<compile_context>
chip_gen: v6e
topology: v6e:2x2x1
jax: 0.10.0
libtpu: 0.0.40
codegen_flags: <defaults>
</compile_context>

<pallas_src>
import jax
import jax.numpy as jnp
from jax import lax
from jax.experimental import pallas as pl
from jax.experimental.pallas import tpu as pltpu


# ----------------------------------------------------------------------------
# Stage 1 kernel: fused 1x1x1 convs + 3x3x3 max-pool + branch3 1x1x1 conv
# ----------------------------------------------------------------------------

def _stage1_kernel(xm_ref, xc_ref, xp_ref, wcat_ref, bcat_ref,
                   w3_ref, b3bias_ref, inter_ref, b0b3_ref, pad_ref):
    d = pl.program_id(1)
    nd = pl.num_programs(1)
    H, W, C = xc_ref.shape            # (H, W, 192)
    HW = H * W

    xc = xc_ref[...]                                              # f32

    # ---- fused 1x1x1 convs: columns = [b1a(96) | b2a(16) | 0(16) | b0(64)] ----
    lhs = xc.reshape(HW, C).astype(jnp.bfloat16)
    ycat = jnp.dot(lhs, wcat_ref[...], preferred_element_type=jnp.float32)
    ycat = jnp.maximum(ycat + bcat_ref[...], 0.0)                 # (HW, 192) f32

    # intermediate for the 3x3x3 convs (bf16: it is a matmul operand downstream)
    inter_ref[...] = ycat[:, 0:128].astype(jnp.bfloat16).reshape(H, W, 128)
    # branch0 result goes straight to the side buffer (final values)
    b0b3_ref[:, 0:64] = ycat[:, 128:192]

    # ---- 3x3x3 max-pool, stride 1, pad 1 ----
    # depth window: three slabs (clamped index maps); mask out-of-range slabs
    dvec = jnp.full((H, W, C), d, jnp.int32)
    xm = jnp.where(dvec > 0, xm_ref[...], -jnp.inf)
    xp = jnp.where(dvec < nd - 1, xp_ref[...], -jnp.inf)
    dmax = jnp.maximum(jnp.maximum(xm, xp), xc)                   # (H, W, 192)

    # H/W window via a (-inf)-padded VMEM scratch (no padded HBM copy)
    pad_ref[...] = jnp.full((H + 2, W + 2, C), -jnp.inf, jnp.float32)
    pad_ref[1:H + 1, 1:W + 1, :] = dmax
    pooled = dmax
    for a in range(3):
        for b in range(3):
            if a == 1 and b == 1:
                continue
            pooled = jnp.maximum(pooled, pad_ref[a:a + H, b:b + W, :])

    # ---- branch3 1x1x1 conv on the pooled slab ----
    y3 = jnp.dot(pooled.reshape(HW, C).astype(jnp.bfloat16), w3_ref[...],
                 preferred_element_type=jnp.float32)
    b0b3_ref[:, 64:96] = jnp.maximum(y3 + b3bias_ref[...], 0.0)


# ----------------------------------------------------------------------------
# Stage 2 kernel: fused 3x3x3 convs (branch1 + branch2) + final assembly
# ----------------------------------------------------------------------------

def _stage2_kernel(im_ref, ic_ref, ip_ref, b0b3_ref, w2_ref, b2bias_ref,
                   out_ref, pad_ref):
    d = pl.program_id(1)
    nd = pl.num_programs(1)
    H, W, C = ic_ref.shape            # (H, W, 128)
    HW = H * W
    Cout = w2_ref.shape[2]            # 160 = 128 (b1) + 32 (b2)

    # zero-padded (3, H+2, W+2, 128) scratch holding depths d-1, d, d+1
    pad_ref[...] = jnp.zeros((3, H + 2, W + 2, C), jnp.float32)
    dvec = jnp.full((H, W, C), d, jnp.int32)
    pad_ref[0, 1:H + 1, 1:W + 1, :] = jnp.where(
        dvec > 0, im_ref[...].astype(jnp.float32), 0.0)
    pad_ref[1, 1:H + 1, 1:W + 1, :] = ic_ref[...].astype(jnp.float32)
    pad_ref[2, 1:H + 1, 1:W + 1, :] = jnp.where(
        dvec < nd - 1, ip_ref[...].astype(jnp.float32), 0.0)

    # 27 shifted matmuls against the block-diagonal weight, f32 accumulation
    acc = jnp.zeros((HW, Cout), jnp.float32)
    for kd in range(3):
        for kh in range(3):
            for kw in range(3):
                tap = kd * 9 + kh * 3 + kw
                slab = pad_ref[kd, kh:kh + H, kw:kw + W, :]       # (H, W, 128)
                lhs = slab.reshape(HW, C).astype(jnp.bfloat16)
                acc = acc + jnp.dot(lhs, w2_ref[tap],
                                    preferred_element_type=jnp.float32)

    y = jnp.maximum(acc + b2bias_ref[...], 0.0)                   # (HW, 160)

    # assemble the final 256-wide channel layout [b0 | b1 | b2 | b3] lane-dense
    out_ref[:, 0:64] = b0b3_ref[:, 0:64]
    out_ref[:, 64:224] = y
    out_ref[:, 224:256] = b0b3_ref[:, 64:96]


# ----------------------------------------------------------------------------
# Forward pass
# ----------------------------------------------------------------------------

def mixed_3b_forward(x_ncdhw, params):
    N, C, D, H, W = x_ncdhw.shape
    assert C == 192
    HW = H * W
    x = jnp.transpose(x_ncdhw, (0, 2, 3, 4, 1))                   # NDHWC, f32

    # clamped depth-halo index maps (boundary masking happens in-kernel)
    dm1 = lambda n, d: (n, jnp.maximum(d - 1, 0), 0, 0, 0)
    dc = lambda n, d: (n, d, 0, 0, 0)
    dp1 = lambda n, d: (n, jnp.minimum(d + 1, D - 1), 0, 0, 0)
    const2 = lambda n, d: (0, 0)
    const3 = lambda n, d: (0, 0, 0)

    inter, b0b3 = pl.pallas_call(
        _stage1_kernel,
        out_shape=(jax.ShapeDtypeStruct((N, D, H, W, 128), jnp.bfloat16),
                   jax.ShapeDtypeStruct((N, D, HW, 96), jnp.float32)),
        grid=(N, D),
        in_specs=[
            pl.BlockSpec((None, None, H, W, 192), dm1),
            pl.BlockSpec((None, None, H, W, 192), dc),
            pl.BlockSpec((None, None, H, W, 192), dp1),
            pl.BlockSpec((192, 192), const2),
            pl.BlockSpec((1, 192), const2),
            pl.BlockSpec((192, 32), const2),
            pl.BlockSpec((1, 32), const2),
        ],
        out_specs=[
            pl.BlockSpec((None, None, H, W, 128), lambda n, d: (n, d, 0, 0, 0)),
            pl.BlockSpec((None, None, HW, 96), lambda n, d: (n, d, 0, 0)),
        ],
        scratch_shapes=[pltpu.VMEM((H + 2, W + 2, 192), jnp.float32)],
        compiler_params=pltpu.CompilerParams(
            dimension_semantics=("parallel", "parallel")),
    )(x, x, x, params["wcat"], params["bcat"], params["w3"], params["b3"])

    out = pl.pallas_call(
        _stage2_kernel,
        out_shape=jax.ShapeDtypeStruct((N, D, HW, 256), jnp.float32),
        grid=(N, D),
        in_specs=[
            pl.BlockSpec((None, None, H, W, 128), dm1),
            pl.BlockSpec((None, None, H, W, 128), dc),
            pl.BlockSpec((None, None, H, W, 128), dp1),
            pl.BlockSpec((None, None, HW, 96), lambda n, d: (n, d, 0, 0)),
            pl.BlockSpec((27, 128, 160), const3),
            pl.BlockSpec((1, 160), const2),
        ],
        out_specs=pl.BlockSpec((None, None, HW, 256), lambda n, d: (n, d, 0, 0)),
        scratch_shapes=[pltpu.VMEM((3, H + 2, W + 2, 128), jnp.float32)],
        compiler_params=pltpu.CompilerParams(
            dimension_semantics=("parallel", "parallel")),
    )(inter, inter, inter, b0b3, params["w2"], params["b2"])

    out = out.reshape(N, D, H, W, 256)
    return jnp.transpose(out, (0, 4, 1, 2, 3))                    # NCDHW


# ----------------------------------------------------------------------------
# Parameters (deterministic; PyTorch layouts, BN folded at build time)
# ----------------------------------------------------------------------------

def _bn_fold(key, c, eps=1e-3):
    k1, k2, k3, k4 = jax.random.split(key, 4)
    gamma = jax.random.uniform(k1, (c,), jnp.float32, 0.5, 1.5)
    beta = 0.1 * jax.random.normal(k2, (c,), jnp.float32)
    mean = 0.1 * jax.random.normal(k3, (c,), jnp.float32)
    var = jax.random.uniform(k4, (c,), jnp.float32, 0.5, 1.5)
    scale = gamma / jnp.sqrt(var + eps)
    bias = beta - mean * scale
    return scale, bias


def _rand_w_1x1(key, cin, cout):
    # torch layout (cout, cin, 1, 1, 1) -> (cin, cout)
    w = 0.05 * jax.random.normal(key, (cout, cin, 1, 1, 1), jnp.float32)
    return jnp.transpose(w.reshape(cout, cin), (1, 0))


def _rand_w_3x3(key, cin, cout):
    # torch layout (cout, cin, 3, 3, 3) -> (27, cin, cout), tap order (kd,kh,kw)
    w = 0.05 * jax.random.normal(key, (cout, cin, 3, 3, 3), jnp.float32)
    return jnp.transpose(w, (2, 3, 4, 1, 0)).reshape(27, cin, cout)


def make_mixed_3b_params(key):
    ks = jax.random.split(key, 12)
    w_b0 = _rand_w_1x1(ks[0], 192, 64)
    s0, c0 = _bn_fold(ks[1], 64)
    w_b1a = _rand_w_1x1(ks[2], 192, 96)
    s1a, c1a = _bn_fold(ks[3], 96)
    w_b1b = _rand_w_3x3(ks[4], 96, 128)
    s1b, c1b = _bn_fold(ks[5], 128)
    w_b2a = _rand_w_1x1(ks[6], 192, 16)
    s2a, c2a = _bn_fold(ks[7], 16)
    w_b2b = _rand_w_3x3(ks[8], 16, 32)
    s2b, c2b = _bn_fold(ks[9], 32)
    w_b3 = _rand_w_1x1(ks[10], 192, 32)
    s3, c3 = _bn_fold(ks[11], 32)

    # --- folded per-layer weights (f32) for the reference ---
    f_b0 = w_b0 * s0
    f_b1a = w_b1a * s1a
    f_b1b = w_b1b * s1b
    f_b2a = w_b2a * s2a
    f_b2b = w_b2b * s2b
    f_b3 = w_b3 * s3

    # --- stage 1 fused 1x1 weight: columns [b1a(96) | b2a(16) | 0(16) | b0(64)] ---
    wcat = jnp.zeros((192, 192), jnp.float32)
    wcat = wcat.at[:, 0:96].set(f_b1a)
    wcat = wcat.at[:, 96:112].set(f_b2a)
    wcat = wcat.at[:, 128:192].set(f_b0)
    bcat = jnp.zeros((192,), jnp.float32)
    bcat = bcat.at[0:96].set(c1a).at[96:112].set(c2a).at[128:192].set(c0)

    # --- stage 2 block-diagonal fused 3x3x3 weight (27, 128, 160) ---
    w2 = jnp.zeros((27, 128, 160), jnp.float32)
    w2 = w2.at[:, 0:96, 0:128].set(f_b1b)
    w2 = w2.at[:, 96:112, 128:160].set(f_b2b)
    b2 = jnp.concatenate([c1b, c2b])

    kernel_params = {
        "wcat": wcat.astype(jnp.bfloat16),
        "bcat": bcat.reshape(1, 192),
        "w3": f_b3.astype(jnp.bfloat16),
        "b3": c3.reshape(1, 32),
        "w2": w2.astype(jnp.bfloat16),
        "b2": b2.reshape(1, 160),
    }
    ref_params = {
        "w0": f_b0, "c0": c0,
        "w1a": f_b1a, "c1a": c1a, "w1b": f_b1b, "c1b": c1b,
        "w2a": f_b2a, "c2a": c2a, "w2b": f_b2b, "c2b": c2b,
        "w3": f_b3, "c3": c3,
    }
    return kernel_params, ref_params


# ----------------------------------------------------------------------------
# Pure-JAX f32 reference (same folded parameters) for a sanity check
# ----------------------------------------------------------------------------

def mixed_3b_reference(x, rp):
    def conv1(v, w, b):                       # w: (cin, cout)
        y = jnp.einsum('ncdhw,co->nodhw', v, w) + b[None, :, None, None, None]
        return jnp.maximum(y, 0.0)

    def conv3(v, w27, b):                     # w27: (27, cin, cout)
        ci, co = w27.shape[1], w27.shape[2]
        w = jnp.transpose(w27.reshape(3, 3, 3, ci, co), (4, 3, 0, 1, 2))
        y = lax.conv_general_dilated(
            v, w, (1, 1, 1), ((1, 1), (1, 1), (1, 1)),
            dimension_numbers=('NCDHW', 'OIDHW', 'NCDHW'))
        return jnp.maximum(y + b[None, :, None, None, None], 0.0)

    x0 = conv1(x, rp["w0"], rp["c0"])
    x1 = conv3(conv1(x, rp["w1a"], rp["c1a"]), rp["w1b"], rp["c1b"])
    x2 = conv3(conv1(x, rp["w2a"], rp["c2a"]), rp["w2b"], rp["c2b"])
    pooled = lax.reduce_window(
        x, -jnp.inf, lax.max, (1, 1, 3, 3, 3), (1, 1, 1, 1, 1),
        ((0, 0), (0, 0), (1, 1), (1, 1), (1, 1)))
    x3 = conv1(pooled, rp["w3"], rp["c3"])
    return jnp.concatenate([x0, x1, x2, x3], axis=1)


# ----------------------------------------------------------------------------

if __name__ == "__main__":
    key = jax.random.PRNGKey(0)
    kx, kp = jax.random.split(key)

    # Cin is fixed at 192 by Mixed_3b; small spatial volume for the test.
    N, C, D, H, W = 1, 192, 4, 8, 8
    x = jax.random.normal(kx, (N, C, D, H, W), jnp.float32)
    params, ref_params = make_mixed_3b_params(kp)

    fwd = jax.jit(mixed_3b_forward)
    out = jax.block_until_ready(fwd(x, params))

    assert out.shape == (N, 256, D, H, W), out.shape
    assert out.dtype == jnp.float32
    assert bool(jnp.all(jnp.isfinite(out)))
    assert bool(jnp.all(out >= 0.0))          # ReLU outputs

    # sanity check against a pure-JAX f32 reference (kernel uses bf16 operands)
    ref = jax.jit(mixed_3b_reference)(x, ref_params)
    max_err = float(jnp.max(jnp.abs(out - ref)))
    assert max_err < 0.2, f"max abs error too large: {max_err}"

    print("KERNEL_OK")
</pallas_src>

<mosaic_0001>
module attributes {stable_mosaic.version = 11 : i64} {
  func.func @_stage1_kernel(%arg0: i32, %arg1: i32, %arg2: memref<1x1x8x8x192xf32, #tpu.memory_space<vmem>>, %arg3: memref<1x1x8x8x192xf32, #tpu.memory_space<vmem>>, %arg4: memref<1x1x8x8x192xf32, #tpu.memory_space<vmem>>, %arg5: memref<192x192xbf16, #tpu.memory_space<vmem>>, %arg6: memref<1x192xf32, #tpu.memory_space<vmem>>, %arg7: memref<192x32xbf16, #tpu.memory_space<vmem>>, %arg8: memref<1x32xf32, #tpu.memory_space<vmem>>, %arg9: memref<1x1x8x8x128xbf16, #tpu.memory_space<vmem>>, %arg10: memref<1x1x64x96xf32, #tpu.memory_space<vmem>>, %arg11: memref<10x10x192xf32, #tpu.memory_space<vmem>>) attributes {dimension_semantics = [#tpu.dimension_semantics<parallel>, #tpu.dimension_semantics<parallel>], iteration_bounds = array<i64: 1, 4>, scalar_prefetch = 0 : i64, scratch_operands = 1 : i64, tpu.core_type = #tpu.core_type<tc>, window_params = [{transform_indices = @transform_0, window_bounds = array<i64: 1, 1, 8, 8, 192>}, {transform_indices = @transform_1, window_bounds = array<i64: 1, 1, 8, 8, 192>}, {transform_indices = @transform_2, window_bounds = array<i64: 1, 1, 8, 8, 192>}, {pipeline_mode = #tpu.pipeline_mode<synchronous>, transform_indices = @transform_3, window_bounds = array<i64: 192, 192>}, {pipeline_mode = #tpu.pipeline_mode<synchronous>, transform_indices = @transform_4, window_bounds = array<i64: 1, 192>}, {pipeline_mode = #tpu.pipeline_mode<synchronous>, transform_indices = @transform_5, window_bounds = array<i64: 192, 32>}, {pipeline_mode = #tpu.pipeline_mode<synchronous>, transform_indices = @transform_6, window_bounds = array<i64: 1, 32>}, {transform_indices = @transform_7, window_bounds = array<i64: 1, 1, 8, 8, 128>}, {transform_indices = @transform_8, window_bounds = array<i64: 1, 1, 64, 96>}]} {
    %c0 = arith.constant 0 : index
    %c0_0 = arith.constant 0 : index
    %c0_1 = arith.constant 0 : index
    %c0_2 = arith.constant 0 : index
    %c0_3 = arith.constant 0 : index
    %0 = vector.load %arg3[%c0, %c0_0, %c0_1, %c0_2, %c0_3] : memref<1x1x8x8x192xf32, #tpu.memory_space<vmem>>, vector<1x1x8x8x192xf32>
    %1 = vector.shape_cast %0 : vector<1x1x8x8x192xf32> to vector<8x8x192xf32>
    %2 = vector.shape_cast %1 : vector<8x8x192xf32> to vector<64x192xf32>
    %3 = arith.truncf %2 : vector<64x192xf32> to vector<64x192xbf16>
    %c0_4 = arith.constant 0 : index
    %c0_5 = arith.constant 0 : index
    %4 = vector.load %arg5[%c0_4, %c0_5] : memref<192x192xbf16, #tpu.memory_space<vmem>>, vector<192x192xbf16>
    %cst = arith.constant dense<0.000000e+00> : vector<64x192xf32>
    %5 = tpu.matmul %3, %4, %cst {dimension_numbers = #tpu.dot_dimension_numbers<[1], [0], [0], [1], [0, 0, 1, 1], [], []>} : vector<64x192xbf16>, vector<192x192xbf16>, vector<64x192xf32> -> vector<64x192xf32>
    %c0_6 = arith.constant 0 : index
    %c0_7 = arith.constant 0 : index
    %6 = vector.load %arg6[%c0_6, %c0_7] : memref<1x192xf32, #tpu.memory_space<vmem>>, vector<1x192xf32>
    %7 = vector.broadcast %6 : vector<1x192xf32> to vector<64x192xf32>
    %8 = arith.addf %5, %7 : vector<64x192xf32>
    %cst_8 = arith.constant 0.000000e+00 : f32
    %9 = vector.broadcast %cst_8 : f32 to vector<64x192xf32>
    %10 = arith.maximumf %8, %9 : vector<64x192xf32>
    %11 = vector.extract_strided_slice %10 {offsets = [0, 0], sizes = [64, 128], strides = [1, 1]} : vector<64x192xf32> to vector<64x128xf32>
    %12 = arith.truncf %11 : vector<64x128xf32> to vector<64x128xbf16>
    %13 = vector.shape_cast %12 : vector<64x128xbf16> to vector<8x8x128xbf16>
    %c0_9 = arith.constant 0 : index
    %c0_10 = arith.constant 0 : index
    %c0_11 = arith.constant 0 : index
    %c0_12 = arith.constant 0 : index
    %c0_13 = arith.constant 0 : index
    %14 = vector.load %arg9[%c0_9, %c0_10, %c0_11, %c0_12, %c0_13] : memref<1x1x8x8x128xbf16, #tpu.memory_space<vmem>>, vector<1x1x8x8x128xbf16>
    %15 = vector.shape_cast %14 : vector<1x1x8x8x128xbf16> to vector<8x8x128xbf16>
    %16 = vector.shape_cast %13 : vector<8x8x128xbf16> to vector<1x1x8x8x128xbf16>
    tpu.vector_store %arg9[%c0_9, %c0_10, %c0_11, %c0_12, %c0_13], %16 {strides = array<i32>} : memref<1x1x8x8x128xbf16, #tpu.memory_space<vmem>>, vector<1x1x8x8x128xbf16>,
    %17 = vector.extract_strided_slice %10 {offsets = [0, 128], sizes = [64, 64], strides = [1, 1]} : vector<64x192xf32> to vector<64x64xf32>
    %c0_14 = arith.constant 0 : index
    %c0_15 = arith.constant 0 : index
    %c0_16 = arith.constant 0 : index
    %c0_17 = arith.constant 0 : index
    %18 = vector.load %arg10[%c0_14, %c0_15, %c0_16, %c0_17] : memref<1x1x64x96xf32, #tpu.memory_space<vmem>>, vector<1x1x64x64xf32>
    %19 = vector.shape_cast %18 : vector<1x1x64x64xf32> to vector<64x64xf32>
    %20 = vector.shape_cast %17 : vector<64x64xf32> to vector<1x1x64x64xf32>
    tpu.vector_store %arg10[%c0_14, %c0_15, %c0_16, %c0_17], %20 {strides = array<i32>} : memref<1x1x64x96xf32, #tpu.memory_space<vmem>>, vector<1x1x64x64xf32>,
    %21 = vector.broadcast %arg1 : i32 to vector<8x8x192xi32>
    %c0_i32 = arith.constant 0 : i32
    %22 = vector.broadcast %c0_i32 : i32 to vector<8x8x192xi32>
    %23 = arith.cmpi sgt, %21, %22 : vector<8x8x192xi32>
    %c0_18 = arith.constant 0 : index
    %c0_19 = arith.constant 0 : index
    %c0_20 = arith.constant 0 : index
    %c0_21 = arith.constant 0 : index
    %c0_22 = arith.constant 0 : index
    %24 = vector.load %arg2[%c0_18, %c0_19, %c0_20, %c0_21, %c0_22] : memref<1x1x8x8x192xf32, #tpu.memory_space<vmem>>, vector<1x1x8x8x192xf32>
    %25 = vector.shape_cast %24 : vector<1x1x8x8x192xf32> to vector<8x8x192xf32>
    %cst_23 = arith.constant 0xFF800000 : f32
    %26 = vector.broadcast %cst_23 : f32 to vector<8x8x192xf32>
    %27 = arith.select %23, %25, %26 : vector<8x8x192xi1>, vector<8x8x192xf32>
    %c3_i32 = arith.constant 3 : i32
    %28 = vector.broadcast %c3_i32 : i32 to vector<8x8x192xi32>
    %29 = arith.cmpi slt, %21, %28 : vector<8x8x192xi32>
    %c0_24 = arith.constant 0 : index
    %c0_25 = arith.constant 0 : index
    %c0_26 = arith.constant 0 : index
    %c0_27 = arith.constant 0 : index
    %c0_28 = arith.constant 0 : index
    %30 = vector.load %arg4[%c0_24, %c0_25, %c0_26, %c0_27, %c0_28] : memref<1x1x8x8x192xf32, #tpu.memory_space<vmem>>, vector<1x1x8x8x192xf32>
    %31 = vector.shape_cast %30 : vector<1x1x8x8x192xf32> to vector<8x8x192xf32>
    %cst_29 = arith.constant 0xFF800000 : f32
    %32 = vector.broadcast %cst_29 : f32 to vector<8x8x192xf32>
    %33 = arith.select %29, %31, %32 : vector<8x8x192xi1>, vector<8x8x192xf32>
    %34 = arith.maximumf %27, %33 : vector<8x8x192xf32>
    %35 = arith.maximumf %34, %1 : vector<8x8x192xf32>
    %cst_30 = arith.constant 0xFF800000 : f32
    %36 = vector.broadcast %cst_30 : f32 to vector<10x10x192xf32>
    %c0_31 = arith.constant 0 : index
    %c0_32 = arith.constant 0 : index
    %c0_33 = arith.constant 0 : index
    %37 = vector.load %arg11[%c0_31, %c0_32, %c0_33] : memref<10x10x192xf32, #tpu.memory_space<vmem>>, vector<10x10x192xf32>
    tpu.vector_store %arg11[%c0_31, %c0_32, %c0_33], %36 {strides = array<i32>} : memref<10x10x192xf32, #tpu.memory_space<vmem>>, vector<10x10x192xf32>,
    %c1 = arith.constant 1 : index
    %c1_34 = arith.constant 1 : index
    %c0_35 = arith.constant 0 : index
    %38 = vector.load %arg11[%c1, %c1_34, %c0_35] : memref<10x10x192xf32, #tpu.memory_space<vmem>>, vector<8x8x192xf32>
    tpu.vector_store %arg11[%c1, %c1_34, %c0_35], %35 {strides = array<i32>} : memref<10x10x192xf32, #tpu.memory_space<vmem>>, vector<8x8x192xf32>,
    %c0_36 = arith.constant 0 : index
    %c0_37 = arith.constant 0 : index
    %c0_38 = arith.constant 0 : index
    %39 = vector.load %arg11[%c0_36, %c0_37, %c0_38] : memref<10x10x192xf32, #tpu.memory_space<vmem>>, vector<8x8x192xf32>
    %40 = arith.maximumf %35, %39 : vector<8x8x192xf32>
    %c0_39 = arith.constant 0 : index
    %c1_40 = arith.constant 1 : index
    %c0_41 = arith.constant 0 : index
    %41 = vector.load %arg11[%c0_39, %c1_40, %c0_41] : memref<10x10x192xf32, #tpu.memory_space<vmem>>, vector<8x8x192xf32>
    %42 = arith.maximumf %40, %41 : vector<8x8x192xf32>
    %c0_42 = arith.constant 0 : index
    %c2 = arith.constant 2 : index
    %c0_43 = arith.constant 0 : index
    %43 = vector.load %arg11[%c0_42, %c2, %c0_43] : memref<10x10x192xf32, #tpu.memory_space<vmem>>, vector<8x8x192xf32>
    %44 = arith.maximumf %42, %43 : vector<8x8x192xf32>
    %c1_44 = arith.constant 1 : index
    %c0_45 = arith.constant 0 : index
    %c0_46 = arith.constant 0 : index
    %45 = vector.load %arg11[%c1_44, %c0_45, %c0_46] : memref<10x10x192xf32, #tpu.memory_space<vmem>>, vector<8x8x192xf32>
    %46 = arith.maximumf %44, %45 : vector<8x8x192xf32>
    %c1_47 = arith.constant 1 : index
    %c2_48 = arith.constant 2 : index
    %c0_49 = arith.constant 0 : index
    %47 = vector.load %arg11[%c1_47, %c2_48, %c0_49] : memref<10x10x192xf32, #tpu.memory_space<vmem>>, vector<8x8x192xf32>
    %48 = arith.maximumf %46, %47 : vector<8x8x192xf32>
    %c2_50 = arith.constant 2 : index
    %c0_51 = arith.constant 0 : index
    %c0_52 = arith.constant 0 : index
    %49 = vector.load %arg11[%c2_50, %c0_51, %c0_52] : memref<10x10x192xf32, #tpu.memory_space<vmem>>, vector<8x8x192xf32>
    %50 = arith.maximumf %48, %49 : vector<8x8x192xf32>
    %c2_53 = arith.constant 2 : index
    %c1_54 = arith.constant 1 : index
    %c0_55 = arith.constant 0 : index
    %51 = vector.load %arg11[%c2_53, %c1_54, %c0_55] : memref<10x10x192xf32, #tpu.memory_space<vmem>>, vector<8x8x192xf32>
    %52 = arith.maximumf %50, %51 : vector<8x8x192xf32>
    %c2_56 = arith.constant 2 : index
    %c2_57 = arith.constant 2 : index
    %c0_58 = arith.constant 0 : index
    %53 = vector.load %arg11[%c2_56, %c2_57, %c0_58] : memref<10x10x192xf32, #tpu.memory_space<vmem>>, vector<8x8x192xf32>
    %54 = arith.maximumf %52, %53 : vector<8x8x192xf32>
    %55 = vector.shape_cast %54 : vector<8x8x192xf32> to vector<64x192xf32>
    %56 = arith.truncf %55 : vector<64x192xf32> to vector<64x192xbf16>
    %c0_59 = arith.constant 0 : index
    %c0_60 = arith.constant 0 : index
    %57 = vector.load %arg7[%c0_59, %c0_60] : memref<192x32xbf16, #tpu.memory_space<vmem>>, vector<192x32xbf16>
    %cst_61 = arith.constant dense<0.000000e+00> : vector<64x32xf32>
    %58 = tpu.matmul %56, %57, %cst_61 {dimension_numbers = #tpu.dot_dimension_numbers<[1], [0], [0], [1], [0, 0, 1, 1], [], []>} : vector<64x192xbf16>, vector<192x32xbf16>, vector<64x32xf32> -> vector<64x32xf32>
    %c0_62 = arith.constant 0 : index
    %c0_63 = arith.constant 0 : index
    %59 = vector.load %arg8[%c0_62, %c0_63] : memref<1x32xf32, #tpu.memory_space<vmem>>, vector<1x32xf32>
    %60 = vector.broadcast %59 : vector<1x32xf32> to vector<64x32xf32>
    %61 = arith.addf %58, %60 : vector<64x32xf32>
    %cst_64 = arith.constant 0.000000e+00 : f32
    %62 = vector.broadcast %cst_64 : f32 to vector<64x32xf32>
    %63 = arith.maximumf %61, %62 : vector<64x32xf32>
    %c0_65 = arith.constant 0 : index
    %c0_66 = arith.constant 0 : index
    %c0_67 = arith.constant 0 : index
    %c64 = arith.constant 64 : index
    %64 = vector.load %arg10[%c0_65, %c0_66, %c0_67, %c64] : memref<1x1x64x96xf32, #tpu.memory_space<vmem>>, vector<1x1x64x32xf32>
    %65 = vector.shape_cast %64 : vector<1x1x64x32xf32> to vector<64x32xf32>
    %66 = vector.shape_cast %63 : vector<64x32xf32> to vector<1x1x64x32xf32>
    tpu.vector_store %arg10[%c0_65, %c0_66, %c0_67, %c64], %66 {strides = array<i32>} : memref<1x1x64x96xf32, #tpu.memory_space<vmem>>, vector<1x1x64x32xf32>,
    return
  }
  func.func @transform_0(%arg0: i32, %arg1: i32) -> (i32, i32, i32, i32, i32) {
    %c1_i32 = arith.constant 1 : i32
    %0 = arith.subi %arg1, %c1_i32 : i32
    %c0_i32 = arith.constant 0 : i32
    %1 = arith.maxsi %0, %c0_i32 : i32
    %c0_i32_0 = arith.constant 0 : i32
    %c0_i32_1 = arith.constant 0 : i32
    %c0_i32_2 = arith.constant 0 : i32
    %c0_i32_3 = arith.constant 0 : i32
    return %arg0, %1, %c0_i32_0, %c0_i32_1, %c0_i32_2 : i32, i32, i32, i32, i32
  }
  func.func @transform_1(%arg0: i32, %arg1: i32) -> (i32, i32, i32, i32, i32) {
    %c0_i32 = arith.constant 0 : i32
    %c0_i32_0 = arith.constant 0 : i32
    %c0_i32_1 = arith.constant 0 : i32
    %c0_i32_2 = arith.constant 0 : i32
    return %arg0, %arg1, %c0_i32, %c0_i32_0, %c0_i32_1 : i32, i32, i32, i32, i32
  }
  func.func @transform_2(%arg0: i32, %arg1: i32) -> (i32, i32, i32, i32, i32) {
    %c1_i32 = arith.constant 1 : i32
    %0 = arith.addi %arg1, %c1_i32 : i32
    %c3_i32 = arith.constant 3 : i32
    %1 = arith.minsi %0, %c3_i32 : i32
    %c0_i32 = arith.constant 0 : i32
    %c0_i32_0 = arith.constant 0 : i32
    %c0_i32_1 = arith.constant 0 : i32
    %c0_i32_2 = arith.constant 0 : i32
    return %arg0, %1, %c0_i32, %c0_i32_0, %c0_i32_1 : i32, i32, i32, i32, i32
  }
  func.func @transform_3(%arg0: i32, %arg1: i32) -> (i32, i32) {
    %c0_i32 = arith.constant 0 : i32
    %c0_i32_0 = arith.constant 0 : i32
    %c0_i32_1 = arith.constant 0 : i32
    return %c0_i32, %c0_i32_0 : i32, i32
  }
  func.func @transform_4(%arg0: i32, %arg1: i32) -> (i32, i32) {
    %c0_i32 = arith.constant 0 : i32
    %c0_i32_0 = arith.constant 0 : i32
    %c0_i32_1 = arith.constant 0 : i32
    return %c0_i32, %c0_i32_0 : i32, i32
  }
  func.func @transform_5(%arg0: i32, %arg1: i32) -> (i32, i32) {
    %c0_i32 = arith.constant 0 : i32
    %c0_i32_0 = arith.constant 0 : i32
    %c0_i32_1 = arith.constant 0 : i32
    return %c0_i32, %c0_i32_0 : i32, i32
  }
  func.func @transform_6(%arg0: i32, %arg1: i32) -> (i32, i32) {
    %c0_i32 = arith.constant 0 : i32
    %c0_i32_0 = arith.constant 0 : i32
    %c0_i32_1 = arith.constant 0 : i32
    return %c0_i32, %c0_i32_0 : i32, i32
  }
  func.func @transform_7(%arg0: i32, %arg1: i32) -> (i32, i32, i32, i32, i32) {
    %c0_i32 = arith.constant 0 : i32
    %c0_i32_0 = arith.constant 0 : i32
    %c0_i32_1 = arith.constant 0 : i32
    %c0_i32_2 = arith.constant 0 : i32
    return %arg0, %arg1, %c0_i32, %c0_i32_0, %c0_i32_1 : i32, i32, i32, i32, i32
  }
  func.func @transform_8(%arg0: i32, %arg1: i32) -> (i32, i32, i32, i32) {
    %c0_i32 = arith.constant 0 : i32
    %c0_i32_0 = arith.constant 0 : i32
    %c0_i32_1 = arith.constant 0 : i32
    return %arg0, %arg1, %c0_i32, %c0_i32_0 : i32, i32, i32, i32
  }
}

module attributes {stable_mosaic.version = 11 : i64} {
  func.func @_stage2_kernel(%arg0: i32, %arg1: i32, %arg2: memref<1x1x8x8x128xbf16, #tpu.memory_space<vmem>>, %arg3: memref<1x1x8x8x128xbf16, #tpu.memory_space<vmem>>, %arg4: memref<1x1x8x8x128xbf16, #tpu.memory_space<vmem>>, %arg5: memref<1x1x64x96xf32, #tpu.memory_space<vmem>>, %arg6: memref<27x128x160xbf16, #tpu.memory_space<vmem>>, %arg7: memref<1x160xf32, #tpu.memory_space<vmem>>, %arg8: memref<1x1x64x256xf32, #tpu.memory_space<vmem>>, %arg9: memref<3x10x10x128xf32, #tpu.memory_space<vmem>>) attributes {dimension_semantics = [#tpu.dimension_semantics<parallel>, #tpu.dimension_semantics<parallel>], iteration_bounds = array<i64: 1, 4>, scalar_prefetch = 0 : i64, scratch_operands = 1 : i64, tpu.core_type = #tpu.core_type<tc>, window_params = [{transform_indices = @transform_0, window_bounds = array<i64: 1, 1, 8, 8, 128>}, {transform_indices = @transform_1, window_bounds = array<i64: 1, 1, 8, 8, 128>}, {transform_indices = @transform_2, window_bounds = array<i64: 1, 1, 8, 8, 128>}, {transform_indices = @transform_3, window_bounds = array<i64: 1, 1, 64, 96>}, {pipeline_mode = #tpu.pipeline_mode<synchronous>, transform_indices = @transform_4, window_bounds = array<i64: 27, 128, 160>}, {pipeline_mode = #tpu.pipeline_mode<synchronous>, transform_indices = @transform_5, window_bounds = array<i64: 1, 160>}, {transform_indices = @transform_6, window_bounds = array<i64: 1, 1, 64, 256>}]} {
    %cst = arith.constant 0.000000e+00 : f32
    %0 = vector.broadcast %cst : f32 to vector<3x10x10x128xf32>
    %c0 = arith.constant 0 : index
    %c0_0 = arith.constant 0 : index
    %c0_1 = arith.constant 0 : index
    %c0_2 = arith.constant 0 : index
    %1 = vector.load %arg9[%c0, %c0_0, %c0_1, %c0_2] : memref<3x10x10x128xf32, #tpu.memory_space<vmem>>, vector<3x10x10x128xf32>
    tpu.vector_store %arg9[%c0, %c0_0, %c0_1, %c0_2], %0 {strides = array<i32>} : memref<3x10x10x128xf32, #tpu.memory_space<vmem>>, vector<3x10x10x128xf32>,
    %2 = vector.broadcast %arg1 : i32 to vector<8x8x128xi32>
    %c0_i32 = arith.constant 0 : i32
    %3 = vector.broadcast %c0_i32 : i32 to vector<8x8x128xi32>
    %4 = arith.cmpi sgt, %2, %3 : vector<8x8x128xi32>
    %c0_3 = arith.constant 0 : index
    %c0_4 = arith.constant 0 : index
    %c0_5 = arith.constant 0 : index
    %c0_6 = arith.constant 0 : index
    %c0_7 = arith.constant 0 : index
    %5 = vector.load %arg2[%c0_3, %c0_4, %c0_5, %c0_6, %c0_7] : memref<1x1x8x8x128xbf16, #tpu.memory_space<vmem>>, vector<1x1x8x8x128xbf16>
    %6 = vector.shape_cast %5 : vector<1x1x8x8x128xbf16> to vector<8x8x128xbf16>
    %7 = arith.extf %6 : vector<8x8x128xbf16> to vector<8x8x128xf32>
    %cst_8 = arith.constant 0.000000e+00 : f32
    %8 = vector.broadcast %cst_8 : f32 to vector<8x8x128xf32>
    %9 = arith.select %4, %7, %8 : vector<8x8x128xi1>, vector<8x8x128xf32>
    %c0_9 = arith.constant 0 : index
    %c1 = arith.constant 1 : index
    %c1_10 = arith.constant 1 : index
    %c0_11 = arith.constant 0 : index
    %10 = vector.load %arg9[%c0_9, %c1, %c1_10, %c0_11] : memref<3x10x10x128xf32, #tpu.memory_space<vmem>>, vector<1x8x8x128xf32>
    %11 = vector.shape_cast %10 : vector<1x8x8x128xf32> to vector<8x8x128xf32>
    %12 = vector.shape_cast %9 : vector<8x8x128xf32> to vector<1x8x8x128xf32>
    tpu.vector_store %arg9[%c0_9, %c1, %c1_10, %c0_11], %12 {strides = array<i32>} : memref<3x10x10x128xf32, #tpu.memory_space<vmem>>, vector<1x8x8x128xf32>,
    %c0_12 = arith.constant 0 : index
    %c0_13 = arith.constant 0 : index
    %c0_14 = arith.constant 0 : index
    %c0_15 = arith.constant 0 : index
    %c0_16 = arith.constant 0 : index
    %13 = vector.load %arg3[%c0_12, %c0_13, %c0_14, %c0_15, %c0_16] : memref<1x1x8x8x128xbf16, #tpu.memory_space<vmem>>, vector<1x1x8x8x128xbf16>
    %14 = vector.shape_cast %13 : vector<1x1x8x8x128xbf16> to vector<8x8x128xbf16>
    %15 = arith.extf %14 : vector<8x8x128xbf16> to vector<8x8x128xf32>
    %c1_17 = arith.constant 1 : index
    %c1_18 = arith.constant 1 : index
    %c1_19 = arith.constant 1 : index
    %c0_20 = arith.constant 0 : index
    %16 = vector.load %arg9[%c1_17, %c1_18, %c1_19, %c0_20] : memref<3x10x10x128xf32, #tpu.memory_space<vmem>>, vector<1x8x8x128xf32>
    %17 = vector.shape_cast %16 : vector<1x8x8x128xf32> to vector<8x8x128xf32>
    %18 = vector.shape_cast %15 : vector<8x8x128xf32> to vector<1x8x8x128xf32>
    tpu.vector_store %arg9[%c1_17, %c1_18, %c1_19, %c0_20], %18 {strides = array<i32>} : memref<3x10x10x128xf32, #tpu.memory_space<vmem>>, vector<1x8x8x128xf32>,
    %c3_i32 = arith.constant 3 : i32
    %19 = vector.broadcast %c3_i32 : i32 to vector<8x8x128xi32>
    %20 = arith.cmpi slt, %2, %19 : vector<8x8x128xi32>
    %c0_21 = arith.constant 0 : index
    %c0_22 = arith.constant 0 : index
    %c0_23 = arith.constant 0 : index
    %c0_24 = arith.constant 0 : index
    %c0_25 = arith.constant 0 : index
    %21 = vector.load %arg4[%c0_21, %c0_22, %c0_23, %c0_24, %c0_25] : memref<1x1x8x8x128xbf16, #tpu.memory_space<vmem>>, vector<1x1x8x8x128xbf16>
    %22 = vector.shape_cast %21 : vector<1x1x8x8x128xbf16> to vector<8x8x128xbf16>
    %23 = arith.extf %22 : vector<8x8x128xbf16> to vector<8x8x128xf32>
    %cst_26 = arith.constant 0.000000e+00 : f32
    %24 = vector.broadcast %cst_26 : f32 to vector<8x8x128xf32>
    %25 = arith.select %20, %23, %24 : vector<8x8x128xi1>, vector<8x8x128xf32>
    %c2 = arith.constant 2 : index
    %c1_27 = arith.constant 1 : index
    %c1_28 = arith.constant 1 : index
    %c0_29 = arith.constant 0 : index
    %26 = vector.load %arg9[%c2, %c1_27, %c1_28, %c0_29] : memref<3x10x10x128xf32, #tpu.memory_space<vmem>>, vector<1x8x8x128xf32>
    %27 = vector.shape_cast %26 : vector<1x8x8x128xf32> to vector<8x8x128xf32>
    %28 = vector.shape_cast %25 : vector<8x8x128xf32> to vector<1x8x8x128xf32>
    tpu.vector_store %arg9[%c2, %c1_27, %c1_28, %c0_29], %28 {strides = array<i32>} : memref<3x10x10x128xf32, #tpu.memory_space<vmem>>, vector<1x8x8x128xf32>,
    %cst_30 = arith.constant 0.000000e+00 : f32
    %29 = vector.broadcast %cst_30 : f32 to vector<64x160xf32>
    %c0_31 = arith.constant 0 : index
    %c0_32 = arith.constant 0 : index
    %c0_33 = arith.constant 0 : index
    %c0_34 = arith.constant 0 : index
    %30 = vector.load %arg9[%c0_31, %c0_32, %c0_33, %c0_34] : memref<3x10x10x128xf32, #tpu.memory_space<vmem>>, vector<1x8x8x128xf32>
    %31 = vector.shape_cast %30 : vector<1x8x8x128xf32> to vector<8x8x128xf32>
    %32 = vector.shape_cast %31 : vector<8x8x128xf32> to vector<64x128xf32>
    %33 = arith.truncf %32 : vector<64x128xf32> to vector<64x128xbf16>
    %c0_35 = arith.constant 0 : index
    %c0_36 = arith.constant 0 : index
    %c0_37 = arith.constant 0 : index
    %34 = vector.load %arg6[%c0_35, %c0_36, %c0_37] : memref<27x128x160xbf16, #tpu.memory_space<vmem>>, vector<1x128x160xbf16>
    %35 = vector.shape_cast %34 : vector<1x128x160xbf16> to vector<128x160xbf16>
    %cst_38 = arith.constant dense<0.000000e+00> : vector<64x160xf32>
    %36 = tpu.matmul %33, %35, %cst_38 {dimension_numbers = #tpu.dot_dimension_numbers<[1], [0], [0], [1], [0, 0, 1, 1], [], []>} : vector<64x128xbf16>, vector<128x160xbf16>, vector<64x160xf32> -> vector<64x160xf32>
    %37 = arith.addf %29, %36 : vector<64x160xf32>
    %c0_39 = arith.constant 0 : index
    %c0_40 = arith.constant 0 : index
    %c1_41 = arith.constant 1 : index
    %c0_42 = arith.constant 0 : index
    %38 = vector.load %arg9[%c0_39, %c0_40, %c1_41, %c0_42] : memref<3x10x10x128xf32, #tpu.memory_space<vmem>>, vector<1x8x8x128xf32>
    %39 = vector.shape_cast %38 : vector<1x8x8x128xf32> to vector<8x8x128xf32>
    %40 = vector.shape_cast %39 : vector<8x8x128xf32> to vector<64x128xf32>
    %41 = arith.truncf %40 : vector<64x128xf32> to vector<64x128xbf16>
    %c1_43 = arith.constant 1 : index
    %c0_44 = arith.constant 0 : index
    %c0_45 = arith.constant 0 : index
    %42 = vector.load %arg6[%c1_43, %c0_44, %c0_45] : memref<27x128x160xbf16, #tpu.memory_space<vmem>>, vector<1x128x160xbf16>
    %43 = vector.shape_cast %42 : vector<1x128x160xbf16> to vector<128x160xbf16>
    %cst_46 = arith.constant dense<0.000000e+00> : vector<64x160xf32>
    %44 = tpu.matmul %41, %43, %cst_46 {dimension_numbers = #tpu.dot_dimension_numbers<[1], [0], [0], [1], [0, 0, 1, 1], [], []>} : vector<64x128xbf16>, vector<128x160xbf16>, vector<64x160xf32> -> vector<64x160xf32>
    %45 = arith.addf %37, %44 : vector<64x160xf32>
    %c0_47 = arith.constant 0 : index
    %c0_48 = arith.constant 0 : index
    %c2_49 = arith.constant 2 : index
    %c0_50 = arith.constant 0 : index
    %46 = vector.load %arg9[%c0_47, %c0_48, %c2_49, %c0_50] : memref<3x10x10x128xf32, #tpu.memory_space<vmem>>, vector<1x8x8x128xf32>
    %47 = vector.shape_cast %46 : vector<1x8x8x128xf32> to vector<8x8x128xf32>
    %48 = vector.shape_cast %47 : vector<8x8x128xf32> to vector<64x128xf32>
    %49 = arith.truncf %48 : vector<64x128xf32> to vector<64x128xbf16>
    %c2_51 = arith.constant 2 : index
    %c0_52 = arith.constant 0 : index
    %c0_53 = arith.constant 0 : index
    %50 = vector.load %arg6[%c2_51, %c0_52, %c0_53] : memref<27x128x160xbf16, #tpu.memory_space<vmem>>, vector<1x128x160xbf16>
    %51 = vector.shape_cast %50 : vector<1x128x160xbf16> to vector<128x160xbf16>
    %cst_54 = arith.constant dense<0.000000e+00> : vector<64x160xf32>
    %52 = tpu.matmul %49, %51, %cst_54 {dimension_numbers = #tpu.dot_dimension_numbers<[1], [0], [0], [1], [0, 0, 1, 1], [], []>} : vector<64x128xbf16>, vector<128x160xbf16>, vector<64x160xf32> -> vector<64x160xf32>
    %53 = arith.addf %45, %52 : vector<64x160xf32>
    %c0_55 = arith.constant 0 : index
    %c1_56 = arith.constant 1 : index
    %c0_57 = arith.constant 0 : index
    %c0_58 = arith.constant 0 : index
    %54 = vector.load %arg9[%c0_55, %c1_56, %c0_57, %c0_58] : memref<3x10x10x128xf32, #tpu.memory_space<vmem>>, vector<1x8x8x128xf32>
    %55 = vector.shape_cast %54 : vector<1x8x8x128xf32> to vector<8x8x128xf32>
    %56 = vector.shape_cast %55 : vector<8x8x128xf32> to vector<64x128xf32>
    %57 = arith.truncf %56 : vector<64x128xf32> to vector<64x128xbf16>
    %c3 = arith.constant 3 : index
    %c0_59 = arith.constant 0 : index
    %c0_60 = arith.constant 0 : index
    %58 = vector.load %arg6[%c3, %c0_59, %c0_60] : memref<27x128x160xbf16, #tpu.memory_space<vmem>>, vector<1x128x160xbf16>
    %59 = vector.shape_cast %58 : vector<1x128x160xbf16> to vector<128x160xbf16>
    %cst_61 = arith.constant dense<0.000000e+00> : vector<64x160xf32>
    %60 = tpu.matmul %57, %59, %cst_61 {dimension_numbers = #tpu.dot_dimension_numbers<[1], [0], [0], [1], [0, 0, 1, 1], [], []>} : vector<64x128xbf16>, vector<128x160xbf16>, vector<64x160xf32> -> vector<64x160xf32>
    %61 = arith.addf %53, %60 : vector<64x160xf32>
    %c0_62 = arith.constant 0 : index
    %c1_63 = arith.constant 1 : index
    %c1_64 = arith.constant 1 : index
    %c0_65 = arith.constant 0 : index
    %62 = vector.load %arg9[%c0_62, %c1_63, %c1_64, %c0_65] : memref<3x10x10x128xf32, #tpu.memory_space<vmem>>, vector<1x8x8x128xf32>
    %63 = vector.shape_cast %62 : vector<1x8x8x128xf32> to vector<8x8x128xf32>
    %64 = vector.shape_cast %63 : vector<8x8x128xf32> to vector<64x128xf32>
    %65 = arith.truncf %64 : vector<64x128xf32> to vector<64x128xbf16>
    %c4 = arith.constant 4 : index
    %c0_66 = arith.constant 0 : index
    %c0_67 = arith.constant 0 : index
    %66 = vector.load %arg6[%c4, %c0_66, %c0_67] : memref<27x128x160xbf16, #tpu.memory_space<vmem>>, vector<1x128x160xbf16>
    %67 = vector.shape_cast %66 : vector<1x128x160xbf16> to vector<128x160xbf16>
    %cst_68 = arith.constant dense<0.000000e+00> : vector<64x160xf32>
    %68 = tpu.matmul %65, %67, %cst_68 {dimension_numbers = #tpu.dot_dimension_numbers<[1], [0], [0], [1], [0, 0, 1, 1], [], []>} : vector<64x128xbf16>, vector<128x160xbf16>, vector<64x160xf32> -> vector<64x160xf32>
    %69 = arith.addf %61, %68 : vector<64x160xf32>
    %c0_69 = arith.constant 0 : index
    %c1_70 = arith.constant 1 : index
    %c2_71 = arith.constant 2 : index
    %c0_72 = arith.constant 0 : index
    %70 = vector.load %arg9[%c0_69, %c1_70, %c2_71, %c0_72] : memref<3x10x10x128xf32, #tpu.memory_space<vmem>>, vector<1x8x8x128xf32>
    %71 = vector.shape_cast %70 : vector<1x8x8x128xf32> to vector<8x8x128xf32>
    %72 = vector.shape_cast %71 : vector<8x8x128xf32> to vector<64x128xf32>
    %73 = arith.truncf %72 : vector<64x128xf32> to vector<64x128xbf16>
    %c5 = arith.constant 5 : index
    %c0_73 = arith.constant 0 : index
    %c0_74 = arith.constant 0 : index
    %74 = vector.load %arg6[%c5, %c0_73, %c0_74] : memref<27x128x160xbf16, #tpu.memory_space<vmem>>, vector<1x128x160xbf16>
    %75 = vector.shape_cast %74 : vector<1x128x160xbf16> to vector<128x160xbf16>
    %cst_75 = arith.constant dense<0.000000e+00> : vector<64x160xf32>
    %76 = tpu.matmul %73, %75, %cst_75 {dimension_numbers = #tpu.dot_dimension_numbers<[1], [0], [0], [1], [0, 0, 1, 1], [], []>} : vector<64x128xbf16>, vector<128x160xbf16>, vector<64x160xf32> -> vector<64x160xf32>
    %77 = arith.addf %69, %76 : vector<64x160xf32>
    %c0_76 = arith.constant 0 : index
    %c2_77 = arith.constant 2 : index
    %c0_78 = arith.constant 0 : index
    %c0_79 = arith.constant 0 : index
    %78 = vector.load %arg9[%c0_76, %c2_77, %c0_78, %c0_79] : memref<3x10x10x128xf32, #tpu.memory_space<vmem>>, vector<1x8x8x128xf32>
    %79 = vector.shape_cast %78 : vector<1x8x8x128xf32> to vector<8x8x128xf32>
    %80 = vector.shape_cast %79 : vector<8x8x128xf32> to vector<64x128xf32>
    %81 = arith.truncf %80 : vector<64x128xf32> to vector<64x128xbf16>
    %c6 = arith.constant 6 : index
    %c0_80 = arith.constant 0 : index
    %c0_81 = arith.constant 0 : index
    %82 = vector.load %arg6[%c6, %c0_80, %c0_81] : memref<27x128x160xbf16, #tpu.memory_space<vmem>>, vector<1x128x160xbf16>
    %83 = vector.shape_cast %82 : vector<1x128x160xbf16> to vector<128x160xbf16>
    %cst_82 = arith.constant dense<0.000000e+00> : vector<64x160xf32>
    %84 = tpu.matmul %81, %83, %cst_82 {dimension_numbers = #tpu.dot_dimension_numbers<[1], [0], [0], [1], [0, 0, 1, 1], [], []>} : vector<64x128xbf16>, vector<128x160xbf16>, vector<64x160xf32> -> vector<64x160xf32>
    %85 = arith.addf %77, %84 : vector<64x160xf32>
    %c0_83 = arith.constant 0 : index
    %c2_84 = arith.constant 2 : index
    %c1_85 = arith.constant 1 : index
    %c0_86 = arith.constant 0 : index
    %86 = vector.load %arg9[%c0_83, %c2_84, %c1_85, %c0_86] : memref<3x10x10x128xf32, #tpu.memory_space<vmem>>, vector<1x8x8x128xf32>
    %87 = vector.shape_cast %86 : vector<1x8x8x128xf32> to vector<8x8x128xf32>
    %88 = vector.shape_cast %87 : vector<8x8x128xf32> to vector<64x128xf32>
    %89 = arith.truncf %88 : vector<64x128xf32> to vector<64x128xbf16>
    %c7 = arith.constant 7 : index
    %c0_87 = arith.constant 0 : index
    %c0_88 = arith.constant 0 : index
    %90 = vector.load %arg6[%c7, %c0_87, %c0_88] : memref<27x128x160xbf16, #tpu.memory_space<vmem>>, vector<1x128x160xbf16>
    %91 = vector.shape_cast %90 : vector<1x128x160xbf16> to vector<128x160xbf16>
    %cst_89 = arith.constant dense<0.000000e+00> : vector<64x160xf32>
    %92 = tpu.matmul %89, %91, %cst_89 {dimension_numbers = #tpu.dot_dimension_numbers<[1], [0], [0], [1], [0, 0, 1, 1], [], []>} : vector<64x128xbf16>, vector<128x160xbf16>, vector<64x160xf32> -> vector<64x160xf32>
    %93 = arith.addf %85, %92 : vector<64x160xf32>
    %c0_90 = arith.constant 0 : index
    %c2_91 = arith.constant 2 : index
    %c2_92 = arith.constant 2 : index
    %c0_93 = arith.constant 0 : index
    %94 = vector.load %arg9[%c0_90, %c2_91, %c2_92, %c0_93] : memref<3x10x10x128xf32, #tpu.memory_space<vmem>>, vector<1x8x8x128xf32>
    %95 = vector.shape_cast %94 : vector<1x8x8x128xf32> to vector<8x8x128xf32>
    %96 = vector.shape_cast %95 : vector<8x8x128xf32> to vector<64x128xf32>
    %97 = arith.truncf %96 : vector<64x128xf32> to vector<64x128xbf16>
    %c8 = arith.constant 8 : index
    %c0_94 = arith.constant 0 : index
    %c0_95 = arith.constant 0 : index
    %98 = vector.load %arg6[%c8, %c0_94, %c0_95] : memref<27x128x160xbf16, #tpu.memory_space<vmem>>, vector<1x128x160xbf16>
    %99 = vector.shape_cast %98 : vector<1x128x160xbf16> to vector<128x160xbf16>
    %cst_96 = arith.constant dense<0.000000e+00> : vector<64x160xf32>
    %100 = tpu.matmul %97, %99, %cst_96 {dimension_numbers = #tpu.dot_dimension_numbers<[1], [0], [0], [1], [0, 0, 1, 1], [], []>} : vector<64x128xbf16>, vector<128x160xbf16>, vector<64x160xf32> -> vector<64x160xf32>
    %101 = arith.addf %93, %100 : vector<64x160xf32>
    %c1_97 = arith.constant 1 : index
    %c0_98 = arith.constant 0 : index
    %c0_99 = arith.constant 0 : index
    %c0_100 = arith.constant 0 : index
    %102 = vector.load %arg9[%c1_97, %c0_98, %c0_99, %c0_100] : memref<3x10x10x128xf32, #tpu.memory_space<vmem>>, vector<1x8x8x128xf32>
    %103 = vector.shape_cast %102 : vector<1x8x8x128xf32> to vector<8x8x128xf32>
    %104 = vector.shape_cast %103 : vector<8x8x128xf32> to vector<64x128xf32>
    %105 = arith.truncf %104 : vector<64x128xf32> to vector<64x128xbf16>
    %c9 = arith.constant 9 : index
    %c0_101 = arith.constant 0 : index
    %c0_102 = arith.constant 0 : index
    %106 = vector.load %arg6[%c9, %c0_101, %c0_102] : memref<27x128x160xbf16, #tpu.memory_space<vmem>>, vector<1x128x160xbf16>
    %107 = vector.shape_cast %106 : vector<1x128x160xbf16> to vector<128x160xbf16>
    %cst_103 = arith.constant dense<0.000000e+00> : vector<64x160xf32>
    %108 = tpu.matmul %105, %107, %cst_103 {dimension_numbers = #tpu.dot_dimension_numbers<[1], [0], [0], [1], [0, 0, 1, 1], [], []>} : vector<64x128xbf16>, vector<128x160xbf16>, vector<64x160xf32> -> vector<64x160xf32>
    %109 = arith.addf %101, %108 : vector<64x160xf32>
    %c1_104 = arith.constant 1 : index
    %c0_105 = arith.constant 0 : index
    %c1_106 = arith.constant 1 : index
    %c0_107 = arith.constant 0 : index
    %110 = vector.load %arg9[%c1_104, %c0_105, %c1_106, %c0_107] : memref<3x10x10x128xf32, #tpu.memory_space<vmem>>, vector<1x8x8x128xf32>
    %111 = vector.shape_cast %110 : vector<1x8x8x128xf32> to vector<8x8x128xf32>
    %112 = vector.shape_cast %111 : vector<8x8x128xf32> to vector<64x128xf32>
    %113 = arith.truncf %112 : vector<64x128xf32> to vector<64x128xbf16>
    %c10 = arith.constant 10 : index
    %c0_108 = arith.constant 0 : index
    %c0_109 = arith.constant 0 : index
    %114 = vector.load %arg6[%c10, %c0_108, %c0_109] : memref<27x128x160xbf16, #tpu.memory_space<vmem>>, vector<1x128x160xbf16>
    %115 = vector.shape_cast %114 : vector<1x128x160xbf16> to vector<128x160xbf16>
    %cst_110 = arith.constant dense<0.000000e+00> : vector<64x160xf32>
    %116 = tpu.matmul %113, %115, %cst_110 {dimension_numbers = #tpu.dot_dimension_numbers<[1], [0], [0], [1], [0, 0, 1, 1], [], []>} : vector<64x128xbf16>, vector<128x160xbf16>, vector<64x160xf32> -> vector<64x160xf32>
    %117 = arith.addf %109, %116 : vector<64x160xf32>
    %c1_111 = arith.constant 1 : index
    %c0_112 = arith.constant 0 : index
    %c2_113 = arith.constant 2 : index
    %c0_114 = arith.constant 0 : index
    %118 = vector.load %arg9[%c1_111, %c0_112, %c2_113, %c0_114] : memref<3x10x10x128xf32, #tpu.memory_space<vmem>>, vector<1x8x8x128xf32>
    %119 = vector.shape_cast %118 : vector<1x8x8x128xf32> to vector<8x8x128xf32>
    %120 = vector.shape_cast %119 : vector<8x8x128xf32> to vector<64x128xf32>
    %121 = arith.truncf %120 : vector<64x128xf32> to vector<64x128xbf16>
    %c11 = arith.constant 11 : index
    %c0_115 = arith.constant 0 : index
    %c0_116 = arith.constant 0 : index
    %122 = vector.load %arg6[%c11, %c0_115, %c0_116] : memref<27x128x160xbf16, #tpu.memory_space<vmem>>, vector<1x128x160xbf16>
    %123 = vector.shape_cast %122 : vector<1x128x160xbf16> to vector<128x160xbf16>
    %cst_117 = arith.constant dense<0.000000e+00> : vector<64x160xf32>
    %124 = tpu.matmul %121, %123, %cst_117 {dimension_numbers = #tpu.dot_dimension_numbers<[1], [0], [0], [1], [0, 0, 1, 1], [], []>} : vector<64x128xbf16>, vector<128x160xbf16>, vector<64x160xf32> -> vector<64x160xf32>
    %125 = arith.addf %117, %124 : vector<64x160xf32>
    %c1_118 = arith.constant 1 : index
    %c1_119 = arith.constant 1 : index
    %c0_120 = arith.constant 0 : index
    %c0_121 = arith.constant 0 : index
    %126 = vector.load %arg9[%c1_118, %c1_119, %c0_120, %c0_121] : memref<3x10x10x128xf32, #tpu.memory_space<vmem>>, vector<1x8x8x128xf32>
    %127 = vector.shape_cast %126 : vector<1x8x8x128xf32> to vector<8x8x128xf32>
    %128 = vector.shape_cast %127 : vector<8x8x128xf32> to vector<64x128xf32>
    %129 = arith.truncf %128 : vector<64x128xf32> to vector<64x128xbf16>
    %c12 = arith.constant 12 : index
    %c0_122 = arith.constant 0 : index
    %c0_123 = arith.constant 0 : index
    %130 = vector.load %arg6[%c12, %c0_122, %c0_123] : memref<27x128x160xbf16, #tpu.memory_space<vmem>>, vector<1x128x160xbf16>
    %131 = vector.shape_cast %130 : vector<1x128x160xbf16> to vector<128x160xbf16>
    %cst_124 = arith.constant dense<0.000000e+00> : vector<64x160xf32>
    %132 = tpu.matmul %129, %131, %cst_124 {dimension_numbers = #tpu.dot_dimension_numbers<[1], [0], [0], [1], [0, 0, 1, 1], [], []>} : vector<64x128xbf16>, vector<128x160xbf16>, vector<64x160xf32> -> vector<64x160xf32>
    %133 = arith.addf %125, %132 : vector<64x160xf32>
    %c1_125 = arith.constant 1 : index
    %c1_126 = arith.constant 1 : index
    %c1_127 = arith.constant 1 : index
    %c0_128 = arith.constant 0 : index
    %134 = vector.load %arg9[%c1_125, %c1_126, %c1_127, %c0_128] : memref<3x10x10x128xf32, #tpu.memory_space<vmem>>, vector<1x8x8x128xf32>
    %135 = vector.shape_cast %134 : vector<1x8x8x128xf32> to vector<8x8x128xf32>
    %136 = vector.shape_cast %135 : vector<8x8x128xf32> to vector<64x128xf32>
    %137 = arith.truncf %136 : vector<64x128xf32> to vector<64x128xbf16>
    %c13 = arith.constant 13 : index
    %c0_129 = arith.constant 0 : index
    %c0_130 = arith.constant 0 : index
    %138 = vector.load %arg6[%c13, %c0_129, %c0_130] : memref<27x128x160xbf16, #tpu.memory_space<vmem>>, vector<1x128x160xbf16>
    %139 = vector.shape_cast %138 : vector<1x128x160xbf16> to vector<128x160xbf16>
    %cst_131 = arith.constant dense<0.000000e+00> : vector<64x160xf32>
    %140 = tpu.matmul %137, %139, %cst_131 {dimension_numbers = #tpu.dot_dimension_numbers<[1], [0], [0], [1], [0, 0, 1, 1], [], []>} : vector<64x128xbf16>, vector<128x160xbf16>, vector<64x160xf32> -> vector<64x160xf32>
    %141 = arith.addf %133, %140 : vector<64x160xf32>
    %c1_132 = arith.constant 1 : index
    %c1_133 = arith.constant 1 : index
    %c2_134 = arith.constant 2 : index
    %c0_135 = arith.constant 0 : index
    %142 = vector.load %arg9[%c1_132, %c1_133, %c2_134, %c0_135] : memref<3x10x10x128xf32, #tpu.memory_space<vmem>>, vector<1x8x8x128xf32>
    %143 = vector.shape_cast %142 : vector<1x8x8x128xf32> to vector<8x8x128xf32>
    %144 = vector.shape_cast %143 : vector<8x8x128xf32> to vector<64x128xf32>
    %145 = arith.truncf %144 : vector<64x128xf32> to vector<64x128xbf16>
    %c14 = arith.constant 14 : index
    %c0_136 = arith.constant 0 : index
    %c0_137 = arith.constant 0 : index
    %146 = vector.load %arg6[%c14, %c0_136, %c0_137] : memref<27x128x160xbf16, #tpu.memory_space<vmem>>, vector<1x128x160xbf16>
    %147 = vector.shape_cast %146 : vector<1x128x160xbf16> to vector<128x160xbf16>
    %cst_138 = arith.constant dense<0.000000e+00> : vector<64x160xf32>
    %148 = tpu.matmul %145, %147, %cst_138 {dimension_numbers = #tpu.dot_dimension_numbers<[1], [0], [0], [1], [0, 0, 1, 1], [], []>} : vector<64x128xbf16>, vector<128x160xbf16>, vector<64x160xf32> -> vector<64x160xf32>
    %149 = arith.addf %141, %148 : vector<64x160xf32>
    %c1_139 = arith.constant 1 : index
    %c2_140 = arith.constant 2 : index
    %c0_141 = arith.constant 0 : index
    %c0_142 = arith.constant 0 : index
    %150 = vector.load %arg9[%c1_139, %c2_140, %c0_141, %c0_142] : memref<3x10x10x128xf32, #tpu.memory_space<vmem>>, vector<1x8x8x128xf32>
    %151 = vector.shape_cast %150 : vector<1x8x8x128xf32> to vector<8x8x128xf32>
    %152 = vector.shape_cast %151 : vector<8x8x128xf32> to vector<64x128xf32>
    %153 = arith.truncf %152 : vector<64x128xf32> to vector<64x128xbf16>
    %c15 = arith.constant 15 : index
    %c0_143 = arith.constant 0 : index
    %c0_144 = arith.constant 0 : index
    %154 = vector.load %arg6[%c15, %c0_143, %c0_144] : memref<27x128x160xbf16, #tpu.memory_space<vmem>>, vector<1x128x160xbf16>
    %155 = vector.shape_cast %154 : vector<1x128x160xbf16> to vector<128x160xbf16>
    %cst_145 = arith.constant dense<0.000000e+00> : vector<64x160xf32>
    %156 = tpu.matmul %153, %155, %cst_145 {dimension_numbers = #tpu.dot_dimension_numbers<[1], [0], [0], [1], [0, 0, 1, 1], [], []>} : vector<64x128xbf16>, vector<128x160xbf16>, vector<64x160xf32> -> vector<64x160xf32>
    %157 = arith.addf %149, %156 : vector<64x160xf32>
    %c1_146 = arith.constant 1 : index
    %c2_147 = arith.constant 2 : index
    %c1_148 = arith.constant 1 : index
    %c0_149 = arith.constant 0 : index
    %158 = vector.load %arg9[%c1_146, %c2_147, %c1_148, %c0_149] : memref<3x10x10x128xf32, #tpu.memory_space<vmem>>, vector<1x8x8x128xf32>
    %159 = vector.shape_cast %158 : vector<1x8x8x128xf32> to vector<8x8x128xf32>
    %160 = vector.shape_cast %159 : vector<8x8x128xf32> to vector<64x128xf32>
    %161 = arith.truncf %160 : vector<64x128xf32> to vector<64x128xbf16>
    %c16 = arith.constant 16 : index
    %c0_150 = arith.constant 0 : index
    %c0_151 = arith.constant 0 : index
    %162 = vector.load %arg6[%c16, %c0_150, %c0_151] : memref<27x128x160xbf16, #tpu.memory_space<vmem>>, vector<1x128x160xbf16>
    %163 = vector.shape_cast %162 : vector<1x128x160xbf16> to vector<128x160xbf16>
    %cst_152 = arith.constant dense<0.000000e+00> : vector<64x160xf32>
    %164 = tpu.matmul %161, %163, %cst_152 {dimension_numbers = #tpu.dot_dimension_numbers<[1], [0], [0], [1], [0, 0, 1, 1], [], []>} : vector<64x128xbf16>, vector<128x160xbf16>, vector<64x160xf32> -> vector<64x160xf32>
    %165 = arith.addf %157, %164 : vector<64x160xf32>
    %c1_153 = arith.constant 1 : index
    %c2_154 = arith.constant 2 : index
    %c2_155 = arith.constant 2 : index
    %c0_156 = arith.constant 0 : index
    %166 = vector.load %arg9[%c1_153, %c2_154, %c2_155, %c0_156] : memref<3x10x10x128xf32, #tpu.memory_space<vmem>>, vector<1x8x8x128xf32>
    %167 = vector.shape_cast %166 : vector<1x8x8x128xf32> to vector<8x8x128xf32>
    %168 = vector.shape_cast %167 : vector<8x8x128xf32> to vector<64x128xf32>
    %169 = arith.truncf %168 : vector<64x128xf32> to vector<64x128xbf16>
    %c17 = arith.constant 17 : index
    %c0_157 = arith.constant 0 : index
    %c0_158 = arith.constant 0 : index
    %170 = vector.load %arg6[%c17, %c0_157, %c0_158] : memref<27x128x160xbf16, #tpu.memory_space<vmem>>, vector<1x128x160xbf16>
    %171 = vector.shape_cast %170 : vector<1x128x160xbf16> to vector<128x160xbf16>
    %cst_159 = arith.constant dense<0.000000e+00> : vector<64x160xf32>
    %172 = tpu.matmul %169, %171, %cst_159 {dimension_numbers = #tpu.dot_dimension_numbers<[1], [0], [0], [1], [0, 0, 1, 1], [], []>} : vector<64x128xbf16>, vector<128x160xbf16>, vector<64x160xf32> -> vector<64x160xf32>
    %173 = arith.addf %165, %172 : vector<64x160xf32>
    %c2_160 = arith.constant 2 : index
    %c0_161 = arith.constant 0 : index
    %c0_162 = arith.constant 0 : index
    %c0_163 = arith.constant 0 : index
    %174 = vector.load %arg9[%c2_160, %c0_161, %c0_162, %c0_163] : memref<3x10x10x128xf32, #tpu.memory_space<vmem>>, vector<1x8x8x128xf32>
    %175 = vector.shape_cast %174 : vector<1x8x8x128xf32> to vector<8x8x128xf32>
    %176 = vector.shape_cast %175 : vector<8x8x128xf32> to vector<64x128xf32>
    %177 = arith.truncf %176 : vector<64x128xf32> to vector<64x128xbf16>
    %c18 = arith.constant 18 : index
    %c0_164 = arith.constant 0 : index
    %c0_165 = arith.constant 0 : index
    %178 = vector.load %arg6[%c18, %c0_164, %c0_165] : memref<27x128x160xbf16, #tpu.memory_space<vmem>>, vector<1x128x160xbf16>
    %179 = vector.shape_cast %178 : vector<1x128x160xbf16> to vector<128x160xbf16>
    %cst_166 = arith.constant dense<0.000000e+00> : vector<64x160xf32>
    %180 = tpu.matmul %177, %179, %cst_166 {dimension_numbers = #tpu.dot_dimension_numbers<[1], [0], [0], [1], [0, 0, 1, 1], [], []>} : vector<64x128xbf16>, vector<128x160xbf16>, vector<64x160xf32> -> vector<64x160xf32>
    %181 = arith.addf %173, %180 : vector<64x160xf32>
    %c2_167 = arith.constant 2 : index
    %c0_168 = arith.constant 0 : index
    %c1_169 = arith.constant 1 : index
    %c0_170 = arith.constant 0 : index
    %182 = vector.load %arg9[%c2_167, %c0_168, %c1_169, %c0_170] : memref<3x10x10x128xf32, #tpu.memory_space<vmem>>, vector<1x8x8x128xf32>
    %183 = vector.shape_cast %182 : vector<1x8x8x128xf32> to vector<8x8x128xf32>
    %184 = vector.shape_cast %183 : vector<8x8x128xf32> to vector<64x128xf32>
    %185 = arith.truncf %184 : vector<64x128xf32> to vector<64x128xbf16>
    %c19 = arith.constant 19 : index
    %c0_171 = arith.constant 0 : index
    %c0_172 = arith.constant 0 : index
    %186 = vector.load %arg6[%c19, %c0_171, %c0_172] : memref<27x128x160xbf16, #tpu.memory_space<vmem>>, vector<1x128x160xbf16>
    %187 = vector.shape_cast %186 : vector<1x128x160xbf16> to vector<128x160xbf16>
    %cst_173 = arith.constant dense<0.000000e+00> : vector<64x160xf32>
    %188 = tpu.matmul %185, %187, %cst_173 {dimension_numbers = #tpu.dot_dimension_numbers<[1], [0], [0], [1], [0, 0, 1, 1], [], []>} : vector<64x128xbf16>, vector<128x160xbf16>, vector<64x160xf32> -> vector<64x160xf32>
    %189 = arith.addf %181, %188 : vector<64x160xf32>
    %c2_174 = arith.constant 2 : index
    %c0_175 = arith.constant 0 : index
    %c2_176 = arith.constant 2 : index
    %c0_177 = arith.constant 0 : index
    %190 = vector.load %arg9[%c2_174, %c0_175, %c2_176, %c0_177] : memref<3x10x10x128xf32, #tpu.memory_space<vmem>>, vector<1x8x8x128xf32>
    %191 = vector.shape_cast %190 : vector<1x8x8x128xf32> to vector<8x8x128xf32>
    %192 = vector.shape_cast %191 : vector<8x8x128xf32> to vector<64x128xf32>
    %193 = arith.truncf %192 : vector<64x128xf32> to vector<64x128xbf16>
    %c20 = arith.constant 20 : index
    %c0_178 = arith.constant 0 : index
    %c0_179 = arith.constant 0 : index
    %194 = vector.load %arg6[%c20, %c0_178, %c0_179] : memref<27x128x160xbf16, #tpu.memory_space<vmem>>, vector<1x128x160xbf16>
    %195 = vector.shape_cast %194 : vector<1x128x160xbf16> to vector<128x160xbf16>
    %cst_180 = arith.constant dense<0.000000e+00> : vector<64x160xf32>
    %196 = tpu.matmul %193, %195, %cst_180 {dimension_numbers = #tpu.dot_dimension_numbers<[1], [0], [0], [1], [0, 0, 1, 1], [], []>} : vector<64x128xbf16>, vector<128x160xbf16>, vector<64x160xf32> -> vector<64x160xf32>
    %197 = arith.addf %189, %196 : vector<64x160xf32>
    %c2_181 = arith.constant 2 : index
    %c1_182 = arith.constant 1 : index
    %c0_183 = arith.constant 0 : index
    %c0_184 = arith.constant 0 : index
    %198 = vector.load %arg9[%c2_181, %c1_182, %c0_183, %c0_184] : memref<3x10x10x128xf32, #tpu.memory_space<vmem>>, vector<1x8x8x128xf32>
    %199 = vector.shape_cast %198 : vector<1x8x8x128xf32> to vector<8x8x128xf32>
    %200 = vector.shape_cast %199 : vector<8x8x128xf32> to vector<64x128xf32>
    %201 = arith.truncf %200 : vector<64x128xf32> to vector<64x128xbf16>
    %c21 = arith.constant 21 : index
    %c0_185 = arith.constant 0 : index
    %c0_186 = arith.constant 0 : index
    %202 = vector.load %arg6[%c21, %c0_185, %c0_186] : memref<27x128x160xbf16, #tpu.memory_space<vmem>>, vector<1x128x160xbf16>
    %203 = vector.shape_cast %202 : vector<1x128x160xbf16> to vector<128x160xbf16>
    %cst_187 = arith.constant dense<0.000000e+00> : vector<64x160xf32>
    %204 = tpu.matmul %201, %203, %cst_187 {dimension_numbers = #tpu.dot_dimension_numbers<[1], [0], [0], [1], [0, 0, 1, 1], [], []>} : vector<64x128xbf16>, vector<128x160xbf16>, vector<64x160xf32> -> vector<64x160xf32>
    %205 = arith.addf %197, %204 : vector<64x160xf32>
    %c2_188 = arith.constant 2 : index
    %c1_189 = arith.constant 1 : index
    %c1_190 = arith.constant 1 : index
    %c0_191 = arith.constant 0 : index
    %206 = vector.load %arg9[%c2_188, %c1_189, %c1_190, %c0_191] : memref<3x10x10x128xf32, #tpu.memory_space<vmem>>, vector<1x8x8x128xf32>
    %207 = vector.shape_cast %206 : vector<1x8x8x128xf32> to vector<8x8x128xf32>
    %208 = vector.shape_cast %207 : vector<8x8x128xf32> to vector<64x128xf32>
    %209 = arith.truncf %208 : vector<64x128xf32> to vector<64x128xbf16>
    %c22 = arith.constant 22 : index
    %c0_192 = arith.constant 0 : index
    %c0_193 = arith.constant 0 : index
    %210 = vector.load %arg6[%c22, %c0_192, %c0_193] : memref<27x128x160xbf16, #tpu.memory_space<vmem>>, vector<1x128x160xbf16>
    %211 = vector.shape_cast %210 : vector<1x128x160xbf16> to vector<128x160xbf16>
    %cst_194 = arith.constant dense<0.000000e+00> : vector<64x160xf32>
    %212 = tpu.matmul %209, %211, %cst_194 {dimension_numbers = #tpu.dot_dimension_numbers<[1], [0], [0], [1], [0, 0, 1, 1], [], []>} : vector<64x128xbf16>, vector<128x160xbf16>, vector<64x160xf32> -> vector<64x160xf32>
    %213 = arith.addf %205, %212 : vector<64x160xf32>
    %c2_195 = arith.constant 2 : index
    %c1_196 = arith.constant 1 : index
    %c2_197 = arith.constant 2 : index
    %c0_198 = arith.constant 0 : index
    %214 = vector.load %arg9[%c2_195, %c1_196, %c2_197, %c0_198] : memref<3x10x10x128xf32, #tpu.memory_space<vmem>>, vector<1x8x8x128xf32>
    %215 = vector.shape_cast %214 : vector<1x8x8x128xf32> to vector<8x8x128xf32>
    %216 = vector.shape_cast %215 : vector<8x8x128xf32> to vector<64x128xf32>
    %217 = arith.truncf %216 : vector<64x128xf32> to vector<64x128xbf16>
    %c23 = arith.constant 23 : index
    %c0_199 = arith.constant 0 : index
    %c0_200 = arith.constant 0 : index
    %218 = vector.load %arg6[%c23, %c0_199, %c0_200] : memref<27x128x160xbf16, #tpu.memory_space<vmem>>, vector<1x128x160xbf16>
    %219 = vector.shape_cast %218 : vector<1x128x160xbf16> to vector<128x160xbf16>
    %cst_201 = arith.constant dense<0.000000e+00> : vector<64x160xf32>
    %220 = tpu.matmul %217, %219, %cst_201 {dimension_numbers = #tpu.dot_dimension_numbers<[1], [0], [0], [1], [0, 0, 1, 1], [], []>} : vector<64x128xbf16>, vector<128x160xbf16>, vector<64x160xf32> -> vector<64x160xf32>
    %221 = arith.addf %213, %220 : vector<64x160xf32>
    %c2_202 = arith.constant 2 : index
    %c2_203 = arith.constant 2 : index
    %c0_204 = arith.constant 0 : index
    %c0_205 = arith.constant 0 : index
    %222 = vector.load %arg9[%c2_202, %c2_203, %c0_204, %c0_205] : memref<3x10x10x128xf32, #tpu.memory_space<vmem>>, vector<1x8x8x128xf32>
    %223 = vector.shape_cast %222 : vector<1x8x8x128xf32> to vector<8x8x128xf32>
    %224 = vector.shape_cast %223 : vector<8x8x128xf32> to vector<64x128xf32>
    %225 = arith.truncf %224 : vector<64x128xf32> to vector<64x128xbf16>
    %c24 = arith.constant 24 : index
    %c0_206 = arith.constant 0 : index
    %c0_207 = arith.constant 0 : index
    %226 = vector.load %arg6[%c24, %c0_206, %c0_207] : memref<27x128x160xbf16, #tpu.memory_space<vmem>>, vector<1x128x160xbf16>
    %227 = vector.shape_cast %226 : vector<1x128x160xbf16> to vector<128x160xbf16>
    %cst_208 = arith.constant dense<0.000000e+00> : vector<64x160xf32>
    %228 = tpu.matmul %225, %227, %cst_208 {dimension_numbers = #tpu.dot_dimension_numbers<[1], [0], [0], [1], [0, 0, 1, 1], [], []>} : vector<64x128xbf16>, vector<128x160xbf16>, vector<64x160xf32> -> vector<64x160xf32>
    %229 = arith.addf %221, %228 : vector<64x160xf32>
    %c2_209 = arith.constant 2 : index
    %c2_210 = arith.constant 2 : index
    %c1_211 = arith.constant 1 : index
    %c0_212 = arith.constant 0 : index
    %230 = vector.load %arg9[%c2_209, %c2_210, %c1_211, %c0_212] : memref<3x10x10x128xf32, #tpu.memory_space<vmem>>, vector<1x8x8x128xf32>
    %231 = vector.shape_cast %230 : vector<1x8x8x128xf32> to vector<8x8x128xf32>
    %232 = vector.shape_cast %231 : vector<8x8x128xf32> to vector<64x128xf32>
    %233 = arith.truncf %232 : vector<64x128xf32> to vector<64x128xbf16>
    %c25 = arith.constant 25 : index
    %c0_213 = arith.constant 0 : index
    %c0_214 = arith.constant 0 : index
    %234 = vector.load %arg6[%c25, %c0_213, %c0_214] : memref<27x128x160xbf16, #tpu.memory_space<vmem>>, vector<1x128x160xbf16>
    %235 = vector.shape_cast %234 : vector<1x128x160xbf16> to vector<128x160xbf16>
    %cst_215 = arith.constant dense<0.000000e+00> : vector<64x160xf32>
    %236 = tpu.matmul %233, %235, %cst_215 {dimension_numbers = #tpu.dot_dimension_numbers<[1], [0], [0], [1], [0, 0, 1, 1], [], []>} : vector<64x128xbf16>, vector<128x160xbf16>, vector<64x160xf32> -> vector<64x160xf32>
    %237 = arith.addf %229, %236 : vector<64x160xf32>
    %c2_216 = arith.constant 2 : index
    %c2_217 = arith.constant 2 : index
    %c2_218 = arith.constant 2 : index
    %c0_219 = arith.constant 0 : index
    %238 = vector.load %arg9[%c2_216, %c2_217, %c2_218, %c0_219] : memref<3x10x10x128xf32, #tpu.memory_space<vmem>>, vector<1x8x8x128xf32>
    %239 = vector.shape_cast %238 : vector<1x8x8x128xf32> to vector<8x8x128xf32>
    %240 = vector.shape_cast %239 : vector<8x8x128xf32> to vector<64x128xf32>
    %241 = arith.truncf %240 : vector<64x128xf32> to vector<64x128xbf16>
    %c26 = arith.constant 26 : index
    %c0_220 = arith.constant 0 : index
    %c0_221 = arith.constant 0 : index
    %242 = vector.load %arg6[%c26, %c0_220, %c0_221] : memref<27x128x160xbf16, #tpu.memory_space<vmem>>, vector<1x128x160xbf16>
    %243 = vector.shape_cast %242 : vector<1x128x160xbf16> to vector<128x160xbf16>
    %cst_222 = arith.constant dense<0.000000e+00> : vector<64x160xf32>
    %244 = tpu.matmul %241, %243, %cst_222 {dimension_numbers = #tpu.dot_dimension_numbers<[1], [0], [0], [1], [0, 0, 1, 1], [], []>} : vector<64x128xbf16>, vector<128x160xbf16>, vector<64x160xf32> -> vector<64x160xf32>
    %245 = arith.addf %237, %244 : vector<64x160xf32>
    %c0_223 = arith.constant 0 : index
    %c0_224 = arith.constant 0 : index
    %246 = vector.load %arg7[%c0_223, %c0_224] : memref<1x160xf32, #tpu.memory_space<vmem>>, vector<1x160xf32>
    %247 = vector.broadcast %246 : vector<1x160xf32> to vector<64x160xf32>
    %248 = arith.addf %245, %247 : vector<64x160xf32>
    %cst_225 = arith.constant 0.000000e+00 : f32
    %249 = vector.broadcast %cst_225 : f32 to vector<64x160xf32>
    %250 = arith.maximumf %248, %249 : vector<64x160xf32>
    %c0_226 = arith.constant 0 : index
    %c0_227 = arith.constant 0 : index
    %c0_228 = arith.constant 0 : index
    %c0_229 = arith.constant 0 : index
    %251 = vector.load %arg5[%c0_226, %c0_227, %c0_228, %c0_229] : memref<1x1x64x96xf32, #tpu.memory_space<vmem>>, vector<1x1x64x64xf32>
    %252 = vector.shape_cast %251 : vector<1x1x64x64xf32> to vector<64x64xf32>
    %c0_230 = arith.constant 0 : index
    %c0_231 = arith.constant 0 : index
    %c0_232 = arith.constant 0 : index
    %c0_233 = arith.constant 0 : index
    %253 = vector.load %arg8[%c0_230, %c0_231, %c0_232, %c0_233] : memref<1x1x64x256xf32, #tpu.memory_space<vmem>>, vector<1x1x64x64xf32>
    %254 = vector.shape_cast %253 : vector<1x1x64x64xf32> to vector<64x64xf32>
    %255 = vector.shape_cast %252 : vector<64x64xf32> to vector<1x1x64x64xf32>
    tpu.vector_store %arg8[%c0_230, %c0_231, %c0_232, %c0_233], %255 {strides = array<i32>} : memref<1x1x64x256xf32, #tpu.memory_space<vmem>>, vector<1x1x64x64xf32>,
    %c0_234 = arith.constant 0 : index
    %c0_235 = arith.constant 0 : index
    %c0_236 = arith.constant 0 : index
    %c64 = arith.constant 64 : index
    %256 = vector.load %arg8[%c0_234, %c0_235, %c0_236, %c64] : memref<1x1x64x256xf32, #tpu.memory_space<vmem>>, vector<1x1x64x160xf32>
    %257 = vector.shape_cast %256 : vector<1x1x64x160xf32> to vector<64x160xf32>
    %258 = vector.shape_cast %250 : vector<64x160xf32> to vector<1x1x64x160xf32>
    tpu.vector_store %arg8[%c0_234, %c0_235, %c0_236, %c64], %258 {strides = array<i32>} : memref<1x1x64x256xf32, #tpu.memory_space<vmem>>, vector<1x1x64x160xf32>,
    %c0_237 = arith.constant 0 : index
    %c0_238 = arith.constant 0 : index
    %c0_239 = arith.constant 0 : index
    %c64_240 = arith.constant 64 : index
    %259 = vector.load %arg5[%c0_237, %c0_238, %c0_239, %c64_240] : memref<1x1x64x96xf32, #tpu.memory_space<vmem>>, vector<1x1x64x32xf32>
    %260 = vector.shape_cast %259 : vector<1x1x64x32xf32> to vector<64x32xf32>
    %c0_241 = arith.constant 0 : index
    %c0_242 = arith.constant 0 : index
    %c0_243 = arith.constant 0 : index
    %c224 = arith.constant 224 : index
    %261 = vector.load %arg8[%c0_241, %c0_242, %c0_243, %c224] : memref<1x1x64x256xf32, #tpu.memory_space<vmem>>, vector<1x1x64x32xf32>
    %262 = vector.shape_cast %261 : vector<1x1x64x32xf32> to vector<64x32xf32>
    %263 = vector.shape_cast %260 : vector<64x32xf32> to vector<1x1x64x32xf32>
    tpu.vector_store %arg8[%c0_241, %c0_242, %c0_243, %c224], %263 {strides = array<i32>} : memref<1x1x64x256xf32, #tpu.memory_space<vmem>>, vector<1x1x64x32xf32>,
    return
  }
  func.func @transform_0(%arg0: i32, %arg1: i32) -> (i32, i32, i32, i32, i32) {
    %c1_i32 = arith.constant 1 : i32
    %0 = arith.subi %arg1, %c1_i32 : i32
    %c0_i32 = arith.constant 0 : i32
    %1 = arith.maxsi %0, %c0_i32 : i32
    %c0_i32_0 = arith.constant 0 : i32
    %c0_i32_1 = arith.constant 0 : i32
    %c0_i32_2 = arith.constant 0 : i32
    %c0_i32_3 = arith.constant 0 : i32
    return %arg0, %1, %c0_i32_0, %c0_i32_1, %c0_i32_2 : i32, i32, i32, i32, i32
  }
  func.func @transform_1(%arg0: i32, %arg1: i32) -> (i32, i32, i32, i32, i32) {
    %c0_i32 = arith.constant 0 : i32
    %c0_i32_0 = arith.constant 0 : i32
    %c0_i32_1 = arith.constant 0 : i32
    %c0_i32_2 = arith.constant 0 : i32
    return %arg0, %arg1, %c0_i32, %c0_i32_0, %c0_i32_1 : i32, i32, i32, i32, i32
  }
  func.func @transform_2(%arg0: i32, %arg1: i32) -> (i32, i32, i32, i32, i32) {
    %c1_i32 = arith.constant 1 : i32
    %0 = arith.addi %arg1, %c1_i32 : i32
    %c3_i32 = arith.constant 3 : i32
    %1 = arith.minsi %0, %c3_i32 : i32
    %c0_i32 = arith.constant 0 : i32
    %c0_i32_0 = arith.constant 0 : i32
    %c0_i32_1 = arith.constant 0 : i32
    %c0_i32_2 = arith.constant 0 : i32
    return %arg0, %1, %c0_i32, %c0_i32_0, %c0_i32_1 : i32, i32, i32, i32, i32
  }
  func.func @transform_3(%arg0: i32, %arg1: i32) -> (i32, i32, i32, i32) {
    %c0_i32 = arith.constant 0 : i32
    %c0_i32_0 = arith.constant 0 : i32
    %c0_i32_1 = arith.constant 0 : i32
    return %arg0, %arg1, %c0_i32, %c0_i32_0 : i32, i32, i32, i32
  }
  func.func @transform_4(%arg0: i32, %arg1: i32) -> (i32, i32, i32) {
    %c0_i32 = arith.constant 0 : i32
    %c0_i32_0 = arith.constant 0 : i32
    %c0_i32_1 = arith.constant 0 : i32
    %c0_i32_2 = arith.constant 0 : i32
    return %c0_i32, %c0_i32_0, %c0_i32_1 : i32, i32, i32
  }
  func.func @transform_5(%arg0: i32, %arg1: i32) -> (i32, i32) {
    %c0_i32 = arith.constant 0 : i32
    %c0_i32_0 = arith.constant 0 : i32
    %c0_i32_1 = arith.constant 0 : i32
    return %c0_i32, %c0_i32_0 : i32, i32
  }
  func.func @transform_6(%arg0: i32, %arg1: i32) -> (i32, i32, i32, i32) {
    %c0_i32 = arith.constant 0 : i32
    %c0_i32_0 = arith.constant 0 : i32
    %c0_i32_1 = arith.constant 0 : i32
    return %arg0, %arg1, %c0_i32, %c0_i32_0 : i32, i32, i32, i32
  }
}

</mosaic_0001>

<llo_original>
// kernel: mixed_3b_forward.2
$region0: #{mixed_3b_forward.2}
  #allocation0 [shape = 'u32[]', space=smem, size = 0x4, offset = 0x4, fixed_abs, tag = 'smem constant byte address 0x4 - core index']
  #allocation1 [shape = 'u32[144,128]{1,0:T(1,128)}', space=vmem, size = 0x12000, scoped, tag = 'internal scratch']
  #allocation2 [shape = 'f32[10,10,192]{2,1,0:T(8,128)}', space=vmem, size = 0x28000, scoped, tag = 'scratch operand']
  %s0 = inlined_call_operand.hbm [shape: f32[1,4,8,8,192], index: 0, kind: input, shape index: {}, may-alias: {0,1,2}]
  %s1 = inlined_call_operand.hbm [shape: f32[1,4,8,8,192], index: 1, kind: input, shape index: {}, may-alias: {0,1,2}]
  %s2 = inlined_call_operand.hbm [shape: f32[1,4,8,8,192], index: 2, kind: input, shape index: {}, may-alias: {0,1,2}]
  %s3 = inlined_call_operand.hbm [shape: bf16[192,192], index: 3, kind: input, shape index: {}]
  %s4 = inlined_call_operand.hbm [shape: f32[1,192], index: 4, kind: input, shape index: {}]
  %s5 = inlined_call_operand.vmem [shape: bf16[192,32], index: 5, kind: input, shape index: {}]
  %s6 = inlined_call_operand.hbm [shape: f32[1,32], index: 6, kind: input, shape index: {}]
  %s7 = inlined_call_operand.vmem [shape: bf16[1,4,8,8,128], index: 7, kind: output, shape index: {0}]
  %s8 = inlined_call_operand.vmem [shape: f32[1,4,64,96], index: 8, kind: output, shape index: {1}]
  %9 = xla_tuple %s7, %s8
  %s10 = sld [smem:[#allocation0]]
  $region93: #{mixed_3b_forward.2} parent=0
    _
  %s12 = ssub.s32 1, %s10
  %s13 = scalar_select 0, %s12, %s10
  $region1: #{mixed_3b_forward.2} parent=0
    #allocation3 [shape = 'u8[131072]{0}', space=vmem, size = 0x20000, scoped, tag = 'input window, operand 0']
    #allocation4 [shape = 's32[2]{0}', space=sflag, size = 0x8, scoped, tag = 'scoped memory for mixed_3b_forward.2']
    #allocation5 [shape = 'u8[131072]{0}', space=vmem, size = 0x20000, scoped, tag = 'input window, operand 1']
    #allocation6 [shape = 's32[2]{0}', space=sflag, size = 0x8, scoped, tag = 'scoped memory for mixed_3b_forward.2']
    #allocation7 [shape = 'u8[131072]{0}', space=vmem, size = 0x20000, scoped, tag = 'input window, operand 2']
    #allocation8 [shape = 'u8[98304]{0}', space=vmem, size = 0x18000, scoped, tag = 'input window, operand 3, single buffered']
    #allocation9 [shape = 's32[1]{0}', space=sflag, size = 0x4, scoped, tag = 'scoped memory for mixed_3b_forward.2']
    #allocation10 [shape = 'u8[1024]{0}', space=vmem, size = 0x400, scoped, tag = 'input window, operand 4, single buffered']
    #allocation11 [shape = 'u8[512]{0}', space=vmem, size = 0x400, scoped, tag = 'input window, operand 6, single buffered']
    #allocation12 [shape = 's32[1]{0}', space=sflag, size = 0x4, scoped, tag = 'scoped memory for mixed_3b_forward.2']
    %14 = vsyncpa [#allocation4], 0
    %s15 = scalar_lea.sflag [#allocation4], 1
    %16 = vsyncpa %s15, 0
    %17 = vsyncpa [#allocation6], 0
    %s18 = scalar_lea.sflag [#allocation6], 1
    %19 = vsyncpa %s18, 0
    %20 = vsyncpa [#allocation9], 0
    %21 = vsyncpa [#allocation12], 0
    loop: start=0, step=1, limit=6
    $region2: #{mixed_3b_forward.2} parent=1 // loop_pre_header
      _
    $region3: #{mixed_3b_forward.2} parent=1 // loop_header
      %s23 = sphi 0, %s27
      %p24 = scmp.ge.s32.totalorder %s23, 6
      %s30 = sphi 0, %s42
      %s31 = sphi 0, %s38
      %s32 = sphi 0, %s30
      %s33 = sphi 0, %s31
      %s34 = sphi 0, %s32
      %s35 = sphi 0, %s33
      %s53 = sphi 0, %s55
      %s56 = sphi 0, %s53
      %s57 = sphi 0, %s56
      %s73 = sphi 0, %s57
      %s81 = sphi 0, %s83
      %s84 = sphi 0, %s81
      %s85 = sphi 0, %s84
      %s101 = sphi 0, %s85
      %s115 = sphi 0, %s117
      %s118 = sphi 0, %s115
      %s119 = sphi 0, %s118
      %s135 = sphi 0, %s119
      %s139 = sphi 0, %s139
      %s141 = sphi 0, %s139
      %s142 = sphi 0, %s141
      %s156 = sphi 0, %s142
      %s160 = sphi 0, %s160
      %s162 = sphi 0, %s160
      %s163 = sphi 0, %s162
      %s177 = sphi 0, %s163
      %s181 = sphi 0, %s181
      %s183 = sphi 0, %s181
      %s184 = sphi 0, %s183
      %s198 = sphi 0, %s184
      %s202 = sphi 0, %s202
      %s204 = sphi 0, %s202
      %s205 = sphi 0, %s204
      %s219 = sphi 0, %s205
      %s227 = sphi 0, %s229
      %s230 = sphi 0, %s227
      %s231 = sphi 0, %s230
      %s247 = sphi 0, %s231
      %s255 = sphi 0, %s257
      %s258 = sphi 0, %s255
      %s259 = sphi 0, %s258
      %s275 = sphi 0, %s259
    $region4: #{mixed_3b_forward.2} parent=1 // loop_header_branch
      %26 = sbr.rel (%p24) target = $region8
    $region5: #{mixed_3b_forward.2} parent=1 // loop_body
      %s28 = ssub.s32 %s23, 1
      %s29 = ssub.s32 %s23, 2
      %s36 = sadd.s32 1, %s31
      %p37 = scmp.ge.s32.totalorder %s36, 4
      %s38 = scalar_select %p37, 0, %s36
      %s39 = sadd.s32 1, %s30
      %s40 = scalar_select %p37, %s39, %s30
      %p41 = scmp.ge.s32.totalorder %s40, 1
      %s42 = scalar_select %p41, 0, %s40
      %s43 = ssub.s32 %s31, 1
      %p44 = scmp.gt.s32.totalorder %s43, 0
      %s45 = scalar_select %p44, %s43, 0
      %s46 = ssub.s32 %s38, 1
      %p47 = scmp.gt.s32.totalorder %s46, 0
      %s48 = scalar_select %p47, %s46, 0
      %s49 = ssub.s32 %s30, %s42
      %s50 = ssub.s32 %s45, %s48
      %s51 = sor.u32 %s49, %s50
      %p52 = scmp.eq.s32.totalorder %s51, 0
      %s54 = sadd.s32 %s53, 1
      %s55 = scalar_select %p52, %s53, %s54
      %p58 = pneg %p52
      %p59 = scmp.eq.s32.totalorder %s23, 3
      %p60 = por %p58, %p59
      %p61 = scmp.ne.s32.totalorder %s53, %s56
      %p62 = scmp.eq.s32.totalorder %s23, 0
      %p63 = por %p61, %p62
      %p64 = scmp.ne.s32.totalorder %s53, %s56
      %p65 = scmp.eq.s32.totalorder %s28, 3
      %p66 = por %p64, %p65
      %p67 = scmp.ne.s32.totalorder %s56, %s57
      %p68 = scmp.eq.s32.totalorder %s28, 0
      %p69 = por %p67, %p68
      %p70 = scmp.ne.s32.totalorder %s56, %s57
      %p71 = scmp.eq.s32.totalorder %s29, 3
      %p72 = por %p70, %p71
      %p74 = scmp.ne.s32.totalorder %s57, %s73
      %p75 = scmp.eq.s32.totalorder %s29, 0
      %p76 = por %p74, %p75
      %s77 = ssub.s32 %s30, %s42
      %s78 = ssub.s32 %s31, %s38
      %s79 = sor.u32 %s77, %s78
      %p80 = scmp.eq.s32.totalorder %s79, 0
      %s82 = sadd.s32 %s81, 1
      %s83 = scalar_select %p80, %s81, %s82
      %p86 = pneg %p80
      %p87 = scmp.eq.s32.totalorder %s23, 3
      %p88 = por %p86, %p87
      %p89 = scmp.ne.s32.totalorder %s81, %s84
      %p90 = scmp.eq.s32.totalorder %s23, 0
      %p91 = por %p89, %p90
      %p92 = scmp.ne.s32.totalorder %s81, %s84
      %p93 = scmp.eq.s32.totalorder %s28, 3
      %p94 = por %p92, %p93
      %p95 = scmp.ne.s32.totalorder %s84, %s85
      %p96 = scmp.eq.s32.totalorder %s28, 0
      %p97 = por %p95, %p96
      %p98 = scmp.ne.s32.totalorder %s84, %s85
      %p99 = scmp.eq.s32.totalorder %s29, 3
      %p100 = por %p98, %p99
      %p102 = scmp.ne.s32.totalorder %s85, %s101
      %p103 = scmp.eq.s32.totalorder %s29, 0
      %p104 = por %p102, %p103
      %s105 = sadd.s32 %s31, 1
      %p106 = scmp.lt.s32.totalorder %s105, 3
      %s107 = scalar_select %p106, %s105, 3
      %s108 = sadd.s32 %s38, 1
      %p109 = scmp.lt.s32.totalorder %s108, 3
      %s110 = scalar_select %p109, %s108, 3
      %s111 = ssub.s32 %s30, %s42
      %s112 = ssub.s32 %s107, %s110
      %s113 = sor.u32 %s111, %s112
      %p114 = scmp.eq.s32.totalorder %s113, 0
      %s116 = sadd.s32 %s115, 1
      %s117 = scalar_select %p114, %s115, %s116
      %p120 = pneg %p114
      %p121 = scmp.eq.s32.totalorder %s23, 3
      %p122 = por %p120, %p121
      %p123 = scmp.ne.s32.totalorder %s115, %s118
      %p124 = scmp.eq.s32.totalorder %s23, 0
      %p125 = por %p123, %p124
      %p126 = scmp.ne.s32.totalorder %s115, %s118
      %p127 = scmp.eq.s32.totalorder %s28, 3
      %p128 = por %p126, %p127
      %p129 = scmp.ne.s32.totalorder %s118, %s119
      %p130 = scmp.eq.s32.totalorder %s28, 0
      %p131 = por %p129, %p130
      %p132 = scmp.ne.s32.totalorder %s118, %s119
      %p133 = scmp.eq.s32.totalorder %s29, 3
      %p134 = por %p132, %p133
      %p136 = scmp.ne.s32.totalorder %s119, %s135
      %p137 = scmp.eq.s32.totalorder %s29, 0
      %p138 = por %p136, %p137
      %s140 = sadd.s32 %s139, 1
      %p143 = scmp.eq.s32.totalorder %s23, 3
      %p144 = scmp.ne.s32.totalorder %s139, %s141
      %p145 = scmp.eq.s32.totalorder %s23, 0
      %p146 = por %p144, %p145
      %p147 = scmp.ne.s32.totalorder %s139, %s141
      %p148 = scmp.eq.s32.totalorder %s28, 3
      %p149 = por %p147, %p148
      %p150 = scmp.ne.s32.totalorder %s141, %s142
      %p151 = scmp.eq.s32.totalorder %s28, 0
      %p152 = por %p150, %p151
      %p153 = scmp.ne.s32.totalorder %s141, %s142
      %p154 = scmp.eq.s32.totalorder %s29, 3
      %p155 = por %p153, %p154
      %p157 = scmp.ne.s32.totalorder %s142, %s156
      %p158 = scmp.eq.s32.totalorder %s29, 0
      %p159 = por %p157, %p158
      %s161 = sadd.s32 %s160, 1
      %p164 = scmp.eq.s32.totalorder %s23, 3
      %p165 = scmp.ne.s32.totalorder %s160, %s162
      %p166 = scmp.eq.s32.totalorder %s23, 0
      %p167 = por %p165, %p166
      %p168 = scmp.ne.s32.totalorder %s160, %s162
      %p169 = scmp.eq.s32.totalorder %s28, 3
      %p170 = por %p168, %p169
      %p171 = scmp.ne.s32.totalorder %s162, %s163
      %p172 = scmp.eq.s32.totalorder %s28, 0
      %p173 = por %p171, %p172
      %p174 = scmp.ne.s32.totalorder %s162, %s163
      %p175 = scmp.eq.s32.totalorder %s29, 3
      %p176 = por %p174, %p175
      %p178 = scmp.ne.s32.totalorder %s163, %s177
      %p179 = scmp.eq.s32.totalorder %s29, 0
      %p180 = por %p178, %p179
      %s182 = sadd.s32 %s181, 1
      %p185 = scmp.eq.s32.totalorder %s23, 3
      %p186 = scmp.ne.s32.totalorder %s181, %s183
      %p187 = scmp.eq.s32.totalorder %s23, 0
      %p188 = por %p186, %p187
      %p189 = scmp.ne.s32.totalorder %s181, %s183
      %p190 = scmp.eq.s32.totalorder %s28, 3
      %p191 = por %p189, %p190
      %p192 = scmp.ne.s32.totalorder %s183, %s184
      %p193 = scmp.eq.s32.totalorder %s28, 0
      %p194 = por %p192, %p193
      %p195 = scmp.ne.s32.totalorder %s183, %s184
      %p196 = scmp.eq.s32.totalorder %s29, 3
      %p197 = por %p195, %p196
      %p199 = scmp.ne.s32.totalorder %s184, %s198
      %p200 = scmp.eq.s32.totalorder %s29, 0
      %p201 = por %p199, %p200
      %s203 = sadd.s32 %s202, 1
      %p206 = scmp.eq.s32.totalorder %s23, 3
      %p207 = scmp.ne.s32.totalorder %s202, %s204
      %p208 = scmp.eq.s32.totalorder %s23, 0
      %p209 = por %p207, %p208
      %p210 = scmp.ne.s32.totalorder %s202, %s204
      %p211 = scmp.eq.s32.totalorder %s28, 3
      %p212 = por %p210, %p211
      %p213 = scmp.ne.s32.totalorder %s204, %s205
      %p214 = scmp.eq.s32.totalorder %s28, 0
      %p215 = por %p213, %p214
      %p216 = scmp.ne.s32.totalorder %s204, %s205
      %p217 = scmp.eq.s32.totalorder %s29, 3
      %p218 = por %p216, %p217
      %p220 = scmp.ne.s32.totalorder %s205, %s219
      %p221 = scmp.eq.s32.totalorder %s29, 0
      %p222 = por %p220, %p221
      %s223 = ssub.s32 %s30, %s42
      %s224 = ssub.s32 %s31, %s38
      %s225 = sor.u32 %s223, %s224
      %p226 = scmp.eq.s32.totalorder %s225, 0
      %s228 = sadd.s32 %s227, 1
      %s229 = scalar_select %p226, %s227, %s228
      %p232 = pneg %p226
      %p233 = scmp.eq.s32.totalorder %s23, 3
      %p234 = por %p232, %p233
      %p235 = scmp.ne.s32.totalorder %s227, %s230
      %p236 = scmp.eq.s32.totalorder %s23, 0
      %p237 = por %p235, %p236
      %p238 = scmp.ne.s32.totalorder %s227, %s230
      %p239 = scmp.eq.s32.totalorder %s28, 3
      %p240 = por %p238, %p239
      %p241 = scmp.ne.s32.totalorder %s230, %s231
      %p242 = scmp.eq.s32.totalorder %s28, 0
      %p243 = por %p241, %p242
      %p244 = scmp.ne.s32.totalorder %s230, %s231
      %p245 = scmp.eq.s32.totalorder %s29, 3
      %p246 = por %p244, %p245
      %p248 = scmp.ne.s32.totalorder %s231, %s247
      %p249 = scmp.eq.s32.totalorder %s29, 0
      %p250 = por %p248, %p249
      %s251 = ssub.s32 %s30, %s42
      %s252 = ssub.s32 %s31, %s38
      %s253 = sor.u32 %s251, %s252
      %p254 = scmp.eq.s32.totalorder %s253, 0
      %s256 = sadd.s32 %s255, 1
      %s257 = scalar_select %p254, %s255, %s256
      %p260 = pneg %p254
      %p261 = scmp.eq.s32.totalorder %s23, 3
      %p262 = por %p260, %p261
      %p263 = scmp.ne.s32.totalorder %s255, %s258
      %p264 = scmp.eq.s32.totalorder %s23, 0
      %p265 = por %p263, %p264
      %p266 = scmp.ne.s32.totalorder %s255, %s258
      %p267 = scmp.eq.s32.totalorder %s28, 3
      %p268 = por %p266, %p267
      %p269 = scmp.ne.s32.totalorder %s258, %s259
      %p270 = scmp.eq.s32.totalorder %s28, 0
      %p271 = por %p269, %p270
      %p272 = scmp.ne.s32.totalorder %s258, %s259
      %p273 = scmp.eq.s32.totalorder %s29, 3
      %p274 = por %p272, %p273
      %p276 = scmp.ne.s32.totalorder %s259, %s275
      %p277 = scmp.eq.s32.totalorder %s29, 0
      %p278 = por %p276, %p277
      %p279 = scmp.le.s32.totalorder 1, %s23
      %p280 = scmp.lt.s32.totalorder %s23, 5
      %p281 = pnand %p279, %p280
      %p282 = pneg %p281
      // Predicated region
      $region9: #{mixed_3b_forward.2} parent=5 // pred_check
        _
      $region10: #{mixed_3b_forward.2} parent=5 // pred_check_branch
        %284 = sbr.rel (%p281) target = $region12
      $region11: #{mixed_3b_forward.2} parent=5 // pred_region
        %s285 = ssub.s32 %s23, 1
        // Predicated region
        $region13: #{mixed_3b_forward.2} parent=11 // pred_check
          %p286 = pneg %p152
        $region14: #{mixed_3b_forward.2} parent=11 // pred_check_branch
          %288 = sbr.rel (%p286) target = $region16
        $region15: #{mixed_3b_forward.2} parent=11 // pred_region
          %s290 = ssub.s32 3072, 3072
          %291 = vsyncadd [#allocation9], %s290
          %s292 = sshll.u32 [#allocation8], 4
          %s293 = int_to_ptr.vmem [resolvable:$true] %s292
          %298 = dma.hbm_to_vmem [thread:$0]  %s3, 3072, %s293, [#allocation9], 128, 128, 8
        $region16: #{mixed_3b_forward.2} parent=11 // pred_fallthru
          _
        // Predicated region
        $region17: #{mixed_3b_forward.2} parent=11 // pred_check
          %p299 = pneg %p173
        $region18: #{mixed_3b_forward.2} parent=11 // pred_check_branch
          %301 = sbr.rel (%p299) target = $region20
        $region19: #{mixed_3b_forward.2} parent=11 // pred_region
          %s303 = ssub.s32 32, 32
          %304 = vsyncadd [#allocation9], %s303
          %s306 = sshll.u32 [#allocation10], 4
          %s307 = int_to_ptr.vmem [resolvable:$true] %s306
          %309 = dma.hbm_to_vmem [thread:$0]  %s4, 32, %s307, [#allocation9]
        $region20: #{mixed_3b_forward.2} parent=11 // pred_fallthru
          _
        // Predicated region
        $region21: #{mixed_3b_forward.2} parent=11 // pred_check
          %p310 = pneg %p194
        $region22: #{mixed_3b_forward.2} parent=11 // pred_check_branch
          %312 = sbr.rel (%p310) target = $region24
        $region23: #{mixed_3b_forward.2} parent=11 // pred_region
          _
        $region24: #{mixed_3b_forward.2} parent=11 // pred_fallthru
          _
        // Predicated region
        $region25: #{mixed_3b_forward.2} parent=11 // pred_check
          %p313 = pneg %p215
        $region26: #{mixed_3b_forward.2} parent=11 // pred_check_branch
          %315 = sbr.rel (%p313) target = $region28
        $region27: #{mixed_3b_forward.2} parent=11 // pred_region
          %s317 = ssub.s32 16, 16
          %318 = vsyncadd [#allocation12], %s317
          %s320 = sshll.u32 [#allocation11], 4
          %s321 = int_to_ptr.vmem [resolvable:$true] %s320
          %323 = dma.hbm_to_vmem [thread:$0]  %s6, 16, %s321, [#allocation12]
        $region28: #{mixed_3b_forward.2} parent=11 // pred_fallthru
          _
      $region12: #{mixed_3b_forward.2} parent=5 // pred_fallthru
        _
      %p324 = scmp.lt.s32.totalorder %s23, 4
      // Predicated region
      $region29: #{mixed_3b_forward.2} parent=5 // pred_check
        %p325 = pneg %p324
      $region30: #{mixed_3b_forward.2} parent=5 // pred_check_branch
        %327 = sbr.rel (%p325) target = $region32
      $region31: #{mixed_3b_forward.2} parent=5 // pred_region
        // Predicated region
        $region33: #{mixed_3b_forward.2} parent=31 // pred_check
          %p328 = pneg %p63
        $region34: #{mixed_3b_forward.2} parent=31 // pred_check_branch
          %330 = sbr.rel (%p328) target = $region36
        $region35: #{mixed_3b_forward.2} parent=31 // pred_region
          %s331 = sand.u32 %s53, 1
          %s332 = scalar_lea.sflag [#allocation4], %s331
          %s333 = sand.u32 %s53, 1
          %s334 = smul.addr %s333, 128
          %s335 = scalar_lea.vmem [#allocation3], %s334
          %s336 = ssub.s32 %s31, 1
          %p337 = scmp.gt.s32.totalorder %s336, 0
          %s338 = scalar_select %p337, %s336, 0
          %s340 = ssub.s32 2048, 2048
          %341 = vsyncadd %s332, %s340
          %s342 = smul.addr %s338, 16
          %s343 = smul.addr %s30, 64
          %s344 = sadd.s32 %s342, %s343
          %s345 = smul.addr %s344, 128
          %s346 = scalar_lea.hbm %s0, %s345
          %s347 = sshll.u32 %s335, 4
          %s348 = int_to_ptr.vmem [resolvable:$true] %s347
          %353 = dma.hbm_to_vmem [thread:$0]  %s346, 2048, %s348, %s332, 256, 256, 16
        $region36: #{mixed_3b_forward.2} parent=31 // pred_fallthru
          _
        // Predicated region
        $region37: #{mixed_3b_forward.2} parent=31 // pred_check
          %p354 = pneg %p91
        $region38: #{mixed_3b_forward.2} parent=31 // pred_check_branch
          %356 = sbr.rel (%p354) target = $region40
        $region39: #{mixed_3b_forward.2} parent=31 // pred_region
          %s357 = sand.u32 %s23, 1
          %s358 = scalar_lea.sflag [#allocation6], %s357
          %s359 = sand.u32 %s81, 1
          %s360 = smul.addr %s359, 128
          %s361 = scalar_lea.vmem [#allocation5], %s360
          %s363 = ssub.s32 2048, 2048
          %364 = vsyncadd %s358, %s363
          %s365 = smul.addr %s31, 16
          %s366 = smul.addr %s30, 64
          %s367 = sadd.s32 %s365, %s366
          %s368 = smul.addr %s367, 128
          %s369 = scalar_lea.hbm %s1, %s368
          %s370 = sshll.u32 %s361, 4
          %s371 = int_to_ptr.vmem [resolvable:$true] %s370
          %376 = dma.hbm_to_vmem [thread:$0]  %s369, 2048, %s371, %s358, 256, 256, 16
        $region40: #{mixed_3b_forward.2} parent=31 // pred_fallthru
          _
        // Predicated region
        $region41: #{mixed_3b_forward.2} parent=31 // pred_check
          %p377 = pneg %p125
        $region42: #{mixed_3b_forward.2} parent=31 // pred_check_branch
          %379 = sbr.rel (%p377) target = $region44
        $region43: #{mixed_3b_forward.2} parent=31 // pred_region
          %s380 = sand.u32 %s23, 1
          %s381 = scalar_lea.sflag [#allocation6], %s380
          %s382 = sand.u32 %s115, 1
          %s383 = smul.addr %s382, 128
          %s384 = scalar_lea.vmem [#allocation7], %s383
          %s385 = sadd.s32 %s31, 1
          %p386 = scmp.lt.s32.totalorder %s385, 3
          %s387 = scalar_select %p386, %s385, 3
          %s389 = ssub.s32 2048, 2048
          %390 = vsyncadd %s381, %s389
          %s391 = smul.addr %s387, 16
          %s392 = smul.addr %s30, 64
          %s393 = sadd.s32 %s391, %s392
          %s394 = smul.addr %s393, 128
          %s395 = scalar_lea.hbm %s2, %s394
          %s396 = sshll.u32 %s384, 4
          %s397 = int_to_ptr.vmem [resolvable:$true] %s396
          %402 = dma.hbm_to_vmem [thread:$0]  %s395, 2048, %s397, %s381, 256, 256, 16
        $region44: #{mixed_3b_forward.2} parent=31 // pred_fallthru
          _
      $region32: #{mixed_3b_forward.2} parent=5 // pred_fallthru
        _
      %p403 = scmp.le.s32.totalorder 1, %s23
      %p404 = scmp.lt.s32.totalorder %s23, 5
      %p405 = pnand %p403, %p404
      %p406 = pneg %p405
      // Predicated region
      $region45: #{mixed_3b_forward.2} parent=5 // pred_check
        _
      $region46: #{mixed_3b_forward.2} parent=5 // pred_check_branch
        %408 = sbr.rel (%p405) target = $region48
      $region47: #{mixed_3b_forward.2} parent=5 // pred_region
        %s409 = ssub.s32 %s23, 1
        %s410 = sand.u32 %s56, 1
        %s411 = scalar_lea.sflag [#allocation4], %s410
        %s412 = sand.u32 %s56, 1
        %s413 = smul.addr %s412, 128
        %s414 = scalar_lea.vmem [#allocation3], %s413
        // Predicated region
        $region49: #{mixed_3b_forward.2} parent=47 // pred_check
          %p415 = pneg %p69
        $region50: #{mixed_3b_forward.2} parent=47 // pred_check_branch
          %417 = sbr.rel (%p415) target = $region52
        $region51: #{mixed_3b_forward.2} parent=47 // pred_region
          %418 = dma.done %s411, 2048
        $region52: #{mixed_3b_forward.2} parent=47 // pred_fallthru
          _
        %s419 = sand.u32 %s28, 1
        %s420 = scalar_lea.sflag [#allocation6], %s419
        %s421 = sand.u32 %s84, 1
        %s422 = smul.addr %s421, 128
        %s423 = scalar_lea.vmem [#allocation5], %s422
        // Predicated region
        $region53: #{mixed_3b_forward.2} parent=47 // pred_check
          %p424 = pneg %p97
        $region54: #{mixed_3b_forward.2} parent=47 // pred_check_branch
          %426 = sbr.rel (%p424) target = $region56
        $region55: #{mixed_3b_forward.2} parent=47 // pred_region
          %427 = dma.done %s420, 2048
        $region56: #{mixed_3b_forward.2} parent=47 // pred_fallthru
          _
        %s428 = sand.u32 %s28, 1
        %s429 = scalar_lea.sflag [#allocation6], %s428
        %s430 = sand.u32 %s118, 1
        %s431 = smul.addr %s430, 128
        %s432 = scalar_lea.vmem [#allocation7], %s431
        // Predicated region
        $region57: #{mixed_3b_forward.2} parent=47 // pred_check
          %p433 = pneg %p131
        $region58: #{mixed_3b_forward.2} parent=47 // pred_check_branch
          %435 = sbr.rel (%p433) target = $region60
        $region59: #{mixed_3b_forward.2} parent=47 // pred_region
          %436 = dma.done %s429, 2048
        $region60: #{mixed_3b_forward.2} parent=47 // pred_fallthru
          _
        // Predicated region
        $region61: #{mixed_3b_forward.2} parent=47 // pred_check
          %p437 = pneg %p152
        $region62: #{mixed_3b_forward.2} parent=47 // pred_check_branch
          %439 = sbr.rel (%p437) target = $region64
        $region63: #{mixed_3b_forward.2} parent=47 // pred_region
          %440 = dma.done [#allocation9], 3072
        $region64: #{mixed_3b_forward.2} parent=47 // pred_fallthru
          _
        // Predicated region
        $region65: #{mixed_3b_forward.2} parent=47 // pred_check
          %p441 = pneg %p173
        $region66: #{mixed_3b_forward.2} parent=47 // pred_check_branch
          %443 = sbr.rel (%p441) target = $region68
        $region67: #{mixed_3b_forward.2} parent=47 // pred_region
          %444 = dma.done [#allocation9], 32
        $region68: #{mixed_3b_forward.2} parent=47 // pred_fallthru
          _
        // Predicated region
        $region69: #{mixed_3b_forward.2} parent=47 // pred_check
          %p445 = pneg %p215
        $region70: #{mixed_3b_forward.2} parent=47 // pred_check_branch
          %447 = sbr.rel (%p445) target = $region72
        $region71: #{mixed_3b_forward.2} parent=47 // pred_region
          %448 = dma.done [#allocation12], 16
        $region72: #{mixed_3b_forward.2} parent=47 // pred_fallthru
          _
        %s449 = sand.u32 %s56, 1
        %s450 = scalar_lea.sflag [#allocation4], %s449
        %s451 = sand.u32 %s56, 1
        %s452 = smul.addr %s451, 128
        %s453 = scalar_lea.vmem [#allocation3], %s452
        %p454 = pneg %p69
        %p455 = pneg %p66
        %s456 = sand.u32 %s28, 1
        %s457 = scalar_lea.sflag [#allocation6], %s456
        %s458 = sand.u32 %s84, 1
        %s459 = smul.addr %s458, 128
        %s460 = scalar_lea.vmem [#allocation5], %s459
        %p461 = pneg %p97
        %p462 = pneg %p94
        %s463 = sand.u32 %s28, 1
        %s464 = scalar_lea.sflag [#allocation6], %s463
        %s465 = sand.u32 %s118, 1
        %s466 = smul.addr %s465, 128
        %s467 = scalar_lea.vmem [#allocation7], %s466
        %p468 = pneg %p131
        %p469 = pneg %p128
        %p470 = pneg %p152
        %p471 = pneg %p149
        %p472 = pneg %p173
        %p473 = pneg %p170
        %p474 = pneg %p194
        %p475 = pneg %p191
        %p476 = pneg %p215
        %p477 = pneg %p212
        %p478 = pneg %p243
        %p479 = pneg %p240
        %p480 = scmp.lt.s32.totalorder %s32, 0
        %s481 = scalar_select %p480, %s32, 0
        %p482 = scmp.lt.s32.totalorder %s33, 3
        %s483 = scalar_select %p482, %s33, 3
        %s484 = smul.addr %s483, 8
        %s485 = smul.addr %s481, 32
        %s486 = sadd.s32 %s484, %s485
        %s487 = smul.addr %s486, 4
        %s488 = scalar_lea.vmem %s7, %s487
        %p489 = pneg %p271
        %p490 = pneg %p268
        %p491 = scmp.lt.s32.totalorder %s32, 0
        %s492 = scalar_select %p491, %s32, 0
        %p493 = scmp.lt.s32.totalorder %s33, 3
        %s494 = scalar_select %p493, %s33, 3
        %s495 = smul.addr %s494, 8
        %s496 = smul.addr %s492, 32
        %s497 = sadd.s32 %s495, %s496
        %s498 = smul.addr %s497, 8
        %s499 = scalar_lea.vmem %s8, %s498
        %s500 = ssub.s32 %s33, 1
        %p501 = scmp.gt.s32.totalorder %s500, 0
        %s502 = scalar_select %p501, %s500, 0
        %s503 = sadd.s32 %s33, 1
        %p504 = scmp.lt.s32.totalorder %s503, 3
        %s505 = scalar_select %p504, %s503, 3
        %p506 = scmp.lt.s32.totalorder %s32, 0
        %s507 = scalar_select %p506, %s32, 0
        %p508 = scmp.lt.s32.totalorder %s33, 3
        %s509 = scalar_select %p508, %s33, 3
        %s510 = smul.addr %s509, 8
        %s511 = smul.addr %s507, 32
        %s512 = sadd.s32 %s510, %s511
        %s513 = smul.addr %s512, 4
        %s514 = scalar_lea.vmem %s7, %s513
        %p515 = scmp.lt.s32.totalorder %s32, 0
        %s516 = scalar_select %p515, %s32, 0
        %p517 = scmp.lt.s32.totalorder %s33, 3
        %s518 = scalar_select %p517, %s33, 3
        %s519 = smul.addr %s518, 8
        %s520 = smul.addr %s516, 32
        %s521 = sadd.s32 %s519, %s520
        %s522 = smul.addr %s521, 8
        %s523 = scalar_lea.vmem %s8, %s522
        %v525 = vld [vmem:[%s423] sm:$0xff]
        %v526 = vld [vmem:[%s423 + $0x8] sm:$0xff]
        %v527 = vld [vmem:[%s423 + $0x10] sm:$0xff]
        %v528 = vld [vmem:[%s423 + $0x18] sm:$0xff]
        %v529 = vld [vmem:[%s423 + $0x20] sm:$0xff]
        %v530 = vld [vmem:[%s423 + $0x28] sm:$0xff]
        %v531 = vld [vmem:[%s423 + $0x30] sm:$0xff]
        %v532 = vld [vmem:[%s423 + $0x38] sm:$0xff]
        %v533 = vld [vmem:[%s423 + $0x40] sm:$0xff]
        %v534 = vld [vmem:[%s423 + $0x48] sm:$0xff]
        %v535 = vld [vmem:[%s423 + $0x50] sm:$0xff]
        %v536 = vld [vmem:[%s423 + $0x58] sm:$0xff]
        %v537 = vld [vmem:[%s423 + $0x60] sm:$0xff]
        %v538 = vld [vmem:[%s423 + $0x68] sm:$0xff]
        %v539 = vld [vmem:[%s423 + $0x70] sm:$0xff]
        %v540 = vld [vmem:[%s423 + $0x78] sm:$0xff]
        %v541 = vpack.c.bf16 %v527, %v525
        %v542 = vpack.c.bf16 %v528, %v526
        %v543 = vpack.c.bf16 %v531, %v529
        %v544 = vpack.c.bf16 %v532, %v530
        %v545 = vpack.c.bf16 %v535, %v533
        %v546 = vpack.c.bf16 %v536, %v534
        %v547 = vpack.c.bf16 %v539, %v537
        %v548 = vpack.c.bf16 %v540, %v538
        %v549 = vld [vmem:[#allocation8] sm:$0xff]
        %v550 = vld [vmem:[#allocation8 + $0x8] sm:$0xff]
        %v551 = vld [vmem:[#allocation8 + $0x10] sm:$0xff]
        %v552 = vld [vmem:[#allocation8 + $0x18] sm:$0xff]
        %v553 = vld [vmem:[#allocation8 + $0x20] sm:$0xff]
        %v554 = vld [vmem:[#allocation8 + $0x28] sm:$0xff]
        %v555 = vld [vmem:[#allocation8 + $0x30] sm:$0xff]
        %v556 = vld [vmem:[#allocation8 + $0x38] sm:$0xff]
        %v557 = vld [vmem:[#allocation8 + $0x40] sm:$0xff]
        %v558 = vld [vmem:[#allocation8 + $0x48] sm:$0xff]
        %v559 = vld [vmem:[#allocation8 + $0x50] sm:$0xff]
        %v560 = vld [vmem:[#allocation8 + $0x58] sm:$0xff]
        %v561 = vld [vmem:[#allocation8 + $0x60] sm:$0xff]
        %v562 = vld [vmem:[#allocation8 + $0x68] sm:$0xff]
        %v563 = vld [vmem:[#allocation8 + $0x70] sm:$0xff]
        %v564 = vld [vmem:[#allocation8 + $0x78] sm:$0xff]
        %v565 = vld [vmem:[#allocation8 + $0x80] sm:$0xff]
        %v566 = vld [vmem:[#allocation8 + $0x88] sm:$0xff]
        %v567 = vld [vmem:[#allocation8 + $0x90] sm:$0xff]
        %v568 = vld [vmem:[#allocation8 + $0x98] sm:$0xff]
        %v569 = vld [vmem:[#allocation8 + $0xa0] sm:$0xff]
        %v570 = vld [vmem:[#allocation8 + $0xa8] sm:$0xff]
        %v571 = vld [vmem:[#allocation8 + $0xb0] sm:$0xff]
        %v572 = vld [vmem:[#allocation8 + $0xb8] sm:$0xff]
        %v573 = vld [vmem:[#allocation10] sm:$0x3]
        %v575 = vlaneseq
        %v576 = vshrl.u32 %v575, 7
        %v577 = vsub.s32 0, %v576
        %v578 = vrot.slane %v573, %v577
        %v579 = vlaneseq
        %v580 = vshrl.u32 %v579, 7
        %v581 = vsub.s32 1, %v580
        %v582 = vrot.slane %v573, %v581
        %v609 = vunpack.c.l.b16 %v549
        %v610 = vunpack.c.h.b16 %v549
        %v611 = vunpack.c.l.b16 %v550
        %v612 = vunpack.c.h.b16 %v550
        %v613 = vunpack.c.l.b16 %v551
        %v614 = vunpack.c.h.b16 %v551
        %v615 = vunpack.c.l.b16 %v552
        %v616 = vunpack.c.h.b16 %v552
        %v617 = vunpack.c.l.b16 %v553
        %v618 = vunpack.c.h.b16 %v553
        %v619 = vunpack.c.l.b16 %v554
        %v620 = vunpack.c.h.b16 %v554
        %v621 = vunpack.c.l.b16 %v555
        %v622 = vunpack.c.h.b16 %v555
        %v623 = vunpack.c.l.b16 %v556
        %v624 = vunpack.c.h.b16 %v556
        %v625 = vunpack.c.l.b16 %v557
        %v626 = vunpack.c.h.b16 %v557
        %v627 = vunpack.c.l.b16 %v558
        %v628 = vunpack.c.h.b16 %v558
        %v629 = vunpack.c.l.b16 %v559
        %v630 = vunpack.c.h.b16 %v559
        %v631 = vunpack.c.l.b16 %v560
        %v632 = vunpack.c.h.b16 %v560
        %v633 = vunpack.c.l.b16 %v561
        %v634 = vunpack.c.h.b16 %v561
        %v635 = vunpack.c.l.b16 %v562
        %v636 = vunpack.c.h.b16 %v562
        %v637 = vunpack.c.l.b16 %v563
        %v638 = vunpack.c.h.b16 %v563
        %v639 = vunpack.c.l.b16 %v564
        %v640 = vunpack.c.h.b16 %v564
        %v641 = vunpack.c.l.b16 %v565
        %v642 = vunpack.c.h.b16 %v565
        %v643 = vunpack.c.l.b16 %v566
        %v644 = vunpack.c.h.b16 %v566
        %v645 = vunpack.c.l.b16 %v567
        %v646 = vunpack.c.h.b16 %v567
        %v647 = vunpack.c.l.b16 %v568
        %v648 = vunpack.c.h.b16 %v568
        %v649 = vunpack.c.l.b16 %v569
        %v650 = vunpack.c.h.b16 %v569
        %v651 = vunpack.c.l.b16 %v570
        %v652 = vunpack.c.h.b16 %v570
        %v653 = vunpack.c.l.b16 %v571
        %v654 = vunpack.c.h.b16 %v571
        %v655 = vunpack.c.l.b16 %v572
        %v656 = vunpack.c.h.b16 %v572
        %v657 = vpack.c.b16 %v611, %v609
        %v658 = vpack.c.b16 %v612, %v610
        %v659 = vpack.c.b16 %v615, %v613
        %v660 = vpack.c.b16 %v616, %v614
        %v661 = vpack.c.b16 %v619, %v617
        %v662 = vpack.c.b16 %v620, %v618
        %v663 = vpack.c.b16 %v623, %v621
        %v664 = vpack.c.b16 %v624, %v622
        %v665 = vpack.c.b16 %v627, %v625
        %v666 = vpack.c.b16 %v628, %v626
        %v667 = vpack.c.b16 %v631, %v629
        %v668 = vpack.c.b16 %v632, %v630
        %v669 = vpack.c.b16 %v635, %v633
        %v670 = vpack.c.b16 %v636, %v634
        %v671 = vpack.c.b16 %v639, %v637
        %v672 = vpack.c.b16 %v640, %v638
        %v673 = vpack.c.b16 %v643, %v641
        %v674 = vpack.c.b16 %v644, %v642
        %v675 = vpack.c.b16 %v647, %v645
        %v676 = vpack.c.b16 %v648, %v646
        %v677 = vpack.c.b16 %v651, %v649
        %v678 = vpack.c.b16 %v652, %v650
        %v679 = vpack.c.b16 %v655, %v653
        %v680 = vpack.c.b16 %v656, %v654
        %vm705 = vcmask 523264
        %v707 = vsel %vm705, %v542, 0
        %v710 = vsel %vm705, %v544, 0
        %v713 = vsel %vm705, %v546, 0
        %v716 = vsel %vm705, %v548, 0
        %718 = vmatprep.subr.bf16.mxu0 %v672
        %719 = vmatpush1.bf16.msra.mxu0 %v671
        %720 = vmatprep.subr.bf16.mxu0 %v670
        %721 = vmatpush1.bf16.msra.mxu0 %v669
        %722 = vmatprep.subr.bf16.mxu0 %v668
        %723 = vmatpush1.bf16.msra.mxu0 %v667
        %724 = vmatprep.subr.bf16.mxu0 %v666
        %725 = vmatpush1.bf16.msra.mxu0 %v665
        %726 = vmatprep.subr.bf16.mxu0 %v664
        %727 = vmatpush1.bf16.msra.mxu0 %v663
        %728 = vmatprep.subr.bf16.mxu0 %v662
        %729 = vmatpush1.bf16.msra.mxu0 %v661
        %730 = vmatprep.subr.bf16.mxu0 %v660
        %731 = vmatpush1.bf16.msra.mxu0 %v659
        %732 = vmatprep.subr.bf16.mxu0 %v658
        %733 = vmatpush1.bf16.msra.mxu0 %v657
        %734 = vmatprep.subr.bf16.mxu0 0
        %735 = vmatpush2.bf16.msra.mxu0 0
        %736 = vmatprep.subr.bf16.mxu0 0
        %737 = vmatpush2.bf16.msra.mxu0 0
        %738 = vmatprep.subr.bf16.mxu0 0
        %739 = vmatpush2.bf16.msra.mxu0 0
        %740 = vmatprep.subr.bf16.mxu0 0
        %741 = vmatpush2.bf16.msra.mxu0 0
        %742 = vmatprep.subr.bf16.mxu0 %v680
        %743 = vmatpush2.bf16.msra.mxu0 %v679
        %744 = vmatprep.subr.bf16.mxu0 %v678
        %745 = vmatpush2.bf16.msra.mxu0 %v677
        %746 = vmatprep.subr.bf16.mxu0 %v676
        %747 = vmatpush2.bf16.msra.mxu0 %v675
        %748 = vmatprep.subr.bf16.mxu0 %v674
        %749 = vmatpush2.bf16.msra.mxu0 %v673
        %750 = vmatprep.mubr.bf16.mxu0 %v707
        %751 = vmatmul.mubr.bf16.gmra.mxu0 %v541
        %v752 = vpop.f32.mrf.mxu0
        %v753 = vadd.f32 %v578, %v752
        %v754 = vpop.f32.mrf.mxu0
        %v755 = vadd.f32 %v582, %v754
        %v756 = vpop.f32.mrf.mxu0
        %v757 = vadd.f32 %v578, %v756
        %v758 = vpop.f32.mrf.mxu0
        %v759 = vadd.f32 %v582, %v758
        %760 = vmatprep.mubr.bf16.mxu0 %v710
        %761 = vmatmul.mubr.bf16.gmra.mxu0 %v543
        %v762 = vpop.f32.mrf.mxu0
        %v763 = vadd.f32 %v578, %v762
        %v764 = vpop.f32.mrf.mxu0
        %v765 = vadd.f32 %v582, %v764
        %v766 = vpop.f32.mrf.mxu0
        %v767 = vadd.f32 %v578, %v766
        %v768 = vpop.f32.mrf.mxu0
        %v769 = vadd.f32 %v582, %v768
        %770 = vmatprep.mubr.bf16.mxu0 %v713
        %771 = vmatmul.mubr.bf16.gmra.mxu0 %v545
        %v772 = vpop.f32.mrf.mxu0
        %v773 = vadd.f32 %v578, %v772
        %v774 = vpop.f32.mrf.mxu0
        %v775 = vadd.f32 %v582, %v774
        %v776 = vpop.f32.mrf.mxu0
        %v777 = vadd.f32 %v578, %v776
        %v778 = vpop.f32.mrf.mxu0
        %v779 = vadd.f32 %v582, %v778
        %780 = vmatprep.mubr.bf16.mxu0 %v716
        %781 = vmatmul.mubr.bf16.gmra.mxu0 %v547
        %v782 = vpop.f32.mrf.mxu0
        %v783 = vadd.f32 %v578, %v782
        %v784 = vpop.f32.mrf.mxu0
        %v785 = vadd.f32 %v582, %v784
        %v786 = vpop.f32.mrf.mxu0
        %v787 = vadd.f32 %v578, %v786
        %v788 = vpop.f32.mrf.mxu0
        %v789 = vadd.f32 %v582, %v788
        %790 = vdwg.mxu0
        %v791 = vmax.f32 %v753, 0.0
        %v792 = vmax.f32 %v755, 0.0
        %v793 = vmax.f32 %v757, 0.0
        %v794 = vmax.f32 %v759, 0.0
        %v795 = vmax.f32 %v763, 0.0
        %v796 = vmax.f32 %v765, 0.0
        %v797 = vmax.f32 %v767, 0.0
        %v798 = vmax.f32 %v769, 0.0
        %v799 = vmax.f32 %v773, 0.0
        %v800 = vmax.f32 %v775, 0.0
        %v801 = vmax.f32 %v777, 0.0
        %v802 = vmax.f32 %v779, 0.0
        %v803 = vmax.f32 %v783, 0.0
        %v804 = vmax.f32 %v785, 0.0
        %v805 = vmax.f32 %v787, 0.0
        %v806 = vmax.f32 %v789, 0.0
        %v807 = vpack.c.bf16 %v793, %v791
        %v808 = vpack.c.bf16 %v797, %v795
        %v809 = vpack.c.bf16 %v801, %v799
        %v810 = vpack.c.bf16 %v805, %v803
        %v815 = vunpack.c.l.b16 %v807
        %v816 = vunpack.c.h.b16 %v807
        %v817 = vunpack.c.l.b16 %v808
        %v818 = vunpack.c.h.b16 %v808
        %v819 = vunpack.c.l.b16 %v809
        %v820 = vunpack.c.h.b16 %v809
        %v821 = vunpack.c.l.b16 %v810
        %v822 = vunpack.c.h.b16 %v810
        %v823 = vpack.c.b16 %v815, %v815
        %v824 = vpack.c.b16 %v816, %v816
        %v825 = vpack.c.b16 %v817, %v817
        %v826 = vpack.c.b16 %v818, %v818
        %v827 = vpack.c.b16 %v819, %v819
        %v828 = vpack.c.b16 %v820, %v820
        %v829 = vpack.c.b16 %v821, %v821
        %v830 = vpack.c.b16 %v822, %v822
        %839 = vst [vmem:[%s514] sm:$0xf] %v823
        %840 = vst [vmem:[%s514 + $0x4] sm:$0xf] %v824
        %841 = vst [vmem:[%s514 + $0x8] sm:$0xf] %v825
        %842 = vst [vmem:[%s514 + $0xc] sm:$0xf] %v826
        %843 = vst [vmem:[%s514 + $0x10] sm:$0xf] %v827
        %844 = vst [vmem:[%s514 + $0x14] sm:$0xf] %v828
        %845 = vst [vmem:[%s514 + $0x18] sm:$0xf] %v829
        %846 = vst [vmem:[%s514 + $0x1c] sm:$0xf] %v830
        %847 = vst.msk [vmem:[%s523] sm:$0xff] %vm705, %v792
        %848 = vst.msk [vmem:[%s523 + $0x8] sm:$0xff] %vm705, %v794
        %849 = vst.msk [vmem:[%s523 + $0x10] sm:$0xff] %vm705, %v796
        %850 = vst.msk [vmem:[%s523 + $0x18] sm:$0xff] %vm705, %v798
        %851 = vst.msk [vmem:[%s523 + $0x20] sm:$0xff] %vm705, %v800
        %852 = vst.msk [vmem:[%s523 + $0x28] sm:$0xff] %vm705, %v802
        %853 = vst.msk [vmem:[%s523 + $0x30] sm:$0xff] %vm705, %v804
        %854 = vst.msk [vmem:[%s523 + $0x38] sm:$0xff] %vm705, %v806
        %v855 = vstv %s33
        %vm856 = vcmp.gt.s32.totalorder %v855, 0
        %v857 = vld [vmem:[%s414] sm:$0xff]
        %v858 = vld [vmem:[%s414 + $0x8] sm:$0xff]
        %v859 = vld [vmem:[%s414 + $0x10] sm:$0xff]
        %v860 = vld [vmem:[%s414 + $0x18] sm:$0xff]
        %v861 = vld [vmem:[%s414 + $0x20] sm:$0xff]
        %v862 = vld [vmem:[%s414 + $0x28] sm:$0xff]
        %v863 = vld [vmem:[%s414 + $0x30] sm:$0xff]
        %v864 = vld [vmem:[%s414 + $0x38] sm:$0xff]
        %v865 = vld [vmem:[%s414 + $0x40] sm:$0xff]
        %v866 = vld [vmem:[%s414 + $0x48] sm:$0xff]
        %v867 = vld [vmem:[%s414 + $0x50] sm:$0xff]
        %v868 = vld [vmem:[%s414 + $0x58] sm:$0xff]
        %v869 = vld [vmem:[%s414 + $0x60] sm:$0xff]
        %v870 = vld [vmem:[%s414 + $0x68] sm:$0xff]
        %v871 = vld [vmem:[%s414 + $0x70] sm:$0xff]
        %v872 = vld [vmem:[%s414 + $0x78] sm:$0xff]
        %v873 = vsel %vm856, %v857, -inf
        %v874 = vsel %vm856, %v858, -inf
        %v875 = vsel %vm856, %v859, -inf
        %v876 = vsel %vm856, %v860, -inf
        %v877 = vsel %vm856, %v861, -inf
        %v878 = vsel %vm856, %v862, -inf
        %v879 = vsel %vm856, %v863, -inf
        %v880 = vsel %vm856, %v864, -inf
        %v881 = vsel %vm856, %v865, -inf
        %v882 = vsel %vm856, %v866, -inf
        %v883 = vsel %vm856, %v867, -inf
        %v884 = vsel %vm856, %v868, -inf
        %v885 = vsel %vm856, %v869, -inf
        %v886 = vsel %vm856, %v870, -inf
        %v887 = vsel %vm856, %v871, -inf
        %v888 = vsel %vm856, %v872, -inf
        %vm889 = vcmp.lt.s32.totalorder %v855, 3
        %v890 = vld [vmem:[%s432] sm:$0xff]
        %v891 = vld [vmem:[%s432 + $0x8] sm:$0xff]
        %v892 = vld [vmem:[%s432 + $0x10] sm:$0xff]
        %v893 = vld [vmem:[%s432 + $0x18] sm:$0xff]
        %v894 = vld [vmem:[%s432 + $0x20] sm:$0xff]
        %v895 = vld [vmem:[%s432 + $0x28] sm:$0xff]
        %v896 = vld [vmem:[%s432 + $0x30] sm:$0xff]
        %v897 = vld [vmem:[%s432 + $0x38] sm:$0xff]
        %v898 = vld [vmem:[%s432 + $0x40] sm:$0xff]
        %v899 = vld [vmem:[%s432 + $0x48] sm:$0xff]
        %v900 = vld [vmem:[%s432 + $0x50] sm:$0xff]
        %v901 = vld [vmem:[%s432 + $0x58] sm:$0xff]
        %v902 = vld [vmem:[%s432 + $0x60] sm:$0xff]
        %v903 = vld [vmem:[%s432 + $0x68] sm:$0xff]
        %v904 = vld [vmem:[%s432 + $0x70] sm:$0xff]
        %v905 = vld [vmem:[%s432 + $0x78] sm:$0xff]
        %v906 = vsel %vm889, %v890, -inf
        %v907 = vsel %vm889, %v891, -inf
        %v908 = vsel %vm889, %v892, -inf
        %v909 = vsel %vm889, %v893, -inf
        %v910 = vsel %vm889, %v894, -inf
        %v911 = vsel %vm889, %v895, -inf
        %v912 = vsel %vm889, %v896, -inf
        %v913 = vsel %vm889, %v897, -inf
        %v914 = vsel %vm889, %v898, -inf
        %v915 = vsel %vm889, %v899, -inf
        %v916 = vsel %vm889, %v900, -inf
        %v917 = vsel %vm889, %v901, -inf
        %v918 = vsel %vm889, %v902, -inf
        %v919 = vsel %vm889, %v903, -inf
        %v920 = vsel %vm889, %v904, -inf
        %v921 = vsel %vm889, %v905, -inf
        %v922 = vmax.f32 %v873, %v906
        %v923 = vmax.f32 %v874, %v907
        %v924 = vmax.f32 %v875, %v908
        %v925 = vmax.f32 %v876, %v909
        %v926 = vmax.f32 %v877, %v910
        %v927 = vmax.f32 %v878, %v911
        %v928 = vmax.f32 %v879, %v912
        %v929 = vmax.f32 %v880, %v913
        %v930 = vmax.f32 %v881, %v914
        %v931 = vmax.f32 %v882, %v915
        %v932 = vmax.f32 %v883, %v916
        %v933 = vmax.f32 %v884, %v917
        %v934 = vmax.f32 %v885, %v918
        %v935 = vmax.f32 %v886, %v919
        %v936 = vmax.f32 %v887, %v920
        %v937 = vmax.f32 %v888, %v921
        %v938 = vmax.f32 %v922, %v525
        %v939 = vmax.f32 %v923, %v526
        %v940 = vmax.f32 %v924, %v527
        %v941 = vmax.f32 %v925, %v528
        %v942 = vmax.f32 %v926, %v529
        %v943 = vmax.f32 %v927, %v530
        %v944 = vmax.f32 %v928, %v531
        %v945 = vmax.f32 %v929, %v532
        %v946 = vmax.f32 %v930, %v533
        %v947 = vmax.f32 %v931, %v534
        %v948 = vmax.f32 %v932, %v535
        %v949 = vmax.f32 %v933, %v536
        %v950 = vmax.f32 %v934, %v537
        %v951 = vmax.f32 %v935, %v538
        %v952 = vmax.f32 %v936, %v539
        %v953 = vmax.f32 %v937, %v540
        %954 = vst [vmem:[#allocation2] sm:$0xff] -inf
        %955 = vst.msk [vmem:[#allocation2 + $0x8] sm:$0xff] %vm705, -inf
        %956 = vst [vmem:[#allocation2 + $0x10] sm:$0x3] -inf
        %vm957 = vcmask 517120
        %958 = vst.msk [vmem:[#allocation2 + $0x18] sm:$0x3] %vm957, -inf
        %959 = vst [vmem:[#allocation2 + $0x20] sm:$0xff] -inf
        %960 = vst.msk [vmem:[#allocation2 + $0x28] sm:$0xff] %vm705, -inf
        %961 = vst [vmem:[#allocation2 + $0x30] sm:$0x3] -inf
        %962 = vst.msk [vmem:[#allocation2 + $0x38] sm:$0x3] %vm957, -inf
        %963 = vst [vmem:[#allocation2 + $0x40] sm:$0xff] -inf
        %964 = vst.msk [vmem:[#allocation2 + $0x48] sm:$0xff] %vm705, -inf
        %965 = vst [vmem:[#allocation2 + $0x50] sm:$0x3] -inf
        %966 = vst.msk [vmem:[#allocation2 + $0x58] sm:$0x3] %vm957, -inf
        %967 = vst [vmem:[#allocation2 + $0x60] sm:$0xff] -inf
        %968 = vst.msk [vmem:[#allocation2 + $0x68] sm:$0xff] %vm705, -inf
        %969 = vst [vmem:[#allocation2 + $0x70] sm:$0x3] -inf
        %970 = vst.msk [vmem:[#allocation2 + $0x78] sm:$0x3] %vm957, -inf
        %971 = vst [vmem:[#allocation2 + $0x80] sm:$0xff] -inf
        %972 = vst.msk [vmem:[#allocation2 + $0x88] sm:$0xff] %vm705, -inf
        %973 = vst [vmem:[#allocation2 + $0x90] sm:$0x3] -inf
        %974 = vst.msk [vmem:[#allocation2 + $0x98] sm:$0x3] %vm957, -inf
        %975 = vst [vmem:[#allocation2 + $0xa0] sm:$0xff] -inf
        %976 = vst.msk [vmem:[#allocation2 + $0xa8] sm:$0xff] %vm705, -inf
        %977 = vst [vmem:[#allocation2 + $0xb0] sm:$0x3] -inf
        %978 = vst.msk [vmem:[#allocation2 + $0xb8] sm:$0x3] %vm957, -inf
        %979 = vst [vmem:[#allocation2 + $0xc0] sm:$0xff] -inf
        %980 = vst.msk [vmem:[#allocation2 + $0xc8] sm:$0xff] %vm705, -inf
        %981 = vst [vmem:[#allocation2 + $0xd0] sm:$0x3] -inf
        %982 = vst.msk [vmem:[#allocation2 + $0xd8] sm:$0x3] %vm957, -inf
        %983 = vst [vmem:[#allocation2 + $0xe0] sm:$0xff] -inf
        %984 = vst.msk [vmem:[#allocation2 + $0xe8] sm:$0xff] %vm705, -inf
        %985 = vst [vmem:[#allocation2 + $0xf0] sm:$0x3] -inf
        %986 = vst.msk [vmem:[#allocation2 + $0xf8] sm:$0x3] %vm957, -inf
        %987 = vst [vmem:[#allocation2 + $0x100] sm:$0xff] -inf
        %988 = vst.msk [vmem:[#allocation2 + $0x108] sm:$0xff] %vm705, -inf
        %989 = vst [vmem:[#allocation2 + $0x110] sm:$0x3] -inf
        %990 = vst.msk [vmem:[#allocation2 + $0x118] sm:$0x3] %vm957, -inf
        %991 = vst [vmem:[#allocation2 + $0x120] sm:$0xff] -inf
        %992 = vst.msk [vmem:[#allocation2 + $0x128] sm:$0xff] %vm705, -inf
        %993 = vst [vmem:[#allocation2 + $0x130] sm:$0x3] -inf
        %994 = vst.msk [vmem:[#allocation2 + $0x138] sm:$0x3] %vm957, -inf
        %v1011 = vrot.slane %v938, 7
        %v1012 = vrot.slane %v939, 7
        %v1013 = vrot.slane %v940, 7
        %v1014 = vrot.slane %v941, 7
        %v1015 = vrot.slane %v942, 7
        %v1016 = vrot.slane %v943, 7
        %v1017 = vrot.slane %v944, 7
        %v1018 = vrot.slane %v945, 7
        %v1019 = vrot.slane %v946, 7
        %v1020 = vrot.slane %v947, 7
        %v1021 = vrot.slane %v948, 7
        %v1022 = vrot.slane %v949, 7
        %v1023 = vrot.slane %v950, 7
        %v1024 = vrot.slane %v951, 7
        %v1025 = vrot.slane %v952, 7
        %v1026 = vrot.slane %v953, 7
        %s1043 = scalar_lea.vmem [#allocation2], 32
        %1044 = vst [vmem:[%s1043] sm:$0xfe] %v1011
        %vm1045 = vcmask 523265
        %1046 = vst.msk [vmem:[%s1043 + $0x8] sm:$0xfe] %vm1045, %v1012
        %1047 = vst [vmem:[%s1043 + $0x10] sm:$0x1] %v1011
        %vm1048 = vcmask 516096
        %1049 = vst.msk [vmem:[%s1043 + $0x18] sm:$0x1] %vm1048, %v1012
        %1050 = vst [vmem:[%s1043 + $0x20] sm:$0xfe] %v1013
        %1051 = vst.msk [vmem:[%s1043 + $0x28] sm:$0xfe] %vm1045, %v1014
        %1052 = vst [vmem:[%s1043 + $0x30] sm:$0x1] %v1013
        %1053 = vst.msk [vmem:[%s1043 + $0x38] sm:$0x1] %vm1048, %v1014
        %1054 = vst [vmem:[%s1043 + $0x40] sm:$0xfe] %v1015
        %1055 = vst.msk [vmem:[%s1043 + $0x48] sm:$0xfe] %vm1045, %v1016
        %1056 = vst [vmem:[%s1043 + $0x50] sm:$0x1] %v1015
        %1057 = vst.msk [vmem:[%s1043 + $0x58] sm:$0x1] %vm1048, %v1016
        %1058 = vst [vmem:[%s1043 + $0x60] sm:$0xfe] %v1017
        %1059 = vst.msk [vmem:[%s1043 + $0x68] sm:$0xfe] %vm1045, %v1018
        %1060 = vst [vmem:[%s1043 + $0x70] sm:$0x1] %v1017
        %1061 = vst.msk [vmem:[%s1043 + $0x78] sm:$0x1] %vm1048, %v1018
        %1062 = vst [vmem:[%s1043 + $0x80] sm:$0xfe] %v1019
        %1063 = vst.msk [vmem:[%s1043 + $0x88] sm:$0xfe] %vm1045, %v1020
        %1064 = vst [vmem:[%s1043 + $0x90] sm:$0x1] %v1019
        %1065 = vst.msk [vmem:[%s1043 + $0x98] sm:$0x1] %vm1048, %v1020
        %1066 = vst [vmem:[%s1043 + $0xa0] sm:$0xfe] %v1021
        %1067 = vst.msk [vmem:[%s1043 + $0xa8] sm:$0xfe] %vm1045, %v1022
        %1068 = vst [vmem:[%s1043 + $0xb0] sm:$0x1] %v1021
        %1069 = vst.msk [vmem:[%s1043 + $0xb8] sm:$0x1] %vm1048, %v1022
        %1070 = vst [vmem:[%s1043 + $0xc0] sm:$0xfe] %v1023
        %1071 = vst.msk [vmem:[%s1043 + $0xc8] sm:$0xfe] %vm1045, %v1024
        %1072 = vst [vmem:[%s1043 + $0xd0] sm:$0x1] %v1023
        %1073 = vst.msk [vmem:[%s1043 + $0xd8] sm:$0x1] %vm1048, %v1024
        %1074 = vst [vmem:[%s1043 + $0xe0] sm:$0xfe] %v1025
        %1075 = vst.msk [vmem:[%s1043 + $0xe8] sm:$0xfe] %vm1045, %v1026
        %1076 = vst [vmem:[%s1043 + $0xf0] sm:$0x1] %v1025
        %1077 = vst.msk [vmem:[%s1043 + $0xf8] sm:$0x1] %vm1048, %v1026
        %v1078 = vld [vmem:[#allocation2] sm:$0xff]
        %v1079 = vld [vmem:[#allocation2 + $0x8] sm:$0xff]
        %v1080 = vld [vmem:[#allocation2 + $0x20] sm:$0xff]
        %v1081 = vld [vmem:[#allocation2 + $0x28] sm:$0xff]
        %v1082 = vld [vmem:[#allocation2 + $0x40] sm:$0xff]
        %v1083 = vld [vmem:[#allocation2 + $0x48] sm:$0xff]
        %v1084 = vld [vmem:[#allocation2 + $0x60] sm:$0xff]
        %v1085 = vld [vmem:[#allocation2 + $0x68] sm:$0xff]
        %v1086 = vld [vmem:[#allocation2 + $0x80] sm:$0xff]
        %v1087 = vld [vmem:[#allocation2 + $0x88] sm:$0xff]
        %v1088 = vld [vmem:[#allocation2 + $0xa0] sm:$0xff]
        %v1089 = vld [vmem:[#allocation2 + $0xa8] sm:$0xff]
        %v1090 = vld [vmem:[#allocation2 + $0xc0] sm:$0xff]
        %v1091 = vld [vmem:[#allocation2 + $0xc8] sm:$0xff]
        %v1092 = vld [vmem:[#allocation2 + $0xe0] sm:$0xff]
        %v1093 = vld [vmem:[#allocation2 + $0xe8] sm:$0xff]
        %v1094 = vmax.f32 %v938, %v1078
        %v1095 = vmax.f32 %v939, %v1079
        %v1096 = vmax.f32 %v940, %v1080
        %v1097 = vmax.f32 %v941, %v1081
        %v1098 = vmax.f32 %v942, %v1082
        %v1099 = vmax.f32 %v943, %v1083
        %v1100 = vmax.f32 %v944, %v1084
        %v1101 = vmax.f32 %v945, %v1085
        %v1102 = vmax.f32 %v946, %v1086
        %v1103 = vmax.f32 %v947, %v1087
        %v1104 = vmax.f32 %v948, %v1088
        %v1105 = vmax.f32 %v949, %v1089
        %v1106 = vmax.f32 %v950, %v1090
        %v1107 = vmax.f32 %v951, %v1091
        %v1108 = vmax.f32 %v952, %v1092
        %v1109 = vmax.f32 %v953, %v1093
        %v1110 = vld [vmem:[#allocation2] sm:$0xfe]
        %v1111 = vld [vmem:[#allocation2 + $0x8] sm:$0xfe]
        %v1112 = vld [vmem:[#allocation2 + $0x10] sm:$0x1]
        %v1113 = vld [vmem:[#allocation2 + $0x18] sm:$0x1]
        %v1114 = vld [vmem:[#allocation2 + $0x20] sm:$0xfe]
        %v1115 = vld [vmem:[#allocation2 + $0x28] sm:$0xfe]
        %v1116 = vld [vmem:[#allocation2 + $0x30] sm:$0x1]
        %v1117 = vld [vmem:[#allocation2 + $0x38] sm:$0x1]
        %v1118 = vld [vmem:[#allocation2 + $0x40] sm:$0xfe]
        %v1119 = vld [vmem:[#allocation2 + $0x48] sm:$0xfe]
        %v1120 = vld [vmem:[#allocation2 + $0x50] sm:$0x1]
        %v1121 = vld [vmem:[#allocation2 + $0x58] sm:$0x1]
        %v1122 = vld [vmem:[#allocation2 + $0x60] sm:$0xfe]
        %v1123 = vld [vmem:[#allocation2 + $0x68] sm:$0xfe]
        %v1124 = vld [vmem:[#allocation2 + $0x70] sm:$0x1]
        %v1125 = vld [vmem:[#allocation2 + $0x78] sm:$0x1]
        %v1126 = vld [vmem:[#allocation2 + $0x80] sm:$0xfe]
        %v1127 = vld [vmem:[#allocation2 + $0x88] sm:$0xfe]
        %v1128 = vld [vmem:[#allocation2 + $0x90] sm:$0x1]
        %v1129 = vld [vmem:[#allocation2 + $0x98] sm:$0x1]
        %v1130 = vld [vmem:[#allocation2 + $0xa0] sm:$0xfe]
        %v1131 = vld [vmem:[#allocation2 + $0xa8] sm:$0xfe]
        %v1132 = vld [vmem:[#allocation2 + $0xb0] sm:$0x1]
        %v1133 = vld [vmem:[#allocation2 + $0xb8] sm:$0x1]
        %v1134 = vld [vmem:[#allocation2 + $0xc0] sm:$0xfe]
        %v1135 = vld [vmem:[#allocation2 + $0xc8] sm:$0xfe]
        %v1136 = vld [vmem:[#allocation2 + $0xd0] sm:$0x1]
        %v1137 = vld [vmem:[#allocation2 + $0xd8] sm:$0x1]
        %v1138 = vld [vmem:[#allocation2 + $0xe0] sm:$0xfe]
        %v1139 = vld [vmem:[#allocation2 + $0xe8] sm:$0xfe]
        %v1140 = vld [vmem:[#allocation2 + $0xf0] sm:$0x1]
        %v1141 = vld [vmem:[#allocation2 + $0xf8] sm:$0x1]
        %vm1174 = vcmask 1046528
        %v1175 = vrot.slane %v1110, 1
        %v1176 = vrot.slane %v1112, 1
        %v1177 = vsel %vm1174, %v1175, %v1176
        %v1178 = vrot.slane %v1111, 1
        %v1179 = vrot.slane %v1113, 1
        %v1180 = vsel %vm1174, %v1178, %v1179
        %v1181 = vrot.slane %v1114, 1
        %v1182 = vrot.slane %v1116, 1
        %v1183 = vsel %vm1174, %v1181, %v1182
        %v1184 = vrot.slane %v1115, 1
        %v1185 = vrot.slane %v1117, 1
        %v1186 = vsel %vm1174, %v1184, %v1185
        %v1187 = vrot.slane %v1118, 1
        %v1188 = vrot.slane %v1120, 1
        %v1189 = vsel %vm1174, %v1187, %v1188
        %v1190 = vrot.slane %v1119, 1
        %v1191 = vrot.slane %v1121, 1
        %v1192 = vsel %vm1174, %v1190, %v1191
        %v1193 = vrot.slane %v1122, 1
        %v1194 = vrot.slane %v1124, 1
        %v1195 = vsel %vm1174, %v1193, %v1194
        %v1196 = vrot.slane %v1123, 1
        %v1197 = vrot.slane %v1125, 1
        %v1198 = vsel %vm1174, %v1196, %v1197
        %v1199 = vrot.slane %v1126, 1
        %v1200 = vrot.slane %v1128, 1
        %v1201 = vsel %vm1174, %v1199, %v1200
        %v1202 = vrot.slane %v1127, 1
        %v1203 = vrot.slane %v1129, 1
        %v1204 = vsel %vm1174, %v1202, %v1203
        %v1205 = vrot.slane %v1130, 1
        %v1206 = vrot.slane %v1132, 1
        %v1207 = vsel %vm1174, %v1205, %v1206
        %v1208 = vrot.slane %v1131, 1
        %v1209 = vrot.slane %v1133, 1
        %v1210 = vsel %vm1174, %v1208, %v1209
        %v1211 = vrot.slane %v1134, 1
        %v1212 = vrot.slane %v1136, 1
        %v1213 = vsel %vm1174, %v1211, %v1212
        %v1214 = vrot.slane %v1135, 1
        %v1215 = vrot.slane %v1137, 1
        %v1216 = vsel %vm1174, %v1214, %v1215
        %v1217 = vrot.slane %v1138, 1
        %v1218 = vrot.slane %v1140, 1
        %v1219 = vsel %vm1174, %v1217, %v1218
        %v1220 = vrot.slane %v1139, 1
        %v1221 = vrot.slane %v1141, 1
        %v1222 = vsel %vm1174, %v1220, %v1221
        %v1239 = vmax.f32 %v1094, %v1177
        %v1240 = vmax.f32 %v1095, %v1180
        %v1241 = vmax.f32 %v1096, %v1183
        %v1242 = vmax.f32 %v1097, %v1186
        %v1243 = vmax.f32 %v1098, %v1189
        %v1244 = vmax.f32 %v1099, %v1192
        %v1245 = vmax.f32 %v1100, %v1195
        %v1246 = vmax.f32 %v1101, %v1198
        %v1247 = vmax.f32 %v1102, %v1201
        %v1248 = vmax.f32 %v1103, %v1204
        %v1249 = vmax.f32 %v1104, %v1207
        %v1250 = vmax.f32 %v1105, %v1210
        %v1251 = vmax.f32 %v1106, %v1213
        %v1252 = vmax.f32 %v1107, %v1216
        %v1253 = vmax.f32 %v1108, %v1219
        %v1254 = vmax.f32 %v1109, %v1222
        %v1255 = vld [vmem:[#allocation2] sm:$0xfc]
        %v1256 = vld [vmem:[#allocation2 + $0x8] sm:$0xfc]
        %v1257 = vld [vmem:[#allocation2 + $0x10] sm:$0x3]
        %v1258 = vld [vmem:[#allocation2 + $0x18] sm:$0x3]
        %v1259 = vld [vmem:[#allocation2 + $0x20] sm:$0xfc]
        %v1260 = vld [vmem:[#allocation2 + $0x28] sm:$0xfc]
        %v1261 = vld [vmem:[#allocation2 + $0x30] sm:$0x3]
        %v1262 = vld [vmem:[#allocation2 + $0x38] sm:$0x3]
        %v1263 = vld [vmem:[#allocation2 + $0x40] sm:$0xfc]
        %v1264 = vld [vmem:[#allocation2 + $0x48] sm:$0xfc]
        %v1265 = vld [vmem:[#allocation2 + $0x50] sm:$0x3]
        %v1266 = vld [vmem:[#allocation2 + $0x58] sm:$0x3]
        %v1267 = vld [vmem:[#allocation2 + $0x60] sm:$0xfc]
        %v1268 = vld [vmem:[#allocation2 + $0x68] sm:$0xfc]
        %v1269 = vld [vmem:[#allocation2 + $0x70] sm:$0x3]
        %v1270 = vld [vmem:[#allocation2 + $0x78] sm:$0x3]
        %v1271 = vld [vmem:[#allocation2 + $0x80] sm:$0xfc]
        %v1272 = vld [vmem:[#allocation2 + $0x88] sm:$0xfc]
        %v1273 = vld [vmem:[#allocation2 + $0x90] sm:$0x3]
        %v1274 = vld [vmem:[#allocation2 + $0x98] sm:$0x3]
        %v1275 = vld [vmem:[#allocation2 + $0xa0] sm:$0xfc]
        %v1276 = vld [vmem:[#allocation2 + $0xa8] sm:$0xfc]
        %v1277 = vld [vmem:[#allocation2 + $0xb0] sm:$0x3]
        %v1278 = vld [vmem:[#allocation2 + $0xb8] sm:$0x3]
        %v1279 = vld [vmem:[#allocation2 + $0xc0] sm:$0xfc]
        %v1280 = vld [vmem:[#allocation2 + $0xc8] sm:$0xfc]
        %v1281 = vld [vmem:[#allocation2 + $0xd0] sm:$0x3]
        %v1282 = vld [vmem:[#allocation2 + $0xd8] sm:$0x3]
        %v1283 = vld [vmem:[#allocation2 + $0xe0] sm:$0xfc]
        %v1284 = vld [vmem:[#allocation2 + $0xe8] sm:$0xfc]
        %v1285 = vld [vmem:[#allocation2 + $0xf0] sm:$0x3]
        %v1286 = vld [vmem:[#allocation2 + $0xf8] sm:$0x3]
        %vm1319 = vcmask 1045504
        %v1320 = vrot.slane %v1255, 2
        %v1321 = vrot.slane %v1257, 2
        %v1322 = vsel %vm1319, %v1320, %v1321
        %v1323 = vrot.slane %v1256, 2
        %v1324 = vrot.slane %v1258, 2
        %v1325 = vsel %vm1319, %v1323, %v1324
        %v1326 = vrot.slane %v1259, 2
        %v1327 = vrot.slane %v1261, 2
        %v1328 = vsel %vm1319, %v1326, %v1327
        %v1329 = vrot.slane %v1260, 2
        %v1330 = vrot.slane %v1262, 2
        %v1331 = vsel %vm1319, %v1329, %v1330
        %v1332 = vrot.slane %v1263, 2
        %v1333 = vrot.slane %v1265, 2
        %v1334 = vsel %vm1319, %v1332, %v1333
        %v1335 = vrot.slane %v1264, 2
        %v1336 = vrot.slane %v1266, 2
        %v1337 = vsel %vm1319, %v1335, %v1336
        %v1338 = vrot.slane %v1267, 2
        %v1339 = vrot.slane %v1269, 2
        %v1340 = vsel %vm1319, %v1338, %v1339
        %v1341 = vrot.slane %v1268, 2
        %v1342 = vrot.slane %v1270, 2
        %v1343 = vsel %vm1319, %v1341, %v1342
        %v1344 = vrot.slane %v1271, 2
        %v1345 = vrot.slane %v1273, 2
        %v1346 = vsel %vm1319, %v1344, %v1345
        %v1347 = vrot.slane %v1272, 2
        %v1348 = vrot.slane %v1274, 2
        %v1349 = vsel %vm1319, %v1347, %v1348
        %v1350 = vrot.slane %v1275, 2
        %v1351 = vrot.slane %v1277, 2
        %v1352 = vsel %vm1319, %v1350, %v1351
        %v1353 = vrot.slane %v1276, 2
        %v1354 = vrot.slane %v1278, 2
        %v1355 = vsel %vm1319, %v1353, %v1354
        %v1356 = vrot.slane %v1279, 2
        %v1357 = vrot.slane %v1281, 2
        %v1358 = vsel %vm1319, %v1356, %v1357
        %v1359 = vrot.slane %v1280, 2
        %v1360 = vrot.slane %v1282, 2
        %v1361 = vsel %vm1319, %v1359, %v1360
        %v1362 = vrot.slane %v1283, 2
        %v1363 = vrot.slane %v1285, 2
        %v1364 = vsel %vm1319, %v1362, %v1363
        %v1365 = vrot.slane %v1284, 2
        %v1366 = vrot.slane %v1286, 2
        %v1367 = vsel %vm1319, %v1365, %v1366
        %v1384 = vmax.f32 %v1239, %v1322
        %v1385 = vmax.f32 %v1240, %v1325
        %v1386 = vmax.f32 %v1241, %v1328
        %v1387 = vmax.f32 %v1242, %v1331
        %v1388 = vmax.f32 %v1243, %v1334
        %v1389 = vmax.f32 %v1244, %v1337
        %v1390 = vmax.f32 %v1245, %v1340
        %v1391 = vmax.f32 %v1246, %v1343
        %v1392 = vmax.f32 %v1247, %v1346
        %v1393 = vmax.f32 %v1248, %v1349
        %v1394 = vmax.f32 %v1249, %v1352
        %v1395 = vmax.f32 %v1250, %v1355
        %v1396 = vmax.f32 %v1251, %v1358
        %v1397 = vmax.f32 %v1252, %v1361
        %v1398 = vmax.f32 %v1253, %v1364
        %v1399 = vmax.f32 %v1254, %v1367
        %v1400 = vld [vmem:[%s1043] sm:$0xff]
        %v1401 = vld [vmem:[%s1043 + $0x8] sm:$0xff]
        %v1402 = vld [vmem:[%s1043 + $0x20] sm:$0xff]
        %v1403 = vld [vmem:[%s1043 + $0x28] sm:$0xff]
        %v1404 = vld [vmem:[%s1043 + $0x40] sm:$0xff]
        %v1405 = vld [vmem:[%s1043 + $0x48] sm:$0xff]
        %v1406 = vld [vmem:[%s1043 + $0x60] sm:$0xff]
        %v1407 = vld [vmem:[%s1043 + $0x68] sm:$0xff]
        %v1408 = vld [vmem:[%s1043 + $0x80] sm:$0xff]
        %v1409 = vld [vmem:[%s1043 + $0x88] sm:$0xff]
        %v1410 = vld [vmem:[%s1043 + $0xa0] sm:$0xff]
        %v1411 = vld [vmem:[%s1043 + $0xa8] sm:$0xff]
        %v1412 = vld [vmem:[%s1043 + $0xc0] sm:$0xff]
        %v1413 = vld [vmem:[%s1043 + $0xc8] sm:$0xff]
        %v1414 = vld [vmem:[%s1043 + $0xe0] sm:$0xff]
        %v1415 = vld [vmem:[%s1043 + $0xe8] sm:$0xff]
        %v1416 = vmax.f32 %v1384, %v1400
        %v1417 = vmax.f32 %v1385, %v1401
        %v1418 = vmax.f32 %v1386, %v1402
        %v1419 = vmax.f32 %v1387, %v1403
        %v1420 = vmax.f32 %v1388, %v1404
        %v1421 = vmax.f32 %v1389, %v1405
        %v1422 = vmax.f32 %v1390, %v1406
        %v1423 = vmax.f32 %v1391, %v1407
        %v1424 = vmax.f32 %v1392, %v1408
        %v1425 = vmax.f32 %v1393, %v1409
        %v1426 = vmax.f32 %v1394, %v1410
        %v1427 = vmax.f32 %v1395, %v1411
        %v1428 = vmax.f32 %v1396, %v1412
        %v1429 = vmax.f32 %v1397, %v1413
        %v1430 = vmax.f32 %v1398, %v1414
        %v1431 = vmax.f32 %v1399, %v1415
        %v1432 = vld [vmem:[%s1043] sm:$0xfc]
        %v1433 = vld [vmem:[%s1043 + $0x8] sm:$0xfc]
        %v1434 = vld [vmem:[%s1043 + $0x10] sm:$0x3]
        %v1435 = vld [vmem:[%s1043 + $0x18] sm:$0x3]
        %v1436 = vld [vmem:[%s1043 + $0x20] sm:$0xfc]
        %v1437 = vld [vmem:[%s1043 + $0x28] sm:$0xfc]
        %v1438 = vld [vmem:[%s1043 + $0x30] sm:$0x3]
        %v1439 = vld [vmem:[%s1043 + $0x38] sm:$0x3]
        %v1440 = vld [vmem:[%s1043 + $0x40] sm:$0xfc]
        %v1441 = vld [vmem:[%s1043 + $0x48] sm:$0xfc]
        %v1442 = vld [vmem:[%s1043 + $0x50] sm:$0x3]
        %v1443 = vld [vmem:[%s1043 + $0x58] sm:$0x3]
        %v1444 = vld [vmem:[%s1043 + $0x60] sm:$0xfc]
        %v1445 = vld [vmem:[%s1043 + $0x68] sm:$0xfc]
        %v1446 = vld [vmem:[%s1043 + $0x70] sm:$0x3]
        %v1447 = vld [vmem:[%s1043 + $0x78] sm:$0x3]
        %v1448 = vld [vmem:[%s1043 + $0x80] sm:$0xfc]
        %v1449 = vld [vmem:[%s1043 + $0x88] sm:$0xfc]
        %v1450 = vld [vmem:[%s1043 + $0x90] sm:$0x3]
        %v1451 = vld [vmem:[%s1043 + $0x98] sm:$0x3]
        %v1452 = vld [vmem:[%s1043 + $0xa0] sm:$0xfc]
        %v1453 = vld [vmem:[%s1043 + $0xa8] sm:$0xfc]
        %v1454 = vld [vmem:[%s1043 + $0xb0] sm:$0x3]
        %v1455 = vld [vmem:[%s1043 + $0xb8] sm:$0x3]
        %v1456 = vld [vmem:[%s1043 + $0xc0] sm:$0xfc]
        %v1457 = vld [vmem:[%s1043 + $0xc8] sm:$0xfc]
        %v1458 = vld [vmem:[%s1043 + $0xd0] sm:$0x3]
        %v1459 = vld [vmem:[%s1043 + $0xd8] sm:$0x3]
        %v1460 = vld [vmem:[%s1043 + $0xe0] sm:$0xfc]
        %v1461 = vld [vmem:[%s1043 + $0xe8] sm:$0xfc]
        %v1462 = vld [vmem:[%s1043 + $0xf0] sm:$0x3]
        %v1463 = vld [vmem:[%s1043 + $0xf8] sm:$0x3]
        %v1496 = vrot.slane %v1432, 2
        %v1497 = vrot.slane %v1434, 2
        %v1498 = vsel %vm1319, %v1496, %v1497
        %v1499 = vrot.slane %v1433, 2
        %v1500 = vrot.slane %v1435, 2
        %v1501 = vsel %vm1319, %v1499, %v1500
        %v1502 = vrot.slane %v1436, 2
        %v1503 = vrot.slane %v1438, 2
        %v1504 = vsel %vm1319, %v1502, %v1503
        %v1505 = vrot.slane %v1437, 2
        %v1506 = vrot.slane %v1439, 2
        %v1507 = vsel %vm1319, %v1505, %v1506
        %v1508 = vrot.slane %v1440, 2
        %v1509 = vrot.slane %v1442, 2
        %v1510 = vsel %vm1319, %v1508, %v1509
        %v1511 = vrot.slane %v1441, 2
        %v1512 = vrot.slane %v1443, 2
        %v1513 = vsel %vm1319, %v1511, %v1512
        %v1514 = vrot.slane %v1444, 2
        %v1515 = vrot.slane %v1446, 2
        %v1516 = vsel %vm1319, %v1514, %v1515
        %v1517 = vrot.slane %v1445, 2
        %v1518 = vrot.slane %v1447, 2
        %v1519 = vsel %vm1319, %v1517, %v1518
        %v1520 = vrot.slane %v1448, 2
        %v1521 = vrot.slane %v1450, 2
        %v1522 = vsel %vm1319, %v1520, %v1521
        %v1523 = vrot.slane %v1449, 2
        %v1524 = vrot.slane %v1451, 2
        %v1525 = vsel %vm1319, %v1523, %v1524
        %v1526 = vrot.slane %v1452, 2
        %v1527 = vrot.slane %v1454, 2
        %v1528 = vsel %vm1319, %v1526, %v1527
        %v1529 = vrot.slane %v1453, 2
        %v1530 = vrot.slane %v1455, 2
        %v1531 = vsel %vm1319, %v1529, %v1530
        %v1532 = vrot.slane %v1456, 2
        %v1533 = vrot.slane %v1458, 2
        %v1534 = vsel %vm1319, %v1532, %v1533
        %v1535 = vrot.slane %v1457, 2
        %v1536 = vrot.slane %v1459, 2
        %v1537 = vsel %vm1319, %v1535, %v1536
        %v1538 = vrot.slane %v1460, 2
        %v1539 = vrot.slane %v1462, 2
        %v1540 = vsel %vm1319, %v1538, %v1539
        %v1541 = vrot.slane %v1461, 2
        %v1542 = vrot.slane %v1463, 2
        %v1543 = vsel %vm1319, %v1541, %v1542
        %v1560 = vmax.f32 %v1416, %v1498
        %v1561 = vmax.f32 %v1417, %v1501
        %v1562 = vmax.f32 %v1418, %v1504
        %v1563 = vmax.f32 %v1419, %v1507
        %v1564 = vmax.f32 %v1420, %v1510
        %v1565 = vmax.f32 %v1421, %v1513
        %v1566 = vmax.f32 %v1422, %v1516
        %v1567 = vmax.f32 %v1423, %v1519
        %v1568 = vmax.f32 %v1424, %v1522
        %v1569 = vmax.f32 %v1425, %v1525
        %v1570 = vmax.f32 %v1426, %v1528
        %v1571 = vmax.f32 %v1427, %v1531
        %v1572 = vmax.f32 %v1428, %v1534
        %v1573 = vmax.f32 %v1429, %v1537
        %v1574 = vmax.f32 %v1430, %v1540
        %v1575 = vmax.f32 %v1431, %v1543
        %s1576 = scalar_lea.vmem [#allocation2], 64
        %v1577 = vld [vmem:[%s1576] sm:$0xff]
        %v1578 = vld [vmem:[%s1576 + $0x8] sm:$0xff]
        %v1579 = vld [vmem:[%s1576 + $0x20] sm:$0xff]
        %v1580 = vld [vmem:[%s1576 + $0x28] sm:$0xff]
        %v1581 = vld [vmem:[%s1576 + $0x40] sm:$0xff]
        %v1582 = vld [vmem:[%s1576 + $0x48] sm:$0xff]
        %v1583 = vld [vmem:[%s1576 + $0x60] sm:$0xff]
        %v1584 = vld [vmem:[%s1576 + $0x68] sm:$0xff]
        %v1585 = vld [vmem:[%s1576 + $0x80] sm:$0xff]
        %v1586 = vld [vmem:[%s1576 + $0x88] sm:$0xff]
        %v1587 = vld [vmem:[%s1576 + $0xa0] sm:$0xff]
        %v1588 = vld [vmem:[%s1576 + $0xa8] sm:$0xff]
        %v1589 = vld [vmem:[%s1576 + $0xc0] sm:$0xff]
        %v1590 = vld [vmem:[%s1576 + $0xc8] sm:$0xff]
        %v1591 = vld [vmem:[%s1576 + $0xe0] sm:$0xff]
        %v1592 = vld [vmem:[%s1576 + $0xe8] sm:$0xff]
        %v1593 = vmax.f32 %v1560, %v1577
        %v1594 = vmax.f32 %v1561, %v1578
        %v1595 = vmax.f32 %v1562, %v1579
        %v1596 = vmax.f32 %v1563, %v1580
        %v1597 = vmax.f32 %v1564, %v1581
        %v1598 = vmax.f32 %v1565, %v1582
        %v1599 = vmax.f32 %v1566, %v1583
        %v1600 = vmax.f32 %v1567, %v1584
        %v1601 = vmax.f32 %v1568, %v1585
        %v1602 = vmax.f32 %v1569, %v1586
        %v1603 = vmax.f32 %v1570, %v1587
        %v1604 = vmax.f32 %v1571, %v1588
        %v1605 = vmax.f32 %v1572, %v1589
        %v1606 = vmax.f32 %v1573, %v1590
        %v1607 = vmax.f32 %v1574, %v1591
        %v1608 = vmax.f32 %v1575, %v1592
        %v1609 = vld [vmem:[%s1576] sm:$0xfe]
        %v1610 = vld [vmem:[%s1576 + $0x8] sm:$0xfe]
        %v1611 = vld [vmem:[%s1576 + $0x10] sm:$0x1]
        %v1612 = vld [vmem:[%s1576 + $0x18] sm:$0x1]
        %v1613 = vld [vmem:[%s1576 + $0x20] sm:$0xfe]
        %v1614 = vld [vmem:[%s1576 + $0x28] sm:$0xfe]
        %v1615 = vld [vmem:[%s1576 + $0x30] sm:$0x1]
        %v1616 = vld [vmem:[%s1576 + $0x38] sm:$0x1]
        %v1617 = vld [vmem:[%s1576 + $0x40] sm:$0xfe]
        %v1618 = vld [vmem:[%s1576 + $0x48] sm:$0xfe]
        %v1619 = vld [vmem:[%s1576 + $0x50] sm:$0x1]
        %v1620 = vld [vmem:[%s1576 + $0x58] sm:$0x1]
        %v1621 = vld [vmem:[%s1576 + $0x60] sm:$0xfe]
        %v1622 = vld [vmem:[%s1576 + $0x68] sm:$0xfe]
        %v1623 = vld [vmem:[%s1576 + $0x70] sm:$0x1]
        %v1624 = vld [vmem:[%s1576 + $0x78] sm:$0x1]
        %v1625 = vld [vmem:[%s1576 + $0x80] sm:$0xfe]
        %v1626 = vld [vmem:[%s1576 + $0x88] sm:$0xfe]
        %v1627 = vld [vmem:[%s1576 + $0x90] sm:$0x1]
        %v1628 = vld [vmem:[%s1576 + $0x98] sm:$0x1]
        %v1629 = vld [vmem:[%s1576 + $0xa0] sm:$0xfe]
        %v1630 = vld [vmem:[%s1576 + $0xa8] sm:$0xfe]
        %v1631 = vld [vmem:[%s1576 + $0xb0] sm:$0x1]
        %v1632 = vld [vmem:[%s1576 + $0xb8] sm:$0x1]
        %v1633 = vld [vmem:[%s1576 + $0xc0] sm:$0xfe]
        %v1634 = vld [vmem:[%s1576 + $0xc8] sm:$0xfe]
        %v1635 = vld [vmem:[%s1576 + $0xd0] sm:$0x1]
        %v1636 = vld [vmem:[%s1576 + $0xd8] sm:$0x1]
        %v1637 = vld [vmem:[%s1576 + $0xe0] sm:$0xfe]
        %v1638 = vld [vmem:[%s1576 + $0xe8] sm:$0xfe]
        %v1639 = vld [vmem:[%s1576 + $0xf0] sm:$0x1]
        %v1640 = vld [vmem:[%s1576 + $0xf8] sm:$0x1]
        %v1673 = vrot.slane %v1609, 1
        %v1674 = vrot.slane %v1611, 1
        %v1675 = vsel %vm1174, %v1673, %v1674
        %v1676 = vrot.slane %v1610, 1
        %v1677 = vrot.slane %v1612, 1
        %v1678 = vsel %vm1174, %v1676, %v1677
        %v1679 = vrot.slane %v1613, 1
        %v1680 = vrot.slane %v1615, 1
        %v1681 = vsel %vm1174, %v1679, %v1680
        %v1682 = vrot.slane %v1614, 1
        %v1683 = vrot.slane %v1616, 1
        %v1684 = vsel %vm1174, %v1682, %v1683
        %v1685 = vrot.slane %v1617, 1
        %v1686 = vrot.slane %v1619, 1
        %v1687 = vsel %vm1174, %v1685, %v1686
        %v1688 = vrot.slane %v1618, 1
        %v1689 = vrot.slane %v1620, 1
        %v1690 = vsel %vm1174, %v1688, %v1689
        %v1691 = vrot.slane %v1621, 1
        %v1692 = vrot.slane %v1623, 1
        %v1693 = vsel %vm1174, %v1691, %v1692
        %v1694 = vrot.slane %v1622, 1
        %v1695 = vrot.slane %v1624, 1
        %v1696 = vsel %vm1174, %v1694, %v1695
        %v1697 = vrot.slane %v1625, 1
        %v1698 = vrot.slane %v1627, 1
        %v1699 = vsel %vm1174, %v1697, %v1698
        %v1700 = vrot.slane %v1626, 1
        %v1701 = vrot.slane %v1628, 1
        %v1702 = vsel %vm1174, %v1700, %v1701
        %v1703 = vrot.slane %v1629, 1
        %v1704 = vrot.slane %v1631, 1
        %v1705 = vsel %vm1174, %v1703, %v1704
        %v1706 = vrot.slane %v1630, 1
        %v1707 = vrot.slane %v1632, 1
        %v1708 = vsel %vm1174, %v1706, %v1707
        %v1709 = vrot.slane %v1633, 1
        %v1710 = vrot.slane %v1635, 1
        %v1711 = vsel %vm1174, %v1709, %v1710
        %v1712 = vrot.slane %v1634, 1
        %v1713 = vrot.slane %v1636, 1
        %v1714 = vsel %vm1174, %v1712, %v1713
        %v1715 = vrot.slane %v1637, 1
        %v1716 = vrot.slane %v1639, 1
        %v1717 = vsel %vm1174, %v1715, %v1716
        %v1718 = vrot.slane %v1638, 1
        %v1719 = vrot.slane %v1640, 1
        %v1720 = vsel %vm1174, %v1718, %v1719
        %v1737 = vmax.f32 %v1593, %v1675
        %v1738 = vmax.f32 %v1594, %v1678
        %v1739 = vmax.f32 %v1595, %v1681
        %v1740 = vmax.f32 %v1596, %v1684
        %v1741 = vmax.f32 %v1597, %v1687
        %v1742 = vmax.f32 %v1598, %v1690
        %v1743 = vmax.f32 %v1599, %v1693
        %v1744 = vmax.f32 %v1600, %v1696
        %v1745 = vmax.f32 %v1601, %v1699
        %v1746 = vmax.f32 %v1602, %v1702
        %v1747 = vmax.f32 %v1603, %v1705
        %v1748 = vmax.f32 %v1604, %v1708
        %v1749 = vmax.f32 %v1605, %v1711
        %v1750 = vmax.f32 %v1606, %v1714
        %v1751 = vmax.f32 %v1607, %v1717
        %v1752 = vmax.f32 %v1608, %v1720
        %v1753 = vld [vmem:[%s1576] sm:$0xfc]
        %v1754 = vld [vmem:[%s1576 + $0x8] sm:$0xfc]
        %v1755 = vld [vmem:[%s1576 + $0x10] sm:$0x3]
        %v1756 = vld [vmem:[%s1576 + $0x18] sm:$0x3]
        %v1757 = vld [vmem:[%s1576 + $0x20] sm:$0xfc]
        %v1758 = vld [vmem:[%s1576 + $0x28] sm:$0xfc]
        %v1759 = vld [vmem:[%s1576 + $0x30] sm:$0x3]
        %v1760 = vld [vmem:[%s1576 + $0x38] sm:$0x3]
        %v1761 = vld [vmem:[%s1576 + $0x40] sm:$0xfc]
        %v1762 = vld [vmem:[%s1576 + $0x48] sm:$0xfc]
        %v1763 = vld [vmem:[%s1576 + $0x50] sm:$0x3]
        %v1764 = vld [vmem:[%s1576 + $0x58] sm:$0x3]
        %v1765 = vld [vmem:[%s1576 + $0x60] sm:$0xfc]
        %v1766 = vld [vmem:[%s1576 + $0x68] sm:$0xfc]
        %v1767 = vld [vmem:[%s1576 + $0x70] sm:$0x3]
        %v1768 = vld [vmem:[%s1576 + $0x78] sm:$0x3]
        %v1769 = vld [vmem:[%s1576 + $0x80] sm:$0xfc]
        %v1770 = vld [vmem:[%s1576 + $0x88] sm:$0xfc]
        %v1771 = vld [vmem:[%s1576 + $0x90] sm:$0x3]
        %v1772 = vld [vmem:[%s1576 + $0x98] sm:$0x3]
        %v1773 = vld [vmem:[%s1576 + $0xa0] sm:$0xfc]
        %v1774 = vld [vmem:[%s1576 + $0xa8] sm:$0xfc]
        %v1775 = vld [vmem:[%s1576 + $0xb0] sm:$0x3]
        %v1776 = vld [vmem:[%s1576 + $0xb8] sm:$0x3]
        %v1777 = vld [vmem:[%s1576 + $0xc0] sm:$0xfc]
        %v1778 = vld [vmem:[%s1576 + $0xc8] sm:$0xfc]
        %v1779 = vld [vmem:[%s1576 + $0xd0] sm:$0x3]
        %v1780 = vld [vmem:[%s1576 + $0xd8] sm:$0x3]
        %v1781 = vld [vmem:[%s1576 + $0xe0] sm:$0xfc]
        %v1782 = vld [vmem:[%s1576 + $0xe8] sm:$0xfc]
        %v1783 = vld [vmem:[%s1576 + $0xf0] sm:$0x3]
        %v1784 = vld [vmem:[%s1576 + $0xf8] sm:$0x3]
        %v1817 = vrot.slane %v1753, 2
        %v1818 = vrot.slane %v1755, 2
        %v1819 = vsel %vm1319, %v1817, %v1818
        %v1820 = vrot.slane %v1754, 2
        %v1821 = vrot.slane %v1756, 2
        %v1822 = vsel %vm1319, %v1820, %v1821
        %v1823 = vrot.slane %v1757, 2
        %v1824 = vrot.slane %v1759, 2
        %v1825 = vsel %vm1319, %v1823, %v1824
        %v1826 = vrot.slane %v1758, 2
        %v1827 = vrot.slane %v1760, 2
        %v1828 = vsel %vm1319, %v1826, %v1827
        %v1829 = vrot.slane %v1761, 2
        %v1830 = vrot.slane %v1763, 2
        %v1831 = vsel %vm1319, %v1829, %v1830
        %v1832 = vrot.slane %v1762, 2
        %v1833 = vrot.slane %v1764, 2
        %v1834 = vsel %vm1319, %v1832, %v1833
        %v1835 = vrot.slane %v1765, 2
        %v1836 = vrot.slane %v1767, 2
        %v1837 = vsel %vm1319, %v1835, %v1836
        %v1838 = vrot.slane %v1766, 2
        %v1839 = vrot.slane %v1768, 2
        %v1840 = vsel %vm1319, %v1838, %v1839
        %v1841 = vrot.slane %v1769, 2
        %v1842 = vrot.slane %v1771, 2
        %v1843 = vsel %vm1319, %v1841, %v1842
        %v1844 = vrot.slane %v1770, 2
        %v1845 = vrot.slane %v1772, 2
        %v1846 = vsel %vm1319, %v1844, %v1845
        %v1847 = vrot.slane %v1773, 2
        %v1848 = vrot.slane %v1775, 2
        %v1849 = vsel %vm1319, %v1847, %v1848
        %v1850 = vrot.slane %v1774, 2
        %v1851 = vrot.slane %v1776, 2
        %v1852 = vsel %vm1319, %v1850, %v1851
        %v1853 = vrot.slane %v1777, 2
        %v1854 = vrot.slane %v1779, 2
        %v1855 = vsel %vm1319, %v1853, %v1854
        %v1856 = vrot.slane %v1778, 2
        %v1857 = vrot.slane %v1780, 2
        %v1858 = vsel %vm1319, %v1856, %v1857
        %v1859 = vrot.slane %v1781, 2
        %v1860 = vrot.slane %v1783, 2
        %v1861 = vsel %vm1319, %v1859, %v1860
        %v1862 = vrot.slane %v1782, 2
        %v1863 = vrot.slane %v1784, 2
        %v1864 = vsel %vm1319, %v1862, %v1863
        %v1881 = vmax.f32 %v1737, %v1819
        %v1882 = vmax.f32 %v1738, %v1822
        %v1883 = vmax.f32 %v1739, %v1825
        %v1884 = vmax.f32 %v1740, %v1828
        %v1885 = vmax.f32 %v1741, %v1831
        %v1886 = vmax.f32 %v1742, %v1834
        %v1887 = vmax.f32 %v1743, %v1837
        %v1888 = vmax.f32 %v1744, %v1840
        %v1889 = vmax.f32 %v1745, %v1843
        %v1890 = vmax.f32 %v1746, %v1846
        %v1891 = vmax.f32 %v1747, %v1849
        %v1892 = vmax.f32 %v1748, %v1852
        %v1893 = vmax.f32 %v1749, %v1855
        %v1894 = vmax.f32 %v1750, %v1858
        %v1895 = vmax.f32 %v1751, %v1861
        %v1896 = vmax.f32 %v1752, %v1864
        %v1897 = vpack.c.bf16 %v1883, %v1881
        %v1898 = vpack.c.bf16 %v1884, %v1882
        %v1899 = vpack.c.bf16 %v1887, %v1885
        %v1900 = vpack.c.bf16 %v1888, %v1886
        %v1901 = vpack.c.bf16 %v1891, %v1889
        %v1902 = vpack.c.bf16 %v1892, %v1890
        %v1903 = vpack.c.bf16 %v1895, %v1893
        %v1904 = vpack.c.bf16 %v1896, %v1894
        %v1905 = vld [vmem:[%s5] sm:$0xf]
        %v1906 = vld [vmem:[%s5 + $0x4] sm:$0xf]
        %v1907 = vld [vmem:[%s5 + $0x8] sm:$0xf]
        %v1908 = vld [vmem:[%s5 + $0xc] sm:$0xf]
        %v1909 = vld [vmem:[%s5 + $0x10] sm:$0xf]
        %v1910 = vld [vmem:[%s5 + $0x14] sm:$0xf]
        %v1911 = vld [vmem:[%s5 + $0x18] sm:$0xf]
        %v1912 = vld [vmem:[%s5 + $0x1c] sm:$0xf]
        %v1913 = vld [vmem:[%s5 + $0x20] sm:$0xf]
        %v1914 = vld [vmem:[%s5 + $0x24] sm:$0xf]
        %v1915 = vld [vmem:[%s5 + $0x28] sm:$0xf]
        %v1916 = vld [vmem:[%s5 + $0x2c] sm:$0xf]
        %v1917 = vld [vmem:[%s5 + $0x30] sm:$0xf]
        %v1918 = vld [vmem:[%s5 + $0x34] sm:$0xf]
        %v1919 = vld [vmem:[%s5 + $0x38] sm:$0xf]
        %v1920 = vld [vmem:[%s5 + $0x3c] sm:$0xf]
        %v1921 = vld [vmem:[%s5 + $0x40] sm:$0xf]
        %v1922 = vld [vmem:[%s5 + $0x44] sm:$0xf]
        %v1923 = vld [vmem:[%s5 + $0x48] sm:$0xf]
        %v1924 = vld [vmem:[%s5 + $0x4c] sm:$0xf]
        %v1925 = vld [vmem:[%s5 + $0x50] sm:$0xf]
        %v1926 = vld [vmem:[%s5 + $0x54] sm:$0xf]
        %v1927 = vld [vmem:[%s5 + $0x58] sm:$0xf]
        %v1928 = vld [vmem:[%s5 + $0x5c] sm:$0xf]
        %v1929 = vld [vmem:[#allocation11] sm:$0x1]
        %v1931 = vlaneseq
        %v1932 = vshrl.u32 %v1931, 7
        %v1933 = vsub.s32 0, %v1932
        %v1934 = vrot.slane %v1929, %v1933
        %v1960 = vunpack.c.l.b16 %v1905
        %v1961 = vunpack.c.l.b16 %v1906
        %v1962 = vunpack.c.l.b16 %v1907
        %v1963 = vunpack.c.l.b16 %v1908
        %v1964 = vunpack.c.l.b16 %v1909
        %v1965 = vunpack.c.l.b16 %v1910
        %v1966 = vunpack.c.l.b16 %v1911
        %v1967 = vunpack.c.l.b16 %v1912
        %v1968 = vunpack.c.l.b16 %v1913
        %v1969 = vunpack.c.l.b16 %v1914
        %v1970 = vunpack.c.l.b16 %v1915
        %v1971 = vunpack.c.l.b16 %v1916
        %v1972 = vunpack.c.l.b16 %v1917
        %v1973 = vunpack.c.l.b16 %v1918
        %v1974 = vunpack.c.l.b16 %v1919
        %v1975 = vunpack.c.l.b16 %v1920
        %v1976 = vunpack.c.l.b16 %v1921
        %v1977 = vunpack.c.l.b16 %v1922
        %v1978 = vunpack.c.l.b16 %v1923
        %v1979 = vunpack.c.l.b16 %v1924
        %v1980 = vunpack.c.l.b16 %v1925
        %v1981 = vunpack.c.l.b16 %v1926
        %v1982 = vunpack.c.l.b16 %v1927
        %v1983 = vunpack.c.l.b16 %v1928
        %v1984 = vpack.c.b16 %v1961, %v1960
        %v1985 = vpack.c.b16 %v1963, %v1962
        %v1986 = vpack.c.b16 %v1965, %v1964
        %v1987 = vpack.c.b16 %v1967, %v1966
        %v1988 = vpack.c.b16 %v1969, %v1968
        %v1989 = vpack.c.b16 %v1971, %v1970
        %v1990 = vpack.c.b16 %v1973, %v1972
        %v1991 = vpack.c.b16 %v1975, %v1974
        %v1992 = vpack.c.b16 %v1977, %v1976
        %v1993 = vpack.c.b16 %v1979, %v1978
        %v1994 = vpack.c.b16 %v1981, %v1980
        %v1995 = vpack.c.b16 %v1983, %v1982
        %v2009 = vsel %vm705, %v1898, 0
        %v2012 = vsel %vm705, %v1900, 0
        %v2015 = vsel %vm705, %v1902, 0
        %v2018 = vsel %vm705, %v1904, 0
        %2020 = vmatprep.subr.bf16.mxu0 0
        %2021 = vmatpush1.bf16.msra.mxu0 %v1991
        %2022 = vmatprep.subr.bf16.mxu0 0
        %2023 = vmatpush1.bf16.msra.mxu0 %v1990
        %2024 = vmatprep.subr.bf16.mxu0 0
        %2025 = vmatpush1.bf16.msra.mxu0 %v1989
        %2026 = vmatprep.subr.bf16.mxu0 0
        %2027 = vmatpush1.bf16.msra.mxu0 %v1988
        %2028 = vmatprep.subr.bf16.mxu0 0
        %2029 = vmatpush1.bf16.msra.mxu0 %v1987
        %2030 = vmatprep.subr.bf16.mxu0 0
        %2031 = vmatpush1.bf16.msra.mxu0 %v1986
        %2032 = vmatprep.subr.bf16.mxu0 0
        %2033 = vmatpush1.bf16.msra.mxu0 %v1985
        %2034 = vmatprep.subr.bf16.mxu0 0
        %2035 = vmatpush1.bf16.msra.mxu0 %v1984
        %2036 = vmatprep.subr.bf16.mxu0 0
        %2037 = vmatpush2.bf16.msra.mxu0 0
        %2038 = vmatprep.subr.bf16.mxu0 0
        %2039 = vmatpush2.bf16.msra.mxu0 0
        %2040 = vmatprep.subr.bf16.mxu0 0
        %2041 = vmatpush2.bf16.msra.mxu0 0
        %2042 = vmatprep.subr.bf16.mxu0 0
        %2043 = vmatpush2.bf16.msra.mxu0 0
        %2044 = vmatprep.subr.bf16.mxu0 0
        %2045 = vmatpush2.bf16.msra.mxu0 %v1995
        %2046 = vmatprep.subr.bf16.mxu0 0
        %2047 = vmatpush2.bf16.msra.mxu0 %v1994
        %2048 = vmatprep.subr.bf16.mxu0 0
        %2049 = vmatpush2.bf16.msra.mxu0 %v1993
        %2050 = vmatprep.subr.bf16.mxu0 0
        %2051 = vmatpush2.bf16.msra.mxu0 %v1992
        %2052 = vmatprep.mubr.bf16.mxu0 %v2009
        %2053 = vmatmul.mubr.bf16.gmra.mxu0 %v1897
        %v2054 = vpop.f32.mrf.mxu0
        %v2055 = vadd.f32 %v1934, %v2054
        %v2056 = vpop.f32.mrf.mxu0
        %v2057 = vpop.f32.mrf.mxu0
        %v2058 = vadd.f32 %v1934, %v2057
        %v2059 = vpop.f32.mrf.mxu0
        %2060 = vmatprep.mubr.bf16.mxu0 %v2012
        %2061 = vmatmul.mubr.bf16.gmra.mxu0 %v1899
        %v2062 = vpop.f32.mrf.mxu0
        %v2063 = vadd.f32 %v1934, %v2062
        %v2064 = vpop.f32.mrf.mxu0
        %v2065 = vpop.f32.mrf.mxu0
        %v2066 = vadd.f32 %v1934, %v2065
        %v2067 = vpop.f32.mrf.mxu0
        %2068 = vmatprep.mubr.bf16.mxu0 %v2015
        %2069 = vmatmul.mubr.bf16.gmra.mxu0 %v1901
        %v2070 = vpop.f32.mrf.mxu0
        %v2071 = vadd.f32 %v1934, %v2070
        %v2072 = vpop.f32.mrf.mxu0
        %v2073 = vpop.f32.mrf.mxu0
        %v2074 = vadd.f32 %v1934, %v2073
        %v2075 = vpop.f32.mrf.mxu0
        %2076 = vmatprep.mubr.bf16.mxu0 %v2018
        %2077 = vmatmul.mubr.bf16.gmra.mxu0 %v1903
        %v2078 = vpop.f32.mrf.mxu0
        %v2079 = vadd.f32 %v1934, %v2078
        %v2080 = vpop.f32.mrf.mxu0
        %v2081 = vpop.f32.mrf.mxu0
        %v2082 = vadd.f32 %v1934, %v2081
        %v2083 = vpop.f32.mrf.mxu0
        %2084 = vdwg.mxu0
        %v2085 = vmax.f32 %v2055, 0.0
        %v2086 = vmax.f32 %v2058, 0.0
        %v2087 = vmax.f32 %v2063, 0.0
        %v2088 = vmax.f32 %v2066, 0.0
        %v2089 = vmax.f32 %v2071, 0.0
        %v2090 = vmax.f32 %v2074, 0.0
        %v2091 = vmax.f32 %v2079, 0.0
        %v2092 = vmax.f32 %v2082, 0.0
        %2101 = vrot.lane.b32.xlu0 %v2085, 64
        %v2102 = vpop.permute.xlu0 %2101
        %2103 = vrot.lane.b32.xlu0 %v2086, 64
        %v2104 = vpop.permute.xlu0 %2103
        %2105 = vrot.lane.b32.xlu0 %v2087, 64
        %v2106 = vpop.permute.xlu0 %2105
        %2107 = vrot.lane.b32.xlu0 %v2088, 64
        %v2108 = vpop.permute.xlu0 %2107
        %2109 = vrot.lane.b32.xlu0 %v2089, 64
        %v2110 = vpop.permute.xlu0 %2109
        %2111 = vrot.lane.b32.xlu0 %v2090, 64
        %v2112 = vpop.permute.xlu0 %2111
        %2113 = vrot.lane.b32.xlu0 %v2091, 64
        %v2114 = vpop.permute.xlu0 %2113
        %2115 = vrot.lane.b32.xlu0 %v2092, 64
        %v2116 = vpop.permute.xlu0 %2115
        %vm2125 = vcmask 785920
        %2126 = vst.msk [vmem:[%s523] sm:$0xff] %vm2125, %v2102
        %2127 = vst.msk [vmem:[%s523 + $0x8] sm:$0xff] %vm2125, %v2104
        %2128 = vst.msk [vmem:[%s523 + $0x10] sm:$0xff] %vm2125, %v2106
        %2129 = vst.msk [vmem:[%s523 + $0x18] sm:$0xff] %vm2125, %v2108
        %2130 = vst.msk [vmem:[%s523 + $0x20] sm:$0xff] %vm2125, %v2110
        %2131 = vst.msk [vmem:[%s523 + $0x28] sm:$0xff] %vm2125, %v2112
        %2132 = vst.msk [vmem:[%s523 + $0x30] sm:$0xff] %vm2125, %v2114
        %2133 = vst.msk [vmem:[%s523 + $0x38] sm:$0xff] %vm2125, %v2116
        %p2134 = scmp.lt.s32.totalorder %s32, 0
        %s2135 = scalar_select %p2134, %s32, 0
        %p2136 = scmp.lt.s32.totalorder %s33, 3
        %s2137 = scalar_select %p2136, %s33, 3
        %s2138 = smul.addr %s2137, 8
        %s2139 = smul.addr %s2135, 32
        %s2140 = sadd.s32 %s2138, %s2139
        %s2141 = smul.addr %s2140, 4
        %s2142 = scalar_lea.vmem %s7, %s2141
        %p2143 = scmp.lt.s32.totalorder %s32, 0
        %s2144 = scalar_select %p2143, %s32, 0
        %p2145 = scmp.lt.s32.totalorder %s33, 3
        %s2146 = scalar_select %p2145, %s33, 3
        %s2147 = smul.addr %s2146, 8
        %s2148 = smul.addr %s2144, 32
        %s2149 = sadd.s32 %s2147, %s2148
        %s2150 = smul.addr %s2149, 8
        %s2151 = scalar_lea.vmem %s8, %s2150
        // Predicated region
        $region73: #{mixed_3b_forward.2} parent=47 // pred_check
          %p2152 = pneg %p240
        $region74: #{mixed_3b_forward.2} parent=47 // pred_check_branch
          %2154 = sbr.rel (%p2152) target = $region76
        $region75: #{mixed_3b_forward.2} parent=47 // pred_region
          _
        $region76: #{mixed_3b_forward.2} parent=47 // pred_fallthru
          _
        // Predicated region
        $region77: #{mixed_3b_forward.2} parent=47 // pred_check
          %p2155 = pneg %p268
        $region78: #{mixed_3b_forward.2} parent=47 // pred_check_branch
          %2157 = sbr.rel (%p2155) target = $region80
        $region79: #{mixed_3b_forward.2} parent=47 // pred_region
          _
        $region80: #{mixed_3b_forward.2} parent=47 // pred_fallthru
          _
      $region48: #{mixed_3b_forward.2} parent=5 // pred_fallthru
        _
      %p2158 = scmp.le.s32.totalorder 2, %s23
      // Predicated region
      $region81: #{mixed_3b_forward.2} parent=5 // pred_check
        %p2159 = pneg %p2158
      $region82: #{mixed_3b_forward.2} parent=5 // pred_check_branch
        %2161 = sbr.rel (%p2159) target = $region84
      $region83: #{mixed_3b_forward.2} parent=5 // pred_region
        %s2162 = ssub.s32 %s23, 2
        // Predicated region
        $region85: #{mixed_3b_forward.2} parent=83 // pred_check
          %p2163 = pneg %p246
        $region86: #{mixed_3b_forward.2} parent=83 // pred_check_branch
          %2165 = sbr.rel (%p2163) target = $region88
        $region87: #{mixed_3b_forward.2} parent=83 // pred_region
          %p2166 = scmp.lt.s32.totalorder %s34, 0
          %s2167 = scalar_select %p2166, %s34, 0
          %p2168 = scmp.lt.s32.totalorder %s35, 3
          %s2169 = scalar_select %p2168, %s35, 3
          %s2170 = smul.addr %s2169, 8
          %s2171 = smul.addr %s2167, 32
          %s2172 = sadd.s32 %s2170, %s2171
          %s2173 = smul.addr %s2172, 4
          %s2174 = scalar_lea.vmem %s7, %s2173
        $region88: #{mixed_3b_forward.2} parent=83 // pred_fallthru
          _
        // Predicated region
        $region89: #{mixed_3b_forward.2} parent=83 // pred_check
          %p2175 = pneg %p274
        $region90: #{mixed_3b_forward.2} parent=83 // pred_check_branch
          %2177 = sbr.rel (%p2175) target = $region92
        $region91: #{mixed_3b_forward.2} parent=83 // pred_region
          %p2178 = scmp.lt.s32.totalorder %s34, 0
          %s2179 = scalar_select %p2178, %s34, 0
          %p2180 = scmp.lt.s32.totalorder %s35, 3
          %s2181 = scalar_select %p2180, %s35, 3
          %s2182 = smul.addr %s2181, 8
          %s2183 = smul.addr %s2179, 32
          %s2184 = sadd.s32 %s2182, %s2183
          %s2185 = smul.addr %s2184, 8
          %s2186 = scalar_lea.vmem %s8, %s2185
        $region92: #{mixed_3b_forward.2} parent=83 // pred_fallthru
          _
      $region84: #{mixed_3b_forward.2} parent=5 // pred_fallthru
        _
    $region6: #{mixed_3b_forward.2} parent=1 // loop_footer
      %s27 = sadd.s32 1, %s23
    $region7: #{mixed_3b_forward.2} parent=1 // loop_footer_branch
      %22 = sbr.rel target = $region3
    $region8: #{mixed_3b_forward.2} parent=1 // loop_exit
      _
    %2187 = vsyncpa [#allocation4], 1
    %s2188 = scalar_lea.sflag [#allocation4], 1
    %2189 = vsyncpa %s2188, 1
    %2190 = vsyncpa [#allocation6], 1
    %s2191 = scalar_lea.sflag [#allocation6], 1
    %2192 = vsyncpa %s2191, 1
    %2193 = vsyncpa [#allocation9], 1
    %2194 = vsyncpa [#allocation12], 1

// kernel: mixed_3b_forward.3
$region0: #{mixed_3b_forward.3}
  #allocation0 [shape = 'u32[]', space=smem, size = 0x4, offset = 0x4, fixed_abs, tag = 'smem constant byte address 0x4 - core index']
  #allocation1 [shape = 'u32[144,128]{1,0:T(1,128)}', space=vmem, size = 0x12000, scoped, tag = 'internal scratch']
  #allocation2 [shape = 'f32[3,10,10,128]{3,2,1,0:T(8,128)}', space=vmem, size = 0x3c000, scoped, tag = 'scratch operand']
  %s0 = inlined_call_operand.vmem [shape: bf16[1,4,8,8,128], index: 0, kind: input, shape index: {}, may-alias: {0,1,2}]
  %s1 = inlined_call_operand.vmem [shape: bf16[1,4,8,8,128], index: 1, kind: input, shape index: {}, may-alias: {0,1,2}]
  %s2 = inlined_call_operand.vmem [shape: bf16[1,4,8,8,128], index: 2, kind: input, shape index: {}, may-alias: {0,1,2}]
  %s3 = inlined_call_operand.vmem [shape: f32[1,4,64,96], index: 3, kind: input, shape index: {}]
  %s4 = inlined_call_operand.vmem [shape: bf16[27,128,160], index: 4, kind: input, shape index: {}]
  %s5 = inlined_call_operand.vmem [shape: f32[1,160], index: 5, kind: input, shape index: {}]
  %s6 = inlined_call_operand.hbm [shape: f32[1,4,64,256], index: 6, kind: output, shape index: {}]
  %s7 = sld [smem:[#allocation0]]
  $region57: #{mixed_3b_forward.3} parent=0
    _
  %s9 = ssub.s32 1, %s7
  %s10 = scalar_select 0, %s9, %s7
  $region1: #{mixed_3b_forward.3} parent=0
    #allocation3 [shape = 'u8[131072]{0}', space=vmem, size = 0x20000, scoped, tag = 'output window, operand 0']
    #allocation4 [shape = 's32[2]{0}', space=sflag, size = 0x8, scoped, tag = 'scoped memory for mixed_3b_forward.3']
    %11 = vsyncpa [#allocation4], 0
    %s12 = scalar_lea.sflag [#allocation4], 1
    %13 = vsyncpa %s12, 0
    loop: start=0, step=1, limit=6
    $region2: #{mixed_3b_forward.3} parent=1 // loop_pre_header
      _
    $region3: #{mixed_3b_forward.3} parent=1 // loop_header
      %s15 = sphi 0, %s19
      %p16 = scmp.ge.s32.totalorder %s15, 6
      %s22 = sphi 0, %s34
      %s23 = sphi 0, %s30
      %s24 = sphi 0, %s22
      %s25 = sphi 0, %s23
      %s26 = sphi 0, %s24
      %s27 = sphi 0, %s25
      %s45 = sphi 0, %s47
      %s48 = sphi 0, %s45
      %s49 = sphi 0, %s48
      %s65 = sphi 0, %s49
      %s73 = sphi 0, %s75
      %s76 = sphi 0, %s73
      %s77 = sphi 0, %s76
      %s93 = sphi 0, %s77
      %s107 = sphi 0, %s109
      %s110 = sphi 0, %s107
      %s111 = sphi 0, %s110
      %s127 = sphi 0, %s111
      %s135 = sphi 0, %s137
      %s138 = sphi 0, %s135
      %s139 = sphi 0, %s138
      %s155 = sphi 0, %s139
      %s159 = sphi 0, %s159
      %s161 = sphi 0, %s159
      %s162 = sphi 0, %s161
      %s176 = sphi 0, %s162
      %s180 = sphi 0, %s180
      %s182 = sphi 0, %s180
      %s183 = sphi 0, %s182
      %s197 = sphi 0, %s183
      %s205 = sphi 0, %s207
      %s208 = sphi 0, %s205
      %s209 = sphi 0, %s208
      %s225 = sphi 0, %s209
    $region4: #{mixed_3b_forward.3} parent=1 // loop_header_branch
      %18 = sbr.rel (%p16) target = $region8
    $region5: #{mixed_3b_forward.3} parent=1 // loop_body
      %s20 = ssub.s32 %s15, 1
      %s21 = ssub.s32 %s15, 2
      %s28 = sadd.s32 1, %s23
      %p29 = scmp.ge.s32.totalorder %s28, 4
      %s30 = scalar_select %p29, 0, %s28
      %s31 = sadd.s32 1, %s22
      %s32 = scalar_select %p29, %s31, %s22
      %p33 = scmp.ge.s32.totalorder %s32, 1
      %s34 = scalar_select %p33, 0, %s32
      %s35 = ssub.s32 %s23, 1
      %p36 = scmp.gt.s32.totalorder %s35, 0
      %s37 = scalar_select %p36, %s35, 0
      %s38 = ssub.s32 %s30, 1
      %p39 = scmp.gt.s32.totalorder %s38, 0
      %s40 = scalar_select %p39, %s38, 0
      %s41 = ssub.s32 %s22, %s34
      %s42 = ssub.s32 %s37, %s40
      %s43 = sor.u32 %s41, %s42
      %p44 = scmp.eq.s32.totalorder %s43, 0
      %s46 = sadd.s32 %s45, 1
      %s47 = scalar_select %p44, %s45, %s46
      %p50 = pneg %p44
      %p51 = scmp.eq.s32.totalorder %s15, 3
      %p52 = por %p50, %p51
      %p53 = scmp.ne.s32.totalorder %s45, %s48
      %p54 = scmp.eq.s32.totalorder %s15, 0
      %p55 = por %p53, %p54
      %p56 = scmp.ne.s32.totalorder %s45, %s48
      %p57 = scmp.eq.s32.totalorder %s20, 3
      %p58 = por %p56, %p57
      %p59 = scmp.ne.s32.totalorder %s48, %s49
      %p60 = scmp.eq.s32.totalorder %s20, 0
      %p61 = por %p59, %p60
      %p62 = scmp.ne.s32.totalorder %s48, %s49
      %p63 = scmp.eq.s32.totalorder %s21, 3
      %p64 = por %p62, %p63
      %p66 = scmp.ne.s32.totalorder %s49, %s65
      %p67 = scmp.eq.s32.totalorder %s21, 0
      %p68 = por %p66, %p67
      %s69 = ssub.s32 %s22, %s34
      %s70 = ssub.s32 %s23, %s30
      %s71 = sor.u32 %s69, %s70
      %p72 = scmp.eq.s32.totalorder %s71, 0
      %s74 = sadd.s32 %s73, 1
      %s75 = scalar_select %p72, %s73, %s74
      %p78 = pneg %p72
      %p79 = scmp.eq.s32.totalorder %s15, 3
      %p80 = por %p78, %p79
      %p81 = scmp.ne.s32.totalorder %s73, %s76
      %p82 = scmp.eq.s32.totalorder %s15, 0
      %p83 = por %p81, %p82
      %p84 = scmp.ne.s32.totalorder %s73, %s76
      %p85 = scmp.eq.s32.totalorder %s20, 3
      %p86 = por %p84, %p85
      %p87 = scmp.ne.s32.totalorder %s76, %s77
      %p88 = scmp.eq.s32.totalorder %s20, 0
      %p89 = por %p87, %p88
      %p90 = scmp.ne.s32.totalorder %s76, %s77
      %p91 = scmp.eq.s32.totalorder %s21, 3
      %p92 = por %p90, %p91
      %p94 = scmp.ne.s32.totalorder %s77, %s93
      %p95 = scmp.eq.s32.totalorder %s21, 0
      %p96 = por %p94, %p95
      %s97 = sadd.s32 %s23, 1
      %p98 = scmp.lt.s32.totalorder %s97, 3
      %s99 = scalar_select %p98, %s97, 3
      %s100 = sadd.s32 %s30, 1
      %p101 = scmp.lt.s32.totalorder %s100, 3
      %s102 = scalar_select %p101, %s100, 3
      %s103 = ssub.s32 %s22, %s34
      %s104 = ssub.s32 %s99, %s102
      %s105 = sor.u32 %s103, %s104
      %p106 = scmp.eq.s32.totalorder %s105, 0
      %s108 = sadd.s32 %s107, 1
      %s109 = scalar_select %p106, %s107, %s108
      %p112 = pneg %p106
      %p113 = scmp.eq.s32.totalorder %s15, 3
      %p114 = por %p112, %p113
      %p115 = scmp.ne.s32.totalorder %s107, %s110
      %p116 = scmp.eq.s32.totalorder %s15, 0
      %p117 = por %p115, %p116
      %p118 = scmp.ne.s32.totalorder %s107, %s110
      %p119 = scmp.eq.s32.totalorder %s20, 3
      %p120 = por %p118, %p119
      %p121 = scmp.ne.s32.totalorder %s110, %s111
      %p122 = scmp.eq.s32.totalorder %s20, 0
      %p123 = por %p121, %p122
      %p124 = scmp.ne.s32.totalorder %s110, %s111
      %p125 = scmp.eq.s32.totalorder %s21, 3
      %p126 = por %p124, %p125
      %p128 = scmp.ne.s32.totalorder %s111, %s127
      %p129 = scmp.eq.s32.totalorder %s21, 0
      %p130 = por %p128, %p129
      %s131 = ssub.s32 %s22, %s34
      %s132 = ssub.s32 %s23, %s30
      %s133 = sor.u32 %s131, %s132
      %p134 = scmp.eq.s32.totalorder %s133, 0
      %s136 = sadd.s32 %s135, 1
      %s137 = scalar_select %p134, %s135, %s136
      %p140 = pneg %p134
      %p141 = scmp.eq.s32.totalorder %s15, 3
      %p142 = por %p140, %p141
      %p143 = scmp.ne.s32.totalorder %s135, %s138
      %p144 = scmp.eq.s32.totalorder %s15, 0
      %p145 = por %p143, %p144
      %p146 = scmp.ne.s32.totalorder %s135, %s138
      %p147 = scmp.eq.s32.totalorder %s20, 3
      %p148 = por %p146, %p147
      %p149 = scmp.ne.s32.totalorder %s138, %s139
      %p150 = scmp.eq.s32.totalorder %s20, 0
      %p151 = por %p149, %p150
      %p152 = scmp.ne.s32.totalorder %s138, %s139
      %p153 = scmp.eq.s32.totalorder %s21, 3
      %p154 = por %p152, %p153
      %p156 = scmp.ne.s32.totalorder %s139, %s155
      %p157 = scmp.eq.s32.totalorder %s21, 0
      %p158 = por %p156, %p157
      %s160 = sadd.s32 %s159, 1
      %p163 = scmp.eq.s32.totalorder %s15, 3
      %p164 = scmp.ne.s32.totalorder %s159, %s161
      %p165 = scmp.eq.s32.totalorder %s15, 0
      %p166 = por %p164, %p165
      %p167 = scmp.ne.s32.totalorder %s159, %s161
      %p168 = scmp.eq.s32.totalorder %s20, 3
      %p169 = por %p167, %p168
      %p170 = scmp.ne.s32.totalorder %s161, %s162
      %p171 = scmp.eq.s32.totalorder %s20, 0
      %p172 = por %p170, %p171
      %p173 = scmp.ne.s32.totalorder %s161, %s162
      %p174 = scmp.eq.s32.totalorder %s21, 3
      %p175 = por %p173, %p174
      %p177 = scmp.ne.s32.totalorder %s162, %s176
      %p178 = scmp.eq.s32.totalorder %s21, 0
      %p179 = por %p177, %p178
      %s181 = sadd.s32 %s180, 1
      %p184 = scmp.eq.s32.totalorder %s15, 3
      %p185 = scmp.ne.s32.totalorder %s180, %s182
      %p186 = scmp.eq.s32.totalorder %s15, 0
      %p187 = por %p185, %p186
      %p188 = scmp.ne.s32.totalorder %s180, %s182
      %p189 = scmp.eq.s32.totalorder %s20, 3
      %p190 = por %p188, %p189
      %p191 = scmp.ne.s32.totalorder %s182, %s183
      %p192 = scmp.eq.s32.totalorder %s20, 0
      %p193 = por %p191, %p192
      %p194 = scmp.ne.s32.totalorder %s182, %s183
      %p195 = scmp.eq.s32.totalorder %s21, 3
      %p196 = por %p194, %p195
      %p198 = scmp.ne.s32.totalorder %s183, %s197
      %p199 = scmp.eq.s32.totalorder %s21, 0
      %p200 = por %p198, %p199
      %s201 = ssub.s32 %s22, %s34
      %s202 = ssub.s32 %s23, %s30
      %s203 = sor.u32 %s201, %s202
      %p204 = scmp.eq.s32.totalorder %s203, 0
      %s206 = sadd.s32 %s205, 1
      %s207 = scalar_select %p204, %s205, %s206
      %p210 = pneg %p204
      %p211 = scmp.eq.s32.totalorder %s15, 3
      %p212 = por %p210, %p211
      %p213 = scmp.ne.s32.totalorder %s205, %s208
      %p214 = scmp.eq.s32.totalorder %s15, 0
      %p215 = por %p213, %p214
      %p216 = scmp.ne.s32.totalorder %s205, %s208
      %p217 = scmp.eq.s32.totalorder %s20, 3
      %p218 = por %p216, %p217
      %p219 = scmp.ne.s32.totalorder %s208, %s209
      %p220 = scmp.eq.s32.totalorder %s20, 0
      %p221 = por %p219, %p220
      %p222 = scmp.ne.s32.totalorder %s208, %s209
      %p223 = scmp.eq.s32.totalorder %s21, 3
      %p224 = por %p222, %p223
      %p226 = scmp.ne.s32.totalorder %s209, %s225
      %p227 = scmp.eq.s32.totalorder %s21, 0
      %p228 = por %p226, %p227
      %p229 = scmp.le.s32.totalorder 1, %s15
      %p230 = scmp.lt.s32.totalorder %s15, 5
      %p231 = pnand %p229, %p230
      %p232 = pneg %p231
      // Predicated region
      $region9: #{mixed_3b_forward.3} parent=5 // pred_check
        _
      $region10: #{mixed_3b_forward.3} parent=5 // pred_check_branch
        %234 = sbr.rel (%p231) target = $region12
      $region11: #{mixed_3b_forward.3} parent=5 // pred_region
        %s235 = ssub.s32 %s15, 1
        // Predicated region
        $region13: #{mixed_3b_forward.3} parent=11 // pred_check
          %p236 = pneg %p172
        $region14: #{mixed_3b_forward.3} parent=11 // pred_check_branch
          %238 = sbr.rel (%p236) target = $region16
        $region15: #{mixed_3b_forward.3} parent=11 // pred_region
          _
        $region16: #{mixed_3b_forward.3} parent=11 // pred_fallthru
          _
        // Predicated region
        $region17: #{mixed_3b_forward.3} parent=11 // pred_check
          %p239 = pneg %p193
        $region18: #{mixed_3b_forward.3} parent=11 // pred_check_branch
          %241 = sbr.rel (%p239) target = $region20
        $region19: #{mixed_3b_forward.3} parent=11 // pred_region
          _
        $region20: #{mixed_3b_forward.3} parent=11 // pred_fallthru
          _
      $region12: #{mixed_3b_forward.3} parent=5 // pred_fallthru
        _
      %p242 = scmp.lt.s32.totalorder %s15, 4
      // Predicated region
      $region21: #{mixed_3b_forward.3} parent=5 // pred_check
        %p243 = pneg %p242
      $region22: #{mixed_3b_forward.3} parent=5 // pred_check_branch
        %245 = sbr.rel (%p243) target = $region24
      $region23: #{mixed_3b_forward.3} parent=5 // pred_region
        // Predicated region
        $region25: #{mixed_3b_forward.3} parent=23 // pred_check
          %p246 = pneg %p55
        $region26: #{mixed_3b_forward.3} parent=23 // pred_check_branch
          %248 = sbr.rel (%p246) target = $region28
        $region27: #{mixed_3b_forward.3} parent=23 // pred_region
          %s249 = ssub.s32 %s23, 1
          %p250 = scmp.gt.s32.totalorder %s249, 0
          %s251 = scalar_select %p250, %s249, 0
          %p252 = scmp.lt.s32.totalorder %s22, 0
          %s253 = scalar_select %p252, %s22, 0
          %p254 = scmp.lt.s32.totalorder %s251, 3
          %s255 = scalar_select %p254, %s251, 3
          %s256 = smul.addr %s255, 8
          %s257 = smul.addr %s253, 32
          %s258 = sadd.s32 %s256, %s257
          %s259 = smul.addr %s258, 4
          %s260 = scalar_lea.vmem %s0, %s259
          %s261 = ssub.s32 %s23, 1
          %p262 = scmp.gt.s32.totalorder %s261, 0
          %s263 = scalar_select %p262, %s261, 0
        $region28: #{mixed_3b_forward.3} parent=23 // pred_fallthru
          _
        // Predicated region
        $region29: #{mixed_3b_forward.3} parent=23 // pred_check
          %p264 = pneg %p83
        $region30: #{mixed_3b_forward.3} parent=23 // pred_check_branch
          %266 = sbr.rel (%p264) target = $region32
        $region31: #{mixed_3b_forward.3} parent=23 // pred_region
          %p267 = scmp.lt.s32.totalorder %s22, 0
          %s268 = scalar_select %p267, %s22, 0
          %p269 = scmp.lt.s32.totalorder %s23, 3
          %s270 = scalar_select %p269, %s23, 3
          %s271 = smul.addr %s270, 8
          %s272 = smul.addr %s268, 32
          %s273 = sadd.s32 %s271, %s272
          %s274 = smul.addr %s273, 4
          %s275 = scalar_lea.vmem %s1, %s274
        $region32: #{mixed_3b_forward.3} parent=23 // pred_fallthru
          _
        // Predicated region
        $region33: #{mixed_3b_forward.3} parent=23 // pred_check
          %p276 = pneg %p117
        $region34: #{mixed_3b_forward.3} parent=23 // pred_check_branch
          %278 = sbr.rel (%p276) target = $region36
        $region35: #{mixed_3b_forward.3} parent=23 // pred_region
          %s279 = sadd.s32 %s23, 1
          %p280 = scmp.lt.s32.totalorder %s279, 3
          %s281 = scalar_select %p280, %s279, 3
          %p282 = scmp.lt.s32.totalorder %s22, 0
          %s283 = scalar_select %p282, %s22, 0
          %p284 = scmp.lt.s32.totalorder %s281, 3
          %s285 = scalar_select %p284, %s281, 3
          %s286 = smul.addr %s285, 8
          %s287 = smul.addr %s283, 32
          %s288 = sadd.s32 %s286, %s287
          %s289 = smul.addr %s288, 4
          %s290 = scalar_lea.vmem %s2, %s289
          %s291 = sadd.s32 %s23, 1
          %p292 = scmp.lt.s32.totalorder %s291, 3
          %s293 = scalar_select %p292, %s291, 3
        $region36: #{mixed_3b_forward.3} parent=23 // pred_fallthru
          _
        // Predicated region
        $region37: #{mixed_3b_forward.3} parent=23 // pred_check
          %p294 = pneg %p145
        $region38: #{mixed_3b_forward.3} parent=23 // pred_check_branch
          %296 = sbr.rel (%p294) target = $region40
        $region39: #{mixed_3b_forward.3} parent=23 // pred_region
          %p297 = scmp.lt.s32.totalorder %s22, 0
          %s298 = scalar_select %p297, %s22, 0
          %p299 = scmp.lt.s32.totalorder %s23, 3
          %s300 = scalar_select %p299, %s23, 3
          %s301 = smul.addr %s300, 8
          %s302 = smul.addr %s298, 32
          %s303 = sadd.s32 %s301, %s302
          %s304 = smul.addr %s303, 8
          %s305 = scalar_lea.vmem %s3, %s304
        $region40: #{mixed_3b_forward.3} parent=23 // pred_fallthru
          _
      $region24: #{mixed_3b_forward.3} parent=5 // pred_fallthru
        _
      %p306 = scmp.le.s32.totalorder 1, %s15
      %p307 = scmp.lt.s32.totalorder %s15, 5
      %p308 = pnand %p306, %p307
      %p309 = pneg %p308
      // Predicated region
      $region41: #{mixed_3b_forward.3} parent=5 // pred_check
        _
      $region42: #{mixed_3b_forward.3} parent=5 // pred_check_branch
        %311 = sbr.rel (%p308) target = $region44
      $region43: #{mixed_3b_forward.3} parent=5 // pred_region
        %s312 = ssub.s32 %s15, 1
        %s313 = ssub.s32 %s25, 1
        %p314 = scmp.gt.s32.totalorder %s313, 0
        %s315 = scalar_select %p314, %s313, 0
        %p316 = scmp.lt.s32.totalorder %s24, 0
        %s317 = scalar_select %p316, %s24, 0
        %p318 = scmp.lt.s32.totalorder %s315, 3
        %s319 = scalar_select %p318, %s315, 3
        %s320 = smul.addr %s319, 8
        %s321 = smul.addr %s317, 32
        %s322 = sadd.s32 %s320, %s321
        %s323 = smul.addr %s322, 4
        %s324 = scalar_lea.vmem %s0, %s323
        %p325 = pneg %p61
        %p326 = pneg %p58
        %p327 = scmp.lt.s32.totalorder %s24, 0
        %s328 = scalar_select %p327, %s24, 0
        %p329 = scmp.lt.s32.totalorder %s25, 3
        %s330 = scalar_select %p329, %s25, 3
        %s331 = smul.addr %s330, 8
        %s332 = smul.addr %s328, 32
        %s333 = sadd.s32 %s331, %s332
        %s334 = smul.addr %s333, 4
        %s335 = scalar_lea.vmem %s1, %s334
        %p336 = pneg %p89
        %p337 = pneg %p86
        %s338 = sadd.s32 %s25, 1
        %p339 = scmp.lt.s32.totalorder %s338, 3
        %s340 = scalar_select %p339, %s338, 3
        %p341 = scmp.lt.s32.totalorder %s24, 0
        %s342 = scalar_select %p341, %s24, 0
        %p343 = scmp.lt.s32.totalorder %s340, 3
        %s344 = scalar_select %p343, %s340, 3
        %s345 = smul.addr %s344, 8
        %s346 = smul.addr %s342, 32
        %s347 = sadd.s32 %s345, %s346
        %s348 = smul.addr %s347, 4
        %s349 = scalar_lea.vmem %s2, %s348
        %p350 = pneg %p123
        %p351 = pneg %p120
        %p352 = scmp.lt.s32.totalorder %s24, 0
        %s353 = scalar_select %p352, %s24, 0
        %p354 = scmp.lt.s32.totalorder %s25, 3
        %s355 = scalar_select %p354, %s25, 3
        %s356 = smul.addr %s355, 8
        %s357 = smul.addr %s353, 32
        %s358 = sadd.s32 %s356, %s357
        %s359 = smul.addr %s358, 8
        %s360 = scalar_lea.vmem %s3, %s359
        %p361 = pneg %p151
        %p362 = pneg %p148
        %p363 = pneg %p172
        %p364 = pneg %p169
        %p365 = pneg %p193
        %p366 = pneg %p190
        %p367 = pneg %p221
        %p368 = pneg %p218
        %s369 = sand.u32 %s208, 1
        %s370 = scalar_lea.sflag [#allocation4], %s369
        %s371 = sand.u32 %s208, 1
        %s372 = smul.addr %s371, 128
        %s373 = scalar_lea.vmem [#allocation3], %s372
        %s374 = ssub.s32 %s25, 1
        %p375 = scmp.gt.s32.totalorder %s374, 0
        %s376 = scalar_select %p375, %s374, 0
        %p377 = scmp.lt.s32.totalorder %s24, 0
        %s378 = scalar_select %p377, %s24, 0
        %p379 = scmp.lt.s32.totalorder %s376, 3
        %s380 = scalar_select %p379, %s376, 3
        %s381 = smul.addr %s380, 8
        %s382 = smul.addr %s378, 32
        %s383 = sadd.s32 %s381, %s382
        %s384 = smul.addr %s383, 4
        %s385 = scalar_lea.vmem %s0, %s384
        %s386 = ssub.s32 %s25, 1
        %p387 = scmp.gt.s32.totalorder %s386, 0
        %s388 = scalar_select %p387, %s386, 0
        %p389 = scmp.lt.s32.totalorder %s24, 0
        %s390 = scalar_select %p389, %s24, 0
        %p391 = scmp.lt.s32.totalorder %s25, 3
        %s392 = scalar_select %p391, %s25, 3
        %s393 = smul.addr %s392, 8
        %s394 = smul.addr %s390, 32
        %s395 = sadd.s32 %s393, %s394
        %s396 = smul.addr %s395, 4
        %s397 = scalar_lea.vmem %s1, %s396
        %s398 = sadd.s32 %s25, 1
        %p399 = scmp.lt.s32.totalorder %s398, 3
        %s400 = scalar_select %p399, %s398, 3
        %p401 = scmp.lt.s32.totalorder %s24, 0
        %s402 = scalar_select %p401, %s24, 0
        %p403 = scmp.lt.s32.totalorder %s400, 3
        %s404 = scalar_select %p403, %s400, 3
        %s405 = smul.addr %s404, 8
        %s406 = smul.addr %s402, 32
        %s407 = sadd.s32 %s405, %s406
        %s408 = smul.addr %s407, 4
        %s409 = scalar_lea.vmem %s2, %s408
        %s410 = sadd.s32 %s25, 1
        %p411 = scmp.lt.s32.totalorder %s410, 3
        %s412 = scalar_select %p411, %s410, 3
        %p413 = scmp.lt.s32.totalorder %s24, 0
        %s414 = scalar_select %p413, %s24, 0
        %p415 = scmp.lt.s32.totalorder %s25, 3
        %s416 = scalar_select %p415, %s25, 3
        %s417 = smul.addr %s416, 8
        %s418 = smul.addr %s414, 32
        %s419 = sadd.s32 %s417, %s418
        %s420 = smul.addr %s419, 8
        %s421 = scalar_lea.vmem %s3, %s420
        %423 = vst [vmem:[#allocation2] sm:$0xff] 0.0
        %424 = vst [vmem:[#allocation2 + $0x8] sm:$0x3] 0.0
        %425 = vst [vmem:[#allocation2 + $0x10] sm:$0xff] 0.0
        %426 = vst [vmem:[#allocation2 + $0x18] sm:$0x3] 0.0
        %427 = vst [vmem:[#allocation2 + $0x20] sm:$0xff] 0.0
        %428 = vst [vmem:[#allocation2 + $0x28] sm:$0x3] 0.0
        %429 = vst [vmem:[#allocation2 + $0x30] sm:$0xff] 0.0
        %430 = vst [vmem:[#allocation2 + $0x38] sm:$0x3] 0.0
        %431 = vst [vmem:[#allocation2 + $0x40] sm:$0xff] 0.0
        %432 = vst [vmem:[#allocation2 + $0x48] sm:$0x3] 0.0
        %433 = vst [vmem:[#allocation2 + $0x50] sm:$0xff] 0.0
        %434 = vst [vmem:[#allocation2 + $0x58] sm:$0x3] 0.0
        %435 = vst [vmem:[#allocation2 + $0x60] sm:$0xff] 0.0
        %436 = vst [vmem:[#allocation2 + $0x68] sm:$0x3] 0.0
        %437 = vst [vmem:[#allocation2 + $0x70] sm:$0xff] 0.0
        %438 = vst [vmem:[#allocation2 + $0x78] sm:$0x3] 0.0
        %439 = vst [vmem:[#allocation2 + $0x80] sm:$0xff] 0.0
        %440 = vst [vmem:[#allocation2 + $0x88] sm:$0x3] 0.0
        %441 = vst [vmem:[#allocation2 + $0x90] sm:$0xff] 0.0
        %442 = vst [vmem:[#allocation2 + $0x98] sm:$0x3] 0.0
        %443 = vst [vmem:[#allocation2 + $0xa0] sm:$0xff] 0.0
        %444 = vst [vmem:[#allocation2 + $0xa8] sm:$0x3] 0.0
        %445 = vst [vmem:[#allocation2 + $0xb0] sm:$0xff] 0.0
        %446 = vst [vmem:[#allocation2 + $0xb8] sm:$0x3] 0.0
        %447 = vst [vmem:[#allocation2 + $0xc0] sm:$0xff] 0.0
        %448 = vst [vmem:[#allocation2 + $0xc8] sm:$0x3] 0.0
        %449 = vst [vmem:[#allocation2 + $0xd0] sm:$0xff] 0.0
        %450 = vst [vmem:[#allocation2 + $0xd8] sm:$0x3] 0.0
        %451 = vst [vmem:[#allocation2 + $0xe0] sm:$0xff] 0.0
        %452 = vst [vmem:[#allocation2 + $0xe8] sm:$0x3] 0.0
        %453 = vst [vmem:[#allocation2 + $0xf0] sm:$0xff] 0.0
        %454 = vst [vmem:[#allocation2 + $0xf8] sm:$0x3] 0.0
        %455 = vst [vmem:[#allocation2 + $0x100] sm:$0xff] 0.0
        %456 = vst [vmem:[#allocation2 + $0x108] sm:$0x3] 0.0
        %457 = vst [vmem:[#allocation2 + $0x110] sm:$0xff] 0.0
        %458 = vst [vmem:[#allocation2 + $0x118] sm:$0x3] 0.0
        %459 = vst [vmem:[#allocation2 + $0x120] sm:$0xff] 0.0
        %460 = vst [vmem:[#allocation2 + $0x128] sm:$0x3] 0.0
        %461 = vst [vmem:[#allocation2 + $0x130] sm:$0xff] 0.0
        %462 = vst [vmem:[#allocation2 + $0x138] sm:$0x3] 0.0
        %463 = vst [vmem:[#allocation2 + $0x140] sm:$0xff] 0.0
        %464 = vst [vmem:[#allocation2 + $0x148] sm:$0x3] 0.0
        %465 = vst [vmem:[#allocation2 + $0x150] sm:$0xff] 0.0
        %466 = vst [vmem:[#allocation2 + $0x158] sm:$0x3] 0.0
        %467 = vst [vmem:[#allocation2 + $0x160] sm:$0xff] 0.0
        %468 = vst [vmem:[#allocation2 + $0x168] sm:$0x3] 0.0
        %469 = vst [vmem:[#allocation2 + $0x170] sm:$0xff] 0.0
        %470 = vst [vmem:[#allocation2 + $0x178] sm:$0x3] 0.0
        %471 = vst [vmem:[#allocation2 + $0x180] sm:$0xff] 0.0
        %472 = vst [vmem:[#allocation2 + $0x188] sm:$0x3] 0.0
        %473 = vst [vmem:[#allocation2 + $0x190] sm:$0xff] 0.0
        %474 = vst [vmem:[#allocation2 + $0x198] sm:$0x3] 0.0
        %475 = vst [vmem:[#allocation2 + $0x1a0] sm:$0xff] 0.0
        %476 = vst [vmem:[#allocation2 + $0x1a8] sm:$0x3] 0.0
        %477 = vst [vmem:[#allocation2 + $0x1b0] sm:$0xff] 0.0
        %478 = vst [vmem:[#allocation2 + $0x1b8] sm:$0x3] 0.0
        %479 = vst [vmem:[#allocation2 + $0x1c0] sm:$0xff] 0.0
        %480 = vst [vmem:[#allocation2 + $0x1c8] sm:$0x3] 0.0
        %481 = vst [vmem:[#allocation2 + $0x1d0] sm:$0xff] 0.0
        %482 = vst [vmem:[#allocation2 + $0x1d8] sm:$0x3] 0.0
        %v483 = vstv %s25
        %vm484 = vcmp.gt.s32.totalorder %v483, 0
        %v485 = vld [vmem:[%s385] sm:$0xf]
        %v486 = vld [vmem:[%s385 + $0x4] sm:$0xf]
        %v487 = vld [vmem:[%s385 + $0x8] sm:$0xf]
        %v488 = vld [vmem:[%s385 + $0xc] sm:$0xf]
        %v489 = vld [vmem:[%s385 + $0x10] sm:$0xf]
        %v490 = vld [vmem:[%s385 + $0x14] sm:$0xf]
        %v491 = vld [vmem:[%s385 + $0x18] sm:$0xf]
        %v492 = vld [vmem:[%s385 + $0x1c] sm:$0xf]
        %v493 = vunpack.c.l.bf16 %v485
        %v494 = vunpack.c.l.bf16 %v486
        %v495 = vunpack.c.l.bf16 %v487
        %v496 = vunpack.c.l.bf16 %v488
        %v497 = vunpack.c.l.bf16 %v489
        %v498 = vunpack.c.l.bf16 %v490
        %v499 = vunpack.c.l.bf16 %v491
        %v500 = vunpack.c.l.bf16 %v492
        %v501 = vsel %vm484, %v493, 0.0
        %v502 = vsel %vm484, %v494, 0.0
        %v503 = vsel %vm484, %v495, 0.0
        %v504 = vsel %vm484, %v496, 0.0
        %v505 = vsel %vm484, %v497, 0.0
        %v506 = vsel %vm484, %v498, 0.0
        %v507 = vsel %vm484, %v499, 0.0
        %v508 = vsel %vm484, %v500, 0.0
        %s509 = scalar_lea.vmem [#allocation2], 16
        %510 = vst [vmem:[%s509 + $0x1] sm:$0xff] %v501
        %511 = vst [vmem:[%s509 + $0x11] sm:$0xff] %v502
        %512 = vst [vmem:[%s509 + $0x21] sm:$0xff] %v503
        %513 = vst [vmem:[%s509 + $0x31] sm:$0xff] %v504
        %514 = vst [vmem:[%s509 + $0x41] sm:$0xff] %v505
        %515 = vst [vmem:[%s509 + $0x51] sm:$0xff] %v506
        %516 = vst [vmem:[%s509 + $0x61] sm:$0xff] %v507
        %517 = vst [vmem:[%s509 + $0x71] sm:$0xff] %v508
        %v518 = vld [vmem:[%s397] sm:$0xf]
        %v519 = vld [vmem:[%s397 + $0x4] sm:$0xf]
        %v520 = vld [vmem:[%s397 + $0x8] sm:$0xf]
        %v521 = vld [vmem:[%s397 + $0xc] sm:$0xf]
        %v522 = vld [vmem:[%s397 + $0x10] sm:$0xf]
        %v523 = vld [vmem:[%s397 + $0x14] sm:$0xf]
        %v524 = vld [vmem:[%s397 + $0x18] sm:$0xf]
        %v525 = vld [vmem:[%s397 + $0x1c] sm:$0xf]
        %v526 = vunpack.c.l.bf16 %v518
        %v527 = vunpack.c.l.bf16 %v519
        %v528 = vunpack.c.l.bf16 %v520
        %v529 = vunpack.c.l.bf16 %v521
        %v530 = vunpack.c.l.bf16 %v522
        %v531 = vunpack.c.l.bf16 %v523
        %v532 = vunpack.c.l.bf16 %v524
        %v533 = vunpack.c.l.bf16 %v525
        %s534 = scalar_lea.vmem [#allocation2], 176
        %535 = vst [vmem:[%s534 + $0x1] sm:$0xff] %v526
        %536 = vst [vmem:[%s534 + $0x11] sm:$0xff] %v527
        %537 = vst [vmem:[%s534 + $0x21] sm:$0xff] %v528
        %538 = vst [vmem:[%s534 + $0x31] sm:$0xff] %v529
        %539 = vst [vmem:[%s534 + $0x41] sm:$0xff] %v530
        %540 = vst [vmem:[%s534 + $0x51] sm:$0xff] %v531
        %541 = vst [vmem:[%s534 + $0x61] sm:$0xff] %v532
        %542 = vst [vmem:[%s534 + $0x71] sm:$0xff] %v533
        %vm543 = vcmp.lt.s32.totalorder %v483, 3
        %v544 = vld [vmem:[%s409] sm:$0xf]
        %v545 = vld [vmem:[%s409 + $0x4] sm:$0xf]
        %v546 = vld [vmem:[%s409 + $0x8] sm:$0xf]
        %v547 = vld [vmem:[%s409 + $0xc] sm:$0xf]
        %v548 = vld [vmem:[%s409 + $0x10] sm:$0xf]
        %v549 = vld [vmem:[%s409 + $0x14] sm:$0xf]
        %v550 = vld [vmem:[%s409 + $0x18] sm:$0xf]
        %v551 = vld [vmem:[%s409 + $0x1c] sm:$0xf]
        %v552 = vunpack.c.l.bf16 %v544
        %v553 = vunpack.c.l.bf16 %v545
        %v554 = vunpack.c.l.bf16 %v546
        %v555 = vunpack.c.l.bf16 %v547
        %v556 = vunpack.c.l.bf16 %v548
        %v557 = vunpack.c.l.bf16 %v549
        %v558 = vunpack.c.l.bf16 %v550
        %v559 = vunpack.c.l.bf16 %v551
        %v560 = vsel %vm543, %v552, 0.0
        %v561 = vsel %vm543, %v553, 0.0
        %v562 = vsel %vm543, %v554, 0.0
        %v563 = vsel %vm543, %v555, 0.0
        %v564 = vsel %vm543, %v556, 0.0
        %v565 = vsel %vm543, %v557, 0.0
        %v566 = vsel %vm543, %v558, 0.0
        %v567 = vsel %vm543, %v559, 0.0
        %s568 = scalar_lea.vmem [#allocation2], 336
        %569 = vst [vmem:[%s568 + $0x1] sm:$0xff] %v560
        %570 = vst [vmem:[%s568 + $0x11] sm:$0xff] %v561
        %571 = vst [vmem:[%s568 + $0x21] sm:$0xff] %v562
        %572 = vst [vmem:[%s568 + $0x31] sm:$0xff] %v563
        %573 = vst [vmem:[%s568 + $0x41] sm:$0xff] %v564
        %574 = vst [vmem:[%s568 + $0x51] sm:$0xff] %v565
        %575 = vst [vmem:[%s568 + $0x61] sm:$0xff] %v566
        %576 = vst [vmem:[%s568 + $0x71] sm:$0xff] %v567
        %v577 = vld [vmem:[#allocation2] sm:$0xff]
        %v578 = vld [vmem:[#allocation2 + $0x10] sm:$0xff]
        %v579 = vld [vmem:[#allocation2 + $0x20] sm:$0xff]
        %v580 = vld [vmem:[#allocation2 + $0x30] sm:$0xff]
        %v581 = vld [vmem:[#allocation2 + $0x40] sm:$0xff]
        %v582 = vld [vmem:[#allocation2 + $0x50] sm:$0xff]
        %v583 = vld [vmem:[#allocation2 + $0x60] sm:$0xff]
        %v584 = vld [vmem:[#allocation2 + $0x70] sm:$0xff]
        %v585 = vpack.c.bf16 %v578, %v577
        %v586 = vpack.c.bf16 %v580, %v579
        %v587 = vpack.c.bf16 %v582, %v581
        %v588 = vpack.c.bf16 %v584, %v583
        %v589 = vld [vmem:[%s4] sm:$0xff]
        %v590 = vld [vmem:[%s4 + $0x8] sm:$0xff]
        %v591 = vld [vmem:[%s4 + $0x10] sm:$0xff]
        %v592 = vld [vmem:[%s4 + $0x18] sm:$0xff]
        %v593 = vld [vmem:[%s4 + $0x20] sm:$0xff]
        %v594 = vld [vmem:[%s4 + $0x28] sm:$0xff]
        %v595 = vld [vmem:[%s4 + $0x30] sm:$0xff]
        %v596 = vld [vmem:[%s4 + $0x38] sm:$0xff]
        %v597 = vld [vmem:[%s4 + $0x40] sm:$0xff]
        %v598 = vld [vmem:[%s4 + $0x48] sm:$0xff]
        %v599 = vld [vmem:[%s4 + $0x50] sm:$0xff]
        %v600 = vld [vmem:[%s4 + $0x58] sm:$0xff]
        %v601 = vld [vmem:[%s4 + $0x60] sm:$0xff]
        %v602 = vld [vmem:[%s4 + $0x68] sm:$0xff]
        %v603 = vld [vmem:[%s4 + $0x70] sm:$0xff]
        %v604 = vld [vmem:[%s4 + $0x78] sm:$0xff]
        %v605 = vld [vmem:[#allocation2 + $0x1] sm:$0xff]
        %v606 = vld [vmem:[#allocation2 + $0x11] sm:$0xff]
        %v607 = vld [vmem:[#allocation2 + $0x21] sm:$0xff]
        %v608 = vld [vmem:[#allocation2 + $0x31] sm:$0xff]
        %v609 = vld [vmem:[#allocation2 + $0x41] sm:$0xff]
        %v610 = vld [vmem:[#allocation2 + $0x51] sm:$0xff]
        %v611 = vld [vmem:[#allocation2 + $0x61] sm:$0xff]
        %v612 = vld [vmem:[#allocation2 + $0x71] sm:$0xff]
        %v613 = vpack.c.bf16 %v606, %v605
        %v614 = vpack.c.bf16 %v608, %v607
        %v615 = vpack.c.bf16 %v610, %v609
        %v616 = vpack.c.bf16 %v612, %v611
        %s617 = scalar_lea.vmem %s4, 128
        %v618 = vld [vmem:[%s617] sm:$0xff]
        %v619 = vld [vmem:[%s617 + $0x8] sm:$0xff]
        %v620 = vld [vmem:[%s617 + $0x10] sm:$0xff]
        %v621 = vld [vmem:[%s617 + $0x18] sm:$0xff]
        %v622 = vld [vmem:[%s617 + $0x20] sm:$0xff]
        %v623 = vld [vmem:[%s617 + $0x28] sm:$0xff]
        %v624 = vld [vmem:[%s617 + $0x30] sm:$0xff]
        %v625 = vld [vmem:[%s617 + $0x38] sm:$0xff]
        %v626 = vld [vmem:[%s617 + $0x40] sm:$0xff]
        %v627 = vld [vmem:[%s617 + $0x48] sm:$0xff]
        %v628 = vld [vmem:[%s617 + $0x50] sm:$0xff]
        %v629 = vld [vmem:[%s617 + $0x58] sm:$0xff]
        %v630 = vld [vmem:[%s617 + $0x60] sm:$0xff]
        %v631 = vld [vmem:[%s617 + $0x68] sm:$0xff]
        %v632 = vld [vmem:[%s617 + $0x70] sm:$0xff]
        %v633 = vld [vmem:[%s617 + $0x78] sm:$0xff]
        %v650 = vunpack.c.l.b16 %v618
        %v651 = vunpack.c.h.b16 %v618
        %v652 = vunpack.c.l.b16 %v619
        %v653 = vunpack.c.h.b16 %v619
        %v654 = vunpack.c.l.b16 %v620
        %v655 = vunpack.c.h.b16 %v620
        %v656 = vunpack.c.l.b16 %v621
        %v657 = vunpack.c.h.b16 %v621
        %v658 = vunpack.c.l.b16 %v622
        %v659 = vunpack.c.h.b16 %v622
        %v660 = vunpack.c.l.b16 %v623
        %v661 = vunpack.c.h.b16 %v623
        %v662 = vunpack.c.l.b16 %v624
        %v663 = vunpack.c.h.b16 %v624
        %v664 = vunpack.c.l.b16 %v625
        %v665 = vunpack.c.h.b16 %v625
        %v666 = vunpack.c.l.b16 %v626
        %v667 = vunpack.c.h.b16 %v626
        %v668 = vunpack.c.l.b16 %v627
        %v669 = vunpack.c.h.b16 %v627
        %v670 = vunpack.c.l.b16 %v628
        %v671 = vunpack.c.h.b16 %v628
        %v672 = vunpack.c.l.b16 %v629
        %v673 = vunpack.c.h.b16 %v629
        %v674 = vunpack.c.l.b16 %v630
        %v675 = vunpack.c.h.b16 %v630
        %v676 = vunpack.c.l.b16 %v631
        %v677 = vunpack.c.h.b16 %v631
        %v678 = vunpack.c.l.b16 %v632
        %v679 = vunpack.c.h.b16 %v632
        %v680 = vunpack.c.l.b16 %v633
        %v681 = vunpack.c.h.b16 %v633
        %v682 = vpack.c.b16 %v652, %v650
        %v683 = vpack.c.b16 %v653, %v651
        %v684 = vpack.c.b16 %v656, %v654
        %v685 = vpack.c.b16 %v657, %v655
        %v686 = vpack.c.b16 %v660, %v658
        %v687 = vpack.c.b16 %v661, %v659
        %v688 = vpack.c.b16 %v664, %v662
        %v689 = vpack.c.b16 %v665, %v663
        %v690 = vpack.c.b16 %v668, %v666
        %v691 = vpack.c.b16 %v669, %v667
        %v692 = vpack.c.b16 %v672, %v670
        %v693 = vpack.c.b16 %v673, %v671
        %v694 = vpack.c.b16 %v676, %v674
        %v695 = vpack.c.b16 %v677, %v675
        %v696 = vpack.c.b16 %v680, %v678
        %v697 = vpack.c.b16 %v681, %v679
        %714 = vmatprep.subr.bf16.mxu0 %v697
        %715 = vmatpush1.bf16.msra.mxu0 %v696
        %716 = vmatprep.subr.bf16.mxu0 %v695
        %717 = vmatpush1.bf16.msra.mxu0 %v694
        %718 = vmatprep.subr.bf16.mxu0 %v693
        %719 = vmatpush1.bf16.msra.mxu0 %v692
        %720 = vmatprep.subr.bf16.mxu0 %v691
        %721 = vmatpush1.bf16.msra.mxu0 %v690
        %722 = vmatprep.subr.bf16.mxu0 %v689
        %723 = vmatpush1.bf16.msra.mxu0 %v688
        %724 = vmatprep.subr.bf16.mxu0 %v687
        %725 = vmatpush1.bf16.msra.mxu0 %v686
        %726 = vmatprep.subr.bf16.mxu0 %v685
        %727 = vmatpush1.bf16.msra.mxu0 %v684
        %728 = vmatprep.subr.bf16.mxu0 %v683
        %729 = vmatpush1.bf16.msra.mxu0 %v682
        %730 = vmatprep.subr.bf16.mxu0 0
        %731 = vmatpush2.bf16.msra.mxu0 0
        %732 = vmatprep.subr.bf16.mxu0 0
        %733 = vmatpush2.bf16.msra.mxu0 0
        %734 = vmatprep.subr.bf16.mxu0 0
        %735 = vmatpush2.bf16.msra.mxu0 0
        %736 = vmatprep.subr.bf16.mxu0 0
        %737 = vmatpush2.bf16.msra.mxu0 0
        %738 = vmatprep.subr.bf16.mxu0 0
        %739 = vmatpush2.bf16.msra.mxu0 0
        %740 = vmatprep.subr.bf16.mxu0 0
        %741 = vmatpush2.bf16.msra.mxu0 0
        %742 = vmatprep.subr.bf16.mxu0 0
        %743 = vmatpush2.bf16.msra.mxu0 0
        %744 = vmatprep.subr.bf16.mxu0 0
        %745 = vmatpush2.bf16.msra.mxu0 0
        %746 = vmatprep.mubr.bf16.mxu0 0
        %747 = vmatmul.mubr.bf16.gmra.mxu0 %v613
        %v748 = vpop.f32.mrf.mxu0
        %v749 = vadd.f32 0.0, %v748
        %v750 = vpop.f32.mrf.mxu0
        %v751 = vadd.f32 0.0, %v750
        %v752 = vpop.f32.mrf.mxu0
        %v753 = vadd.f32 0.0, %v752
        %v754 = vpop.f32.mrf.mxu0
        %v755 = vadd.f32 0.0, %v754
        %756 = vmatprep.mubr.bf16.mxu0 0
        %757 = vmatmul.mubr.bf16.gmra.mxu0 %v614
        %v758 = vpop.f32.mrf.mxu0
        %v759 = vadd.f32 0.0, %v758
        %v760 = vpop.f32.mrf.mxu0
        %v761 = vadd.f32 0.0, %v760
        %v762 = vpop.f32.mrf.mxu0
        %v763 = vadd.f32 0.0, %v762
        %v764 = vpop.f32.mrf.mxu0
        %v765 = vadd.f32 0.0, %v764
        %766 = vmatprep.mubr.bf16.mxu0 0
        %767 = vmatmul.mubr.bf16.gmra.mxu0 %v615
        %v768 = vpop.f32.mrf.mxu0
        %v769 = vadd.f32 0.0, %v768
        %v770 = vpop.f32.mrf.mxu0
        %v771 = vadd.f32 0.0, %v770
        %v772 = vpop.f32.mrf.mxu0
        %v773 = vadd.f32 0.0, %v772
        %v774 = vpop.f32.mrf.mxu0
        %v775 = vadd.f32 0.0, %v774
        %776 = vmatprep.mubr.bf16.mxu0 0
        %777 = vmatmul.mubr.bf16.gmra.mxu0 %v616
        %v778 = vpop.f32.mrf.mxu0
        %v779 = vadd.f32 0.0, %v778
        %v780 = vpop.f32.mrf.mxu0
        %v781 = vadd.f32 0.0, %v780
        %v782 = vpop.f32.mrf.mxu0
        %v783 = vadd.f32 0.0, %v782
        %v784 = vpop.f32.mrf.mxu0
        %v785 = vadd.f32 0.0, %v784
        %786 = vdwg.mxu0
        %v803 = vunpack.c.l.b16 %v589
        %v804 = vunpack.c.h.b16 %v589
        %v805 = vunpack.c.l.b16 %v590
        %v806 = vunpack.c.h.b16 %v590
        %v807 = vunpack.c.l.b16 %v591
        %v808 = vunpack.c.h.b16 %v591
        %v809 = vunpack.c.l.b16 %v592
        %v810 = vunpack.c.h.b16 %v592
        %v811 = vunpack.c.l.b16 %v593
        %v812 = vunpack.c.h.b16 %v593
        %v813 = vunpack.c.l.b16 %v594
        %v814 = vunpack.c.h.b16 %v594
        %v815 = vunpack.c.l.b16 %v595
        %v816 = vunpack.c.h.b16 %v595
        %v817 = vunpack.c.l.b16 %v596
        %v818 = vunpack.c.h.b16 %v596
        %v819 = vunpack.c.l.b16 %v597
        %v820 = vunpack.c.h.b16 %v597
        %v821 = vunpack.c.l.b16 %v598
        %v822 = vunpack.c.h.b16 %v598
        %v823 = vunpack.c.l.b16 %v599
        %v824 = vunpack.c.h.b16 %v599
        %v825 = vunpack.c.l.b16 %v600
        %v826 = vunpack.c.h.b16 %v600
        %v827 = vunpack.c.l.b16 %v601
        %v828 = vunpack.c.h.b16 %v601
        %v829 = vunpack.c.l.b16 %v602
        %v830 = vunpack.c.h.b16 %v602
        %v831 = vunpack.c.l.b16 %v603
        %v832 = vunpack.c.h.b16 %v603
        %v833 = vunpack.c.l.b16 %v604
        %v834 = vunpack.c.h.b16 %v604
        %v835 = vpack.c.b16 %v805, %v803
        %v836 = vpack.c.b16 %v806, %v804
        %v837 = vpack.c.b16 %v809, %v807
        %v838 = vpack.c.b16 %v810, %v808
        %v839 = vpack.c.b16 %v813, %v811
        %v840 = vpack.c.b16 %v814, %v812
        %v841 = vpack.c.b16 %v817, %v815
        %v842 = vpack.c.b16 %v818, %v816
        %v843 = vpack.c.b16 %v821, %v819
        %v844 = vpack.c.b16 %v822, %v820
        %v845 = vpack.c.b16 %v825, %v823
        %v846 = vpack.c.b16 %v826, %v824
        %v847 = vpack.c.b16 %v829, %v827
        %v848 = vpack.c.b16 %v830, %v828
        %v849 = vpack.c.b16 %v833, %v831
        %v850 = vpack.c.b16 %v834, %v832
        %867 = vmatprep.subr.bf16.mxu0 %v850
        %868 = vmatpush1.bf16.msra.mxu0 %v849
        %869 = vmatprep.subr.bf16.mxu0 %v848
        %870 = vmatpush1.bf16.msra.mxu0 %v847
        %871 = vmatprep.subr.bf16.mxu0 %v846
        %872 = vmatpush1.bf16.msra.mxu0 %v845
        %873 = vmatprep.subr.bf16.mxu0 %v844
        %874 = vmatpush1.bf16.msra.mxu0 %v843
        %875 = vmatprep.subr.bf16.mxu0 %v842
        %876 = vmatpush1.bf16.msra.mxu0 %v841
        %877 = vmatprep.subr.bf16.mxu0 %v840
        %878 = vmatpush1.bf16.msra.mxu0 %v839
        %879 = vmatprep.subr.bf16.mxu0 %v838
        %880 = vmatpush1.bf16.msra.mxu0 %v837
        %881 = vmatprep.subr.bf16.mxu0 %v836
        %882 = vmatpush1.bf16.msra.mxu0 %v835
        %883 = vmatprep.subr.bf16.mxu0 0
        %884 = vmatpush2.bf16.msra.mxu0 0
        %885 = vmatprep.subr.bf16.mxu0 0
        %886 = vmatpush2.bf16.msra.mxu0 0
        %887 = vmatprep.subr.bf16.mxu0 0
        %888 = vmatpush2.bf16.msra.mxu0 0
        %889 = vmatprep.subr.bf16.mxu0 0
        %890 = vmatpush2.bf16.msra.mxu0 0
        %891 = vmatprep.subr.bf16.mxu0 0
        %892 = vmatpush2.bf16.msra.mxu0 0
        %893 = vmatprep.subr.bf16.mxu0 0
        %894 = vmatpush2.bf16.msra.mxu0 0
        %895 = vmatprep.subr.bf16.mxu0 0
        %896 = vmatpush2.bf16.msra.mxu0 0
        %897 = vmatprep.subr.bf16.mxu0 0
        %898 = vmatpush2.bf16.msra.mxu0 0
        %899 = vmatprep.mubr.bf16.mxu0 0
        %900 = vmatmul.mubr.bf16.gmra.mxu0 %v585
        %v901 = vpop.f32.mrf.mxu0
        %v902 = vadd.f32 %v749, %v901
        %v903 = vpop.f32.mrf.mxu0
        %v904 = vadd.f32 %v751, %v903
        %v905 = vpop.f32.mrf.mxu0
        %v906 = vadd.f32 %v753, %v905
        %v907 = vpop.f32.mrf.mxu0
        %v908 = vadd.f32 %v755, %v907
        %909 = vmatprep.mubr.bf16.mxu0 0
        %910 = vmatmul.mubr.bf16.gmra.mxu0 %v586
        %v911 = vpop.f32.mrf.mxu0
        %v912 = vadd.f32 %v759, %v911
        %v913 = vpop.f32.mrf.mxu0
        %v914 = vadd.f32 %v761, %v913
        %v915 = vpop.f32.mrf.mxu0
        %v916 = vadd.f32 %v763, %v915
        %v917 = vpop.f32.mrf.mxu0
        %v918 = vadd.f32 %v765, %v917
        %919 = vmatprep.mubr.bf16.mxu0 0
        %920 = vmatmul.mubr.bf16.gmra.mxu0 %v587
        %v921 = vpop.f32.mrf.mxu0
        %v922 = vadd.f32 %v769, %v921
        %v923 = vpop.f32.mrf.mxu0
        %v924 = vadd.f32 %v771, %v923
        %v925 = vpop.f32.mrf.mxu0
        %v926 = vadd.f32 %v773, %v925
        %v927 = vpop.f32.mrf.mxu0
        %v928 = vadd.f32 %v775, %v927
        %929 = vmatprep.mubr.bf16.mxu0 0
        %930 = vmatmul.mubr.bf16.gmra.mxu0 %v588
        %v931 = vpop.f32.mrf.mxu0
        %v932 = vadd.f32 %v779, %v931
        %v933 = vpop.f32.mrf.mxu0
        %v934 = vadd.f32 %v781, %v933
        %v935 = vpop.f32.mrf.mxu0
        %v936 = vadd.f32 %v783, %v935
        %v937 = vpop.f32.mrf.mxu0
        %v938 = vadd.f32 %v785, %v937
        %939 = vdwg.mxu0
        %v940 = vld [vmem:[#allocation2 + $0x2] sm:$0xff]
        %v941 = vld [vmem:[#allocation2 + $0x12] sm:$0xff]
        %v942 = vld [vmem:[#allocation2 + $0x22] sm:$0xff]
        %v943 = vld [vmem:[#allocation2 + $0x32] sm:$0xff]
        %v944 = vld [vmem:[#allocation2 + $0x42] sm:$0xff]
        %v945 = vld [vmem:[#allocation2 + $0x52] sm:$0xff]
        %v946 = vld [vmem:[#allocation2 + $0x62] sm:$0xff]
        %v947 = vld [vmem:[#allocation2 + $0x72] sm:$0xff]
        %v948 = vpack.c.bf16 %v941, %v940
        %v949 = vpack.c.bf16 %v943, %v942
        %v950 = vpack.c.bf16 %v945, %v944
        %v951 = vpack.c.bf16 %v947, %v946
        %s952 = scalar_lea.vmem %s4, 256
        %v953 = vld [vmem:[%s952] sm:$0xff]
        %v954 = vld [vmem:[%s952 + $0x8] sm:$0xff]
        %v955 = vld [vmem:[%s952 + $0x10] sm:$0xff]
        %v956 = vld [vmem:[%s952 + $0x18] sm:$0xff]
        %v957 = vld [vmem:[%s952 + $0x20] sm:$0xff]
        %v958 = vld [vmem:[%s952 + $0x28] sm:$0xff]
        %v959 = vld [vmem:[%s952 + $0x30] sm:$0xff]
        %v960 = vld [vmem:[%s952 + $0x38] sm:$0xff]
        %v961 = vld [vmem:[%s952 + $0x40] sm:$0xff]
        %v962 = vld [vmem:[%s952 + $0x48] sm:$0xff]
        %v963 = vld [vmem:[%s952 + $0x50] sm:$0xff]
        %v964 = vld [vmem:[%s952 + $0x58] sm:$0xff]
        %v965 = vld [vmem:[%s952 + $0x60] sm:$0xff]
        %v966 = vld [vmem:[%s952 + $0x68] sm:$0xff]
        %v967 = vld [vmem:[%s952 + $0x70] sm:$0xff]
        %v968 = vld [vmem:[%s952 + $0x78] sm:$0xff]
        %v985 = vunpack.c.l.b16 %v953
        %v986 = vunpack.c.h.b16 %v953
        %v987 = vunpack.c.l.b16 %v954
        %v988 = vunpack.c.h.b16 %v954
        %v989 = vunpack.c.l.b16 %v955
        %v990 = vunpack.c.h.b16 %v955
        %v991 = vunpack.c.l.b16 %v956
        %v992 = vunpack.c.h.b16 %v956
        %v993 = vunpack.c.l.b16 %v957
        %v994 = vunpack.c.h.b16 %v957
        %v995 = vunpack.c.l.b16 %v958
        %v996 = vunpack.c.h.b16 %v958
        %v997 = vunpack.c.l.b16 %v959
        %v998 = vunpack.c.h.b16 %v959
        %v999 = vunpack.c.l.b16 %v960
        %v1000 = vunpack.c.h.b16 %v960
        %v1001 = vunpack.c.l.b16 %v961
        %v1002 = vunpack.c.h.b16 %v961
        %v1003 = vunpack.c.l.b16 %v962
        %v1004 = vunpack.c.h.b16 %v962
        %v1005 = vunpack.c.l.b16 %v963
        %v1006 = vunpack.c.h.b16 %v963
        %v1007 = vunpack.c.l.b16 %v964
        %v1008 = vunpack.c.h.b16 %v964
        %v1009 = vunpack.c.l.b16 %v965
        %v1010 = vunpack.c.h.b16 %v965
        %v1011 = vunpack.c.l.b16 %v966
        %v1012 = vunpack.c.h.b16 %v966
        %v1013 = vunpack.c.l.b16 %v967
        %v1014 = vunpack.c.h.b16 %v967
        %v1015 = vunpack.c.l.b16 %v968
        %v1016 = vunpack.c.h.b16 %v968
        %v1017 = vpack.c.b16 %v987, %v985
        %v1018 = vpack.c.b16 %v988, %v986
        %v1019 = vpack.c.b16 %v991, %v989
        %v1020 = vpack.c.b16 %v992, %v990
        %v1021 = vpack.c.b16 %v995, %v993
        %v1022 = vpack.c.b16 %v996, %v994
        %v1023 = vpack.c.b16 %v999, %v997
        %v1024 = vpack.c.b16 %v1000, %v998
        %v1025 = vpack.c.b16 %v1003, %v1001
        %v1026 = vpack.c.b16 %v1004, %v1002
        %v1027 = vpack.c.b16 %v1007, %v1005
        %v1028 = vpack.c.b16 %v1008, %v1006
        %v1029 = vpack.c.b16 %v1011, %v1009
        %v1030 = vpack.c.b16 %v1012, %v1010
        %v1031 = vpack.c.b16 %v1015, %v1013
        %v1032 = vpack.c.b16 %v1016, %v1014
        %1049 = vmatprep.subr.bf16.mxu0 %v1032
        %1050 = vmatpush1.bf16.msra.mxu0 %v1031
        %1051 = vmatprep.subr.bf16.mxu0 %v1030
        %1052 = vmatpush1.bf16.msra.mxu0 %v1029
        %1053 = vmatprep.subr.bf16.mxu0 %v1028
        %1054 = vmatpush1.bf16.msra.mxu0 %v1027
        %1055 = vmatprep.subr.bf16.mxu0 %v1026
        %1056 = vmatpush1.bf16.msra.mxu0 %v1025
        %1057 = vmatprep.subr.bf16.mxu0 %v1024
        %1058 = vmatpush1.bf16.msra.mxu0 %v1023
        %1059 = vmatprep.subr.bf16.mxu0 %v1022
        %1060 = vmatpush1.bf16.msra.mxu0 %v1021
        %1061 = vmatprep.subr.bf16.mxu0 %v1020
        %1062 = vmatpush1.bf16.msra.mxu0 %v1019
        %1063 = vmatprep.subr.bf16.mxu0 %v1018
        %1064 = vmatpush1.bf16.msra.mxu0 %v1017
        %1065 = vmatprep.subr.bf16.mxu0 0
        %1066 = vmatpush2.bf16.msra.mxu0 0
        %1067 = vmatprep.subr.bf16.mxu0 0
        %1068 = vmatpush2.bf16.msra.mxu0 0
        %1069 = vmatprep.subr.bf16.mxu0 0
        %1070 = vmatpush2.bf16.msra.mxu0 0
        %1071 = vmatprep.subr.bf16.mxu0 0
        %1072 = vmatpush2.bf16.msra.mxu0 0
        %1073 = vmatprep.subr.bf16.mxu0 0
        %1074 = vmatpush2.bf16.msra.mxu0 0
        %1075 = vmatprep.subr.bf16.mxu0 0
        %1076 = vmatpush2.bf16.msra.mxu0 0
        %1077 = vmatprep.subr.bf16.mxu0 0
        %1078 = vmatpush2.bf16.msra.mxu0 0
        %1079 = vmatprep.subr.bf16.mxu0 0
        %1080 = vmatpush2.bf16.msra.mxu0 0
        %1081 = vmatprep.mubr.bf16.mxu0 0
        %1082 = vmatmul.mubr.bf16.gmra.mxu0 %v948
        %v1083 = vpop.f32.mrf.mxu0
        %v1084 = vadd.f32 0.0, %v1083
        %v1085 = vpop.f32.mrf.mxu0
        %v1086 = vadd.f32 0.0, %v1085
        %v1087 = vpop.f32.mrf.mxu0
        %v1088 = vadd.f32 0.0, %v1087
        %v1089 = vpop.f32.mrf.mxu0
        %v1090 = vadd.f32 0.0, %v1089
        %1091 = vmatprep.mubr.bf16.mxu0 0
        %1092 = vmatmul.mubr.bf16.gmra.mxu0 %v949
        %v1093 = vpop.f32.mrf.mxu0
        %v1094 = vadd.f32 0.0, %v1093
        %v1095 = vpop.f32.mrf.mxu0
        %v1096 = vadd.f32 0.0, %v1095
        %v1097 = vpop.f32.mrf.mxu0
        %v1098 = vadd.f32 0.0, %v1097
        %v1099 = vpop.f32.mrf.mxu0
        %v1100 = vadd.f32 0.0, %v1099
        %1101 = vmatprep.mubr.bf16.mxu0 0
        %1102 = vmatmul.mubr.bf16.gmra.mxu0 %v950
        %v1103 = vpop.f32.mrf.mxu0
        %v1104 = vadd.f32 0.0, %v1103
        %v1105 = vpop.f32.mrf.mxu0
        %v1106 = vadd.f32 0.0, %v1105
        %v1107 = vpop.f32.mrf.mxu0
        %v1108 = vadd.f32 0.0, %v1107
        %v1109 = vpop.f32.mrf.mxu0
        %v1110 = vadd.f32 0.0, %v1109
        %1111 = vmatprep.mubr.bf16.mxu0 0
        %1112 = vmatmul.mubr.bf16.gmra.mxu0 %v951
        %v1113 = vpop.f32.mrf.mxu0
        %v1114 = vadd.f32 0.0, %v1113
        %v1115 = vpop.f32.mrf.mxu0
        %v1116 = vadd.f32 0.0, %v1115
        %v1117 = vpop.f32.mrf.mxu0
        %v1118 = vadd.f32 0.0, %v1117
        %v1119 = vpop.f32.mrf.mxu0
        %v1120 = vadd.f32 0.0, %v1119
        %1121 = vdwg.mxu0
        %v1122 = vadd.f32 %v902, %v1084
        %v1123 = vadd.f32 %v904, %v1086
        %v1124 = vadd.f32 %v906, %v1088
        %v1125 = vadd.f32 %v908, %v1090
        %v1126 = vadd.f32 %v912, %v1094
        %v1127 = vadd.f32 %v914, %v1096
        %v1128 = vadd.f32 %v916, %v1098
        %v1129 = vadd.f32 %v918, %v1100
        %v1130 = vadd.f32 %v922, %v1104
        %v1131 = vadd.f32 %v924, %v1106
        %v1132 = vadd.f32 %v926, %v1108
        %v1133 = vadd.f32 %v928, %v1110
        %v1134 = vadd.f32 %v932, %v1114
        %v1135 = vadd.f32 %v934, %v1116
        %v1136 = vadd.f32 %v936, %v1118
        %v1137 = vadd.f32 %v938, %v1120
        %v1138 = vld [vmem:[%s509] sm:$0xff]
        %v1139 = vld [vmem:[%s509 + $0x10] sm:$0xff]
        %v1140 = vld [vmem:[%s509 + $0x20] sm:$0xff]
        %v1141 = vld [vmem:[%s509 + $0x30] sm:$0xff]
        %v1142 = vld [vmem:[%s509 + $0x40] sm:$0xff]
        %v1143 = vld [vmem:[%s509 + $0x50] sm:$0xff]
        %v1144 = vld [vmem:[%s509 + $0x60] sm:$0xff]
        %v1145 = vld [vmem:[%s509 + $0x70] sm:$0xff]
        %v1146 = vpack.c.bf16 %v1139, %v1138
        %v1147 = vpack.c.bf16 %v1141, %v1140
        %v1148 = vpack.c.bf16 %v1143, %v1142
        %v1149 = vpack.c.bf16 %v1145, %v1144
        %s1150 = scalar_lea.vmem %s4, 384
        %v1151 = vld [vmem:[%s1150] sm:$0xff]
        %v1152 = vld [vmem:[%s1150 + $0x8] sm:$0xff]
        %v1153 = vld [vmem:[%s1150 + $0x10] sm:$0xff]
        %v1154 = vld [vmem:[%s1150 + $0x18] sm:$0xff]
        %v1155 = vld [vmem:[%s1150 + $0x20] sm:$0xff]
        %v1156 = vld [vmem:[%s1150 + $0x28] sm:$0xff]
        %v1157 = vld [vmem:[%s1150 + $0x30] sm:$0xff]
        %v1158 = vld [vmem:[%s1150 + $0x38] sm:$0xff]
        %v1159 = vld [vmem:[%s1150 + $0x40] sm:$0xff]
        %v1160 = vld [vmem:[%s1150 + $0x48] sm:$0xff]
        %v1161 = vld [vmem:[%s1150 + $0x50] sm:$0xff]
        %v1162 = vld [vmem:[%s1150 + $0x58] sm:$0xff]
        %v1163 = vld [vmem:[%s1150 + $0x60] sm:$0xff]
        %v1164 = vld [vmem:[%s1150 + $0x68] sm:$0xff]
        %v1165 = vld [vmem:[%s1150 + $0x70] sm:$0xff]
        %v1166 = vld [vmem:[%s1150 + $0x78] sm:$0xff]
        %v1183 = vunpack.c.l.b16 %v1151
        %v1184 = vunpack.c.h.b16 %v1151
        %v1185 = vunpack.c.l.b16 %v1152
        %v1186 = vunpack.c.h.b16 %v1152
        %v1187 = vunpack.c.l.b16 %v1153
        %v1188 = vunpack.c.h.b16 %v1153
        %v1189 = vunpack.c.l.b16 %v1154
        %v1190 = vunpack.c.h.b16 %v1154
        %v1191 = vunpack.c.l.b16 %v1155
        %v1192 = vunpack.c.h.b16 %v1155
        %v1193 = vunpack.c.l.b16 %v1156
        %v1194 = vunpack.c.h.b16 %v1156
        %v1195 = vunpack.c.l.b16 %v1157
        %v1196 = vunpack.c.h.b16 %v1157
        %v1197 = vunpack.c.l.b16 %v1158
        %v1198 = vunpack.c.h.b16 %v1158
        %v1199 = vunpack.c.l.b16 %v1159
        %v1200 = vunpack.c.h.b16 %v1159
        %v1201 = vunpack.c.l.b16 %v1160
        %v1202 = vunpack.c.h.b16 %v1160
        %v1203 = vunpack.c.l.b16 %v1161
        %v1204 = vunpack.c.h.b16 %v1161
        %v1205 = vunpack.c.l.b16 %v1162
        %v1206 = vunpack.c.h.b16 %v1162
        %v1207 = vunpack.c.l.b16 %v1163
        %v1208 = vunpack.c.h.b16 %v1163
        %v1209 = vunpack.c.l.b16 %v1164
        %v1210 = vunpack.c.h.b16 %v1164
        %v1211 = vunpack.c.l.b16 %v1165
        %v1212 = vunpack.c.h.b16 %v1165
        %v1213 = vunpack.c.l.b16 %v1166
        %v1214 = vunpack.c.h.b16 %v1166
        %v1215 = vpack.c.b16 %v1185, %v1183
        %v1216 = vpack.c.b16 %v1186, %v1184
        %v1217 = vpack.c.b16 %v1189, %v1187
        %v1218 = vpack.c.b16 %v1190, %v1188
        %v1219 = vpack.c.b16 %v1193, %v1191
        %v1220 = vpack.c.b16 %v1194, %v1192
        %v1221 = vpack.c.b16 %v1197, %v1195
        %v1222 = vpack.c.b16 %v1198, %v1196
        %v1223 = vpack.c.b16 %v1201, %v1199
        %v1224 = vpack.c.b16 %v1202, %v1200
        %v1225 = vpack.c.b16 %v1205, %v1203
        %v1226 = vpack.c.b16 %v1206, %v1204
        %v1227 = vpack.c.b16 %v1209, %v1207
        %v1228 = vpack.c.b16 %v1210, %v1208
        %v1229 = vpack.c.b16 %v1213, %v1211
        %v1230 = vpack.c.b16 %v1214, %v1212
        %1247 = vmatprep.subr.bf16.mxu0 %v1230
        %1248 = vmatpush1.bf16.msra.mxu0 %v1229
        %1249 = vmatprep.subr.bf16.mxu0 %v1228
        %1250 = vmatpush1.bf16.msra.mxu0 %v1227
        %1251 = vmatprep.subr.bf16.mxu0 %v1226
        %1252 = vmatpush1.bf16.msra.mxu0 %v1225
        %1253 = vmatprep.subr.bf16.mxu0 %v1224
        %1254 = vmatpush1.bf16.msra.mxu0 %v1223
        %1255 = vmatprep.subr.bf16.mxu0 %v1222
        %1256 = vmatpush1.bf16.msra.mxu0 %v1221
        %1257 = vmatprep.subr.bf16.mxu0 %v1220
        %1258 = vmatpush1.bf16.msra.mxu0 %v1219
        %1259 = vmatprep.subr.bf16.mxu0 %v1218
        %1260 = vmatpush1.bf16.msra.mxu0 %v1217
        %1261 = vmatprep.subr.bf16.mxu0 %v1216
        %1262 = vmatpush1.bf16.msra.mxu0 %v1215
        %1263 = vmatprep.subr.bf16.mxu0 0
        %1264 = vmatpush2.bf16.msra.mxu0 0
        %1265 = vmatprep.subr.bf16.mxu0 0
        %1266 = vmatpush2.bf16.msra.mxu0 0
        %1267 = vmatprep.subr.bf16.mxu0 0
        %1268 = vmatpush2.bf16.msra.mxu0 0
        %1269 = vmatprep.subr.bf16.mxu0 0
        %1270 = vmatpush2.bf16.msra.mxu0 0
        %1271 = vmatprep.subr.bf16.mxu0 0
        %1272 = vmatpush2.bf16.msra.mxu0 0
        %1273 = vmatprep.subr.bf16.mxu0 0
        %1274 = vmatpush2.bf16.msra.mxu0 0
        %1275 = vmatprep.subr.bf16.mxu0 0
        %1276 = vmatpush2.bf16.msra.mxu0 0
        %1277 = vmatprep.subr.bf16.mxu0 0
        %1278 = vmatpush2.bf16.msra.mxu0 0
        %1279 = vmatprep.mubr.bf16.mxu0 0
        %1280 = vmatmul.mubr.bf16.gmra.mxu0 %v1146
        %v1281 = vpop.f32.mrf.mxu0
        %v1282 = vadd.f32 0.0, %v1281
        %v1283 = vpop.f32.mrf.mxu0
        %v1284 = vadd.f32 0.0, %v1283
        %v1285 = vpop.f32.mrf.mxu0
        %v1286 = vadd.f32 0.0, %v1285
        %v1287 = vpop.f32.mrf.mxu0
        %v1288 = vadd.f32 0.0, %v1287
        %1289 = vmatprep.mubr.bf16.mxu0 0
        %1290 = vmatmul.mubr.bf16.gmra.mxu0 %v1147
        %v1291 = vpop.f32.mrf.mxu0
        %v1292 = vadd.f32 0.0, %v1291
        %v1293 = vpop.f32.mrf.mxu0
        %v1294 = vadd.f32 0.0, %v1293
        %v1295 = vpop.f32.mrf.mxu0
        %v1296 = vadd.f32 0.0, %v1295
        %v1297 = vpop.f32.mrf.mxu0
        %v1298 = vadd.f32 0.0, %v1297
        %1299 = vmatprep.mubr.bf16.mxu0 0
        %1300 = vmatmul.mubr.bf16.gmra.mxu0 %v1148
        %v1301 = vpop.f32.mrf.mxu0
        %v1302 = vadd.f32 0.0, %v1301
        %v1303 = vpop.f32.mrf.mxu0
        %v1304 = vadd.f32 0.0, %v1303
        %v1305 = vpop.f32.mrf.mxu0
        %v1306 = vadd.f32 0.0, %v1305
        %v1307 = vpop.f32.mrf.mxu0
        %v1308 = vadd.f32 0.0, %v1307
        %1309 = vmatprep.mubr.bf16.mxu0 0
        %1310 = vmatmul.mubr.bf16.gmra.mxu0 %v1149
        %v1311 = vpop.f32.mrf.mxu0
        %v1312 = vadd.f32 0.0, %v1311
        %v1313 = vpop.f32.mrf.mxu0
        %v1314 = vadd.f32 0.0, %v1313
        %v1315 = vpop.f32.mrf.mxu0
        %v1316 = vadd.f32 0.0, %v1315
        %v1317 = vpop.f32.mrf.mxu0
        %v1318 = vadd.f32 0.0, %v1317
        %1319 = vdwg.mxu0
        %v1320 = vadd.f32 %v1122, %v1282
        %v1321 = vadd.f32 %v1123, %v1284
        %v1322 = vadd.f32 %v1124, %v1286
        %v1323 = vadd.f32 %v1125, %v1288
        %v1324 = vadd.f32 %v1126, %v1292
        %v1325 = vadd.f32 %v1127, %v1294
        %v1326 = vadd.f32 %v1128, %v1296
        %v1327 = vadd.f32 %v1129, %v1298
        %v1328 = vadd.f32 %v1130, %v1302
        %v1329 = vadd.f32 %v1131, %v1304
        %v1330 = vadd.f32 %v1132, %v1306
        %v1331 = vadd.f32 %v1133, %v1308
        %v1332 = vadd.f32 %v1134, %v1312
        %v1333 = vadd.f32 %v1135, %v1314
        %v1334 = vadd.f32 %v1136, %v1316
        %v1335 = vadd.f32 %v1137, %v1318
        %v1336 = vld [vmem:[%s509 + $0x1] sm:$0xff]
        %v1337 = vld [vmem:[%s509 + $0x11] sm:$0xff]
        %v1338 = vld [vmem:[%s509 + $0x21] sm:$0xff]
        %v1339 = vld [vmem:[%s509 + $0x31] sm:$0xff]
        %v1340 = vld [vmem:[%s509 + $0x41] sm:$0xff]
        %v1341 = vld [vmem:[%s509 + $0x51] sm:$0xff]
        %v1342 = vld [vmem:[%s509 + $0x61] sm:$0xff]
        %v1343 = vld [vmem:[%s509 + $0x71] sm:$0xff]
        %v1344 = vpack.c.bf16 %v1337, %v1336
        %v1345 = vpack.c.bf16 %v1339, %v1338
        %v1346 = vpack.c.bf16 %v1341, %v1340
        %v1347 = vpack.c.bf16 %v1343, %v1342
        %s1348 = scalar_lea.vmem %s4, 512
        %v1349 = vld [vmem:[%s1348] sm:$0xff]
        %v1350 = vld [vmem:[%s1348 + $0x8] sm:$0xff]
        %v1351 = vld [vmem:[%s1348 + $0x10] sm:$0xff]
        %v1352 = vld [vmem:[%s1348 + $0x18] sm:$0xff]
        %v1353 = vld [vmem:[%s1348 + $0x20] sm:$0xff]
        %v1354 = vld [vmem:[%s1348 + $0x28] sm:$0xff]
        %v1355 = vld [vmem:[%s1348 + $0x30] sm:$0xff]
        %v1356 = vld [vmem:[%s1348 + $0x38] sm:$0xff]
        %v1357 = vld [vmem:[%s1348 + $0x40] sm:$0xff]
        %v1358 = vld [vmem:[%s1348 + $0x48] sm:$0xff]
        %v1359 = vld [vmem:[%s1348 + $0x50] sm:$0xff]
        %v1360 = vld [vmem:[%s1348 + $0x58] sm:$0xff]
        %v1361 = vld [vmem:[%s1348 + $0x60] sm:$0xff]
        %v1362 = vld [vmem:[%s1348 + $0x68] sm:$0xff]
        %v1363 = vld [vmem:[%s1348 + $0x70] sm:$0xff]
        %v1364 = vld [vmem:[%s1348 + $0x78] sm:$0xff]
        %v1381 = vunpack.c.l.b16 %v1349
        %v1382 = vunpack.c.h.b16 %v1349
        %v1383 = vunpack.c.l.b16 %v1350
        %v1384 = vunpack.c.h.b16 %v1350
        %v1385 = vunpack.c.l.b16 %v1351
        %v1386 = vunpack.c.h.b16 %v1351
        %v1387 = vunpack.c.l.b16 %v1352
        %v1388 = vunpack.c.h.b16 %v1352
        %v1389 = vunpack.c.l.b16 %v1353
        %v1390 = vunpack.c.h.b16 %v1353
        %v1391 = vunpack.c.l.b16 %v1354
        %v1392 = vunpack.c.h.b16 %v1354
        %v1393 = vunpack.c.l.b16 %v1355
        %v1394 = vunpack.c.h.b16 %v1355
        %v1395 = vunpack.c.l.b16 %v1356
        %v1396 = vunpack.c.h.b16 %v1356
        %v1397 = vunpack.c.l.b16 %v1357
        %v1398 = vunpack.c.h.b16 %v1357
        %v1399 = vunpack.c.l.b16 %v1358
        %v1400 = vunpack.c.h.b16 %v1358
        %v1401 = vunpack.c.l.b16 %v1359
        %v1402 = vunpack.c.h.b16 %v1359
        %v1403 = vunpack.c.l.b16 %v1360
        %v1404 = vunpack.c.h.b16 %v1360
        %v1405 = vunpack.c.l.b16 %v1361
        %v1406 = vunpack.c.h.b16 %v1361
        %v1407 = vunpack.c.l.b16 %v1362
        %v1408 = vunpack.c.h.b16 %v1362
        %v1409 = vunpack.c.l.b16 %v1363
        %v1410 = vunpack.c.h.b16 %v1363
        %v1411 = vunpack.c.l.b16 %v1364
        %v1412 = vunpack.c.h.b16 %v1364
        %v1413 = vpack.c.b16 %v1383, %v1381
        %v1414 = vpack.c.b16 %v1384, %v1382
        %v1415 = vpack.c.b16 %v1387, %v1385
        %v1416 = vpack.c.b16 %v1388, %v1386
        %v1417 = vpack.c.b16 %v1391, %v1389
        %v1418 = vpack.c.b16 %v1392, %v1390
        %v1419 = vpack.c.b16 %v1395, %v1393
        %v1420 = vpack.c.b16 %v1396, %v1394
        %v1421 = vpack.c.b16 %v1399, %v1397
        %v1422 = vpack.c.b16 %v1400, %v1398
        %v1423 = vpack.c.b16 %v1403, %v1401
        %v1424 = vpack.c.b16 %v1404, %v1402
        %v1425 = vpack.c.b16 %v1407, %v1405
        %v1426 = vpack.c.b16 %v1408, %v1406
        %v1427 = vpack.c.b16 %v1411, %v1409
        %v1428 = vpack.c.b16 %v1412, %v1410
        %1445 = vmatprep.subr.bf16.mxu0 %v1428
        %1446 = vmatpush1.bf16.msra.mxu0 %v1427
        %1447 = vmatprep.subr.bf16.mxu0 %v1426
        %1448 = vmatpush1.bf16.msra.mxu0 %v1425
        %1449 = vmatprep.subr.bf16.mxu0 %v1424
        %1450 = vmatpush1.bf16.msra.mxu0 %v1423
        %1451 = vmatprep.subr.bf16.mxu0 %v1422
        %1452 = vmatpush1.bf16.msra.mxu0 %v1421
        %1453 = vmatprep.subr.bf16.mxu0 %v1420
        %1454 = vmatpush1.bf16.msra.mxu0 %v1419
        %1455 = vmatprep.subr.bf16.mxu0 %v1418
        %1456 = vmatpush1.bf16.msra.mxu0 %v1417
        %1457 = vmatprep.subr.bf16.mxu0 %v1416
        %1458 = vmatpush1.bf16.msra.mxu0 %v1415
        %1459 = vmatprep.subr.bf16.mxu0 %v1414
        %1460 = vmatpush1.bf16.msra.mxu0 %v1413
        %1461 = vmatprep.subr.bf16.mxu0 0
        %1462 = vmatpush2.bf16.msra.mxu0 0
        %1463 = vmatprep.subr.bf16.mxu0 0
        %1464 = vmatpush2.bf16.msra.mxu0 0
        %1465 = vmatprep.subr.bf16.mxu0 0
        %1466 = vmatpush2.bf16.msra.mxu0 0
        %1467 = vmatprep.subr.bf16.mxu0 0
        %1468 = vmatpush2.bf16.msra.mxu0 0
        %1469 = vmatprep.subr.bf16.mxu0 0
        %1470 = vmatpush2.bf16.msra.mxu0 0
        %1471 = vmatprep.subr.bf16.mxu0 0
        %1472 = vmatpush2.bf16.msra.mxu0 0
        %1473 = vmatprep.subr.bf16.mxu0 0
        %1474 = vmatpush2.bf16.msra.mxu0 0
        %1475 = vmatprep.subr.bf16.mxu0 0
        %1476 = vmatpush2.bf16.msra.mxu0 0
        %1477 = vmatprep.mubr.bf16.mxu0 0
        %1478 = vmatmul.mubr.bf16.gmra.mxu0 %v1344
        %v1479 = vpop.f32.mrf.mxu0
        %v1480 = vadd.f32 0.0, %v1479
        %v1481 = vpop.f32.mrf.mxu0
        %v1482 = vadd.f32 0.0, %v1481
        %v1483 = vpop.f32.mrf.mxu0
        %v1484 = vadd.f32 0.0, %v1483
        %v1485 = vpop.f32.mrf.mxu0
        %v1486 = vadd.f32 0.0, %v1485
        %1487 = vmatprep.mubr.bf16.mxu0 0
        %1488 = vmatmul.mubr.bf16.gmra.mxu0 %v1345
        %v1489 = vpop.f32.mrf.mxu0
        %v1490 = vadd.f32 0.0, %v1489
        %v1491 = vpop.f32.mrf.mxu0
        %v1492 = vadd.f32 0.0, %v1491
        %v1493 = vpop.f32.mrf.mxu0
        %v1494 = vadd.f32 0.0, %v1493
        %v1495 = vpop.f32.mrf.mxu0
        %v1496 = vadd.f32 0.0, %v1495
        %1497 = vmatprep.mubr.bf16.mxu0 0
        %1498 = vmatmul.mubr.bf16.gmra.mxu0 %v1346
        %v1499 = vpop.f32.mrf.mxu0
        %v1500 = vadd.f32 0.0, %v1499
        %v1501 = vpop.f32.mrf.mxu0
        %v1502 = vadd.f32 0.0, %v1501
        %v1503 = vpop.f32.mrf.mxu0
        %v1504 = vadd.f32 0.0, %v1503
        %v1505 = vpop.f32.mrf.mxu0
        %v1506 = vadd.f32 0.0, %v1505
        %1507 = vmatprep.mubr.bf16.mxu0 0
        %1508 = vmatmul.mubr.bf16.gmra.mxu0 %v1347
        %v1509 = vpop.f32.mrf.mxu0
        %v1510 = vadd.f32 0.0, %v1509
        %v1511 = vpop.f32.mrf.mxu0
        %v1512 = vadd.f32 0.0, %v1511
        %v1513 = vpop.f32.mrf.mxu0
        %v1514 = vadd.f32 0.0, %v1513
        %v1515 = vpop.f32.mrf.mxu0
        %v1516 = vadd.f32 0.0, %v1515
        %1517 = vdwg.mxu0
        %v1518 = vadd.f32 %v1320, %v1480
        %v1519 = vadd.f32 %v1321, %v1482
        %v1520 = vadd.f32 %v1322, %v1484
        %v1521 = vadd.f32 %v1323, %v1486
        %v1522 = vadd.f32 %v1324, %v1490
        %v1523 = vadd.f32 %v1325, %v1492
        %v1524 = vadd.f32 %v1326, %v1494
        %v1525 = vadd.f32 %v1327, %v1496
        %v1526 = vadd.f32 %v1328, %v1500
        %v1527 = vadd.f32 %v1329, %v1502
        %v1528 = vadd.f32 %v1330, %v1504
        %v1529 = vadd.f32 %v1331, %v1506
        %v1530 = vadd.f32 %v1332, %v1510
        %v1531 = vadd.f32 %v1333, %v1512
        %v1532 = vadd.f32 %v1334, %v1514
        %v1533 = vadd.f32 %v1335, %v1516
        %v1534 = vld [vmem:[%s509 + $0x2] sm:$0xff]
        %v1535 = vld [vmem:[%s509 + $0x12] sm:$0xff]
        %v1536 = vld [vmem:[%s509 + $0x22] sm:$0xff]
        %v1537 = vld [vmem:[%s509 + $0x32] sm:$0xff]
        %v1538 = vld [vmem:[%s509 + $0x42] sm:$0xff]
        %v1539 = vld [vmem:[%s509 + $0x52] sm:$0xff]
        %v1540 = vld [vmem:[%s509 + $0x62] sm:$0xff]
        %v1541 = vld [vmem:[%s509 + $0x72] sm:$0xff]
        %v1542 = vpack.c.bf16 %v1535, %v1534
        %v1543 = vpack.c.bf16 %v1537, %v1536
        %v1544 = vpack.c.bf16 %v1539, %v1538
        %v1545 = vpack.c.bf16 %v1541, %v1540
        %s1546 = scalar_lea.vmem %s4, 640
        %v1547 = vld [vmem:[%s1546] sm:$0xff]
        %v1548 = vld [vmem:[%s1546 + $0x8] sm:$0xff]
        %v1549 = vld [vmem:[%s1546 + $0x10] sm:$0xff]
        %v1550 = vld [vmem:[%s1546 + $0x18] sm:$0xff]
        %v1551 = vld [vmem:[%s1546 + $0x20] sm:$0xff]
        %v1552 = vld [vmem:[%s1546 + $0x28] sm:$0xff]
        %v1553 = vld [vmem:[%s1546 + $0x30] sm:$0xff]
        %v1554 = vld [vmem:[%s1546 + $0x38] sm:$0xff]
        %v1555 = vld [vmem:[%s1546 + $0x40] sm:$0xff]
        %v1556 = vld [vmem:[%s1546 + $0x48] sm:$0xff]
        %v1557 = vld [vmem:[%s1546 + $0x50] sm:$0xff]
        %v1558 = vld [vmem:[%s1546 + $0x58] sm:$0xff]
        %v1559 = vld [vmem:[%s1546 + $0x60] sm:$0xff]
        %v1560 = vld [vmem:[%s1546 + $0x68] sm:$0xff]
        %v1561 = vld [vmem:[%s1546 + $0x70] sm:$0xff]
        %v1562 = vld [vmem:[%s1546 + $0x78] sm:$0xff]
        %v1579 = vunpack.c.l.b16 %v1547
        %v1580 = vunpack.c.h.b16 %v1547
        %v1581 = vunpack.c.l.b16 %v1548
        %v1582 = vunpack.c.h.b16 %v1548
        %v1583 = vunpack.c.l.b16 %v1549
        %v1584 = vunpack.c.h.b16 %v1549
        %v1585 = vunpack.c.l.b16 %v1550
        %v1586 = vunpack.c.h.b16 %v1550
        %v1587 = vunpack.c.l.b16 %v1551
        %v1588 = vunpack.c.h.b16 %v1551
        %v1589 = vunpack.c.l.b16 %v1552
        %v1590 = vunpack.c.h.b16 %v1552
        %v1591 = vunpack.c.l.b16 %v1553
        %v1592 = vunpack.c.h.b16 %v1553
        %v1593 = vunpack.c.l.b16 %v1554
        %v1594 = vunpack.c.h.b16 %v1554
        %v1595 = vunpack.c.l.b16 %v1555
        %v1596 = vunpack.c.h.b16 %v1555
        %v1597 = vunpack.c.l.b16 %v1556
        %v1598 = vunpack.c.h.b16 %v1556
        %v1599 = vunpack.c.l.b16 %v1557
        %v1600 = vunpack.c.h.b16 %v1557
        %v1601 = vunpack.c.l.b16 %v1558
        %v1602 = vunpack.c.h.b16 %v1558
        %v1603 = vunpack.c.l.b16 %v1559
        %v1604 = vunpack.c.h.b16 %v1559
        %v1605 = vunpack.c.l.b16 %v1560
        %v1606 = vunpack.c.h.b16 %v1560
        %v1607 = vunpack.c.l.b16 %v1561
        %v1608 = vunpack.c.h.b16 %v1561
        %v1609 = vunpack.c.l.b16 %v1562
        %v1610 = vunpack.c.h.b16 %v1562
        %v1611 = vpack.c.b16 %v1581, %v1579
        %v1612 = vpack.c.b16 %v1582, %v1580
        %v1613 = vpack.c.b16 %v1585, %v1583
        %v1614 = vpack.c.b16 %v1586, %v1584
        %v1615 = vpack.c.b16 %v1589, %v1587
        %v1616 = vpack.c.b16 %v1590, %v1588
        %v1617 = vpack.c.b16 %v1593, %v1591
        %v1618 = vpack.c.b16 %v1594, %v1592
        %v1619 = vpack.c.b16 %v1597, %v1595
        %v1620 = vpack.c.b16 %v1598, %v1596
        %v1621 = vpack.c.b16 %v1601, %v1599
        %v1622 = vpack.c.b16 %v1602, %v1600
        %v1623 = vpack.c.b16 %v1605, %v1603
        %v1624 = vpack.c.b16 %v1606, %v1604
        %v1625 = vpack.c.b16 %v1609, %v1607
        %v1626 = vpack.c.b16 %v1610, %v1608
        %1643 = vmatprep.subr.bf16.mxu0 %v1626
        %1644 = vmatpush1.bf16.msra.mxu0 %v1625
        %1645 = vmatprep.subr.bf16.mxu0 %v1624
        %1646 = vmatpush1.bf16.msra.mxu0 %v1623
        %1647 = vmatprep.subr.bf16.mxu0 %v1622
        %1648 = vmatpush1.bf16.msra.mxu0 %v1621
        %1649 = vmatprep.subr.bf16.mxu0 %v1620
        %1650 = vmatpush1.bf16.msra.mxu0 %v1619
        %1651 = vmatprep.subr.bf16.mxu0 %v1618
        %1652 = vmatpush1.bf16.msra.mxu0 %v1617
        %1653 = vmatprep.subr.bf16.mxu0 %v1616
        %1654 = vmatpush1.bf16.msra.mxu0 %v1615
        %1655 = vmatprep.subr.bf16.mxu0 %v1614
        %1656 = vmatpush1.bf16.msra.mxu0 %v1613
        %1657 = vmatprep.subr.bf16.mxu0 %v1612
        %1658 = vmatpush1.bf16.msra.mxu0 %v1611
        %1659 = vmatprep.subr.bf16.mxu0 0
        %1660 = vmatpush2.bf16.msra.mxu0 0
        %1661 = vmatprep.subr.bf16.mxu0 0
        %1662 = vmatpush2.bf16.msra.mxu0 0
        %1663 = vmatprep.subr.bf16.mxu0 0
        %1664 = vmatpush2.bf16.msra.mxu0 0
        %1665 = vmatprep.subr.bf16.mxu0 0
        %1666 = vmatpush2.bf16.msra.mxu0 0
        %1667 = vmatprep.subr.bf16.mxu0 0
        %1668 = vmatpush2.bf16.msra.mxu0 0
        %1669 = vmatprep.subr.bf16.mxu0 0
        %1670 = vmatpush2.bf16.msra.mxu0 0
        %1671 = vmatprep.subr.bf16.mxu0 0
        %1672 = vmatpush2.bf16.msra.mxu0 0
        %1673 = vmatprep.subr.bf16.mxu0 0
        %1674 = vmatpush2.bf16.msra.mxu0 0
        %1675 = vmatprep.mubr.bf16.mxu0 0
        %1676 = vmatmul.mubr.bf16.gmra.mxu0 %v1542
        %v1677 = vpop.f32.mrf.mxu0
        %v1678 = vadd.f32 0.0, %v1677
        %v1679 = vpop.f32.mrf.mxu0
        %v1680 = vadd.f32 0.0, %v1679
        %v1681 = vpop.f32.mrf.mxu0
        %v1682 = vadd.f32 0.0, %v1681
        %v1683 = vpop.f32.mrf.mxu0
        %v1684 = vadd.f32 0.0, %v1683
        %1685 = vmatprep.mubr.bf16.mxu0 0
        %1686 = vmatmul.mubr.bf16.gmra.mxu0 %v1543
        %v1687 = vpop.f32.mrf.mxu0
        %v1688 = vadd.f32 0.0, %v1687
        %v1689 = vpop.f32.mrf.mxu0
        %v1690 = vadd.f32 0.0, %v1689
        %v1691 = vpop.f32.mrf.mxu0
        %v1692 = vadd.f32 0.0, %v1691
        %v1693 = vpop.f32.mrf.mxu0
        %v1694 = vadd.f32 0.0, %v1693
        %1695 = vmatprep.mubr.bf16.mxu0 0
        %1696 = vmatmul.mubr.bf16.gmra.mxu0 %v1544
        %v1697 = vpop.f32.mrf.mxu0
        %v1698 = vadd.f32 0.0, %v1697
        %v1699 = vpop.f32.mrf.mxu0
        %v1700 = vadd.f32 0.0, %v1699
        %v1701 = vpop.f32.mrf.mxu0
        %v1702 = vadd.f32 0.0, %v1701
        %v1703 = vpop.f32.mrf.mxu0
        %v1704 = vadd.f32 0.0, %v1703
        %1705 = vmatprep.mubr.bf16.mxu0 0
        %1706 = vmatmul.mubr.bf16.gmra.mxu0 %v1545
        %v1707 = vpop.f32.mrf.mxu0
        %v1708 = vadd.f32 0.0, %v1707
        %v1709 = vpop.f32.mrf.mxu0
        %v1710 = vadd.f32 0.0, %v1709
        %v1711 = vpop.f32.mrf.mxu0
        %v1712 = vadd.f32 0.0, %v1711
        %v1713 = vpop.f32.mrf.mxu0
        %v1714 = vadd.f32 0.0, %v1713
        %1715 = vdwg.mxu0
        %v1716 = vadd.f32 %v1518, %v1678
        %v1717 = vadd.f32 %v1519, %v1680
        %v1718 = vadd.f32 %v1520, %v1682
        %v1719 = vadd.f32 %v1521, %v1684
        %v1720 = vadd.f32 %v1522, %v1688
        %v1721 = vadd.f32 %v1523, %v1690
        %v1722 = vadd.f32 %v1524, %v1692
        %v1723 = vadd.f32 %v1525, %v1694
        %v1724 = vadd.f32 %v1526, %v1698
        %v1725 = vadd.f32 %v1527, %v1700
        %v1726 = vadd.f32 %v1528, %v1702
        %v1727 = vadd.f32 %v1529, %v1704
        %v1728 = vadd.f32 %v1530, %v1708
        %v1729 = vadd.f32 %v1531, %v1710
        %v1730 = vadd.f32 %v1532, %v1712
        %v1731 = vadd.f32 %v1533, %v1714
        %s1732 = scalar_lea.vmem [#allocation2], 32
        %v1733 = vld [vmem:[%s1732] sm:$0xff]
        %v1734 = vld [vmem:[%s1732 + $0x10] sm:$0xff]
        %v1735 = vld [vmem:[%s1732 + $0x20] sm:$0xff]
        %v1736 = vld [vmem:[%s1732 + $0x30] sm:$0xff]
        %v1737 = vld [vmem:[%s1732 + $0x40] sm:$0xff]
        %v1738 = vld [vmem:[%s1732 + $0x50] sm:$0xff]
        %v1739 = vld [vmem:[%s1732 + $0x60] sm:$0xff]
        %v1740 = vld [vmem:[%s1732 + $0x70] sm:$0xff]
        %v1741 = vpack.c.bf16 %v1734, %v1733
        %v1742 = vpack.c.bf16 %v1736, %v1735
        %v1743 = vpack.c.bf16 %v1738, %v1737
        %v1744 = vpack.c.bf16 %v1740, %v1739
        %s1745 = scalar_lea.vmem %s4, 768
        %v1746 = vld [vmem:[%s1745] sm:$0xff]
        %v1747 = vld [vmem:[%s1745 + $0x8] sm:$0xff]
        %v1748 = vld [vmem:[%s1745 + $0x10] sm:$0xff]
        %v1749 = vld [vmem:[%s1745 + $0x18] sm:$0xff]
        %v1750 = vld [vmem:[%s1745 + $0x20] sm:$0xff]
        %v1751 = vld [vmem:[%s1745 + $0x28] sm:$0xff]
        %v1752 = vld [vmem:[%s1745 + $0x30] sm:$0xff]
        %v1753 = vld [vmem:[%s1745 + $0x38] sm:$0xff]
        %v1754 = vld [vmem:[%s1745 + $0x40] sm:$0xff]
        %v1755 = vld [vmem:[%s1745 + $0x48] sm:$0xff]
        %v1756 = vld [vmem:[%s1745 + $0x50] sm:$0xff]
        %v1757 = vld [vmem:[%s1745 + $0x58] sm:$0xff]
        %v1758 = vld [vmem:[%s1745 + $0x60] sm:$0xff]
        %v1759 = vld [vmem:[%s1745 + $0x68] sm:$0xff]
        %v1760 = vld [vmem:[%s1745 + $0x70] sm:$0xff]
        %v1761 = vld [vmem:[%s1745 + $0x78] sm:$0xff]
        %v1778 = vunpack.c.l.b16 %v1746
        %v1779 = vunpack.c.h.b16 %v1746
        %v1780 = vunpack.c.l.b16 %v1747
        %v1781 = vunpack.c.h.b16 %v1747
        %v1782 = vunpack.c.l.b16 %v1748
        %v1783 = vunpack.c.h.b16 %v1748
        %v1784 = vunpack.c.l.b16 %v1749
        %v1785 = vunpack.c.h.b16 %v1749
        %v1786 = vunpack.c.l.b16 %v1750
        %v1787 = vunpack.c.h.b16 %v1750
        %v1788 = vunpack.c.l.b16 %v1751
        %v1789 = vunpack.c.h.b16 %v1751
        %v1790 = vunpack.c.l.b16 %v1752
        %v1791 = vunpack.c.h.b16 %v1752
        %v1792 = vunpack.c.l.b16 %v1753
        %v1793 = vunpack.c.h.b16 %v1753
        %v1794 = vunpack.c.l.b16 %v1754
        %v1795 = vunpack.c.h.b16 %v1754
        %v1796 = vunpack.c.l.b16 %v1755
        %v1797 = vunpack.c.h.b16 %v1755
        %v1798 = vunpack.c.l.b16 %v1756
        %v1799 = vunpack.c.h.b16 %v1756
        %v1800 = vunpack.c.l.b16 %v1757
        %v1801 = vunpack.c.h.b16 %v1757
        %v1802 = vunpack.c.l.b16 %v1758
        %v1803 = vunpack.c.h.b16 %v1758
        %v1804 = vunpack.c.l.b16 %v1759
        %v1805 = vunpack.c.h.b16 %v1759
        %v1806 = vunpack.c.l.b16 %v1760
        %v1807 = vunpack.c.h.b16 %v1760
        %v1808 = vunpack.c.l.b16 %v1761
        %v1809 = vunpack.c.h.b16 %v1761
        %v1810 = vpack.c.b16 %v1780, %v1778
        %v1811 = vpack.c.b16 %v1781, %v1779
        %v1812 = vpack.c.b16 %v1784, %v1782
        %v1813 = vpack.c.b16 %v1785, %v1783
        %v1814 = vpack.c.b16 %v1788, %v1786
        %v1815 = vpack.c.b16 %v1789, %v1787
        %v1816 = vpack.c.b16 %v1792, %v1790
        %v1817 = vpack.c.b16 %v1793, %v1791
        %v1818 = vpack.c.b16 %v1796, %v1794
        %v1819 = vpack.c.b16 %v1797, %v1795
        %v1820 = vpack.c.b16 %v1800, %v1798
        %v1821 = vpack.c.b16 %v1801, %v1799
        %v1822 = vpack.c.b16 %v1804, %v1802
        %v1823 = vpack.c.b16 %v1805, %v1803
        %v1824 = vpack.c.b16 %v1808, %v1806
        %v1825 = vpack.c.b16 %v1809, %v1807
        %1842 = vmatprep.subr.bf16.mxu0 %v1825
        %1843 = vmatpush1.bf16.msra.mxu0 %v1824
        %1844 = vmatprep.subr.bf16.mxu0 %v1823
        %1845 = vmatpush1.bf16.msra.mxu0 %v1822
        %1846 = vmatprep.subr.bf16.mxu0 %v1821
        %1847 = vmatpush1.bf16.msra.mxu0 %v1820
        %1848 = vmatprep.subr.bf16.mxu0 %v1819
        %1849 = vmatpush1.bf16.msra.mxu0 %v1818
        %1850 = vmatprep.subr.bf16.mxu0 %v1817
        %1851 = vmatpush1.bf16.msra.mxu0 %v1816
        %1852 = vmatprep.subr.bf16.mxu0 %v1815
        %1853 = vmatpush1.bf16.msra.mxu0 %v1814
        %1854 = vmatprep.subr.bf16.mxu0 %v1813
        %1855 = vmatpush1.bf16.msra.mxu0 %v1812
        %1856 = vmatprep.subr.bf16.mxu0 %v1811
        %1857 = vmatpush1.bf16.msra.mxu0 %v1810
        %1858 = vmatprep.subr.bf16.mxu0 0
        %1859 = vmatpush2.bf16.msra.mxu0 0
        %1860 = vmatprep.subr.bf16.mxu0 0
        %1861 = vmatpush2.bf16.msra.mxu0 0
        %1862 = vmatprep.subr.bf16.mxu0 0
        %1863 = vmatpush2.bf16.msra.mxu0 0
        %1864 = vmatprep.subr.bf16.mxu0 0
        %1865 = vmatpush2.bf16.msra.mxu0 0
        %1866 = vmatprep.subr.bf16.mxu0 0
        %1867 = vmatpush2.bf16.msra.mxu0 0
        %1868 = vmatprep.subr.bf16.mxu0 0
        %1869 = vmatpush2.bf16.msra.mxu0 0
        %1870 = vmatprep.subr.bf16.mxu0 0
        %1871 = vmatpush2.bf16.msra.mxu0 0
        %1872 = vmatprep.subr.bf16.mxu0 0
        %1873 = vmatpush2.bf16.msra.mxu0 0
        %1874 = vmatprep.mubr.bf16.mxu0 0
        %1875 = vmatmul.mubr.bf16.gmra.mxu0 %v1741
        %v1876 = vpop.f32.mrf.mxu0
        %v1877 = vadd.f32 0.0, %v1876
        %v1878 = vpop.f32.mrf.mxu0
        %v1879 = vadd.f32 0.0, %v1878
        %v1880 = vpop.f32.mrf.mxu0
        %v1881 = vadd.f32 0.0, %v1880
        %v1882 = vpop.f32.mrf.mxu0
        %v1883 = vadd.f32 0.0, %v1882
        %1884 = vmatprep.mubr.bf16.mxu0 0
        %1885 = vmatmul.mubr.bf16.gmra.mxu0 %v1742
        %v1886 = vpop.f32.mrf.mxu0
        %v1887 = vadd.f32 0.0, %v1886
        %v1888 = vpop.f32.mrf.mxu0
        %v1889 = vadd.f32 0.0, %v1888
        %v1890 = vpop.f32.mrf.mxu0
        %v1891 = vadd.f32 0.0, %v1890
        %v1892 = vpop.f32.mrf.mxu0
        %v1893 = vadd.f32 0.0, %v1892
        %1894 = vmatprep.mubr.bf16.mxu0 0
        %1895 = vmatmul.mubr.bf16.gmra.mxu0 %v1743
        %v1896 = vpop.f32.mrf.mxu0
        %v1897 = vadd.f32 0.0, %v1896
        %v1898 = vpop.f32.mrf.mxu0
        %v1899 = vadd.f32 0.0, %v1898
        %v1900 = vpop.f32.mrf.mxu0
        %v1901 = vadd.f32 0.0, %v1900
        %v1902 = vpop.f32.mrf.mxu0
        %v1903 = vadd.f32 0.0, %v1902
        %1904 = vmatprep.mubr.bf16.mxu0 0
        %1905 = vmatmul.mubr.bf16.gmra.mxu0 %v1744
        %v1906 = vpop.f32.mrf.mxu0
        %v1907 = vadd.f32 0.0, %v1906
        %v1908 = vpop.f32.mrf.mxu0
        %v1909 = vadd.f32 0.0, %v1908
        %v1910 = vpop.f32.mrf.mxu0
        %v1911 = vadd.f32 0.0, %v1910
        %v1912 = vpop.f32.mrf.mxu0
        %v1913 = vadd.f32 0.0, %v1912
        %1914 = vdwg.mxu0
        %v1915 = vadd.f32 %v1716, %v1877
        %v1916 = vadd.f32 %v1717, %v1879
        %v1917 = vadd.f32 %v1718, %v1881
        %v1918 = vadd.f32 %v1719, %v1883
        %v1919 = vadd.f32 %v1720, %v1887
        %v1920 = vadd.f32 %v1721, %v1889
        %v1921 = vadd.f32 %v1722, %v1891
        %v1922 = vadd.f32 %v1723, %v1893
        %v1923 = vadd.f32 %v1724, %v1897
        %v1924 = vadd.f32 %v1725, %v1899
        %v1925 = vadd.f32 %v1726, %v1901
        %v1926 = vadd.f32 %v1727, %v1903
        %v1927 = vadd.f32 %v1728, %v1907
        %v1928 = vadd.f32 %v1729, %v1909
        %v1929 = vadd.f32 %v1730, %v1911
        %v1930 = vadd.f32 %v1731, %v1913
        %v1931 = vld [vmem:[%s1732 + $0x1] sm:$0xff]
        %v1932 = vld [vmem:[%s1732 + $0x11] sm:$0xff]
        %v1933 = vld [vmem:[%s1732 + $0x21] sm:$0xff]
        %v1934 = vld [vmem:[%s1732 + $0x31] sm:$0xff]
        %v1935 = vld [vmem:[%s1732 + $0x41] sm:$0xff]
        %v1936 = vld [vmem:[%s1732 + $0x51] sm:$0xff]
        %v1937 = vld [vmem:[%s1732 + $0x61] sm:$0xff]
        %v1938 = vld [vmem:[%s1732 + $0x71] sm:$0xff]
        %v1939 = vpack.c.bf16 %v1932, %v1931
        %v1940 = vpack.c.bf16 %v1934, %v1933
        %v1941 = vpack.c.bf16 %v1936, %v1935
        %v1942 = vpack.c.bf16 %v1938, %v1937
        %s1943 = scalar_lea.vmem %s4, 896
        %v1944 = vld [vmem:[%s1943] sm:$0xff]
        %v1945 = vld [vmem:[%s1943 + $0x8] sm:$0xff]
        %v1946 = vld [vmem:[%s1943 + $0x10] sm:$0xff]
        %v1947 = vld [vmem:[%s1943 + $0x18] sm:$0xff]
        %v1948 = vld [vmem:[%s1943 + $0x20] sm:$0xff]
        %v1949 = vld [vmem:[%s1943 + $0x28] sm:$0xff]
        %v1950 = vld [vmem:[%s1943 + $0x30] sm:$0xff]
        %v1951 = vld [vmem:[%s1943 + $0x38] sm:$0xff]
        %v1952 = vld [vmem:[%s1943 + $0x40] sm:$0xff]
        %v1953 = vld [vmem:[%s1943 + $0x48] sm:$0xff]
        %v1954 = vld [vmem:[%s1943 + $0x50] sm:$0xff]
        %v1955 = vld [vmem:[%s1943 + $0x58] sm:$0xff]
        %v1956 = vld [vmem:[%s1943 + $0x60] sm:$0xff]
        %v1957 = vld [vmem:[%s1943 + $0x68] sm:$0xff]
        %v1958 = vld [vmem:[%s1943 + $0x70] sm:$0xff]
        %v1959 = vld [vmem:[%s1943 + $0x78] sm:$0xff]
        %v1976 = vunpack.c.l.b16 %v1944
        %v1977 = vunpack.c.h.b16 %v1944
        %v1978 = vunpack.c.l.b16 %v1945
        %v1979 = vunpack.c.h.b16 %v1945
        %v1980 = vunpack.c.l.b16 %v1946
        %v1981 = vunpack.c.h.b16 %v1946
        %v1982 = vunpack.c.l.b16 %v1947
        %v1983 = vunpack.c.h.b16 %v1947
        %v1984 = vunpack.c.l.b16 %v1948
        %v1985 = vunpack.c.h.b16 %v1948
        %v1986 = vunpack.c.l.b16 %v1949
        %v1987 = vunpack.c.h.b16 %v1949
        %v1988 = vunpack.c.l.b16 %v1950
        %v1989 = vunpack.c.h.b16 %v1950
        %v1990 = vunpack.c.l.b16 %v1951
        %v1991 = vunpack.c.h.b16 %v1951
        %v1992 = vunpack.c.l.b16 %v1952
        %v1993 = vunpack.c.h.b16 %v1952
        %v1994 = vunpack.c.l.b16 %v1953
        %v1995 = vunpack.c.h.b16 %v1953
        %v1996 = vunpack.c.l.b16 %v1954
        %v1997 = vunpack.c.h.b16 %v1954
        %v1998 = vunpack.c.l.b16 %v1955
        %v1999 = vunpack.c.h.b16 %v1955
        %v2000 = vunpack.c.l.b16 %v1956
        %v2001 = vunpack.c.h.b16 %v1956
        %v2002 = vunpack.c.l.b16 %v1957
        %v2003 = vunpack.c.h.b16 %v1957
        %v2004 = vunpack.c.l.b16 %v1958
        %v2005 = vunpack.c.h.b16 %v1958
        %v2006 = vunpack.c.l.b16 %v1959
        %v2007 = vunpack.c.h.b16 %v1959
        %v2008 = vpack.c.b16 %v1978, %v1976
        %v2009 = vpack.c.b16 %v1979, %v1977
        %v2010 = vpack.c.b16 %v1982, %v1980
        %v2011 = vpack.c.b16 %v1983, %v1981
        %v2012 = vpack.c.b16 %v1986, %v1984
        %v2013 = vpack.c.b16 %v1987, %v1985
        %v2014 = vpack.c.b16 %v1990, %v1988
        %v2015 = vpack.c.b16 %v1991, %v1989
        %v2016 = vpack.c.b16 %v1994, %v1992
        %v2017 = vpack.c.b16 %v1995, %v1993
        %v2018 = vpack.c.b16 %v1998, %v1996
        %v2019 = vpack.c.b16 %v1999, %v1997
        %v2020 = vpack.c.b16 %v2002, %v2000
        %v2021 = vpack.c.b16 %v2003, %v2001
        %v2022 = vpack.c.b16 %v2006, %v2004
        %v2023 = vpack.c.b16 %v2007, %v2005
        %2040 = vmatprep.subr.bf16.mxu0 %v2023
        %2041 = vmatpush1.bf16.msra.mxu0 %v2022
        %2042 = vmatprep.subr.bf16.mxu0 %v2021
        %2043 = vmatpush1.bf16.msra.mxu0 %v2020
        %2044 = vmatprep.subr.bf16.mxu0 %v2019
        %2045 = vmatpush1.bf16.msra.mxu0 %v2018
        %2046 = vmatprep.subr.bf16.mxu0 %v2017
        %2047 = vmatpush1.bf16.msra.mxu0 %v2016
        %2048 = vmatprep.subr.bf16.mxu0 %v2015
        %2049 = vmatpush1.bf16.msra.mxu0 %v2014
        %2050 = vmatprep.subr.bf16.mxu0 %v2013
        %2051 = vmatpush1.bf16.msra.mxu0 %v2012
        %2052 = vmatprep.subr.bf16.mxu0 %v2011
        %2053 = vmatpush1.bf16.msra.mxu0 %v2010
        %2054 = vmatprep.subr.bf16.mxu0 %v2009
        %2055 = vmatpush1.bf16.msra.mxu0 %v2008
        %2056 = vmatprep.subr.bf16.mxu0 0
        %2057 = vmatpush2.bf16.msra.mxu0 0
        %2058 = vmatprep.subr.bf16.mxu0 0
        %2059 = vmatpush2.bf16.msra.mxu0 0
        %2060 = vmatprep.subr.bf16.mxu0 0
        %2061 = vmatpush2.bf16.msra.mxu0 0
        %2062 = vmatprep.subr.bf16.mxu0 0
        %2063 = vmatpush2.bf16.msra.mxu0 0
        %2064 = vmatprep.subr.bf16.mxu0 0
        %2065 = vmatpush2.bf16.msra.mxu0 0
        %2066 = vmatprep.subr.bf16.mxu0 0
        %2067 = vmatpush2.bf16.msra.mxu0 0
        %2068 = vmatprep.subr.bf16.mxu0 0
        %2069 = vmatpush2.bf16.msra.mxu0 0
        %2070 = vmatprep.subr.bf16.mxu0 0
        %2071 = vmatpush2.bf16.msra.mxu0 0
        %2072 = vmatprep.mubr.bf16.mxu0 0
        %2073 = vmatmul.mubr.bf16.gmra.mxu0 %v1939
        %v2074 = vpop.f32.mrf.mxu0
        %v2075 = vadd.f32 0.0, %v2074
        %v2076 = vpop.f32.mrf.mxu0
        %v2077 = vadd.f32 0.0, %v2076
        %v2078 = vpop.f32.mrf.mxu0
        %v2079 = vadd.f32 0.0, %v2078
        %v2080 = vpop.f32.mrf.mxu0
        %v2081 = vadd.f32 0.0, %v2080
        %2082 = vmatprep.mubr.bf16.mxu0 0
        %2083 = vmatmul.mubr.bf16.gmra.mxu0 %v1940
        %v2084 = vpop.f32.mrf.mxu0
        %v2085 = vadd.f32 0.0, %v2084
        %v2086 = vpop.f32.mrf.mxu0
        %v2087 = vadd.f32 0.0, %v2086
        %v2088 = vpop.f32.mrf.mxu0
        %v2089 = vadd.f32 0.0, %v2088
        %v2090 = vpop.f32.mrf.mxu0
        %v2091 = vadd.f32 0.0, %v2090
        %2092 = vmatprep.mubr.bf16.mxu0 0
        %2093 = vmatmul.mubr.bf16.gmra.mxu0 %v1941
        %v2094 = vpop.f32.mrf.mxu0
        %v2095 = vadd.f32 0.0, %v2094
        %v2096 = vpop.f32.mrf.mxu0
        %v2097 = vadd.f32 0.0, %v2096
        %v2098 = vpop.f32.mrf.mxu0
        %v2099 = vadd.f32 0.0, %v2098
        %v2100 = vpop.f32.mrf.mxu0
        %v2101 = vadd.f32 0.0, %v2100
        %2102 = vmatprep.mubr.bf16.mxu0 0
        %2103 = vmatmul.mubr.bf16.gmra.mxu0 %v1942
        %v2104 = vpop.f32.mrf.mxu0
        %v2105 = vadd.f32 0.0, %v2104
        %v2106 = vpop.f32.mrf.mxu0
        %v2107 = vadd.f32 0.0, %v2106
        %v2108 = vpop.f32.mrf.mxu0
        %v2109 = vadd.f32 0.0, %v2108
        %v2110 = vpop.f32.mrf.mxu0
        %v2111 = vadd.f32 0.0, %v2110
        %2112 = vdwg.mxu0
        %v2113 = vadd.f32 %v1915, %v2075
        %v2114 = vadd.f32 %v1916, %v2077
        %v2115 = vadd.f32 %v1917, %v2079
        %v2116 = vadd.f32 %v1918, %v2081
        %v2117 = vadd.f32 %v1919, %v2085
        %v2118 = vadd.f32 %v1920, %v2087
        %v2119 = vadd.f32 %v1921, %v2089
        %v2120 = vadd.f32 %v1922, %v2091
        %v2121 = vadd.f32 %v1923, %v2095
        %v2122 = vadd.f32 %v1924, %v2097
        %v2123 = vadd.f32 %v1925, %v2099
        %v2124 = vadd.f32 %v1926, %v2101
        %v2125 = vadd.f32 %v1927, %v2105
        %v2126 = vadd.f32 %v1928, %v2107
        %v2127 = vadd.f32 %v1929, %v2109
        %v2128 = vadd.f32 %v1930, %v2111
        %v2129 = vld [vmem:[%s1732 + $0x2] sm:$0xff]
        %v2130 = vld [vmem:[%s1732 + $0x12] sm:$0xff]
        %v2131 = vld [vmem:[%s1732 + $0x22] sm:$0xff]
        %v2132 = vld [vmem:[%s1732 + $0x32] sm:$0xff]
        %v2133 = vld [vmem:[%s1732 + $0x42] sm:$0xff]
        %v2134 = vld [vmem:[%s1732 + $0x52] sm:$0xff]
        %v2135 = vld [vmem:[%s1732 + $0x62] sm:$0xff]
        %v2136 = vld [vmem:[%s1732 + $0x72] sm:$0xff]
        %v2137 = vpack.c.bf16 %v2130, %v2129
        %v2138 = vpack.c.bf16 %v2132, %v2131
        %v2139 = vpack.c.bf16 %v2134, %v2133
        %v2140 = vpack.c.bf16 %v2136, %v2135
        %s2141 = scalar_lea.vmem %s4, 1024
        %v2142 = vld [vmem:[%s2141] sm:$0xff]
        %v2143 = vld [vmem:[%s2141 + $0x8] sm:$0xff]
        %v2144 = vld [vmem:[%s2141 + $0x10] sm:$0xff]
        %v2145 = vld [vmem:[%s2141 + $0x18] sm:$0xff]
        %v2146 = vld [vmem:[%s2141 + $0x20] sm:$0xff]
        %v2147 = vld [vmem:[%s2141 + $0x28] sm:$0xff]
        %v2148 = vld [vmem:[%s2141 + $0x30] sm:$0xff]
        %v2149 = vld [vmem:[%s2141 + $0x38] sm:$0xff]
        %v2150 = vld [vmem:[%s2141 + $0x40] sm:$0xff]
        %v2151 = vld [vmem:[%s2141 + $0x48] sm:$0xff]
        %v2152 = vld [vmem:[%s2141 + $0x50] sm:$0xff]
        %v2153 = vld [vmem:[%s2141 + $0x58] sm:$0xff]
        %v2154 = vld [vmem:[%s2141 + $0x60] sm:$0xff]
        %v2155 = vld [vmem:[%s2141 + $0x68] sm:$0xff]
        %v2156 = vld [vmem:[%s2141 + $0x70] sm:$0xff]
        %v2157 = vld [vmem:[%s2141 + $0x78] sm:$0xff]
        %v2174 = vunpack.c.l.b16 %v2142
        %v2175 = vunpack.c.h.b16 %v2142
        %v2176 = vunpack.c.l.b16 %v2143
        %v2177 = vunpack.c.h.b16 %v2143
        %v2178 = vunpack.c.l.b16 %v2144
        %v2179 = vunpack.c.h.b16 %v2144
        %v2180 = vunpack.c.l.b16 %v2145
        %v2181 = vunpack.c.h.b16 %v2145
        %v2182 = vunpack.c.l.b16 %v2146
        %v2183 = vunpack.c.h.b16 %v2146
        %v2184 = vunpack.c.l.b16 %v2147
        %v2185 = vunpack.c.h.b16 %v2147
        %v2186 = vunpack.c.l.b16 %v2148
        %v2187 = vunpack.c.h.b16 %v2148
        %v2188 = vunpack.c.l.b16 %v2149
        %v2189 = vunpack.c.h.b16 %v2149
        %v2190 = vunpack.c.l.b16 %v2150
        %v2191 = vunpack.c.h.b16 %v2150
        %v2192 = vunpack.c.l.b16 %v2151
        %v2193 = vunpack.c.h.b16 %v2151
        %v2194 = vunpack.c.l.b16 %v2152
        %v2195 = vunpack.c.h.b16 %v2152
        %v2196 = vunpack.c.l.b16 %v2153
        %v2197 = vunpack.c.h.b16 %v2153
        %v2198 = vunpack.c.l.b16 %v2154
        %v2199 = vunpack.c.h.b16 %v2154
        %v2200 = vunpack.c.l.b16 %v2155
        %v2201 = vunpack.c.h.b16 %v2155
        %v2202 = vunpack.c.l.b16 %v2156
        %v2203 = vunpack.c.h.b16 %v2156
        %v2204 = vunpack.c.l.b16 %v2157
        %v2205 = vunpack.c.h.b16 %v2157
        %v2206 = vpack.c.b16 %v2176, %v2174
        %v2207 = vpack.c.b16 %v2177, %v2175
        %v2208 = vpack.c.b16 %v2180, %v2178
        %v2209 = vpack.c.b16 %v2181, %v2179
        %v2210 = vpack.c.b16 %v2184, %v2182
        %v2211 = vpack.c.b16 %v2185, %v2183
        %v2212 = vpack.c.b16 %v2188, %v2186
        %v2213 = vpack.c.b16 %v2189, %v2187
        %v2214 = vpack.c.b16 %v2192, %v2190
        %v2215 = vpack.c.b16 %v2193, %v2191
        %v2216 = vpack.c.b16 %v2196, %v2194
        %v2217 = vpack.c.b16 %v2197, %v2195
        %v2218 = vpack.c.b16 %v2200, %v2198
        %v2219 = vpack.c.b16 %v2201, %v2199
        %v2220 = vpack.c.b16 %v2204, %v2202
        %v2221 = vpack.c.b16 %v2205, %v2203
        %2238 = vmatprep.subr.bf16.mxu0 %v2221
        %2239 = vmatpush1.bf16.msra.mxu0 %v2220
        %2240 = vmatprep.subr.bf16.mxu0 %v2219
        %2241 = vmatpush1.bf16.msra.mxu0 %v2218
        %2242 = vmatprep.subr.bf16.mxu0 %v2217
        %2243 = vmatpush1.bf16.msra.mxu0 %v2216
        %2244 = vmatprep.subr.bf16.mxu0 %v2215
        %2245 = vmatpush1.bf16.msra.mxu0 %v2214
        %2246 = vmatprep.subr.bf16.mxu0 %v2213
        %2247 = vmatpush1.bf16.msra.mxu0 %v2212
        %2248 = vmatprep.subr.bf16.mxu0 %v2211
        %2249 = vmatpush1.bf16.msra.mxu0 %v2210
        %2250 = vmatprep.subr.bf16.mxu0 %v2209
        %2251 = vmatpush1.bf16.msra.mxu0 %v2208
        %2252 = vmatprep.subr.bf16.mxu0 %v2207
        %2253 = vmatpush1.bf16.msra.mxu0 %v2206
        %2254 = vmatprep.subr.bf16.mxu0 0
        %2255 = vmatpush2.bf16.msra.mxu0 0
        %2256 = vmatprep.subr.bf16.mxu0 0
        %2257 = vmatpush2.bf16.msra.mxu0 0
        %2258 = vmatprep.subr.bf16.mxu0 0
        %2259 = vmatpush2.bf16.msra.mxu0 0
        %2260 = vmatprep.subr.bf16.mxu0 0
        %2261 = vmatpush2.bf16.msra.mxu0 0
        %2262 = vmatprep.subr.bf16.mxu0 0
        %2263 = vmatpush2.bf16.msra.mxu0 0
        %2264 = vmatprep.subr.bf16.mxu0 0
        %2265 = vmatpush2.bf16.msra.mxu0 0
        %2266 = vmatprep.subr.bf16.mxu0 0
        %2267 = vmatpush2.bf16.msra.mxu0 0
        %2268 = vmatprep.subr.bf16.mxu0 0
        %2269 = vmatpush2.bf16.msra.mxu0 0
        %2270 = vmatprep.mubr.bf16.mxu0 0
        %2271 = vmatmul.mubr.bf16.gmra.mxu0 %v2137
        %v2272 = vpop.f32.mrf.mxu0
        %v2273 = vadd.f32 0.0, %v2272
        %v2274 = vpop.f32.mrf.mxu0
        %v2275 = vadd.f32 0.0, %v2274
        %v2276 = vpop.f32.mrf.mxu0
        %v2277 = vadd.f32 0.0, %v2276
        %v2278 = vpop.f32.mrf.mxu0
        %v2279 = vadd.f32 0.0, %v2278
        %2280 = vmatprep.mubr.bf16.mxu0 0
        %2281 = vmatmul.mubr.bf16.gmra.mxu0 %v2138
        %v2282 = vpop.f32.mrf.mxu0
        %v2283 = vadd.f32 0.0, %v2282
        %v2284 = vpop.f32.mrf.mxu0
        %v2285 = vadd.f32 0.0, %v2284
        %v2286 = vpop.f32.mrf.mxu0
        %v2287 = vadd.f32 0.0, %v2286
        %v2288 = vpop.f32.mrf.mxu0
        %v2289 = vadd.f32 0.0, %v2288
        %2290 = vmatprep.mubr.bf16.mxu0 0
        %2291 = vmatmul.mubr.bf16.gmra.mxu0 %v2139
        %v2292 = vpop.f32.mrf.mxu0
        %v2293 = vadd.f32 0.0, %v2292
        %v2294 = vpop.f32.mrf.mxu0
        %v2295 = vadd.f32 0.0, %v2294
        %v2296 = vpop.f32.mrf.mxu0
        %v2297 = vadd.f32 0.0, %v2296
        %v2298 = vpop.f32.mrf.mxu0
        %v2299 = vadd.f32 0.0, %v2298
        %2300 = vmatprep.mubr.bf16.mxu0 0
        %2301 = vmatmul.mubr.bf16.gmra.mxu0 %v2140
        %v2302 = vpop.f32.mrf.mxu0
        %v2303 = vadd.f32 0.0, %v2302
        %v2304 = vpop.f32.mrf.mxu0
        %v2305 = vadd.f32 0.0, %v2304
        %v2306 = vpop.f32.mrf.mxu0
        %v2307 = vadd.f32 0.0, %v2306
        %v2308 = vpop.f32.mrf.mxu0
        %v2309 = vadd.f32 0.0, %v2308
        %2310 = vdwg.mxu0
        %v2311 = vadd.f32 %v2113, %v2273
        %v2312 = vadd.f32 %v2114, %v2275
        %v2313 = vadd.f32 %v2115, %v2277
        %v2314 = vadd.f32 %v2116, %v2279
        %v2315 = vadd.f32 %v2117, %v2283
        %v2316 = vadd.f32 %v2118, %v2285
        %v2317 = vadd.f32 %v2119, %v2287
        %v2318 = vadd.f32 %v2120, %v2289
        %v2319 = vadd.f32 %v2121, %v2293
        %v2320 = vadd.f32 %v2122, %v2295
        %v2321 = vadd.f32 %v2123, %v2297
        %v2322 = vadd.f32 %v2124, %v2299
        %v2323 = vadd.f32 %v2125, %v2303
        %v2324 = vadd.f32 %v2126, %v2305
        %v2325 = vadd.f32 %v2127, %v2307
        %v2326 = vadd.f32 %v2128, %v2309
        %s2327 = scalar_lea.vmem [#allocation2], 160
        %v2328 = vld [vmem:[%s2327] sm:$0xff]
        %v2329 = vld [vmem:[%s2327 + $0x10] sm:$0xff]
        %v2330 = vld [vmem:[%s2327 + $0x20] sm:$0xff]
        %v2331 = vld [vmem:[%s2327 + $0x30] sm:$0xff]
        %v2332 = vld [vmem:[%s2327 + $0x40] sm:$0xff]
        %v2333 = vld [vmem:[%s2327 + $0x50] sm:$0xff]
        %v2334 = vld [vmem:[%s2327 + $0x60] sm:$0xff]
        %v2335 = vld [vmem:[%s2327 + $0x70] sm:$0xff]
        %v2336 = vpack.c.bf16 %v2329, %v2328
        %v2337 = vpack.c.bf16 %v2331, %v2330
        %v2338 = vpack.c.bf16 %v2333, %v2332
        %v2339 = vpack.c.bf16 %v2335, %v2334
        %s2340 = scalar_lea.vmem %s4, 1152
        %v2341 = vld [vmem:[%s2340] sm:$0xff]
        %v2342 = vld [vmem:[%s2340 + $0x8] sm:$0xff]
        %v2343 = vld [vmem:[%s2340 + $0x10] sm:$0xff]
        %v2344 = vld [vmem:[%s2340 + $0x18] sm:$0xff]
        %v2345 = vld [vmem:[%s2340 + $0x20] sm:$0xff]
        %v2346 = vld [vmem:[%s2340 + $0x28] sm:$0xff]
        %v2347 = vld [vmem:[%s2340 + $0x30] sm:$0xff]
        %v2348 = vld [vmem:[%s2340 + $0x38] sm:$0xff]
        %v2349 = vld [vmem:[%s2340 + $0x40] sm:$0xff]
        %v2350 = vld [vmem:[%s2340 + $0x48] sm:$0xff]
        %v2351 = vld [vmem:[%s2340 + $0x50] sm:$0xff]
        %v2352 = vld [vmem:[%s2340 + $0x58] sm:$0xff]
        %v2353 = vld [vmem:[%s2340 + $0x60] sm:$0xff]
        %v2354 = vld [vmem:[%s2340 + $0x68] sm:$0xff]
        %v2355 = vld [vmem:[%s2340 + $0x70] sm:$0xff]
        %v2356 = vld [vmem:[%s2340 + $0x78] sm:$0xff]
        %v2373 = vunpack.c.l.b16 %v2341
        %v2374 = vunpack.c.h.b16 %v2341
        %v2375 = vunpack.c.l.b16 %v2342
        %v2376 = vunpack.c.h.b16 %v2342
        %v2377 = vunpack.c.l.b16 %v2343
        %v2378 = vunpack.c.h.b16 %v2343
        %v2379 = vunpack.c.l.b16 %v2344
        %v2380 = vunpack.c.h.b16 %v2344
        %v2381 = vunpack.c.l.b16 %v2345
        %v2382 = vunpack.c.h.b16 %v2345
        %v2383 = vunpack.c.l.b16 %v2346
        %v2384 = vunpack.c.h.b16 %v2346
        %v2385 = vunpack.c.l.b16 %v2347
        %v2386 = vunpack.c.h.b16 %v2347
        %v2387 = vunpack.c.l.b16 %v2348
        %v2388 = vunpack.c.h.b16 %v2348
        %v2389 = vunpack.c.l.b16 %v2349
        %v2390 = vunpack.c.h.b16 %v2349
        %v2391 = vunpack.c.l.b16 %v2350
        %v2392 = vunpack.c.h.b16 %v2350
        %v2393 = vunpack.c.l.b16 %v2351
        %v2394 = vunpack.c.h.b16 %v2351
        %v2395 = vunpack.c.l.b16 %v2352
        %v2396 = vunpack.c.h.b16 %v2352
        %v2397 = vunpack.c.l.b16 %v2353
        %v2398 = vunpack.c.h.b16 %v2353
        %v2399 = vunpack.c.l.b16 %v2354
        %v2400 = vunpack.c.h.b16 %v2354
        %v2401 = vunpack.c.l.b16 %v2355
        %v2402 = vunpack.c.h.b16 %v2355
        %v2403 = vunpack.c.l.b16 %v2356
        %v2404 = vunpack.c.h.b16 %v2356
        %v2405 = vpack.c.b16 %v2375, %v2373
        %v2406 = vpack.c.b16 %v2376, %v2374
        %v2407 = vpack.c.b16 %v2379, %v2377
        %v2408 = vpack.c.b16 %v2380, %v2378
        %v2409 = vpack.c.b16 %v2383, %v2381
        %v2410 = vpack.c.b16 %v2384, %v2382
        %v2411 = vpack.c.b16 %v2387, %v2385
        %v2412 = vpack.c.b16 %v2388, %v2386
        %v2413 = vpack.c.b16 %v2391, %v2389
        %v2414 = vpack.c.b16 %v2392, %v2390
        %v2415 = vpack.c.b16 %v2395, %v2393
        %v2416 = vpack.c.b16 %v2396, %v2394
        %v2417 = vpack.c.b16 %v2399, %v2397
        %v2418 = vpack.c.b16 %v2400, %v2398
        %v2419 = vpack.c.b16 %v2403, %v2401
        %v2420 = vpack.c.b16 %v2404, %v2402
        %2437 = vmatprep.subr.bf16.mxu0 %v2420
        %2438 = vmatpush1.bf16.msra.mxu0 %v2419
        %2439 = vmatprep.subr.bf16.mxu0 %v2418
        %2440 = vmatpush1.bf16.msra.mxu0 %v2417
        %2441 = vmatprep.subr.bf16.mxu0 %v2416
        %2442 = vmatpush1.bf16.msra.mxu0 %v2415
        %2443 = vmatprep.subr.bf16.mxu0 %v2414
        %2444 = vmatpush1.bf16.msra.mxu0 %v2413
        %2445 = vmatprep.subr.bf16.mxu0 %v2412
        %2446 = vmatpush1.bf16.msra.mxu0 %v2411
        %2447 = vmatprep.subr.bf16.mxu0 %v2410
        %2448 = vmatpush1.bf16.msra.mxu0 %v2409
        %2449 = vmatprep.subr.bf16.mxu0 %v2408
        %2450 = vmatpush1.bf16.msra.mxu0 %v2407
        %2451 = vmatprep.subr.bf16.mxu0 %v2406
        %2452 = vmatpush1.bf16.msra.mxu0 %v2405
        %2453 = vmatprep.subr.bf16.mxu0 0
        %2454 = vmatpush2.bf16.msra.mxu0 0
        %2455 = vmatprep.subr.bf16.mxu0 0
        %2456 = vmatpush2.bf16.msra.mxu0 0
        %2457 = vmatprep.subr.bf16.mxu0 0
        %2458 = vmatpush2.bf16.msra.mxu0 0
        %2459 = vmatprep.subr.bf16.mxu0 0
        %2460 = vmatpush2.bf16.msra.mxu0 0
        %2461 = vmatprep.subr.bf16.mxu0 0
        %2462 = vmatpush2.bf16.msra.mxu0 0
        %2463 = vmatprep.subr.bf16.mxu0 0
        %2464 = vmatpush2.bf16.msra.mxu0 0
        %2465 = vmatprep.subr.bf16.mxu0 0
        %2466 = vmatpush2.bf16.msra.mxu0 0
        %2467 = vmatprep.subr.bf16.mxu0 0
        %2468 = vmatpush2.bf16.msra.mxu0 0
        %2469 = vmatprep.mubr.bf16.mxu0 0
        %2470 = vmatmul.mubr.bf16.gmra.mxu0 %v2336
        %v2471 = vpop.f32.mrf.mxu0
        %v2472 = vadd.f32 0.0, %v2471
        %v2473 = vpop.f32.mrf.mxu0
        %v2474 = vadd.f32 0.0, %v2473
        %v2475 = vpop.f32.mrf.mxu0
        %v2476 = vadd.f32 0.0, %v2475
        %v2477 = vpop.f32.mrf.mxu0
        %v2478 = vadd.f32 0.0, %v2477
        %2479 = vmatprep.mubr.bf16.mxu0 0
        %2480 = vmatmul.mubr.bf16.gmra.mxu0 %v2337
        %v2481 = vpop.f32.mrf.mxu0
        %v2482 = vadd.f32 0.0, %v2481
        %v2483 = vpop.f32.mrf.mxu0
        %v2484 = vadd.f32 0.0, %v2483
        %v2485 = vpop.f32.mrf.mxu0
        %v2486 = vadd.f32 0.0, %v2485
        %v2487 = vpop.f32.mrf.mxu0
        %v2488 = vadd.f32 0.0, %v2487
        %2489 = vmatprep.mubr.bf16.mxu0 0
        %2490 = vmatmul.mubr.bf16.gmra.mxu0 %v2338
        %v2491 = vpop.f32.mrf.mxu0
        %v2492 = vadd.f32 0.0, %v2491
        %v2493 = vpop.f32.mrf.mxu0
        %v2494 = vadd.f32 0.0, %v2493
        %v2495 = vpop.f32.mrf.mxu0
        %v2496 = vadd.f32 0.0, %v2495
        %v2497 = vpop.f32.mrf.mxu0
        %v2498 = vadd.f32 0.0, %v2497
        %2499 = vmatprep.mubr.bf16.mxu0 0
        %2500 = vmatmul.mubr.bf16.gmra.mxu0 %v2339
        %v2501 = vpop.f32.mrf.mxu0
        %v2502 = vadd.f32 0.0, %v2501
        %v2503 = vpop.f32.mrf.mxu0
        %v2504 = vadd.f32 0.0, %v2503
        %v2505 = vpop.f32.mrf.mxu0
        %v2506 = vadd.f32 0.0, %v2505
        %v2507 = vpop.f32.mrf.mxu0
        %v2508 = vadd.f32 0.0, %v2507
        %2509 = vdwg.mxu0
        %v2510 = vadd.f32 %v2311, %v2472
        %v2511 = vadd.f32 %v2312, %v2474
        %v2512 = vadd.f32 %v2313, %v2476
        %v2513 = vadd.f32 %v2314, %v2478
        %v2514 = vadd.f32 %v2315, %v2482
        %v2515 = vadd.f32 %v2316, %v2484
        %v2516 = vadd.f32 %v2317, %v2486
        %v2517 = vadd.f32 %v2318, %v2488
        %v2518 = vadd.f32 %v2319, %v2492
        %v2519 = vadd.f32 %v2320, %v2494
        %v2520 = vadd.f32 %v2321, %v2496
        %v2521 = vadd.f32 %v2322, %v2498
        %v2522 = vadd.f32 %v2323, %v2502
        %v2523 = vadd.f32 %v2324, %v2504
        %v2524 = vadd.f32 %v2325, %v2506
        %v2525 = vadd.f32 %v2326, %v2508
        %v2526 = vld [vmem:[%s2327 + $0x1] sm:$0xff]
        %v2527 = vld [vmem:[%s2327 + $0x11] sm:$0xff]
        %v2528 = vld [vmem:[%s2327 + $0x21] sm:$0xff]
        %v2529 = vld [vmem:[%s2327 + $0x31] sm:$0xff]
        %v2530 = vld [vmem:[%s2327 + $0x41] sm:$0xff]
        %v2531 = vld [vmem:[%s2327 + $0x51] sm:$0xff]
        %v2532 = vld [vmem:[%s2327 + $0x61] sm:$0xff]
        %v2533 = vld [vmem:[%s2327 + $0x71] sm:$0xff]
        %v2534 = vpack.c.bf16 %v2527, %v2526
        %v2535 = vpack.c.bf16 %v2529, %v2528
        %v2536 = vpack.c.bf16 %v2531, %v2530
        %v2537 = vpack.c.bf16 %v2533, %v2532
        %s2538 = scalar_lea.vmem %s4, 1280
        %v2539 = vld [vmem:[%s2538] sm:$0xff]
        %v2540 = vld [vmem:[%s2538 + $0x8] sm:$0xff]
        %v2541 = vld [vmem:[%s2538 + $0x10] sm:$0xff]
        %v2542 = vld [vmem:[%s2538 + $0x18] sm:$0xff]
        %v2543 = vld [vmem:[%s2538 + $0x20] sm:$0xff]
        %v2544 = vld [vmem:[%s2538 + $0x28] sm:$0xff]
        %v2545 = vld [vmem:[%s2538 + $0x30] sm:$0xff]
        %v2546 = vld [vmem:[%s2538 + $0x38] sm:$0xff]
        %v2547 = vld [vmem:[%s2538 + $0x40] sm:$0xff]
        %v2548 = vld [vmem:[%s2538 + $0x48] sm:$0xff]
        %v2549 = vld [vmem:[%s2538 + $0x50] sm:$0xff]
        %v2550 = vld [vmem:[%s2538 + $0x58] sm:$0xff]
        %v2551 = vld [vmem:[%s2538 + $0x60] sm:$0xff]
        %v2552 = vld [vmem:[%s2538 + $0x68] sm:$0xff]
        %v2553 = vld [vmem:[%s2538 + $0x70] sm:$0xff]
        %v2554 = vld [vmem:[%s2538 + $0x78] sm:$0xff]
        %v2571 = vunpack.c.l.b16 %v2539
        %v2572 = vunpack.c.h.b16 %v2539
        %v2573 = vunpack.c.l.b16 %v2540
        %v2574 = vunpack.c.h.b16 %v2540
        %v2575 = vunpack.c.l.b16 %v2541
        %v2576 = vunpack.c.h.b16 %v2541
        %v2577 = vunpack.c.l.b16 %v2542
        %v2578 = vunpack.c.h.b16 %v2542
        %v2579 = vunpack.c.l.b16 %v2543
        %v2580 = vunpack.c.h.b16 %v2543
        %v2581 = vunpack.c.l.b16 %v2544
        %v2582 = vunpack.c.h.b16 %v2544
        %v2583 = vunpack.c.l.b16 %v2545
        %v2584 = vunpack.c.h.b16 %v2545
        %v2585 = vunpack.c.l.b16 %v2546
        %v2586 = vunpack.c.h.b16 %v2546
        %v2587 = vunpack.c.l.b16 %v2547
        %v2588 = vunpack.c.h.b16 %v2547
        %v2589 = vunpack.c.l.b16 %v2548
        %v2590 = vunpack.c.h.b16 %v2548
        %v2591 = vunpack.c.l.b16 %v2549
        %v2592 = vunpack.c.h.b16 %v2549
        %v2593 = vunpack.c.l.b16 %v2550
        %v2594 = vunpack.c.h.b16 %v2550
        %v2595 = vunpack.c.l.b16 %v2551
        %v2596 = vunpack.c.h.b16 %v2551
        %v2597 = vunpack.c.l.b16 %v2552
        %v2598 = vunpack.c.h.b16 %v2552
        %v2599 = vunpack.c.l.b16 %v2553
        %v2600 = vunpack.c.h.b16 %v2553
        %v2601 = vunpack.c.l.b16 %v2554
        %v2602 = vunpack.c.h.b16 %v2554
        %v2603 = vpack.c.b16 %v2573, %v2571
        %v2604 = vpack.c.b16 %v2574, %v2572
        %v2605 = vpack.c.b16 %v2577, %v2575
        %v2606 = vpack.c.b16 %v2578, %v2576
        %v2607 = vpack.c.b16 %v2581, %v2579
        %v2608 = vpack.c.b16 %v2582, %v2580
        %v2609 = vpack.c.b16 %v2585, %v2583
        %v2610 = vpack.c.b16 %v2586, %v2584
        %v2611 = vpack.c.b16 %v2589, %v2587
        %v2612 = vpack.c.b16 %v2590, %v2588
        %v2613 = vpack.c.b16 %v2593, %v2591
        %v2614 = vpack.c.b16 %v2594, %v2592
        %v2615 = vpack.c.b16 %v2597, %v2595
        %v2616 = vpack.c.b16 %v2598, %v2596
        %v2617 = vpack.c.b16 %v2601, %v2599
        %v2618 = vpack.c.b16 %v2602, %v2600
        %2635 = vmatprep.subr.bf16.mxu0 %v2618
        %2636 = vmatpush1.bf16.msra.mxu0 %v2617
        %2637 = vmatprep.subr.bf16.mxu0 %v2616
        %2638 = vmatpush1.bf16.msra.mxu0 %v2615
        %2639 = vmatprep.subr.bf16.mxu0 %v2614
        %2640 = vmatpush1.bf16.msra.mxu0 %v2613
        %2641 = vmatprep.subr.bf16.mxu0 %v2612
        %2642 = vmatpush1.bf16.msra.mxu0 %v2611
        %2643 = vmatprep.subr.bf16.mxu0 %v2610
        %2644 = vmatpush1.bf16.msra.mxu0 %v2609
        %2645 = vmatprep.subr.bf16.mxu0 %v2608
        %2646 = vmatpush1.bf16.msra.mxu0 %v2607
        %2647 = vmatprep.subr.bf16.mxu0 %v2606
        %2648 = vmatpush1.bf16.msra.mxu0 %v2605
        %2649 = vmatprep.subr.bf16.mxu0 %v2604
        %2650 = vmatpush1.bf16.msra.mxu0 %v2603
        %2651 = vmatprep.subr.bf16.mxu0 0
        %2652 = vmatpush2.bf16.msra.mxu0 0
        %2653 = vmatprep.subr.bf16.mxu0 0
        %2654 = vmatpush2.bf16.msra.mxu0 0
        %2655 = vmatprep.subr.bf16.mxu0 0
        %2656 = vmatpush2.bf16.msra.mxu0 0
        %2657 = vmatprep.subr.bf16.mxu0 0
        %2658 = vmatpush2.bf16.msra.mxu0 0
        %2659 = vmatprep.subr.bf16.mxu0 0
        %2660 = vmatpush2.bf16.msra.mxu0 0
        %2661 = vmatprep.subr.bf16.mxu0 0
        %2662 = vmatpush2.bf16.msra.mxu0 0
        %2663 = vmatprep.subr.bf16.mxu0 0
        %2664 = vmatpush2.bf16.msra.mxu0 0
        %2665 = vmatprep.subr.bf16.mxu0 0
        %2666 = vmatpush2.bf16.msra.mxu0 0
        %2667 = vmatprep.mubr.bf16.mxu0 0
        %2668 = vmatmul.mubr.bf16.gmra.mxu0 %v2534
        %v2669 = vpop.f32.mrf.mxu0
        %v2670 = vadd.f32 0.0, %v2669
        %v2671 = vpop.f32.mrf.mxu0
        %v2672 = vadd.f32 0.0, %v2671
        %v2673 = vpop.f32.mrf.mxu0
        %v2674 = vadd.f32 0.0, %v2673
        %v2675 = vpop.f32.mrf.mxu0
        %v2676 = vadd.f32 0.0, %v2675
        %2677 = vmatprep.mubr.bf16.mxu0 0
        %2678 = vmatmul.mubr.bf16.gmra.mxu0 %v2535
        %v2679 = vpop.f32.mrf.mxu0
        %v2680 = vadd.f32 0.0, %v2679
        %v2681 = vpop.f32.mrf.mxu0
        %v2682 = vadd.f32 0.0, %v2681
        %v2683 = vpop.f32.mrf.mxu0
        %v2684 = vadd.f32 0.0, %v2683
        %v2685 = vpop.f32.mrf.mxu0
        %v2686 = vadd.f32 0.0, %v2685
        %2687 = vmatprep.mubr.bf16.mxu0 0
        %2688 = vmatmul.mubr.bf16.gmra.mxu0 %v2536
        %v2689 = vpop.f32.mrf.mxu0
        %v2690 = vadd.f32 0.0, %v2689
        %v2691 = vpop.f32.mrf.mxu0
        %v2692 = vadd.f32 0.0, %v2691
        %v2693 = vpop.f32.mrf.mxu0
        %v2694 = vadd.f32 0.0, %v2693
        %v2695 = vpop.f32.mrf.mxu0
        %v2696 = vadd.f32 0.0, %v2695
        %2697 = vmatprep.mubr.bf16.mxu0 0
        %2698 = vmatmul.mubr.bf16.gmra.mxu0 %v2537
        %v2699 = vpop.f32.mrf.mxu0
        %v2700 = vadd.f32 0.0, %v2699
        %v2701 = vpop.f32.mrf.mxu0
        %v2702 = vadd.f32 0.0, %v2701
        %v2703 = vpop.f32.mrf.mxu0
        %v2704 = vadd.f32 0.0, %v2703
        %v2705 = vpop.f32.mrf.mxu0
        %v2706 = vadd.f32 0.0, %v2705
        %2707 = vdwg.mxu0
        %v2708 = vadd.f32 %v2510, %v2670
        %v2709 = vadd.f32 %v2511, %v2672
        %v2710 = vadd.f32 %v2512, %v2674
        %v2711 = vadd.f32 %v2513, %v2676
        %v2712 = vadd.f32 %v2514, %v2680
        %v2713 = vadd.f32 %v2515, %v2682
        %v2714 = vadd.f32 %v2516, %v2684
        %v2715 = vadd.f32 %v2517, %v2686
        %v2716 = vadd.f32 %v2518, %v2690
        %v2717 = vadd.f32 %v2519, %v2692
        %v2718 = vadd.f32 %v2520, %v2694
        %v2719 = vadd.f32 %v2521, %v2696
        %v2720 = vadd.f32 %v2522, %v2700
        %v2721 = vadd.f32 %v2523, %v2702
        %v2722 = vadd.f32 %v2524, %v2704
        %v2723 = vadd.f32 %v2525, %v2706
        %v2724 = vld [vmem:[%s2327 + $0x2] sm:$0xff]
        %v2725 = vld [vmem:[%s2327 + $0x12] sm:$0xff]
        %v2726 = vld [vmem:[%s2327 + $0x22] sm:$0xff]
        %v2727 = vld [vmem:[%s2327 + $0x32] sm:$0xff]
        %v2728 = vld [vmem:[%s2327 + $0x42] sm:$0xff]
        %v2729 = vld [vmem:[%s2327 + $0x52] sm:$0xff]
        %v2730 = vld [vmem:[%s2327 + $0x62] sm:$0xff]
        %v2731 = vld [vmem:[%s2327 + $0x72] sm:$0xff]
        %v2732 = vpack.c.bf16 %v2725, %v2724
        %v2733 = vpack.c.bf16 %v2727, %v2726
        %v2734 = vpack.c.bf16 %v2729, %v2728
        %v2735 = vpack.c.bf16 %v2731, %v2730
        %s2736 = scalar_lea.vmem %s4, 1408
        %v2737 = vld [vmem:[%s2736] sm:$0xff]
        %v2738 = vld [vmem:[%s2736 + $0x8] sm:$0xff]
        %v2739 = vld [vmem:[%s2736 + $0x10] sm:$0xff]
        %v2740 = vld [vmem:[%s2736 + $0x18] sm:$0xff]
        %v2741 = vld [vmem:[%s2736 + $0x20] sm:$0xff]
        %v2742 = vld [vmem:[%s2736 + $0x28] sm:$0xff]
        %v2743 = vld [vmem:[%s2736 + $0x30] sm:$0xff]
        %v2744 = vld [vmem:[%s2736 + $0x38] sm:$0xff]
        %v2745 = vld [vmem:[%s2736 + $0x40] sm:$0xff]
        %v2746 = vld [vmem:[%s2736 + $0x48] sm:$0xff]
        %v2747 = vld [vmem:[%s2736 + $0x50] sm:$0xff]
        %v2748 = vld [vmem:[%s2736 + $0x58] sm:$0xff]
        %v2749 = vld [vmem:[%s2736 + $0x60] sm:$0xff]
        %v2750 = vld [vmem:[%s2736 + $0x68] sm:$0xff]
        %v2751 = vld [vmem:[%s2736 + $0x70] sm:$0xff]
        %v2752 = vld [vmem:[%s2736 + $0x78] sm:$0xff]
        %v2769 = vunpack.c.l.b16 %v2737
        %v2770 = vunpack.c.h.b16 %v2737
        %v2771 = vunpack.c.l.b16 %v2738
        %v2772 = vunpack.c.h.b16 %v2738
        %v2773 = vunpack.c.l.b16 %v2739
        %v2774 = vunpack.c.h.b16 %v2739
        %v2775 = vunpack.c.l.b16 %v2740
        %v2776 = vunpack.c.h.b16 %v2740
        %v2777 = vunpack.c.l.b16 %v2741
        %v2778 = vunpack.c.h.b16 %v2741
        %v2779 = vunpack.c.l.b16 %v2742
        %v2780 = vunpack.c.h.b16 %v2742
        %v2781 = vunpack.c.l.b16 %v2743
        %v2782 = vunpack.c.h.b16 %v2743
        %v2783 = vunpack.c.l.b16 %v2744
        %v2784 = vunpack.c.h.b16 %v2744
        %v2785 = vunpack.c.l.b16 %v2745
        %v2786 = vunpack.c.h.b16 %v2745
        %v2787 = vunpack.c.l.b16 %v2746
        %v2788 = vunpack.c.h.b16 %v2746
        %v2789 = vunpack.c.l.b16 %v2747
        %v2790 = vunpack.c.h.b16 %v2747
        %v2791 = vunpack.c.l.b16 %v2748
        %v2792 = vunpack.c.h.b16 %v2748
        %v2793 = vunpack.c.l.b16 %v2749
        %v2794 = vunpack.c.h.b16 %v2749
        %v2795 = vunpack.c.l.b16 %v2750
        %v2796 = vunpack.c.h.b16 %v2750
        %v2797 = vunpack.c.l.b16 %v2751
        %v2798 = vunpack.c.h.b16 %v2751
        %v2799 = vunpack.c.l.b16 %v2752
        %v2800 = vunpack.c.h.b16 %v2752
        %v2801 = vpack.c.b16 %v2771, %v2769
        %v2802 = vpack.c.b16 %v2772, %v2770
        %v2803 = vpack.c.b16 %v2775, %v2773
        %v2804 = vpack.c.b16 %v2776, %v2774
        %v2805 = vpack.c.b16 %v2779, %v2777
        %v2806 = vpack.c.b16 %v2780, %v2778
        %v2807 = vpack.c.b16 %v2783, %v2781
        %v2808 = vpack.c.b16 %v2784, %v2782
        %v2809 = vpack.c.b16 %v2787, %v2785
        %v2810 = vpack.c.b16 %v2788, %v2786
        %v2811 = vpack.c.b16 %v2791, %v2789
        %v2812 = vpack.c.b16 %v2792, %v2790
        %v2813 = vpack.c.b16 %v2795, %v2793
        %v2814 = vpack.c.b16 %v2796, %v2794
        %v2815 = vpack.c.b16 %v2799, %v2797
        %v2816 = vpack.c.b16 %v2800, %v2798
        %2833 = vmatprep.subr.bf16.mxu0 %v2816
        %2834 = vmatpush1.bf16.msra.mxu0 %v2815
        %2835 = vmatprep.subr.bf16.mxu0 %v2814
        %2836 = vmatpush1.bf16.msra.mxu0 %v2813
        %2837 = vmatprep.subr.bf16.mxu0 %v2812
        %2838 = vmatpush1.bf16.msra.mxu0 %v2811
        %2839 = vmatprep.subr.bf16.mxu0 %v2810
        %2840 = vmatpush1.bf16.msra.mxu0 %v2809
        %2841 = vmatprep.subr.bf16.mxu0 %v2808
        %2842 = vmatpush1.bf16.msra.mxu0 %v2807
        %2843 = vmatprep.subr.bf16.mxu0 %v2806
        %2844 = vmatpush1.bf16.msra.mxu0 %v2805
        %2845 = vmatprep.subr.bf16.mxu0 %v2804
        %2846 = vmatpush1.bf16.msra.mxu0 %v2803
        %2847 = vmatprep.subr.bf16.mxu0 %v2802
        %2848 = vmatpush1.bf16.msra.mxu0 %v2801
        %2849 = vmatprep.subr.bf16.mxu0 0
        %2850 = vmatpush2.bf16.msra.mxu0 0
        %2851 = vmatprep.subr.bf16.mxu0 0
        %2852 = vmatpush2.bf16.msra.mxu0 0
        %2853 = vmatprep.subr.bf16.mxu0 0
        %2854 = vmatpush2.bf16.msra.mxu0 0
        %2855 = vmatprep.subr.bf16.mxu0 0
        %2856 = vmatpush2.bf16.msra.mxu0 0
        %2857 = vmatprep.subr.bf16.mxu0 0
        %2858 = vmatpush2.bf16.msra.mxu0 0
        %2859 = vmatprep.subr.bf16.mxu0 0
        %2860 = vmatpush2.bf16.msra.mxu0 0
        %2861 = vmatprep.subr.bf16.mxu0 0
        %2862 = vmatpush2.bf16.msra.mxu0 0
        %2863 = vmatprep.subr.bf16.mxu0 0
        %2864 = vmatpush2.bf16.msra.mxu0 0
        %2865 = vmatprep.mubr.bf16.mxu0 0
        %2866 = vmatmul.mubr.bf16.gmra.mxu0 %v2732
        %v2867 = vpop.f32.mrf.mxu0
        %v2868 = vadd.f32 0.0, %v2867
        %v2869 = vpop.f32.mrf.mxu0
        %v2870 = vadd.f32 0.0, %v2869
        %v2871 = vpop.f32.mrf.mxu0
        %v2872 = vadd.f32 0.0, %v2871
        %v2873 = vpop.f32.mrf.mxu0
        %v2874 = vadd.f32 0.0, %v2873
        %2875 = vmatprep.mubr.bf16.mxu0 0
        %2876 = vmatmul.mubr.bf16.gmra.mxu0 %v2733
        %v2877 = vpop.f32.mrf.mxu0
        %v2878 = vadd.f32 0.0, %v2877
        %v2879 = vpop.f32.mrf.mxu0
        %v2880 = vadd.f32 0.0, %v2879
        %v2881 = vpop.f32.mrf.mxu0
        %v2882 = vadd.f32 0.0, %v2881
        %v2883 = vpop.f32.mrf.mxu0
        %v2884 = vadd.f32 0.0, %v2883
        %2885 = vmatprep.mubr.bf16.mxu0 0
        %2886 = vmatmul.mubr.bf16.gmra.mxu0 %v2734
        %v2887 = vpop.f32.mrf.mxu0
        %v2888 = vadd.f32 0.0, %v2887
        %v2889 = vpop.f32.mrf.mxu0
        %v2890 = vadd.f32 0.0, %v2889
        %v2891 = vpop.f32.mrf.mxu0
        %v2892 = vadd.f32 0.0, %v2891
        %v2893 = vpop.f32.mrf.mxu0
        %v2894 = vadd.f32 0.0, %v2893
        %2895 = vmatprep.mubr.bf16.mxu0 0
        %2896 = vmatmul.mubr.bf16.gmra.mxu0 %v2735
        %v2897 = vpop.f32.mrf.mxu0
        %v2898 = vadd.f32 0.0, %v2897
        %v2899 = vpop.f32.mrf.mxu0
        %v2900 = vadd.f32 0.0, %v2899
        %v2901 = vpop.f32.mrf.mxu0
        %v2902 = vadd.f32 0.0, %v2901
        %v2903 = vpop.f32.mrf.mxu0
        %v2904 = vadd.f32 0.0, %v2903
        %2905 = vdwg.mxu0
        %v2906 = vadd.f32 %v2708, %v2868
        %v2907 = vadd.f32 %v2709, %v2870
        %v2908 = vadd.f32 %v2710, %v2872
        %v2909 = vadd.f32 %v2711, %v2874
        %v2910 = vadd.f32 %v2712, %v2878
        %v2911 = vadd.f32 %v2713, %v2880
        %v2912 = vadd.f32 %v2714, %v2882
        %v2913 = vadd.f32 %v2715, %v2884
        %v2914 = vadd.f32 %v2716, %v2888
        %v2915 = vadd.f32 %v2717, %v2890
        %v2916 = vadd.f32 %v2718, %v2892
        %v2917 = vadd.f32 %v2719, %v2894
        %v2918 = vadd.f32 %v2720, %v2898
        %v2919 = vadd.f32 %v2721, %v2900
        %v2920 = vadd.f32 %v2722, %v2902
        %v2921 = vadd.f32 %v2723, %v2904
        %v2922 = vld [vmem:[%s534] sm:$0xff]
        %v2923 = vld [vmem:[%s534 + $0x10] sm:$0xff]
        %v2924 = vld [vmem:[%s534 + $0x20] sm:$0xff]
        %v2925 = vld [vmem:[%s534 + $0x30] sm:$0xff]
        %v2926 = vld [vmem:[%s534 + $0x40] sm:$0xff]
        %v2927 = vld [vmem:[%s534 + $0x50] sm:$0xff]
        %v2928 = vld [vmem:[%s534 + $0x60] sm:$0xff]
        %v2929 = vld [vmem:[%s534 + $0x70] sm:$0xff]
        %v2930 = vpack.c.bf16 %v2923, %v2922
        %v2931 = vpack.c.bf16 %v2925, %v2924
        %v2932 = vpack.c.bf16 %v2927, %v2926
        %v2933 = vpack.c.bf16 %v2929, %v2928
        %s2934 = scalar_lea.vmem %s4, 1536
        %v2935 = vld [vmem:[%s2934] sm:$0xff]
        %v2936 = vld [vmem:[%s2934 + $0x8] sm:$0xff]
        %v2937 = vld [vmem:[%s2934 + $0x10] sm:$0xff]
        %v2938 = vld [vmem:[%s2934 + $0x18] sm:$0xff]
        %v2939 = vld [vmem:[%s2934 + $0x20] sm:$0xff]
        %v2940 = vld [vmem:[%s2934 + $0x28] sm:$0xff]
        %v2941 = vld [vmem:[%s2934 + $0x30] sm:$0xff]
        %v2942 = vld [vmem:[%s2934 + $0x38] sm:$0xff]
        %v2943 = vld [vmem:[%s2934 + $0x40] sm:$0xff]
        %v2944 = vld [vmem:[%s2934 + $0x48] sm:$0xff]
        %v2945 = vld [vmem:[%s2934 + $0x50] sm:$0xff]
        %v2946 = vld [vmem:[%s2934 + $0x58] sm:$0xff]
        %v2947 = vld [vmem:[%s2934 + $0x60] sm:$0xff]
        %v2948 = vld [vmem:[%s2934 + $0x68] sm:$0xff]
        %v2949 = vld [vmem:[%s2934 + $0x70] sm:$0xff]
        %v2950 = vld [vmem:[%s2934 + $0x78] sm:$0xff]
        %v2967 = vunpack.c.l.b16 %v2935
        %v2968 = vunpack.c.h.b16 %v2935
        %v2969 = vunpack.c.l.b16 %v2936
        %v2970 = vunpack.c.h.b16 %v2936
        %v2971 = vunpack.c.l.b16 %v2937
        %v2972 = vunpack.c.h.b16 %v2937
        %v2973 = vunpack.c.l.b16 %v2938
        %v2974 = vunpack.c.h.b16 %v2938
        %v2975 = vunpack.c.l.b16 %v2939
        %v2976 = vunpack.c.h.b16 %v2939
        %v2977 = vunpack.c.l.b16 %v2940
        %v2978 = vunpack.c.h.b16 %v2940
        %v2979 = vunpack.c.l.b16 %v2941
        %v2980 = vunpack.c.h.b16 %v2941
        %v2981 = vunpack.c.l.b16 %v2942
        %v2982 = vunpack.c.h.b16 %v2942
        %v2983 = vunpack.c.l.b16 %v2943
        %v2984 = vunpack.c.h.b16 %v2943
        %v2985 = vunpack.c.l.b16 %v2944
        %v2986 = vunpack.c.h.b16 %v2944
        %v2987 = vunpack.c.l.b16 %v2945
        %v2988 = vunpack.c.h.b16 %v2945
        %v2989 = vunpack.c.l.b16 %v2946
        %v2990 = vunpack.c.h.b16 %v2946
        %v2991 = vunpack.c.l.b16 %v2947
        %v2992 = vunpack.c.h.b16 %v2947
        %v2993 = vunpack.c.l.b16 %v2948
        %v2994 = vunpack.c.h.b16 %v2948
        %v2995 = vunpack.c.l.b16 %v2949
        %v2996 = vunpack.c.h.b16 %v2949
        %v2997 = vunpack.c.l.b16 %v2950
        %v2998 = vunpack.c.h.b16 %v2950
        %v2999 = vpack.c.b16 %v2969, %v2967
        %v3000 = vpack.c.b16 %v2970, %v2968
        %v3001 = vpack.c.b16 %v2973, %v2971
        %v3002 = vpack.c.b16 %v2974, %v2972
        %v3003 = vpack.c.b16 %v2977, %v2975
        %v3004 = vpack.c.b16 %v2978, %v2976
        %v3005 = vpack.c.b16 %v2981, %v2979
        %v3006 = vpack.c.b16 %v2982, %v2980
        %v3007 = vpack.c.b16 %v2985, %v2983
        %v3008 = vpack.c.b16 %v2986, %v2984
        %v3009 = vpack.c.b16 %v2989, %v2987
        %v3010 = vpack.c.b16 %v2990, %v2988
        %v3011 = vpack.c.b16 %v2993, %v2991
        %v3012 = vpack.c.b16 %v2994, %v2992
        %v3013 = vpack.c.b16 %v2997, %v2995
        %v3014 = vpack.c.b16 %v2998, %v2996
        %3031 = vmatprep.subr.bf16.mxu0 %v3014
        %3032 = vmatpush1.bf16.msra.mxu0 %v3013
        %3033 = vmatprep.subr.bf16.mxu0 %v3012
        %3034 = vmatpush1.bf16.msra.mxu0 %v3011
        %3035 = vmatprep.subr.bf16.mxu0 %v3010
        %3036 = vmatpush1.bf16.msra.mxu0 %v3009
        %3037 = vmatprep.subr.bf16.mxu0 %v3008
        %3038 = vmatpush1.bf16.msra.mxu0 %v3007
        %3039 = vmatprep.subr.bf16.mxu0 %v3006
        %3040 = vmatpush1.bf16.msra.mxu0 %v3005
        %3041 = vmatprep.subr.bf16.mxu0 %v3004
        %3042 = vmatpush1.bf16.msra.mxu0 %v3003
        %3043 = vmatprep.subr.bf16.mxu0 %v3002
        %3044 = vmatpush1.bf16.msra.mxu0 %v3001
        %3045 = vmatprep.subr.bf16.mxu0 %v3000
        %3046 = vmatpush1.bf16.msra.mxu0 %v2999
        %3047 = vmatprep.subr.bf16.mxu0 0
        %3048 = vmatpush2.bf16.msra.mxu0 0
        %3049 = vmatprep.subr.bf16.mxu0 0
        %3050 = vmatpush2.bf16.msra.mxu0 0
        %3051 = vmatprep.subr.bf16.mxu0 0
        %3052 = vmatpush2.bf16.msra.mxu0 0
        %3053 = vmatprep.subr.bf16.mxu0 0
        %3054 = vmatpush2.bf16.msra.mxu0 0
        %3055 = vmatprep.subr.bf16.mxu0 0
        %3056 = vmatpush2.bf16.msra.mxu0 0
        %3057 = vmatprep.subr.bf16.mxu0 0
        %3058 = vmatpush2.bf16.msra.mxu0 0
        %3059 = vmatprep.subr.bf16.mxu0 0
        %3060 = vmatpush2.bf16.msra.mxu0 0
        %3061 = vmatprep.subr.bf16.mxu0 0
        %3062 = vmatpush2.bf16.msra.mxu0 0
        %3063 = vmatprep.mubr.bf16.mxu0 0
        %3064 = vmatmul.mubr.bf16.gmra.mxu0 %v2930
        %v3065 = vpop.f32.mrf.mxu0
        %v3066 = vadd.f32 0.0, %v3065
        %v3067 = vpop.f32.mrf.mxu0
        %v3068 = vadd.f32 0.0, %v3067
        %v3069 = vpop.f32.mrf.mxu0
        %v3070 = vadd.f32 0.0, %v3069
        %v3071 = vpop.f32.mrf.mxu0
        %v3072 = vadd.f32 0.0, %v3071
        %3073 = vmatprep.mubr.bf16.mxu0 0
        %3074 = vmatmul.mubr.bf16.gmra.mxu0 %v2931
        %v3075 = vpop.f32.mrf.mxu0
        %v3076 = vadd.f32 0.0, %v3075
        %v3077 = vpop.f32.mrf.mxu0
        %v3078 = vadd.f32 0.0, %v3077
        %v3079 = vpop.f32.mrf.mxu0
        %v3080 = vadd.f32 0.0, %v3079
        %v3081 = vpop.f32.mrf.mxu0
        %v3082 = vadd.f32 0.0, %v3081
        %3083 = vmatprep.mubr.bf16.mxu0 0
        %3084 = vmatmul.mubr.bf16.gmra.mxu0 %v2932
        %v3085 = vpop.f32.mrf.mxu0
        %v3086 = vadd.f32 0.0, %v3085
        %v3087 = vpop.f32.mrf.mxu0
        %v3088 = vadd.f32 0.0, %v3087
        %v3089 = vpop.f32.mrf.mxu0
        %v3090 = vadd.f32 0.0, %v3089
        %v3091 = vpop.f32.mrf.mxu0
        %v3092 = vadd.f32 0.0, %v3091
        %3093 = vmatprep.mubr.bf16.mxu0 0
        %3094 = vmatmul.mubr.bf16.gmra.mxu0 %v2933
        %v3095 = vpop.f32.mrf.mxu0
        %v3096 = vadd.f32 0.0, %v3095
        %v3097 = vpop.f32.mrf.mxu0
        %v3098 = vadd.f32 0.0, %v3097
        %v3099 = vpop.f32.mrf.mxu0
        %v3100 = vadd.f32 0.0, %v3099
        %v3101 = vpop.f32.mrf.mxu0
        %v3102 = vadd.f32 0.0, %v3101
        %3103 = vdwg.mxu0
        %v3104 = vadd.f32 %v2906, %v3066
        %v3105 = vadd.f32 %v2907, %v3068
        %v3106 = vadd.f32 %v2908, %v3070
        %v3107 = vadd.f32 %v2909, %v3072
        %v3108 = vadd.f32 %v2910, %v3076
        %v3109 = vadd.f32 %v2911, %v3078
        %v3110 = vadd.f32 %v2912, %v3080
        %v3111 = vadd.f32 %v2913, %v3082
        %v3112 = vadd.f32 %v2914, %v3086
        %v3113 = vadd.f32 %v2915, %v3088
        %v3114 = vadd.f32 %v2916, %v3090
        %v3115 = vadd.f32 %v2917, %v3092
        %v3116 = vadd.f32 %v2918, %v3096
        %v3117 = vadd.f32 %v2919, %v3098
        %v3118 = vadd.f32 %v2920, %v3100
        %v3119 = vadd.f32 %v2921, %v3102
        %v3120 = vld [vmem:[%s534 + $0x1] sm:$0xff]
        %v3121 = vld [vmem:[%s534 + $0x11] sm:$0xff]
        %v3122 = vld [vmem:[%s534 + $0x21] sm:$0xff]
        %v3123 = vld [vmem:[%s534 + $0x31] sm:$0xff]
        %v3124 = vld [vmem:[%s534 + $0x41] sm:$0xff]
        %v3125 = vld [vmem:[%s534 + $0x51] sm:$0xff]
        %v3126 = vld [vmem:[%s534 + $0x61] sm:$0xff]
        %v3127 = vld [vmem:[%s534 + $0x71] sm:$0xff]
        %v3128 = vpack.c.bf16 %v3121, %v3120
        %v3129 = vpack.c.bf16 %v3123, %v3122
        %v3130 = vpack.c.bf16 %v3125, %v3124
        %v3131 = vpack.c.bf16 %v3127, %v3126
        %s3132 = scalar_lea.vmem %s4, 1664
        %v3133 = vld [vmem:[%s3132] sm:$0xff]
        %v3134 = vld [vmem:[%s3132 + $0x8] sm:$0xff]
        %v3135 = vld [vmem:[%s3132 + $0x10] sm:$0xff]
        %v3136 = vld [vmem:[%s3132 + $0x18] sm:$0xff]
        %v3137 = vld [vmem:[%s3132 + $0x20] sm:$0xff]
        %v3138 = vld [vmem:[%s3132 + $0x28] sm:$0xff]
        %v3139 = vld [vmem:[%s3132 + $0x30] sm:$0xff]
        %v3140 = vld [vmem:[%s3132 + $0x38] sm:$0xff]
        %v3141 = vld [vmem:[%s3132 + $0x40] sm:$0xff]
        %v3142 = vld [vmem:[%s3132 + $0x48] sm:$0xff]
        %v3143 = vld [vmem:[%s3132 + $0x50] sm:$0xff]
        %v3144 = vld [vmem:[%s3132 + $0x58] sm:$0xff]
        %v3145 = vld [vmem:[%s3132 + $0x60] sm:$0xff]
        %v3146 = vld [vmem:[%s3132 + $0x68] sm:$0xff]
        %v3147 = vld [vmem:[%s3132 + $0x70] sm:$0xff]
        %v3148 = vld [vmem:[%s3132 + $0x78] sm:$0xff]
        %v3165 = vunpack.c.l.b16 %v3133
        %v3166 = vunpack.c.h.b16 %v3133
        %v3167 = vunpack.c.l.b16 %v3134
        %v3168 = vunpack.c.h.b16 %v3134
        %v3169 = vunpack.c.l.b16 %v3135
        %v3170 = vunpack.c.h.b16 %v3135
        %v3171 = vunpack.c.l.b16 %v3136
        %v3172 = vunpack.c.h.b16 %v3136
        %v3173 = vunpack.c.l.b16 %v3137
        %v3174 = vunpack.c.h.b16 %v3137
        %v3175 = vunpack.c.l.b16 %v3138
        %v3176 = vunpack.c.h.b16 %v3138
        %v3177 = vunpack.c.l.b16 %v3139
        %v3178 = vunpack.c.h.b16 %v3139
        %v3179 = vunpack.c.l.b16 %v3140
        %v3180 = vunpack.c.h.b16 %v3140
        %v3181 = vunpack.c.l.b16 %v3141
        %v3182 = vunpack.c.h.b16 %v3141
        %v3183 = vunpack.c.l.b16 %v3142
        %v3184 = vunpack.c.h.b16 %v3142
        %v3185 = vunpack.c.l.b16 %v3143
        %v3186 = vunpack.c.h.b16 %v3143
        %v3187 = vunpack.c.l.b16 %v3144
        %v3188 = vunpack.c.h.b16 %v3144
        %v3189 = vunpack.c.l.b16 %v3145
        %v3190 = vunpack.c.h.b16 %v3145
        %v3191 = vunpack.c.l.b16 %v3146
        %v3192 = vunpack.c.h.b16 %v3146
        %v3193 = vunpack.c.l.b16 %v3147
        %v3194 = vunpack.c.h.b16 %v3147
        %v3195 = vunpack.c.l.b16 %v3148
        %v3196 = vunpack.c.h.b16 %v3148
        %v3197 = vpack.c.b16 %v3167, %v3165
        %v3198 = vpack.c.b16 %v3168, %v3166
        %v3199 = vpack.c.b16 %v3171, %v3169
        %v3200 = vpack.c.b16 %v3172, %v3170
        %v3201 = vpack.c.b16 %v3175, %v3173
        %v3202 = vpack.c.b16 %v3176, %v3174
        %v3203 = vpack.c.b16 %v3179, %v3177
        %v3204 = vpack.c.b16 %v3180, %v3178
        %v3205 = vpack.c.b16 %v3183, %v3181
        %v3206 = vpack.c.b16 %v3184, %v3182
        %v3207 = vpack.c.b16 %v3187, %v3185
        %v3208 = vpack.c.b16 %v3188, %v3186
        %v3209 = vpack.c.b16 %v3191, %v3189
        %v3210 = vpack.c.b16 %v3192, %v3190
        %v3211 = vpack.c.b16 %v3195, %v3193
        %v3212 = vpack.c.b16 %v3196, %v3194
        %3229 = vmatprep.subr.bf16.mxu0 %v3212
        %3230 = vmatpush1.bf16.msra.mxu0 %v3211
        %3231 = vmatprep.subr.bf16.mxu0 %v3210
        %3232 = vmatpush1.bf16.msra.mxu0 %v3209
        %3233 = vmatprep.subr.bf16.mxu0 %v3208
        %3234 = vmatpush1.bf16.msra.mxu0 %v3207
        %3235 = vmatprep.subr.bf16.mxu0 %v3206
        %3236 = vmatpush1.bf16.msra.mxu0 %v3205
        %3237 = vmatprep.subr.bf16.mxu0 %v3204
        %3238 = vmatpush1.bf16.msra.mxu0 %v3203
        %3239 = vmatprep.subr.bf16.mxu0 %v3202
        %3240 = vmatpush1.bf16.msra.mxu0 %v3201
        %3241 = vmatprep.subr.bf16.mxu0 %v3200
        %3242 = vmatpush1.bf16.msra.mxu0 %v3199
        %3243 = vmatprep.subr.bf16.mxu0 %v3198
        %3244 = vmatpush1.bf16.msra.mxu0 %v3197
        %3245 = vmatprep.subr.bf16.mxu0 0
        %3246 = vmatpush2.bf16.msra.mxu0 0
        %3247 = vmatprep.subr.bf16.mxu0 0
        %3248 = vmatpush2.bf16.msra.mxu0 0
        %3249 = vmatprep.subr.bf16.mxu0 0
        %3250 = vmatpush2.bf16.msra.mxu0 0
        %3251 = vmatprep.subr.bf16.mxu0 0
        %3252 = vmatpush2.bf16.msra.mxu0 0
        %3253 = vmatprep.subr.bf16.mxu0 0
        %3254 = vmatpush2.bf16.msra.mxu0 0
        %3255 = vmatprep.subr.bf16.mxu0 0
        %3256 = vmatpush2.bf16.msra.mxu0 0
        %3257 = vmatprep.subr.bf16.mxu0 0
        %3258 = vmatpush2.bf16.msra.mxu0 0
        %3259 = vmatprep.subr.bf16.mxu0 0
        %3260 = vmatpush2.bf16.msra.mxu0 0
        %3261 = vmatprep.mubr.bf16.mxu0 0
        %3262 = vmatmul.mubr.bf16.gmra.mxu0 %v3128
        %v3263 = vpop.f32.mrf.mxu0
        %v3264 = vadd.f32 0.0, %v3263
        %v3265 = vpop.f32.mrf.mxu0
        %v3266 = vadd.f32 0.0, %v3265
        %v3267 = vpop.f32.mrf.mxu0
        %v3268 = vadd.f32 0.0, %v3267
        %v3269 = vpop.f32.mrf.mxu0
        %v3270 = vadd.f32 0.0, %v3269
        %3271 = vmatprep.mubr.bf16.mxu0 0
        %3272 = vmatmul.mubr.bf16.gmra.mxu0 %v3129
        %v3273 = vpop.f32.mrf.mxu0
        %v3274 = vadd.f32 0.0, %v3273
        %v3275 = vpop.f32.mrf.mxu0
        %v3276 = vadd.f32 0.0, %v3275
        %v3277 = vpop.f32.mrf.mxu0
        %v3278 = vadd.f32 0.0, %v3277
        %v3279 = vpop.f32.mrf.mxu0
        %v3280 = vadd.f32 0.0, %v3279
        %3281 = vmatprep.mubr.bf16.mxu0 0
        %3282 = vmatmul.mubr.bf16.gmra.mxu0 %v3130
        %v3283 = vpop.f32.mrf.mxu0
        %v3284 = vadd.f32 0.0, %v3283
        %v3285 = vpop.f32.mrf.mxu0
        %v3286 = vadd.f32 0.0, %v3285
        %v3287 = vpop.f32.mrf.mxu0
        %v3288 = vadd.f32 0.0, %v3287
        %v3289 = vpop.f32.mrf.mxu0
        %v3290 = vadd.f32 0.0, %v3289
        %3291 = vmatprep.mubr.bf16.mxu0 0
        %3292 = vmatmul.mubr.bf16.gmra.mxu0 %v3131
        %v3293 = vpop.f32.mrf.mxu0
        %v3294 = vadd.f32 0.0, %v3293
        %v3295 = vpop.f32.mrf.mxu0
        %v3296 = vadd.f32 0.0, %v3295
        %v3297 = vpop.f32.mrf.mxu0
        %v3298 = vadd.f32 0.0, %v3297
        %v3299 = vpop.f32.mrf.mxu0
        %v3300 = vadd.f32 0.0, %v3299
        %3301 = vdwg.mxu0
        %v3302 = vadd.f32 %v3104, %v3264
        %v3303 = vadd.f32 %v3105, %v3266
        %v3304 = vadd.f32 %v3106, %v3268
        %v3305 = vadd.f32 %v3107, %v3270
        %v3306 = vadd.f32 %v3108, %v3274
        %v3307 = vadd.f32 %v3109, %v3276
        %v3308 = vadd.f32 %v3110, %v3278
        %v3309 = vadd.f32 %v3111, %v3280
        %v3310 = vadd.f32 %v3112, %v3284
        %v3311 = vadd.f32 %v3113, %v3286
        %v3312 = vadd.f32 %v3114, %v3288
        %v3313 = vadd.f32 %v3115, %v3290
        %v3314 = vadd.f32 %v3116, %v3294
        %v3315 = vadd.f32 %v3117, %v3296
        %v3316 = vadd.f32 %v3118, %v3298
        %v3317 = vadd.f32 %v3119, %v3300
        %v3318 = vld [vmem:[%s534 + $0x2] sm:$0xff]
        %v3319 = vld [vmem:[%s534 + $0x12] sm:$0xff]
        %v3320 = vld [vmem:[%s534 + $0x22] sm:$0xff]
        %v3321 = vld [vmem:[%s534 + $0x32] sm:$0xff]
        %v3322 = vld [vmem:[%s534 + $0x42] sm:$0xff]
        %v3323 = vld [vmem:[%s534 + $0x52] sm:$0xff]
        %v3324 = vld [vmem:[%s534 + $0x62] sm:$0xff]
        %v3325 = vld [vmem:[%s534 + $0x72] sm:$0xff]
        %v3326 = vpack.c.bf16 %v3319, %v3318
        %v3327 = vpack.c.bf16 %v3321, %v3320
        %v3328 = vpack.c.bf16 %v3323, %v3322
        %v3329 = vpack.c.bf16 %v3325, %v3324
        %s3330 = scalar_lea.vmem %s4, 1792
        %v3331 = vld [vmem:[%s3330] sm:$0xff]
        %v3332 = vld [vmem:[%s3330 + $0x8] sm:$0xff]
        %v3333 = vld [vmem:[%s3330 + $0x10] sm:$0xff]
        %v3334 = vld [vmem:[%s3330 + $0x18] sm:$0xff]
        %v3335 = vld [vmem:[%s3330 + $0x20] sm:$0xff]
        %v3336 = vld [vmem:[%s3330 + $0x28] sm:$0xff]
        %v3337 = vld [vmem:[%s3330 + $0x30] sm:$0xff]
        %v3338 = vld [vmem:[%s3330 + $0x38] sm:$0xff]
        %v3339 = vld [vmem:[%s3330 + $0x40] sm:$0xff]
        %v3340 = vld [vmem:[%s3330 + $0x48] sm:$0xff]
        %v3341 = vld [vmem:[%s3330 + $0x50] sm:$0xff]
        %v3342 = vld [vmem:[%s3330 + $0x58] sm:$0xff]
        %v3343 = vld [vmem:[%s3330 + $0x60] sm:$0xff]
        %v3344 = vld [vmem:[%s3330 + $0x68] sm:$0xff]
        %v3345 = vld [vmem:[%s3330 + $0x70] sm:$0xff]
        %v3346 = vld [vmem:[%s3330 + $0x78] sm:$0xff]
        %v3363 = vunpack.c.l.b16 %v3331
        %v3364 = vunpack.c.h.b16 %v3331
        %v3365 = vunpack.c.l.b16 %v3332
        %v3366 = vunpack.c.h.b16 %v3332
        %v3367 = vunpack.c.l.b16 %v3333
        %v3368 = vunpack.c.h.b16 %v3333
        %v3369 = vunpack.c.l.b16 %v3334
        %v3370 = vunpack.c.h.b16 %v3334
        %v3371 = vunpack.c.l.b16 %v3335
        %v3372 = vunpack.c.h.b16 %v3335
        %v3373 = vunpack.c.l.b16 %v3336
        %v3374 = vunpack.c.h.b16 %v3336
        %v3375 = vunpack.c.l.b16 %v3337
        %v3376 = vunpack.c.h.b16 %v3337
        %v3377 = vunpack.c.l.b16 %v3338
        %v3378 = vunpack.c.h.b16 %v3338
        %v3379 = vunpack.c.l.b16 %v3339
        %v3380 = vunpack.c.h.b16 %v3339
        %v3381 = vunpack.c.l.b16 %v3340
        %v3382 = vunpack.c.h.b16 %v3340
        %v3383 = vunpack.c.l.b16 %v3341
        %v3384 = vunpack.c.h.b16 %v3341
        %v3385 = vunpack.c.l.b16 %v3342
        %v3386 = vunpack.c.h.b16 %v3342
        %v3387 = vunpack.c.l.b16 %v3343
        %v3388 = vunpack.c.h.b16 %v3343
        %v3389 = vunpack.c.l.b16 %v3344
        %v3390 = vunpack.c.h.b16 %v3344
        %v3391 = vunpack.c.l.b16 %v3345
        %v3392 = vunpack.c.h.b16 %v3345
        %v3393 = vunpack.c.l.b16 %v3346
        %v3394 = vunpack.c.h.b16 %v3346
        %v3395 = vpack.c.b16 %v3365, %v3363
        %v3396 = vpack.c.b16 %v3366, %v3364
        %v3397 = vpack.c.b16 %v3369, %v3367
        %v3398 = vpack.c.b16 %v3370, %v3368
        %v3399 = vpack.c.b16 %v3373, %v3371
        %v3400 = vpack.c.b16 %v3374, %v3372
        %v3401 = vpack.c.b16 %v3377, %v3375
        %v3402 = vpack.c.b16 %v3378, %v3376
        %v3403 = vpack.c.b16 %v3381, %v3379
        %v3404 = vpack.c.b16 %v3382, %v3380
        %v3405 = vpack.c.b16 %v3385, %v3383
        %v3406 = vpack.c.b16 %v3386, %v3384
        %v3407 = vpack.c.b16 %v3389, %v3387
        %v3408 = vpack.c.b16 %v3390, %v3388
        %v3409 = vpack.c.b16 %v3393, %v3391
        %v3410 = vpack.c.b16 %v3394, %v3392
        %3427 = vmatprep.subr.bf16.mxu0 %v3410
        %3428 = vmatpush1.bf16.msra.mxu0 %v3409
        %3429 = vmatprep.subr.bf16.mxu0 %v3408
        %3430 = vmatpush1.bf16.msra.mxu0 %v3407
        %3431 = vmatprep.subr.bf16.mxu0 %v3406
        %3432 = vmatpush1.bf16.msra.mxu0 %v3405
        %3433 = vmatprep.subr.bf16.mxu0 %v3404
        %3434 = vmatpush1.bf16.msra.mxu0 %v3403
        %3435 = vmatprep.subr.bf16.mxu0 %v3402
        %3436 = vmatpush1.bf16.msra.mxu0 %v3401
        %3437 = vmatprep.subr.bf16.mxu0 %v3400
        %3438 = vmatpush1.bf16.msra.mxu0 %v3399
        %3439 = vmatprep.subr.bf16.mxu0 %v3398
        %3440 = vmatpush1.bf16.msra.mxu0 %v3397
        %3441 = vmatprep.subr.bf16.mxu0 %v3396
        %3442 = vmatpush1.bf16.msra.mxu0 %v3395
        %3443 = vmatprep.subr.bf16.mxu0 0
        %3444 = vmatpush2.bf16.msra.mxu0 0
        %3445 = vmatprep.subr.bf16.mxu0 0
        %3446 = vmatpush2.bf16.msra.mxu0 0
        %3447 = vmatprep.subr.bf16.mxu0 0
        %3448 = vmatpush2.bf16.msra.mxu0 0
        %3449 = vmatprep.subr.bf16.mxu0 0
        %3450 = vmatpush2.bf16.msra.mxu0 0
        %3451 = vmatprep.subr.bf16.mxu0 0
        %3452 = vmatpush2.bf16.msra.mxu0 0
        %3453 = vmatprep.subr.bf16.mxu0 0
        %3454 = vmatpush2.bf16.msra.mxu0 0
        %3455 = vmatprep.subr.bf16.mxu0 0
        %3456 = vmatpush2.bf16.msra.mxu0 0
        %3457 = vmatprep.subr.bf16.mxu0 0
        %3458 = vmatpush2.bf16.msra.mxu0 0
        %3459 = vmatprep.mubr.bf16.mxu0 0
        %3460 = vmatmul.mubr.bf16.gmra.mxu0 %v3326
        %v3461 = vpop.f32.mrf.mxu0
        %v3462 = vadd.f32 0.0, %v3461
        %v3463 = vpop.f32.mrf.mxu0
        %v3464 = vadd.f32 0.0, %v3463
        %v3465 = vpop.f32.mrf.mxu0
        %v3466 = vadd.f32 0.0, %v3465
        %v3467 = vpop.f32.mrf.mxu0
        %v3468 = vadd.f32 0.0, %v3467
        %3469 = vmatprep.mubr.bf16.mxu0 0
        %3470 = vmatmul.mubr.bf16.gmra.mxu0 %v3327
        %v3471 = vpop.f32.mrf.mxu0
        %v3472 = vadd.f32 0.0, %v3471
        %v3473 = vpop.f32.mrf.mxu0
        %v3474 = vadd.f32 0.0, %v3473
        %v3475 = vpop.f32.mrf.mxu0
        %v3476 = vadd.f32 0.0, %v3475
        %v3477 = vpop.f32.mrf.mxu0
        %v3478 = vadd.f32 0.0, %v3477
        %3479 = vmatprep.mubr.bf16.mxu0 0
        %3480 = vmatmul.mubr.bf16.gmra.mxu0 %v3328
        %v3481 = vpop.f32.mrf.mxu0
        %v3482 = vadd.f32 0.0, %v3481
        %v3483 = vpop.f32.mrf.mxu0
        %v3484 = vadd.f32 0.0, %v3483
        %v3485 = vpop.f32.mrf.mxu0
        %v3486 = vadd.f32 0.0, %v3485
        %v3487 = vpop.f32.mrf.mxu0
        %v3488 = vadd.f32 0.0, %v3487
        %3489 = vmatprep.mubr.bf16.mxu0 0
        %3490 = vmatmul.mubr.bf16.gmra.mxu0 %v3329
        %v3491 = vpop.f32.mrf.mxu0
        %v3492 = vadd.f32 0.0, %v3491
        %v3493 = vpop.f32.mrf.mxu0
        %v3494 = vadd.f32 0.0, %v3493
        %v3495 = vpop.f32.mrf.mxu0
        %v3496 = vadd.f32 0.0, %v3495
        %v3497 = vpop.f32.mrf.mxu0
        %v3498 = vadd.f32 0.0, %v3497
        %3499 = vdwg.mxu0
        %v3500 = vadd.f32 %v3302, %v3462
        %v3501 = vadd.f32 %v3303, %v3464
        %v3502 = vadd.f32 %v3304, %v3466
        %v3503 = vadd.f32 %v3305, %v3468
        %v3504 = vadd.f32 %v3306, %v3472
        %v3505 = vadd.f32 %v3307, %v3474
        %v3506 = vadd.f32 %v3308, %v3476
        %v3507 = vadd.f32 %v3309, %v3478
        %v3508 = vadd.f32 %v3310, %v3482
        %v3509 = vadd.f32 %v3311, %v3484
        %v3510 = vadd.f32 %v3312, %v3486
        %v3511 = vadd.f32 %v3313, %v3488
        %v3512 = vadd.f32 %v3314, %v3492
        %v3513 = vadd.f32 %v3315, %v3494
        %v3514 = vadd.f32 %v3316, %v3496
        %v3515 = vadd.f32 %v3317, %v3498
        %s3516 = scalar_lea.vmem [#allocation2], 192
        %v3517 = vld [vmem:[%s3516] sm:$0xff]
        %v3518 = vld [vmem:[%s3516 + $0x10] sm:$0xff]
        %v3519 = vld [vmem:[%s3516 + $0x20] sm:$0xff]
        %v3520 = vld [vmem:[%s3516 + $0x30] sm:$0xff]
        %v3521 = vld [vmem:[%s3516 + $0x40] sm:$0xff]
        %v3522 = vld [vmem:[%s3516 + $0x50] sm:$0xff]
        %v3523 = vld [vmem:[%s3516 + $0x60] sm:$0xff]
        %v3524 = vld [vmem:[%s3516 + $0x70] sm:$0xff]
        %v3525 = vpack.c.bf16 %v3518, %v3517
        %v3526 = vpack.c.bf16 %v3520, %v3519
        %v3527 = vpack.c.bf16 %v3522, %v3521
        %v3528 = vpack.c.bf16 %v3524, %v3523
        %s3529 = scalar_lea.vmem %s4, 1920
        %v3530 = vld [vmem:[%s3529] sm:$0xff]
        %v3531 = vld [vmem:[%s3529 + $0x8] sm:$0xff]
        %v3532 = vld [vmem:[%s3529 + $0x10] sm:$0xff]
        %v3533 = vld [vmem:[%s3529 + $0x18] sm:$0xff]
        %v3534 = vld [vmem:[%s3529 + $0x20] sm:$0xff]
        %v3535 = vld [vmem:[%s3529 + $0x28] sm:$0xff]
        %v3536 = vld [vmem:[%s3529 + $0x30] sm:$0xff]
        %v3537 = vld [vmem:[%s3529 + $0x38] sm:$0xff]
        %v3538 = vld [vmem:[%s3529 + $0x40] sm:$0xff]
        %v3539 = vld [vmem:[%s3529 + $0x48] sm:$0xff]
        %v3540 = vld [vmem:[%s3529 + $0x50] sm:$0xff]
        %v3541 = vld [vmem:[%s3529 + $0x58] sm:$0xff]
        %v3542 = vld [vmem:[%s3529 + $0x60] sm:$0xff]
        %v3543 = vld [vmem:[%s3529 + $0x68] sm:$0xff]
        %v3544 = vld [vmem:[%s3529 + $0x70] sm:$0xff]
        %v3545 = vld [vmem:[%s3529 + $0x78] sm:$0xff]
        %v3562 = vunpack.c.l.b16 %v3530
        %v3563 = vunpack.c.h.b16 %v3530
        %v3564 = vunpack.c.l.b16 %v3531
        %v3565 = vunpack.c.h.b16 %v3531
        %v3566 = vunpack.c.l.b16 %v3532
        %v3567 = vunpack.c.h.b16 %v3532
        %v3568 = vunpack.c.l.b16 %v3533
        %v3569 = vunpack.c.h.b16 %v3533
        %v3570 = vunpack.c.l.b16 %v3534
        %v3571 = vunpack.c.h.b16 %v3534
        %v3572 = vunpack.c.l.b16 %v3535
        %v3573 = vunpack.c.h.b16 %v3535
        %v3574 = vunpack.c.l.b16 %v3536
        %v3575 = vunpack.c.h.b16 %v3536
        %v3576 = vunpack.c.l.b16 %v3537
        %v3577 = vunpack.c.h.b16 %v3537
        %v3578 = vunpack.c.l.b16 %v3538
        %v3579 = vunpack.c.h.b16 %v3538
        %v3580 = vunpack.c.l.b16 %v3539
        %v3581 = vunpack.c.h.b16 %v3539
        %v3582 = vunpack.c.l.b16 %v3540
        %v3583 = vunpack.c.h.b16 %v3540
        %v3584 = vunpack.c.l.b16 %v3541
        %v3585 = vunpack.c.h.b16 %v3541
        %v3586 = vunpack.c.l.b16 %v3542
        %v3587 = vunpack.c.h.b16 %v3542
        %v3588 = vunpack.c.l.b16 %v3543
        %v3589 = vunpack.c.h.b16 %v3543
        %v3590 = vunpack.c.l.b16 %v3544
        %v3591 = vunpack.c.h.b16 %v3544
        %v3592 = vunpack.c.l.b16 %v3545
        %v3593 = vunpack.c.h.b16 %v3545
        %v3594 = vpack.c.b16 %v3564, %v3562
        %v3595 = vpack.c.b16 %v3565, %v3563
        %v3596 = vpack.c.b16 %v3568, %v3566
        %v3597 = vpack.c.b16 %v3569, %v3567
        %v3598 = vpack.c.b16 %v3572, %v3570
        %v3599 = vpack.c.b16 %v3573, %v3571
        %v3600 = vpack.c.b16 %v3576, %v3574
        %v3601 = vpack.c.b16 %v3577, %v3575
        %v3602 = vpack.c.b16 %v3580, %v3578
        %v3603 = vpack.c.b16 %v3581, %v3579
        %v3604 = vpack.c.b16 %v3584, %v3582
        %v3605 = vpack.c.b16 %v3585, %v3583
        %v3606 = vpack.c.b16 %v3588, %v3586
        %v3607 = vpack.c.b16 %v3589, %v3587
        %v3608 = vpack.c.b16 %v3592, %v3590
        %v3609 = vpack.c.b16 %v3593, %v3591
        %3626 = vmatprep.subr.bf16.mxu0 %v3609
        %3627 = vmatpush1.bf16.msra.mxu0 %v3608
        %3628 = vmatprep.subr.bf16.mxu0 %v3607
        %3629 = vmatpush1.bf16.msra.mxu0 %v3606
        %3630 = vmatprep.subr.bf16.mxu0 %v3605
        %3631 = vmatpush1.bf16.msra.mxu0 %v3604
        %3632 = vmatprep.subr.bf16.mxu0 %v3603
        %3633 = vmatpush1.bf16.msra.mxu0 %v3602
        %3634 = vmatprep.subr.bf16.mxu0 %v3601
        %3635 = vmatpush1.bf16.msra.mxu0 %v3600
        %3636 = vmatprep.subr.bf16.mxu0 %v3599
        %3637 = vmatpush1.bf16.msra.mxu0 %v3598
        %3638 = vmatprep.subr.bf16.mxu0 %v3597
        %3639 = vmatpush1.bf16.msra.mxu0 %v3596
        %3640 = vmatprep.subr.bf16.mxu0 %v3595
        %3641 = vmatpush1.bf16.msra.mxu0 %v3594
        %3642 = vmatprep.subr.bf16.mxu0 0
        %3643 = vmatpush2.bf16.msra.mxu0 0
        %3644 = vmatprep.subr.bf16.mxu0 0
        %3645 = vmatpush2.bf16.msra.mxu0 0
        %3646 = vmatprep.subr.bf16.mxu0 0
        %3647 = vmatpush2.bf16.msra.mxu0 0
        %3648 = vmatprep.subr.bf16.mxu0 0
        %3649 = vmatpush2.bf16.msra.mxu0 0
        %3650 = vmatprep.subr.bf16.mxu0 0
        %3651 = vmatpush2.bf16.msra.mxu0 0
        %3652 = vmatprep.subr.bf16.mxu0 0
        %3653 = vmatpush2.bf16.msra.mxu0 0
        %3654 = vmatprep.subr.bf16.mxu0 0
        %3655 = vmatpush2.bf16.msra.mxu0 0
        %3656 = vmatprep.subr.bf16.mxu0 0
        %3657 = vmatpush2.bf16.msra.mxu0 0
        %3658 = vmatprep.mubr.bf16.mxu0 0
        %3659 = vmatmul.mubr.bf16.gmra.mxu0 %v3525
        %v3660 = vpop.f32.mrf.mxu0
        %v3661 = vadd.f32 0.0, %v3660
        %v3662 = vpop.f32.mrf.mxu0
        %v3663 = vadd.f32 0.0, %v3662
        %v3664 = vpop.f32.mrf.mxu0
        %v3665 = vadd.f32 0.0, %v3664
        %v3666 = vpop.f32.mrf.mxu0
        %v3667 = vadd.f32 0.0, %v3666
        %3668 = vmatprep.mubr.bf16.mxu0 0
        %3669 = vmatmul.mubr.bf16.gmra.mxu0 %v3526
        %v3670 = vpop.f32.mrf.mxu0
        %v3671 = vadd.f32 0.0, %v3670
        %v3672 = vpop.f32.mrf.mxu0
        %v3673 = vadd.f32 0.0, %v3672
        %v3674 = vpop.f32.mrf.mxu0
        %v3675 = vadd.f32 0.0, %v3674
        %v3676 = vpop.f32.mrf.mxu0
        %v3677 = vadd.f32 0.0, %v3676
        %3678 = vmatprep.mubr.bf16.mxu0 0
        %3679 = vmatmul.mubr.bf16.gmra.mxu0 %v3527
        %v3680 = vpop.f32.mrf.mxu0
        %v3681 = vadd.f32 0.0, %v3680
        %v3682 = vpop.f32.mrf.mxu0
        %v3683 = vadd.f32 0.0, %v3682
        %v3684 = vpop.f32.mrf.mxu0
        %v3685 = vadd.f32 0.0, %v3684
        %v3686 = vpop.f32.mrf.mxu0
        %v3687 = vadd.f32 0.0, %v3686
        %3688 = vmatprep.mubr.bf16.mxu0 0
        %3689 = vmatmul.mubr.bf16.gmra.mxu0 %v3528
        %v3690 = vpop.f32.mrf.mxu0
        %v3691 = vadd.f32 0.0, %v3690
        %v3692 = vpop.f32.mrf.mxu0
        %v3693 = vadd.f32 0.0, %v3692
        %v3694 = vpop.f32.mrf.mxu0
        %v3695 = vadd.f32 0.0, %v3694
        %v3696 = vpop.f32.mrf.mxu0
        %v3697 = vadd.f32 0.0, %v3696
        %3698 = vdwg.mxu0
        %v3699 = vadd.f32 %v3500, %v3661
        %v3700 = vadd.f32 %v3501, %v3663
        %v3701 = vadd.f32 %v3502, %v3665
        %v3702 = vadd.f32 %v3503, %v3667
        %v3703 = vadd.f32 %v3504, %v3671
        %v3704 = vadd.f32 %v3505, %v3673
        %v3705 = vadd.f32 %v3506, %v3675
        %v3706 = vadd.f32 %v3507, %v3677
        %v3707 = vadd.f32 %v3508, %v3681
        %v3708 = vadd.f32 %v3509, %v3683
        %v3709 = vadd.f32 %v3510, %v3685
        %v3710 = vadd.f32 %v3511, %v3687
        %v3711 = vadd.f32 %v3512, %v3691
        %v3712 = vadd.f32 %v3513, %v3693
        %v3713 = vadd.f32 %v3514, %v3695
        %v3714 = vadd.f32 %v3515, %v3697
        %v3715 = vld [vmem:[%s3516 + $0x1] sm:$0xff]
        %v3716 = vld [vmem:[%s3516 + $0x11] sm:$0xff]
        %v3717 = vld [vmem:[%s3516 + $0x21] sm:$0xff]
        %v3718 = vld [vmem:[%s3516 + $0x31] sm:$0xff]
        %v3719 = vld [vmem:[%s3516 + $0x41] sm:$0xff]
        %v3720 = vld [vmem:[%s3516 + $0x51] sm:$0xff]
        %v3721 = vld [vmem:[%s3516 + $0x61] sm:$0xff]
        %v3722 = vld [vmem:[%s3516 + $0x71] sm:$0xff]
        %v3723 = vpack.c.bf16 %v3716, %v3715
        %v3724 = vpack.c.bf16 %v3718, %v3717
        %v3725 = vpack.c.bf16 %v3720, %v3719
        %v3726 = vpack.c.bf16 %v3722, %v3721
        %s3727 = scalar_lea.vmem %s4, 2048
        %v3728 = vld [vmem:[%s3727] sm:$0xff]
        %v3729 = vld [vmem:[%s3727 + $0x8] sm:$0xff]
        %v3730 = vld [vmem:[%s3727 + $0x10] sm:$0xff]
        %v3731 = vld [vmem:[%s3727 + $0x18] sm:$0xff]
        %v3732 = vld [vmem:[%s3727 + $0x20] sm:$0xff]
        %v3733 = vld [vmem:[%s3727 + $0x28] sm:$0xff]
        %v3734 = vld [vmem:[%s3727 + $0x30] sm:$0xff]
        %v3735 = vld [vmem:[%s3727 + $0x38] sm:$0xff]
        %v3736 = vld [vmem:[%s3727 + $0x40] sm:$0xff]
        %v3737 = vld [vmem:[%s3727 + $0x48] sm:$0xff]
        %v3738 = vld [vmem:[%s3727 + $0x50] sm:$0xff]
        %v3739 = vld [vmem:[%s3727 + $0x58] sm:$0xff]
        %v3740 = vld [vmem:[%s3727 + $0x60] sm:$0xff]
        %v3741 = vld [vmem:[%s3727 + $0x68] sm:$0xff]
        %v3742 = vld [vmem:[%s3727 + $0x70] sm:$0xff]
        %v3743 = vld [vmem:[%s3727 + $0x78] sm:$0xff]
        %v3760 = vunpack.c.l.b16 %v3728
        %v3761 = vunpack.c.h.b16 %v3728
        %v3762 = vunpack.c.l.b16 %v3729
        %v3763 = vunpack.c.h.b16 %v3729
        %v3764 = vunpack.c.l.b16 %v3730
        %v3765 = vunpack.c.h.b16 %v3730
        %v3766 = vunpack.c.l.b16 %v3731
        %v3767 = vunpack.c.h.b16 %v3731
        %v3768 = vunpack.c.l.b16 %v3732
        %v3769 = vunpack.c.h.b16 %v3732
        %v3770 = vunpack.c.l.b16 %v3733
        %v3771 = vunpack.c.h.b16 %v3733
        %v3772 = vunpack.c.l.b16 %v3734
        %v3773 = vunpack.c.h.b16 %v3734
        %v3774 = vunpack.c.l.b16 %v3735
        %v3775 = vunpack.c.h.b16 %v3735
        %v3776 = vunpack.c.l.b16 %v3736
        %v3777 = vunpack.c.h.b16 %v3736
        %v3778 = vunpack.c.l.b16 %v3737
        %v3779 = vunpack.c.h.b16 %v3737
        %v3780 = vunpack.c.l.b16 %v3738
        %v3781 = vunpack.c.h.b16 %v3738
        %v3782 = vunpack.c.l.b16 %v3739
        %v3783 = vunpack.c.h.b16 %v3739
        %v3784 = vunpack.c.l.b16 %v3740
        %v3785 = vunpack.c.h.b16 %v3740
        %v3786 = vunpack.c.l.b16 %v3741
        %v3787 = vunpack.c.h.b16 %v3741
        %v3788 = vunpack.c.l.b16 %v3742
        %v3789 = vunpack.c.h.b16 %v3742
        %v3790 = vunpack.c.l.b16 %v3743
        %v3791 = vunpack.c.h.b16 %v3743
        %v3792 = vpack.c.b16 %v3762, %v3760
        %v3793 = vpack.c.b16 %v3763, %v3761
        %v3794 = vpack.c.b16 %v3766, %v3764
        %v3795 = vpack.c.b16 %v3767, %v3765
        %v3796 = vpack.c.b16 %v3770, %v3768
        %v3797 = vpack.c.b16 %v3771, %v3769
        %v3798 = vpack.c.b16 %v3774, %v3772
        %v3799 = vpack.c.b16 %v3775, %v3773
        %v3800 = vpack.c.b16 %v3778, %v3776
        %v3801 = vpack.c.b16 %v3779, %v3777
        %v3802 = vpack.c.b16 %v3782, %v3780
        %v3803 = vpack.c.b16 %v3783, %v3781
        %v3804 = vpack.c.b16 %v3786, %v3784
        %v3805 = vpack.c.b16 %v3787, %v3785
        %v3806 = vpack.c.b16 %v3790, %v3788
        %v3807 = vpack.c.b16 %v3791, %v3789
        %3824 = vmatprep.subr.bf16.mxu0 %v3807
        %3825 = vmatpush1.bf16.msra.mxu0 %v3806
        %3826 = vmatprep.subr.bf16.mxu0 %v3805
        %3827 = vmatpush1.bf16.msra.mxu0 %v3804
        %3828 = vmatprep.subr.bf16.mxu0 %v3803
        %3829 = vmatpush1.bf16.msra.mxu0 %v3802
        %3830 = vmatprep.subr.bf16.mxu0 %v3801
        %3831 = vmatpush1.bf16.msra.mxu0 %v3800
        %3832 = vmatprep.subr.bf16.mxu0 %v3799
        %3833 = vmatpush1.bf16.msra.mxu0 %v3798
        %3834 = vmatprep.subr.bf16.mxu0 %v3797
        %3835 = vmatpush1.bf16.msra.mxu0 %v3796
        %3836 = vmatprep.subr.bf16.mxu0 %v3795
        %3837 = vmatpush1.bf16.msra.mxu0 %v3794
        %3838 = vmatprep.subr.bf16.mxu0 %v3793
        %3839 = vmatpush1.bf16.msra.mxu0 %v3792
        %3840 = vmatprep.subr.bf16.mxu0 0
        %3841 = vmatpush2.bf16.msra.mxu0 0
        %3842 = vmatprep.subr.bf16.mxu0 0
        %3843 = vmatpush2.bf16.msra.mxu0 0
        %3844 = vmatprep.subr.bf16.mxu0 0
        %3845 = vmatpush2.bf16.msra.mxu0 0
        %3846 = vmatprep.subr.bf16.mxu0 0
        %3847 = vmatpush2.bf16.msra.mxu0 0
        %3848 = vmatprep.subr.bf16.mxu0 0
        %3849 = vmatpush2.bf16.msra.mxu0 0
        %3850 = vmatprep.subr.bf16.mxu0 0
        %3851 = vmatpush2.bf16.msra.mxu0 0
        %3852 = vmatprep.subr.bf16.mxu0 0
        %3853 = vmatpush2.bf16.msra.mxu0 0
        %3854 = vmatprep.subr.bf16.mxu0 0
        %3855 = vmatpush2.bf16.msra.mxu0 0
        %3856 = vmatprep.mubr.bf16.mxu0 0
        %3857 = vmatmul.mubr.bf16.gmra.mxu0 %v3723
        %v3858 = vpop.f32.mrf.mxu0
        %v3859 = vadd.f32 0.0, %v3858
        %v3860 = vpop.f32.mrf.mxu0
        %v3861 = vadd.f32 0.0, %v3860
        %v3862 = vpop.f32.mrf.mxu0
        %v3863 = vadd.f32 0.0, %v3862
        %v3864 = vpop.f32.mrf.mxu0
        %v3865 = vadd.f32 0.0, %v3864
        %3866 = vmatprep.mubr.bf16.mxu0 0
        %3867 = vmatmul.mubr.bf16.gmra.mxu0 %v3724
        %v3868 = vpop.f32.mrf.mxu0
        %v3869 = vadd.f32 0.0, %v3868
        %v3870 = vpop.f32.mrf.mxu0
        %v3871 = vadd.f32 0.0, %v3870
        %v3872 = vpop.f32.mrf.mxu0
        %v3873 = vadd.f32 0.0, %v3872
        %v3874 = vpop.f32.mrf.mxu0
        %v3875 = vadd.f32 0.0, %v3874
        %3876 = vmatprep.mubr.bf16.mxu0 0
        %3877 = vmatmul.mubr.bf16.gmra.mxu0 %v3725
        %v3878 = vpop.f32.mrf.mxu0
        %v3879 = vadd.f32 0.0, %v3878
        %v3880 = vpop.f32.mrf.mxu0
        %v3881 = vadd.f32 0.0, %v3880
        %v3882 = vpop.f32.mrf.mxu0
        %v3883 = vadd.f32 0.0, %v3882
        %v3884 = vpop.f32.mrf.mxu0
        %v3885 = vadd.f32 0.0, %v3884
        %3886 = vmatprep.mubr.bf16.mxu0 0
        %3887 = vmatmul.mubr.bf16.gmra.mxu0 %v3726
        %v3888 = vpop.f32.mrf.mxu0
        %v3889 = vadd.f32 0.0, %v3888
        %v3890 = vpop.f32.mrf.mxu0
        %v3891 = vadd.f32 0.0, %v3890
        %v3892 = vpop.f32.mrf.mxu0
        %v3893 = vadd.f32 0.0, %v3892
        %v3894 = vpop.f32.mrf.mxu0
        %v3895 = vadd.f32 0.0, %v3894
        %3896 = vdwg.mxu0
        %v3897 = vadd.f32 %v3699, %v3859
        %v3898 = vadd.f32 %v3700, %v3861
        %v3899 = vadd.f32 %v3701, %v3863
        %v3900 = vadd.f32 %v3702, %v3865
        %v3901 = vadd.f32 %v3703, %v3869
        %v3902 = vadd.f32 %v3704, %v3871
        %v3903 = vadd.f32 %v3705, %v3873
        %v3904 = vadd.f32 %v3706, %v3875
        %v3905 = vadd.f32 %v3707, %v3879
        %v3906 = vadd.f32 %v3708, %v3881
        %v3907 = vadd.f32 %v3709, %v3883
        %v3908 = vadd.f32 %v3710, %v3885
        %v3909 = vadd.f32 %v3711, %v3889
        %v3910 = vadd.f32 %v3712, %v3891
        %v3911 = vadd.f32 %v3713, %v3893
        %v3912 = vadd.f32 %v3714, %v3895
        %v3913 = vld [vmem:[%s3516 + $0x2] sm:$0xff]
        %v3914 = vld [vmem:[%s3516 + $0x12] sm:$0xff]
        %v3915 = vld [vmem:[%s3516 + $0x22] sm:$0xff]
        %v3916 = vld [vmem:[%s3516 + $0x32] sm:$0xff]
        %v3917 = vld [vmem:[%s3516 + $0x42] sm:$0xff]
        %v3918 = vld [vmem:[%s3516 + $0x52] sm:$0xff]
        %v3919 = vld [vmem:[%s3516 + $0x62] sm:$0xff]
        %v3920 = vld [vmem:[%s3516 + $0x72] sm:$0xff]
        %v3921 = vpack.c.bf16 %v3914, %v3913
        %v3922 = vpack.c.bf16 %v3916, %v3915
        %v3923 = vpack.c.bf16 %v3918, %v3917
        %v3924 = vpack.c.bf16 %v3920, %v3919
        %s3925 = scalar_lea.vmem %s4, 2176
        %v3926 = vld [vmem:[%s3925] sm:$0xff]
        %v3927 = vld [vmem:[%s3925 + $0x8] sm:$0xff]
        %v3928 = vld [vmem:[%s3925 + $0x10] sm:$0xff]
        %v3929 = vld [vmem:[%s3925 + $0x18] sm:$0xff]
        %v3930 = vld [vmem:[%s3925 + $0x20] sm:$0xff]
        %v3931 = vld [vmem:[%s3925 + $0x28] sm:$0xff]
        %v3932 = vld [vmem:[%s3925 + $0x30] sm:$0xff]
        %v3933 = vld [vmem:[%s3925 + $0x38] sm:$0xff]
        %v3934 = vld [vmem:[%s3925 + $0x40] sm:$0xff]
        %v3935 = vld [vmem:[%s3925 + $0x48] sm:$0xff]
        %v3936 = vld [vmem:[%s3925 + $0x50] sm:$0xff]
        %v3937 = vld [vmem:[%s3925 + $0x58] sm:$0xff]
        %v3938 = vld [vmem:[%s3925 + $0x60] sm:$0xff]
        %v3939 = vld [vmem:[%s3925 + $0x68] sm:$0xff]
        %v3940 = vld [vmem:[%s3925 + $0x70] sm:$0xff]
        %v3941 = vld [vmem:[%s3925 + $0x78] sm:$0xff]
        %v3958 = vunpack.c.l.b16 %v3926
        %v3959 = vunpack.c.h.b16 %v3926
        %v3960 = vunpack.c.l.b16 %v3927
        %v3961 = vunpack.c.h.b16 %v3927
        %v3962 = vunpack.c.l.b16 %v3928
        %v3963 = vunpack.c.h.b16 %v3928
        %v3964 = vunpack.c.l.b16 %v3929
        %v3965 = vunpack.c.h.b16 %v3929
        %v3966 = vunpack.c.l.b16 %v3930
        %v3967 = vunpack.c.h.b16 %v3930
        %v3968 = vunpack.c.l.b16 %v3931
        %v3969 = vunpack.c.h.b16 %v3931
        %v3970 = vunpack.c.l.b16 %v3932
        %v3971 = vunpack.c.h.b16 %v3932
        %v3972 = vunpack.c.l.b16 %v3933
        %v3973 = vunpack.c.h.b16 %v3933
        %v3974 = vunpack.c.l.b16 %v3934
        %v3975 = vunpack.c.h.b16 %v3934
        %v3976 = vunpack.c.l.b16 %v3935
        %v3977 = vunpack.c.h.b16 %v3935
        %v3978 = vunpack.c.l.b16 %v3936
        %v3979 = vunpack.c.h.b16 %v3936
        %v3980 = vunpack.c.l.b16 %v3937
        %v3981 = vunpack.c.h.b16 %v3937
        %v3982 = vunpack.c.l.b16 %v3938
        %v3983 = vunpack.c.h.b16 %v3938
        %v3984 = vunpack.c.l.b16 %v3939
        %v3985 = vunpack.c.h.b16 %v3939
        %v3986 = vunpack.c.l.b16 %v3940
        %v3987 = vunpack.c.h.b16 %v3940
        %v3988 = vunpack.c.l.b16 %v3941
        %v3989 = vunpack.c.h.b16 %v3941
        %v3990 = vpack.c.b16 %v3960, %v3958
        %v3991 = vpack.c.b16 %v3961, %v3959
        %v3992 = vpack.c.b16 %v3964, %v3962
        %v3993 = vpack.c.b16 %v3965, %v3963
        %v3994 = vpack.c.b16 %v3968, %v3966
        %v3995 = vpack.c.b16 %v3969, %v3967
        %v3996 = vpack.c.b16 %v3972, %v3970
        %v3997 = vpack.c.b16 %v3973, %v3971
        %v3998 = vpack.c.b16 %v3976, %v3974
        %v3999 = vpack.c.b16 %v3977, %v3975
        %v4000 = vpack.c.b16 %v3980, %v3978
        %v4001 = vpack.c.b16 %v3981, %v3979
        %v4002 = vpack.c.b16 %v3984, %v3982
        %v4003 = vpack.c.b16 %v3985, %v3983
        %v4004 = vpack.c.b16 %v3988, %v3986
        %v4005 = vpack.c.b16 %v3989, %v3987
        %4022 = vmatprep.subr.bf16.mxu0 %v4005
        %4023 = vmatpush1.bf16.msra.mxu0 %v4004
        %4024 = vmatprep.subr.bf16.mxu0 %v4003
        %4025 = vmatpush1.bf16.msra.mxu0 %v4002
        %4026 = vmatprep.subr.bf16.mxu0 %v4001
        %4027 = vmatpush1.bf16.msra.mxu0 %v4000
        %4028 = vmatprep.subr.bf16.mxu0 %v3999
        %4029 = vmatpush1.bf16.msra.mxu0 %v3998
        %4030 = vmatprep.subr.bf16.mxu0 %v3997
        %4031 = vmatpush1.bf16.msra.mxu0 %v3996
        %4032 = vmatprep.subr.bf16.mxu0 %v3995
        %4033 = vmatpush1.bf16.msra.mxu0 %v3994
        %4034 = vmatprep.subr.bf16.mxu0 %v3993
        %4035 = vmatpush1.bf16.msra.mxu0 %v3992
        %4036 = vmatprep.subr.bf16.mxu0 %v3991
        %4037 = vmatpush1.bf16.msra.mxu0 %v3990
        %4038 = vmatprep.subr.bf16.mxu0 0
        %4039 = vmatpush2.bf16.msra.mxu0 0
        %4040 = vmatprep.subr.bf16.mxu0 0
        %4041 = vmatpush2.bf16.msra.mxu0 0
        %4042 = vmatprep.subr.bf16.mxu0 0
        %4043 = vmatpush2.bf16.msra.mxu0 0
        %4044 = vmatprep.subr.bf16.mxu0 0
        %4045 = vmatpush2.bf16.msra.mxu0 0
        %4046 = vmatprep.subr.bf16.mxu0 0
        %4047 = vmatpush2.bf16.msra.mxu0 0
        %4048 = vmatprep.subr.bf16.mxu0 0
        %4049 = vmatpush2.bf16.msra.mxu0 0
        %4050 = vmatprep.subr.bf16.mxu0 0
        %4051 = vmatpush2.bf16.msra.mxu0 0
        %4052 = vmatprep.subr.bf16.mxu0 0
        %4053 = vmatpush2.bf16.msra.mxu0 0
        %4054 = vmatprep.mubr.bf16.mxu0 0
        %4055 = vmatmul.mubr.bf16.gmra.mxu0 %v3921
        %v4056 = vpop.f32.mrf.mxu0
        %v4057 = vadd.f32 0.0, %v4056
        %v4058 = vpop.f32.mrf.mxu0
        %v4059 = vadd.f32 0.0, %v4058
        %v4060 = vpop.f32.mrf.mxu0
        %v4061 = vadd.f32 0.0, %v4060
        %v4062 = vpop.f32.mrf.mxu0
        %v4063 = vadd.f32 0.0, %v4062
        %4064 = vmatprep.mubr.bf16.mxu0 0
        %4065 = vmatmul.mubr.bf16.gmra.mxu0 %v3922
        %v4066 = vpop.f32.mrf.mxu0
        %v4067 = vadd.f32 0.0, %v4066
        %v4068 = vpop.f32.mrf.mxu0
        %v4069 = vadd.f32 0.0, %v4068
        %v4070 = vpop.f32.mrf.mxu0
        %v4071 = vadd.f32 0.0, %v4070
        %v4072 = vpop.f32.mrf.mxu0
        %v4073 = vadd.f32 0.0, %v4072
        %4074 = vmatprep.mubr.bf16.mxu0 0
        %4075 = vmatmul.mubr.bf16.gmra.mxu0 %v3923
        %v4076 = vpop.f32.mrf.mxu0
        %v4077 = vadd.f32 0.0, %v4076
        %v4078 = vpop.f32.mrf.mxu0
        %v4079 = vadd.f32 0.0, %v4078
        %v4080 = vpop.f32.mrf.mxu0
        %v4081 = vadd.f32 0.0, %v4080
        %v4082 = vpop.f32.mrf.mxu0
        %v4083 = vadd.f32 0.0, %v4082
        %4084 = vmatprep.mubr.bf16.mxu0 0
        %4085 = vmatmul.mubr.bf16.gmra.mxu0 %v3924
        %v4086 = vpop.f32.mrf.mxu0
        %v4087 = vadd.f32 0.0, %v4086
        %v4088 = vpop.f32.mrf.mxu0
        %v4089 = vadd.f32 0.0, %v4088
        %v4090 = vpop.f32.mrf.mxu0
        %v4091 = vadd.f32 0.0, %v4090
        %v4092 = vpop.f32.mrf.mxu0
        %v4093 = vadd.f32 0.0, %v4092
        %4094 = vdwg.mxu0
        %v4095 = vadd.f32 %v3897, %v4057
        %v4096 = vadd.f32 %v3898, %v4059
        %v4097 = vadd.f32 %v3899, %v4061
        %v4098 = vadd.f32 %v3900, %v4063
        %v4099 = vadd.f32 %v3901, %v4067
        %v4100 = vadd.f32 %v3902, %v4069
        %v4101 = vadd.f32 %v3903, %v4071
        %v4102 = vadd.f32 %v3904, %v4073
        %v4103 = vadd.f32 %v3905, %v4077
        %v4104 = vadd.f32 %v3906, %v4079
        %v4105 = vadd.f32 %v3907, %v4081
        %v4106 = vadd.f32 %v3908, %v4083
        %v4107 = vadd.f32 %v3909, %v4087
        %v4108 = vadd.f32 %v3910, %v4089
        %v4109 = vadd.f32 %v3911, %v4091
        %v4110 = vadd.f32 %v3912, %v4093
        %s4111 = scalar_lea.vmem [#allocation2], 320
        %v4112 = vld [vmem:[%s4111] sm:$0xff]
        %v4113 = vld [vmem:[%s4111 + $0x10] sm:$0xff]
        %v4114 = vld [vmem:[%s4111 + $0x20] sm:$0xff]
        %v4115 = vld [vmem:[%s4111 + $0x30] sm:$0xff]
        %v4116 = vld [vmem:[%s4111 + $0x40] sm:$0xff]
        %v4117 = vld [vmem:[%s4111 + $0x50] sm:$0xff]
        %v4118 = vld [vmem:[%s4111 + $0x60] sm:$0xff]
        %v4119 = vld [vmem:[%s4111 + $0x70] sm:$0xff]
        %v4120 = vpack.c.bf16 %v4113, %v4112
        %v4121 = vpack.c.bf16 %v4115, %v4114
        %v4122 = vpack.c.bf16 %v4117, %v4116
        %v4123 = vpack.c.bf16 %v4119, %v4118
        %s4124 = scalar_lea.vmem %s4, 2304
        %v4125 = vld [vmem:[%s4124] sm:$0xff]
        %v4126 = vld [vmem:[%s4124 + $0x8] sm:$0xff]
        %v4127 = vld [vmem:[%s4124 + $0x10] sm:$0xff]
        %v4128 = vld [vmem:[%s4124 + $0x18] sm:$0xff]
        %v4129 = vld [vmem:[%s4124 + $0x20] sm:$0xff]
        %v4130 = vld [vmem:[%s4124 + $0x28] sm:$0xff]
        %v4131 = vld [vmem:[%s4124 + $0x30] sm:$0xff]
        %v4132 = vld [vmem:[%s4124 + $0x38] sm:$0xff]
        %v4133 = vld [vmem:[%s4124 + $0x40] sm:$0xff]
        %v4134 = vld [vmem:[%s4124 + $0x48] sm:$0xff]
        %v4135 = vld [vmem:[%s4124 + $0x50] sm:$0xff]
        %v4136 = vld [vmem:[%s4124 + $0x58] sm:$0xff]
        %v4137 = vld [vmem:[%s4124 + $0x60] sm:$0xff]
        %v4138 = vld [vmem:[%s4124 + $0x68] sm:$0xff]
        %v4139 = vld [vmem:[%s4124 + $0x70] sm:$0xff]
        %v4140 = vld [vmem:[%s4124 + $0x78] sm:$0xff]
        %v4157 = vunpack.c.l.b16 %v4125
        %v4158 = vunpack.c.h.b16 %v4125
        %v4159 = vunpack.c.l.b16 %v4126
        %v4160 = vunpack.c.h.b16 %v4126
        %v4161 = vunpack.c.l.b16 %v4127
        %v4162 = vunpack.c.h.b16 %v4127
        %v4163 = vunpack.c.l.b16 %v4128
        %v4164 = vunpack.c.h.b16 %v4128
        %v4165 = vunpack.c.l.b16 %v4129
        %v4166 = vunpack.c.h.b16 %v4129
        %v4167 = vunpack.c.l.b16 %v4130
        %v4168 = vunpack.c.h.b16 %v4130
        %v4169 = vunpack.c.l.b16 %v4131
        %v4170 = vunpack.c.h.b16 %v4131
        %v4171 = vunpack.c.l.b16 %v4132
        %v4172 = vunpack.c.h.b16 %v4132
        %v4173 = vunpack.c.l.b16 %v4133
        %v4174 = vunpack.c.h.b16 %v4133
        %v4175 = vunpack.c.l.b16 %v4134
        %v4176 = vunpack.c.h.b16 %v4134
        %v4177 = vunpack.c.l.b16 %v4135
        %v4178 = vunpack.c.h.b16 %v4135
        %v4179 = vunpack.c.l.b16 %v4136
        %v4180 = vunpack.c.h.b16 %v4136
        %v4181 = vunpack.c.l.b16 %v4137
        %v4182 = vunpack.c.h.b16 %v4137
        %v4183 = vunpack.c.l.b16 %v4138
        %v4184 = vunpack.c.h.b16 %v4138
        %v4185 = vunpack.c.l.b16 %v4139
        %v4186 = vunpack.c.h.b16 %v4139
        %v4187 = vunpack.c.l.b16 %v4140
        %v4188 = vunpack.c.h.b16 %v4140
        %v4189 = vpack.c.b16 %v4159, %v4157
        %v4190 = vpack.c.b16 %v4160, %v4158
        %v4191 = vpack.c.b16 %v4163, %v4161
        %v4192 = vpack.c.b16 %v4164, %v4162
        %v4193 = vpack.c.b16 %v4167, %v4165
        %v4194 = vpack.c.b16 %v4168, %v4166
        %v4195 = vpack.c.b16 %v4171, %v4169
        %v4196 = vpack.c.b16 %v4172, %v4170
        %v4197 = vpack.c.b16 %v4175, %v4173
        %v4198 = vpack.c.b16 %v4176, %v4174
        %v4199 = vpack.c.b16 %v4179, %v4177
        %v4200 = vpack.c.b16 %v4180, %v4178
        %v4201 = vpack.c.b16 %v4183, %v4181
        %v4202 = vpack.c.b16 %v4184, %v4182
        %v4203 = vpack.c.b16 %v4187, %v4185
        %v4204 = vpack.c.b16 %v4188, %v4186
        %4221 = vmatprep.subr.bf16.mxu0 %v4204
        %4222 = vmatpush1.bf16.msra.mxu0 %v4203
        %4223 = vmatprep.subr.bf16.mxu0 %v4202
        %4224 = vmatpush1.bf16.msra.mxu0 %v4201
        %4225 = vmatprep.subr.bf16.mxu0 %v4200
        %4226 = vmatpush1.bf16.msra.mxu0 %v4199
        %4227 = vmatprep.subr.bf16.mxu0 %v4198
        %4228 = vmatpush1.bf16.msra.mxu0 %v4197
        %4229 = vmatprep.subr.bf16.mxu0 %v4196
        %4230 = vmatpush1.bf16.msra.mxu0 %v4195
        %4231 = vmatprep.subr.bf16.mxu0 %v4194
        %4232 = vmatpush1.bf16.msra.mxu0 %v4193
        %4233 = vmatprep.subr.bf16.mxu0 %v4192
        %4234 = vmatpush1.bf16.msra.mxu0 %v4191
        %4235 = vmatprep.subr.bf16.mxu0 %v4190
        %4236 = vmatpush1.bf16.msra.mxu0 %v4189
        %4237 = vmatprep.subr.bf16.mxu0 0
        %4238 = vmatpush2.bf16.msra.mxu0 0
        %4239 = vmatprep.subr.bf16.mxu0 0
        %4240 = vmatpush2.bf16.msra.mxu0 0
        %4241 = vmatprep.subr.bf16.mxu0 0
        %4242 = vmatpush2.bf16.msra.mxu0 0
        %4243 = vmatprep.subr.bf16.mxu0 0
        %4244 = vmatpush2.bf16.msra.mxu0 0
        %4245 = vmatprep.subr.bf16.mxu0 0
        %4246 = vmatpush2.bf16.msra.mxu0 0
        %4247 = vmatprep.subr.bf16.mxu0 0
        %4248 = vmatpush2.bf16.msra.mxu0 0
        %4249 = vmatprep.subr.bf16.mxu0 0
        %4250 = vmatpush2.bf16.msra.mxu0 0
        %4251 = vmatprep.subr.bf16.mxu0 0
        %4252 = vmatpush2.bf16.msra.mxu0 0
        %4253 = vmatprep.mubr.bf16.mxu0 0
        %4254 = vmatmul.mubr.bf16.gmra.mxu0 %v4120
        %v4255 = vpop.f32.mrf.mxu0
        %v4256 = vadd.f32 0.0, %v4255
        %v4257 = vpop.f32.mrf.mxu0
        %v4258 = vadd.f32 0.0, %v4257
        %v4259 = vpop.f32.mrf.mxu0
        %v4260 = vadd.f32 0.0, %v4259
        %v4261 = vpop.f32.mrf.mxu0
        %v4262 = vadd.f32 0.0, %v4261
        %4263 = vmatprep.mubr.bf16.mxu0 0
        %4264 = vmatmul.mubr.bf16.gmra.mxu0 %v4121
        %v4265 = vpop.f32.mrf.mxu0
        %v4266 = vadd.f32 0.0, %v4265
        %v4267 = vpop.f32.mrf.mxu0
        %v4268 = vadd.f32 0.0, %v4267
        %v4269 = vpop.f32.mrf.mxu0
        %v4270 = vadd.f32 0.0, %v4269
        %v4271 = vpop.f32.mrf.mxu0
        %v4272 = vadd.f32 0.0, %v4271
        %4273 = vmatprep.mubr.bf16.mxu0 0
        %4274 = vmatmul.mubr.bf16.gmra.mxu0 %v4122
        %v4275 = vpop.f32.mrf.mxu0
        %v4276 = vadd.f32 0.0, %v4275
        %v4277 = vpop.f32.mrf.mxu0
        %v4278 = vadd.f32 0.0, %v4277
        %v4279 = vpop.f32.mrf.mxu0
        %v4280 = vadd.f32 0.0, %v4279
        %v4281 = vpop.f32.mrf.mxu0
        %v4282 = vadd.f32 0.0, %v4281
        %4283 = vmatprep.mubr.bf16.mxu0 0
        %4284 = vmatmul.mubr.bf16.gmra.mxu0 %v4123
        %v4285 = vpop.f32.mrf.mxu0
        %v4286 = vadd.f32 0.0, %v4285
        %v4287 = vpop.f32.mrf.mxu0
        %v4288 = vadd.f32 0.0, %v4287
        %v4289 = vpop.f32.mrf.mxu0
        %v4290 = vadd.f32 0.0, %v4289
        %v4291 = vpop.f32.mrf.mxu0
        %v4292 = vadd.f32 0.0, %v4291
        %4293 = vdwg.mxu0
        %v4294 = vadd.f32 %v4095, %v4256
        %v4295 = vadd.f32 %v4096, %v4258
        %v4296 = vadd.f32 %v4097, %v4260
        %v4297 = vadd.f32 %v4098, %v4262
        %v4298 = vadd.f32 %v4099, %v4266
        %v4299 = vadd.f32 %v4100, %v4268
        %v4300 = vadd.f32 %v4101, %v4270
        %v4301 = vadd.f32 %v4102, %v4272
        %v4302 = vadd.f32 %v4103, %v4276
        %v4303 = vadd.f32 %v4104, %v4278
        %v4304 = vadd.f32 %v4105, %v4280
        %v4305 = vadd.f32 %v4106, %v4282
        %v4306 = vadd.f32 %v4107, %v4286
        %v4307 = vadd.f32 %v4108, %v4288
        %v4308 = vadd.f32 %v4109, %v4290
        %v4309 = vadd.f32 %v4110, %v4292
        %v4310 = vld [vmem:[%s4111 + $0x1] sm:$0xff]
        %v4311 = vld [vmem:[%s4111 + $0x11] sm:$0xff]
        %v4312 = vld [vmem:[%s4111 + $0x21] sm:$0xff]
        %v4313 = vld [vmem:[%s4111 + $0x31] sm:$0xff]
        %v4314 = vld [vmem:[%s4111 + $0x41] sm:$0xff]
        %v4315 = vld [vmem:[%s4111 + $0x51] sm:$0xff]
        %v4316 = vld [vmem:[%s4111 + $0x61] sm:$0xff]
        %v4317 = vld [vmem:[%s4111 + $0x71] sm:$0xff]
        %v4318 = vpack.c.bf16 %v4311, %v4310
        %v4319 = vpack.c.bf16 %v4313, %v4312
        %v4320 = vpack.c.bf16 %v4315, %v4314
        %v4321 = vpack.c.bf16 %v4317, %v4316
        %s4322 = scalar_lea.vmem %s4, 2432
        %v4323 = vld [vmem:[%s4322] sm:$0xff]
        %v4324 = vld [vmem:[%s4322 + $0x8] sm:$0xff]
        %v4325 = vld [vmem:[%s4322 + $0x10] sm:$0xff]
        %v4326 = vld [vmem:[%s4322 + $0x18] sm:$0xff]
        %v4327 = vld [vmem:[%s4322 + $0x20] sm:$0xff]
        %v4328 = vld [vmem:[%s4322 + $0x28] sm:$0xff]
        %v4329 = vld [vmem:[%s4322 + $0x30] sm:$0xff]
        %v4330 = vld [vmem:[%s4322 + $0x38] sm:$0xff]
        %v4331 = vld [vmem:[%s4322 + $0x40] sm:$0xff]
        %v4332 = vld [vmem:[%s4322 + $0x48] sm:$0xff]
        %v4333 = vld [vmem:[%s4322 + $0x50] sm:$0xff]
        %v4334 = vld [vmem:[%s4322 + $0x58] sm:$0xff]
        %v4335 = vld [vmem:[%s4322 + $0x60] sm:$0xff]
        %v4336 = vld [vmem:[%s4322 + $0x68] sm:$0xff]
        %v4337 = vld [vmem:[%s4322 + $0x70] sm:$0xff]
        %v4338 = vld [vmem:[%s4322 + $0x78] sm:$0xff]
        %v4355 = vunpack.c.l.b16 %v4323
        %v4356 = vunpack.c.h.b16 %v4323
        %v4357 = vunpack.c.l.b16 %v4324
        %v4358 = vunpack.c.h.b16 %v4324
        %v4359 = vunpack.c.l.b16 %v4325
        %v4360 = vunpack.c.h.b16 %v4325
        %v4361 = vunpack.c.l.b16 %v4326
        %v4362 = vunpack.c.h.b16 %v4326
        %v4363 = vunpack.c.l.b16 %v4327
        %v4364 = vunpack.c.h.b16 %v4327
        %v4365 = vunpack.c.l.b16 %v4328
        %v4366 = vunpack.c.h.b16 %v4328
        %v4367 = vunpack.c.l.b16 %v4329
        %v4368 = vunpack.c.h.b16 %v4329
        %v4369 = vunpack.c.l.b16 %v4330
        %v4370 = vunpack.c.h.b16 %v4330
        %v4371 = vunpack.c.l.b16 %v4331
        %v4372 = vunpack.c.h.b16 %v4331
        %v4373 = vunpack.c.l.b16 %v4332
        %v4374 = vunpack.c.h.b16 %v4332
        %v4375 = vunpack.c.l.b16 %v4333
        %v4376 = vunpack.c.h.b16 %v4333
        %v4377 = vunpack.c.l.b16 %v4334
        %v4378 = vunpack.c.h.b16 %v4334
        %v4379 = vunpack.c.l.b16 %v4335
        %v4380 = vunpack.c.h.b16 %v4335
        %v4381 = vunpack.c.l.b16 %v4336
        %v4382 = vunpack.c.h.b16 %v4336
        %v4383 = vunpack.c.l.b16 %v4337
        %v4384 = vunpack.c.h.b16 %v4337
        %v4385 = vunpack.c.l.b16 %v4338
        %v4386 = vunpack.c.h.b16 %v4338
        %v4387 = vpack.c.b16 %v4357, %v4355
        %v4388 = vpack.c.b16 %v4358, %v4356
        %v4389 = vpack.c.b16 %v4361, %v4359
        %v4390 = vpack.c.b16 %v4362, %v4360
        %v4391 = vpack.c.b16 %v4365, %v4363
        %v4392 = vpack.c.b16 %v4366, %v4364
        %v4393 = vpack.c.b16 %v4369, %v4367
        %v4394 = vpack.c.b16 %v4370, %v4368
        %v4395 = vpack.c.b16 %v4373, %v4371
        %v4396 = vpack.c.b16 %v4374, %v4372
        %v4397 = vpack.c.b16 %v4377, %v4375
        %v4398 = vpack.c.b16 %v4378, %v4376
        %v4399 = vpack.c.b16 %v4381, %v4379
        %v4400 = vpack.c.b16 %v4382, %v4380
        %v4401 = vpack.c.b16 %v4385, %v4383
        %v4402 = vpack.c.b16 %v4386, %v4384
        %4419 = vmatprep.subr.bf16.mxu0 %v4402
        %4420 = vmatpush1.bf16.msra.mxu0 %v4401
        %4421 = vmatprep.subr.bf16.mxu0 %v4400
        %4422 = vmatpush1.bf16.msra.mxu0 %v4399
        %4423 = vmatprep.subr.bf16.mxu0 %v4398
        %4424 = vmatpush1.bf16.msra.mxu0 %v4397
        %4425 = vmatprep.subr.bf16.mxu0 %v4396
        %4426 = vmatpush1.bf16.msra.mxu0 %v4395
        %4427 = vmatprep.subr.bf16.mxu0 %v4394
        %4428 = vmatpush1.bf16.msra.mxu0 %v4393
        %4429 = vmatprep.subr.bf16.mxu0 %v4392
        %4430 = vmatpush1.bf16.msra.mxu0 %v4391
        %4431 = vmatprep.subr.bf16.mxu0 %v4390
        %4432 = vmatpush1.bf16.msra.mxu0 %v4389
        %4433 = vmatprep.subr.bf16.mxu0 %v4388
        %4434 = vmatpush1.bf16.msra.mxu0 %v4387
        %4435 = vmatprep.subr.bf16.mxu0 0
        %4436 = vmatpush2.bf16.msra.mxu0 0
        %4437 = vmatprep.subr.bf16.mxu0 0
        %4438 = vmatpush2.bf16.msra.mxu0 0
        %4439 = vmatprep.subr.bf16.mxu0 0
        %4440 = vmatpush2.bf16.msra.mxu0 0
        %4441 = vmatprep.subr.bf16.mxu0 0
        %4442 = vmatpush2.bf16.msra.mxu0 0
        %4443 = vmatprep.subr.bf16.mxu0 0
        %4444 = vmatpush2.bf16.msra.mxu0 0
        %4445 = vmatprep.subr.bf16.mxu0 0
        %4446 = vmatpush2.bf16.msra.mxu0 0
        %4447 = vmatprep.subr.bf16.mxu0 0
        %4448 = vmatpush2.bf16.msra.mxu0 0
        %4449 = vmatprep.subr.bf16.mxu0 0
        %4450 = vmatpush2.bf16.msra.mxu0 0
        %4451 = vmatprep.mubr.bf16.mxu0 0
        %4452 = vmatmul.mubr.bf16.gmra.mxu0 %v4318
        %v4453 = vpop.f32.mrf.mxu0
        %v4454 = vadd.f32 0.0, %v4453
        %v4455 = vpop.f32.mrf.mxu0
        %v4456 = vadd.f32 0.0, %v4455
        %v4457 = vpop.f32.mrf.mxu0
        %v4458 = vadd.f32 0.0, %v4457
        %v4459 = vpop.f32.mrf.mxu0
        %v4460 = vadd.f32 0.0, %v4459
        %4461 = vmatprep.mubr.bf16.mxu0 0
        %4462 = vmatmul.mubr.bf16.gmra.mxu0 %v4319
        %v4463 = vpop.f32.mrf.mxu0
        %v4464 = vadd.f32 0.0, %v4463
        %v4465 = vpop.f32.mrf.mxu0
        %v4466 = vadd.f32 0.0, %v4465
        %v4467 = vpop.f32.mrf.mxu0
        %v4468 = vadd.f32 0.0, %v4467
        %v4469 = vpop.f32.mrf.mxu0
        %v4470 = vadd.f32 0.0, %v4469
        %4471 = vmatprep.mubr.bf16.mxu0 0
        %4472 = vmatmul.mubr.bf16.gmra.mxu0 %v4320
        %v4473 = vpop.f32.mrf.mxu0
        %v4474 = vadd.f32 0.0, %v4473
        %v4475 = vpop.f32.mrf.mxu0
        %v4476 = vadd.f32 0.0, %v4475
        %v4477 = vpop.f32.mrf.mxu0
        %v4478 = vadd.f32 0.0, %v4477
        %v4479 = vpop.f32.mrf.mxu0
        %v4480 = vadd.f32 0.0, %v4479
        %4481 = vmatprep.mubr.bf16.mxu0 0
        %4482 = vmatmul.mubr.bf16.gmra.mxu0 %v4321
        %v4483 = vpop.f32.mrf.mxu0
        %v4484 = vadd.f32 0.0, %v4483
        %v4485 = vpop.f32.mrf.mxu0
        %v4486 = vadd.f32 0.0, %v4485
        %v4487 = vpop.f32.mrf.mxu0
        %v4488 = vadd.f32 0.0, %v4487
        %v4489 = vpop.f32.mrf.mxu0
        %v4490 = vadd.f32 0.0, %v4489
        %4491 = vdwg.mxu0
        %v4492 = vadd.f32 %v4294, %v4454
        %v4493 = vadd.f32 %v4295, %v4456
        %v4494 = vadd.f32 %v4296, %v4458
        %v4495 = vadd.f32 %v4297, %v4460
        %v4496 = vadd.f32 %v4298, %v4464
        %v4497 = vadd.f32 %v4299, %v4466
        %v4498 = vadd.f32 %v4300, %v4468
        %v4499 = vadd.f32 %v4301, %v4470
        %v4500 = vadd.f32 %v4302, %v4474
        %v4501 = vadd.f32 %v4303, %v4476
        %v4502 = vadd.f32 %v4304, %v4478
        %v4503 = vadd.f32 %v4305, %v4480
        %v4504 = vadd.f32 %v4306, %v4484
        %v4505 = vadd.f32 %v4307, %v4486
        %v4506 = vadd.f32 %v4308, %v4488
        %v4507 = vadd.f32 %v4309, %v4490
        %v4508 = vld [vmem:[%s4111 + $0x2] sm:$0xff]
        %v4509 = vld [vmem:[%s4111 + $0x12] sm:$0xff]
        %v4510 = vld [vmem:[%s4111 + $0x22] sm:$0xff]
        %v4511 = vld [vmem:[%s4111 + $0x32] sm:$0xff]
        %v4512 = vld [vmem:[%s4111 + $0x42] sm:$0xff]
        %v4513 = vld [vmem:[%s4111 + $0x52] sm:$0xff]
        %v4514 = vld [vmem:[%s4111 + $0x62] sm:$0xff]
        %v4515 = vld [vmem:[%s4111 + $0x72] sm:$0xff]
        %v4516 = vpack.c.bf16 %v4509, %v4508
        %v4517 = vpack.c.bf16 %v4511, %v4510
        %v4518 = vpack.c.bf16 %v4513, %v4512
        %v4519 = vpack.c.bf16 %v4515, %v4514
        %s4520 = scalar_lea.vmem %s4, 2560
        %v4521 = vld [vmem:[%s4520] sm:$0xff]
        %v4522 = vld [vmem:[%s4520 + $0x8] sm:$0xff]
        %v4523 = vld [vmem:[%s4520 + $0x10] sm:$0xff]
        %v4524 = vld [vmem:[%s4520 + $0x18] sm:$0xff]
        %v4525 = vld [vmem:[%s4520 + $0x20] sm:$0xff]
        %v4526 = vld [vmem:[%s4520 + $0x28] sm:$0xff]
        %v4527 = vld [vmem:[%s4520 + $0x30] sm:$0xff]
        %v4528 = vld [vmem:[%s4520 + $0x38] sm:$0xff]
        %v4529 = vld [vmem:[%s4520 + $0x40] sm:$0xff]
        %v4530 = vld [vmem:[%s4520 + $0x48] sm:$0xff]
        %v4531 = vld [vmem:[%s4520 + $0x50] sm:$0xff]
        %v4532 = vld [vmem:[%s4520 + $0x58] sm:$0xff]
        %v4533 = vld [vmem:[%s4520 + $0x60] sm:$0xff]
        %v4534 = vld [vmem:[%s4520 + $0x68] sm:$0xff]
        %v4535 = vld [vmem:[%s4520 + $0x70] sm:$0xff]
        %v4536 = vld [vmem:[%s4520 + $0x78] sm:$0xff]
        %v4553 = vunpack.c.l.b16 %v4521
        %v4554 = vunpack.c.h.b16 %v4521
        %v4555 = vunpack.c.l.b16 %v4522
        %v4556 = vunpack.c.h.b16 %v4522
        %v4557 = vunpack.c.l.b16 %v4523
        %v4558 = vunpack.c.h.b16 %v4523
        %v4559 = vunpack.c.l.b16 %v4524
        %v4560 = vunpack.c.h.b16 %v4524
        %v4561 = vunpack.c.l.b16 %v4525
        %v4562 = vunpack.c.h.b16 %v4525
        %v4563 = vunpack.c.l.b16 %v4526
        %v4564 = vunpack.c.h.b16 %v4526
        %v4565 = vunpack.c.l.b16 %v4527
        %v4566 = vunpack.c.h.b16 %v4527
        %v4567 = vunpack.c.l.b16 %v4528
        %v4568 = vunpack.c.h.b16 %v4528
        %v4569 = vunpack.c.l.b16 %v4529
        %v4570 = vunpack.c.h.b16 %v4529
        %v4571 = vunpack.c.l.b16 %v4530
        %v4572 = vunpack.c.h.b16 %v4530
        %v4573 = vunpack.c.l.b16 %v4531
        %v4574 = vunpack.c.h.b16 %v4531
        %v4575 = vunpack.c.l.b16 %v4532
        %v4576 = vunpack.c.h.b16 %v4532
        %v4577 = vunpack.c.l.b16 %v4533
        %v4578 = vunpack.c.h.b16 %v4533
        %v4579 = vunpack.c.l.b16 %v4534
        %v4580 = vunpack.c.h.b16 %v4534
        %v4581 = vunpack.c.l.b16 %v4535
        %v4582 = vunpack.c.h.b16 %v4535
        %v4583 = vunpack.c.l.b16 %v4536
        %v4584 = vunpack.c.h.b16 %v4536
        %v4585 = vpack.c.b16 %v4555, %v4553
        %v4586 = vpack.c.b16 %v4556, %v4554
        %v4587 = vpack.c.b16 %v4559, %v4557
        %v4588 = vpack.c.b16 %v4560, %v4558
        %v4589 = vpack.c.b16 %v4563, %v4561
        %v4590 = vpack.c.b16 %v4564, %v4562
        %v4591 = vpack.c.b16 %v4567, %v4565
        %v4592 = vpack.c.b16 %v4568, %v4566
        %v4593 = vpack.c.b16 %v4571, %v4569
        %v4594 = vpack.c.b16 %v4572, %v4570
        %v4595 = vpack.c.b16 %v4575, %v4573
        %v4596 = vpack.c.b16 %v4576, %v4574
        %v4597 = vpack.c.b16 %v4579, %v4577
        %v4598 = vpack.c.b16 %v4580, %v4578
        %v4599 = vpack.c.b16 %v4583, %v4581
        %v4600 = vpack.c.b16 %v4584, %v4582
        %4617 = vmatprep.subr.bf16.mxu0 %v4600
        %4618 = vmatpush1.bf16.msra.mxu0 %v4599
        %4619 = vmatprep.subr.bf16.mxu0 %v4598
        %4620 = vmatpush1.bf16.msra.mxu0 %v4597
        %4621 = vmatprep.subr.bf16.mxu0 %v4596
        %4622 = vmatpush1.bf16.msra.mxu0 %v4595
        %4623 = vmatprep.subr.bf16.mxu0 %v4594
        %4624 = vmatpush1.bf16.msra.mxu0 %v4593
        %4625 = vmatprep.subr.bf16.mxu0 %v4592
        %4626 = vmatpush1.bf16.msra.mxu0 %v4591
        %4627 = vmatprep.subr.bf16.mxu0 %v4590
        %4628 = vmatpush1.bf16.msra.mxu0 %v4589
        %4629 = vmatprep.subr.bf16.mxu0 %v4588
        %4630 = vmatpush1.bf16.msra.mxu0 %v4587
        %4631 = vmatprep.subr.bf16.mxu0 %v4586
        %4632 = vmatpush1.bf16.msra.mxu0 %v4585
        %4633 = vmatprep.subr.bf16.mxu0 0
        %4634 = vmatpush2.bf16.msra.mxu0 0
        %4635 = vmatprep.subr.bf16.mxu0 0
        %4636 = vmatpush2.bf16.msra.mxu0 0
        %4637 = vmatprep.subr.bf16.mxu0 0
        %4638 = vmatpush2.bf16.msra.mxu0 0
        %4639 = vmatprep.subr.bf16.mxu0 0
        %4640 = vmatpush2.bf16.msra.mxu0 0
        %4641 = vmatprep.subr.bf16.mxu0 0
        %4642 = vmatpush2.bf16.msra.mxu0 0
        %4643 = vmatprep.subr.bf16.mxu0 0
        %4644 = vmatpush2.bf16.msra.mxu0 0
        %4645 = vmatprep.subr.bf16.mxu0 0
        %4646 = vmatpush2.bf16.msra.mxu0 0
        %4647 = vmatprep.subr.bf16.mxu0 0
        %4648 = vmatpush2.bf16.msra.mxu0 0
        %4649 = vmatprep.mubr.bf16.mxu0 0
        %4650 = vmatmul.mubr.bf16.gmra.mxu0 %v4516
        %v4651 = vpop.f32.mrf.mxu0
        %v4652 = vadd.f32 0.0, %v4651
        %v4653 = vpop.f32.mrf.mxu0
        %v4654 = vadd.f32 0.0, %v4653
        %v4655 = vpop.f32.mrf.mxu0
        %v4656 = vadd.f32 0.0, %v4655
        %v4657 = vpop.f32.mrf.mxu0
        %v4658 = vadd.f32 0.0, %v4657
        %4659 = vmatprep.mubr.bf16.mxu0 0
        %4660 = vmatmul.mubr.bf16.gmra.mxu0 %v4517
        %v4661 = vpop.f32.mrf.mxu0
        %v4662 = vadd.f32 0.0, %v4661
        %v4663 = vpop.f32.mrf.mxu0
        %v4664 = vadd.f32 0.0, %v4663
        %v4665 = vpop.f32.mrf.mxu0
        %v4666 = vadd.f32 0.0, %v4665
        %v4667 = vpop.f32.mrf.mxu0
        %v4668 = vadd.f32 0.0, %v4667
        %4669 = vmatprep.mubr.bf16.mxu0 0
        %4670 = vmatmul.mubr.bf16.gmra.mxu0 %v4518
        %v4671 = vpop.f32.mrf.mxu0
        %v4672 = vadd.f32 0.0, %v4671
        %v4673 = vpop.f32.mrf.mxu0
        %v4674 = vadd.f32 0.0, %v4673
        %v4675 = vpop.f32.mrf.mxu0
        %v4676 = vadd.f32 0.0, %v4675
        %v4677 = vpop.f32.mrf.mxu0
        %v4678 = vadd.f32 0.0, %v4677
        %4679 = vmatprep.mubr.bf16.mxu0 0
        %4680 = vmatmul.mubr.bf16.gmra.mxu0 %v4519
        %v4681 = vpop.f32.mrf.mxu0
        %v4682 = vadd.f32 0.0, %v4681
        %v4683 = vpop.f32.mrf.mxu0
        %v4684 = vadd.f32 0.0, %v4683
        %v4685 = vpop.f32.mrf.mxu0
        %v4686 = vadd.f32 0.0, %v4685
        %v4687 = vpop.f32.mrf.mxu0
        %v4688 = vadd.f32 0.0, %v4687
        %4689 = vdwg.mxu0
        %v4690 = vadd.f32 %v4492, %v4652
        %v4691 = vadd.f32 %v4493, %v4654
        %v4692 = vadd.f32 %v4494, %v4656
        %v4693 = vadd.f32 %v4495, %v4658
        %v4694 = vadd.f32 %v4496, %v4662
        %v4695 = vadd.f32 %v4497, %v4664
        %v4696 = vadd.f32 %v4498, %v4666
        %v4697 = vadd.f32 %v4499, %v4668
        %v4698 = vadd.f32 %v4500, %v4672
        %v4699 = vadd.f32 %v4501, %v4674
        %v4700 = vadd.f32 %v4502, %v4676
        %v4701 = vadd.f32 %v4503, %v4678
        %v4702 = vadd.f32 %v4504, %v4682
        %v4703 = vadd.f32 %v4505, %v4684
        %v4704 = vadd.f32 %v4506, %v4686
        %v4705 = vadd.f32 %v4507, %v4688
        %v4706 = vld [vmem:[%s568] sm:$0xff]
        %v4707 = vld [vmem:[%s568 + $0x10] sm:$0xff]
        %v4708 = vld [vmem:[%s568 + $0x20] sm:$0xff]
        %v4709 = vld [vmem:[%s568 + $0x30] sm:$0xff]
        %v4710 = vld [vmem:[%s568 + $0x40] sm:$0xff]
        %v4711 = vld [vmem:[%s568 + $0x50] sm:$0xff]
        %v4712 = vld [vmem:[%s568 + $0x60] sm:$0xff]
        %v4713 = vld [vmem:[%s568 + $0x70] sm:$0xff]
        %v4714 = vpack.c.bf16 %v4707, %v4706
        %v4715 = vpack.c.bf16 %v4709, %v4708
        %v4716 = vpack.c.bf16 %v4711, %v4710
        %v4717 = vpack.c.bf16 %v4713, %v4712
        %s4718 = scalar_lea.vmem %s4, 2688
        %v4719 = vld [vmem:[%s4718] sm:$0xff]
        %v4720 = vld [vmem:[%s4718 + $0x8] sm:$0xff]
        %v4721 = vld [vmem:[%s4718 + $0x10] sm:$0xff]
        %v4722 = vld [vmem:[%s4718 + $0x18] sm:$0xff]
        %v4723 = vld [vmem:[%s4718 + $0x20] sm:$0xff]
        %v4724 = vld [vmem:[%s4718 + $0x28] sm:$0xff]
        %v4725 = vld [vmem:[%s4718 + $0x30] sm:$0xff]
        %v4726 = vld [vmem:[%s4718 + $0x38] sm:$0xff]
        %v4727 = vld [vmem:[%s4718 + $0x40] sm:$0xff]
        %v4728 = vld [vmem:[%s4718 + $0x48] sm:$0xff]
        %v4729 = vld [vmem:[%s4718 + $0x50] sm:$0xff]
        %v4730 = vld [vmem:[%s4718 + $0x58] sm:$0xff]
        %v4731 = vld [vmem:[%s4718 + $0x60] sm:$0xff]
        %v4732 = vld [vmem:[%s4718 + $0x68] sm:$0xff]
        %v4733 = vld [vmem:[%s4718 + $0x70] sm:$0xff]
        %v4734 = vld [vmem:[%s4718 + $0x78] sm:$0xff]
        %v4751 = vunpack.c.l.b16 %v4719
        %v4752 = vunpack.c.h.b16 %v4719
        %v4753 = vunpack.c.l.b16 %v4720
        %v4754 = vunpack.c.h.b16 %v4720
        %v4755 = vunpack.c.l.b16 %v4721
        %v4756 = vunpack.c.h.b16 %v4721
        %v4757 = vunpack.c.l.b16 %v4722
        %v4758 = vunpack.c.h.b16 %v4722
        %v4759 = vunpack.c.l.b16 %v4723
        %v4760 = vunpack.c.h.b16 %v4723
        %v4761 = vunpack.c.l.b16 %v4724
        %v4762 = vunpack.c.h.b16 %v4724
        %v4763 = vunpack.c.l.b16 %v4725
        %v4764 = vunpack.c.h.b16 %v4725
        %v4765 = vunpack.c.l.b16 %v4726
        %v4766 = vunpack.c.h.b16 %v4726
        %v4767 = vunpack.c.l.b16 %v4727
        %v4768 = vunpack.c.h.b16 %v4727
        %v4769 = vunpack.c.l.b16 %v4728
        %v4770 = vunpack.c.h.b16 %v4728
        %v4771 = vunpack.c.l.b16 %v4729
        %v4772 = vunpack.c.h.b16 %v4729
        %v4773 = vunpack.c.l.b16 %v4730
        %v4774 = vunpack.c.h.b16 %v4730
        %v4775 = vunpack.c.l.b16 %v4731
        %v4776 = vunpack.c.h.b16 %v4731
        %v4777 = vunpack.c.l.b16 %v4732
        %v4778 = vunpack.c.h.b16 %v4732
        %v4779 = vunpack.c.l.b16 %v4733
        %v4780 = vunpack.c.h.b16 %v4733
        %v4781 = vunpack.c.l.b16 %v4734
        %v4782 = vunpack.c.h.b16 %v4734
        %v4783 = vpack.c.b16 %v4753, %v4751
        %v4784 = vpack.c.b16 %v4754, %v4752
        %v4785 = vpack.c.b16 %v4757, %v4755
        %v4786 = vpack.c.b16 %v4758, %v4756
        %v4787 = vpack.c.b16 %v4761, %v4759
        %v4788 = vpack.c.b16 %v4762, %v4760
        %v4789 = vpack.c.b16 %v4765, %v4763
        %v4790 = vpack.c.b16 %v4766, %v4764
        %v4791 = vpack.c.b16 %v4769, %v4767
        %v4792 = vpack.c.b16 %v4770, %v4768
        %v4793 = vpack.c.b16 %v4773, %v4771
        %v4794 = vpack.c.b16 %v4774, %v4772
        %v4795 = vpack.c.b16 %v4777, %v4775
        %v4796 = vpack.c.b16 %v4778, %v4776
        %v4797 = vpack.c.b16 %v4781, %v4779
        %v4798 = vpack.c.b16 %v4782, %v4780
        %4815 = vmatprep.subr.bf16.mxu0 %v4798
        %4816 = vmatpush1.bf16.msra.mxu0 %v4797
        %4817 = vmatprep.subr.bf16.mxu0 %v4796
        %4818 = vmatpush1.bf16.msra.mxu0 %v4795
        %4819 = vmatprep.subr.bf16.mxu0 %v4794
        %4820 = vmatpush1.bf16.msra.mxu0 %v4793
        %4821 = vmatprep.subr.bf16.mxu0 %v4792
        %4822 = vmatpush1.bf16.msra.mxu0 %v4791
        %4823 = vmatprep.subr.bf16.mxu0 %v4790
        %4824 = vmatpush1.bf16.msra.mxu0 %v4789
        %4825 = vmatprep.subr.bf16.mxu0 %v4788
        %4826 = vmatpush1.bf16.msra.mxu0 %v4787
        %4827 = vmatprep.subr.bf16.mxu0 %v4786
        %4828 = vmatpush1.bf16.msra.mxu0 %v4785
        %4829 = vmatprep.subr.bf16.mxu0 %v4784
        %4830 = vmatpush1.bf16.msra.mxu0 %v4783
        %4831 = vmatprep.subr.bf16.mxu0 0
        %4832 = vmatpush2.bf16.msra.mxu0 0
        %4833 = vmatprep.subr.bf16.mxu0 0
        %4834 = vmatpush2.bf16.msra.mxu0 0
        %4835 = vmatprep.subr.bf16.mxu0 0
        %4836 = vmatpush2.bf16.msra.mxu0 0
        %4837 = vmatprep.subr.bf16.mxu0 0
        %4838 = vmatpush2.bf16.msra.mxu0 0
        %4839 = vmatprep.subr.bf16.mxu0 0
        %4840 = vmatpush2.bf16.msra.mxu0 0
        %4841 = vmatprep.subr.bf16.mxu0 0
        %4842 = vmatpush2.bf16.msra.mxu0 0
        %4843 = vmatprep.subr.bf16.mxu0 0
        %4844 = vmatpush2.bf16.msra.mxu0 0
        %4845 = vmatprep.subr.bf16.mxu0 0
        %4846 = vmatpush2.bf16.msra.mxu0 0
        %4847 = vmatprep.mubr.bf16.mxu0 0
        %4848 = vmatmul.mubr.bf16.gmra.mxu0 %v4714
        %v4849 = vpop.f32.mrf.mxu0
        %v4850 = vadd.f32 0.0, %v4849
        %v4851 = vpop.f32.mrf.mxu0
        %v4852 = vadd.f32 0.0, %v4851
        %v4853 = vpop.f32.mrf.mxu0
        %v4854 = vadd.f32 0.0, %v4853
        %v4855 = vpop.f32.mrf.mxu0
        %v4856 = vadd.f32 0.0, %v4855
        %4857 = vmatprep.mubr.bf16.mxu0 0
        %4858 = vmatmul.mubr.bf16.gmra.mxu0 %v4715
        %v4859 = vpop.f32.mrf.mxu0
        %v4860 = vadd.f32 0.0, %v4859
        %v4861 = vpop.f32.mrf.mxu0
        %v4862 = vadd.f32 0.0, %v4861
        %v4863 = vpop.f32.mrf.mxu0
        %v4864 = vadd.f32 0.0, %v4863
        %v4865 = vpop.f32.mrf.mxu0
        %v4866 = vadd.f32 0.0, %v4865
        %4867 = vmatprep.mubr.bf16.mxu0 0
        %4868 = vmatmul.mubr.bf16.gmra.mxu0 %v4716
        %v4869 = vpop.f32.mrf.mxu0
        %v4870 = vadd.f32 0.0, %v4869
        %v4871 = vpop.f32.mrf.mxu0
        %v4872 = vadd.f32 0.0, %v4871
        %v4873 = vpop.f32.mrf.mxu0
        %v4874 = vadd.f32 0.0, %v4873
        %v4875 = vpop.f32.mrf.mxu0
        %v4876 = vadd.f32 0.0, %v4875
        %4877 = vmatprep.mubr.bf16.mxu0 0
        %4878 = vmatmul.mubr.bf16.gmra.mxu0 %v4717
        %v4879 = vpop.f32.mrf.mxu0
        %v4880 = vadd.f32 0.0, %v4879
        %v4881 = vpop.f32.mrf.mxu0
        %v4882 = vadd.f32 0.0, %v4881
        %v4883 = vpop.f32.mrf.mxu0
        %v4884 = vadd.f32 0.0, %v4883
        %v4885 = vpop.f32.mrf.mxu0
        %v4886 = vadd.f32 0.0, %v4885
        %4887 = vdwg.mxu0
        %v4888 = vadd.f32 %v4690, %v4850
        %v4889 = vadd.f32 %v4691, %v4852
        %v4890 = vadd.f32 %v4692, %v4854
        %v4891 = vadd.f32 %v4693, %v4856
        %v4892 = vadd.f32 %v4694, %v4860
        %v4893 = vadd.f32 %v4695, %v4862
        %v4894 = vadd.f32 %v4696, %v4864
        %v4895 = vadd.f32 %v4697, %v4866
        %v4896 = vadd.f32 %v4698, %v4870
        %v4897 = vadd.f32 %v4699, %v4872
        %v4898 = vadd.f32 %v4700, %v4874
        %v4899 = vadd.f32 %v4701, %v4876
        %v4900 = vadd.f32 %v4702, %v4880
        %v4901 = vadd.f32 %v4703, %v4882
        %v4902 = vadd.f32 %v4704, %v4884
        %v4903 = vadd.f32 %v4705, %v4886
        %v4904 = vld [vmem:[%s568 + $0x1] sm:$0xff]
        %v4905 = vld [vmem:[%s568 + $0x11] sm:$0xff]
        %v4906 = vld [vmem:[%s568 + $0x21] sm:$0xff]
        %v4907 = vld [vmem:[%s568 + $0x31] sm:$0xff]
        %v4908 = vld [vmem:[%s568 + $0x41] sm:$0xff]
        %v4909 = vld [vmem:[%s568 + $0x51] sm:$0xff]
        %v4910 = vld [vmem:[%s568 + $0x61] sm:$0xff]
        %v4911 = vld [vmem:[%s568 + $0x71] sm:$0xff]
        %v4912 = vpack.c.bf16 %v4905, %v4904
        %v4913 = vpack.c.bf16 %v4907, %v4906
        %v4914 = vpack.c.bf16 %v4909, %v4908
        %v4915 = vpack.c.bf16 %v4911, %v4910
        %s4916 = scalar_lea.vmem %s4, 2816
        %v4917 = vld [vmem:[%s4916] sm:$0xff]
        %v4918 = vld [vmem:[%s4916 + $0x8] sm:$0xff]
        %v4919 = vld [vmem:[%s4916 + $0x10] sm:$0xff]
        %v4920 = vld [vmem:[%s4916 + $0x18] sm:$0xff]
        %v4921 = vld [vmem:[%s4916 + $0x20] sm:$0xff]
        %v4922 = vld [vmem:[%s4916 + $0x28] sm:$0xff]
        %v4923 = vld [vmem:[%s4916 + $0x30] sm:$0xff]
        %v4924 = vld [vmem:[%s4916 + $0x38] sm:$0xff]
        %v4925 = vld [vmem:[%s4916 + $0x40] sm:$0xff]
        %v4926 = vld [vmem:[%s4916 + $0x48] sm:$0xff]
        %v4927 = vld [vmem:[%s4916 + $0x50] sm:$0xff]
        %v4928 = vld [vmem:[%s4916 + $0x58] sm:$0xff]
        %v4929 = vld [vmem:[%s4916 + $0x60] sm:$0xff]
        %v4930 = vld [vmem:[%s4916 + $0x68] sm:$0xff]
        %v4931 = vld [vmem:[%s4916 + $0x70] sm:$0xff]
        %v4932 = vld [vmem:[%s4916 + $0x78] sm:$0xff]
        %v4949 = vunpack.c.l.b16 %v4917
        %v4950 = vunpack.c.h.b16 %v4917
        %v4951 = vunpack.c.l.b16 %v4918
        %v4952 = vunpack.c.h.b16 %v4918
        %v4953 = vunpack.c.l.b16 %v4919
        %v4954 = vunpack.c.h.b16 %v4919
        %v4955 = vunpack.c.l.b16 %v4920
        %v4956 = vunpack.c.h.b16 %v4920
        %v4957 = vunpack.c.l.b16 %v4921
        %v4958 = vunpack.c.h.b16 %v4921
        %v4959 = vunpack.c.l.b16 %v4922
        %v4960 = vunpack.c.h.b16 %v4922
        %v4961 = vunpack.c.l.b16 %v4923
        %v4962 = vunpack.c.h.b16 %v4923
        %v4963 = vunpack.c.l.b16 %v4924
        %v4964 = vunpack.c.h.b16 %v4924
        %v4965 = vunpack.c.l.b16 %v4925
        %v4966 = vunpack.c.h.b16 %v4925
        %v4967 = vunpack.c.l.b16 %v4926
        %v4968 = vunpack.c.h.b16 %v4926
        %v4969 = vunpack.c.l.b16 %v4927
        %v4970 = vunpack.c.h.b16 %v4927
        %v4971 = vunpack.c.l.b16 %v4928
        %v4972 = vunpack.c.h.b16 %v4928
        %v4973 = vunpack.c.l.b16 %v4929
        %v4974 = vunpack.c.h.b16 %v4929
        %v4975 = vunpack.c.l.b16 %v4930
        %v4976 = vunpack.c.h.b16 %v4930
        %v4977 = vunpack.c.l.b16 %v4931
        %v4978 = vunpack.c.h.b16 %v4931
        %v4979 = vunpack.c.l.b16 %v4932
        %v4980 = vunpack.c.h.b16 %v4932
        %v4981 = vpack.c.b16 %v4951, %v4949
        %v4982 = vpack.c.b16 %v4952, %v4950
        %v4983 = vpack.c.b16 %v4955, %v4953
        %v4984 = vpack.c.b16 %v4956, %v4954
        %v4985 = vpack.c.b16 %v4959, %v4957
        %v4986 = vpack.c.b16 %v4960, %v4958
        %v4987 = vpack.c.b16 %v4963, %v4961
        %v4988 = vpack.c.b16 %v4964, %v4962
        %v4989 = vpack.c.b16 %v4967, %v4965
        %v4990 = vpack.c.b16 %v4968, %v4966
        %v4991 = vpack.c.b16 %v4971, %v4969
        %v4992 = vpack.c.b16 %v4972, %v4970
        %v4993 = vpack.c.b16 %v4975, %v4973
        %v4994 = vpack.c.b16 %v4976, %v4974
        %v4995 = vpack.c.b16 %v4979, %v4977
        %v4996 = vpack.c.b16 %v4980, %v4978
        %5013 = vmatprep.subr.bf16.mxu0 %v4996
        %5014 = vmatpush1.bf16.msra.mxu0 %v4995
        %5015 = vmatprep.subr.bf16.mxu0 %v4994
        %5016 = vmatpush1.bf16.msra.mxu0 %v4993
        %5017 = vmatprep.subr.bf16.mxu0 %v4992
        %5018 = vmatpush1.bf16.msra.mxu0 %v4991
        %5019 = vmatprep.subr.bf16.mxu0 %v4990
        %5020 = vmatpush1.bf16.msra.mxu0 %v4989
        %5021 = vmatprep.subr.bf16.mxu0 %v4988
        %5022 = vmatpush1.bf16.msra.mxu0 %v4987
        %5023 = vmatprep.subr.bf16.mxu0 %v4986
        %5024 = vmatpush1.bf16.msra.mxu0 %v4985
        %5025 = vmatprep.subr.bf16.mxu0 %v4984
        %5026 = vmatpush1.bf16.msra.mxu0 %v4983
        %5027 = vmatprep.subr.bf16.mxu0 %v4982
        %5028 = vmatpush1.bf16.msra.mxu0 %v4981
        %5029 = vmatprep.subr.bf16.mxu0 0
        %5030 = vmatpush2.bf16.msra.mxu0 0
        %5031 = vmatprep.subr.bf16.mxu0 0
        %5032 = vmatpush2.bf16.msra.mxu0 0
        %5033 = vmatprep.subr.bf16.mxu0 0
        %5034 = vmatpush2.bf16.msra.mxu0 0
        %5035 = vmatprep.subr.bf16.mxu0 0
        %5036 = vmatpush2.bf16.msra.mxu0 0
        %5037 = vmatprep.subr.bf16.mxu0 0
        %5038 = vmatpush2.bf16.msra.mxu0 0
        %5039 = vmatprep.subr.bf16.mxu0 0
        %5040 = vmatpush2.bf16.msra.mxu0 0
        %5041 = vmatprep.subr.bf16.mxu0 0
        %5042 = vmatpush2.bf16.msra.mxu0 0
        %5043 = vmatprep.subr.bf16.mxu0 0
        %5044 = vmatpush2.bf16.msra.mxu0 0
        %5045 = vmatprep.mubr.bf16.mxu0 0
        %5046 = vmatmul.mubr.bf16.gmra.mxu0 %v4912
        %v5047 = vpop.f32.mrf.mxu0
        %v5048 = vadd.f32 0.0, %v5047
        %v5049 = vpop.f32.mrf.mxu0
        %v5050 = vadd.f32 0.0, %v5049
        %v5051 = vpop.f32.mrf.mxu0
        %v5052 = vadd.f32 0.0, %v5051
        %v5053 = vpop.f32.mrf.mxu0
        %v5054 = vadd.f32 0.0, %v5053
        %5055 = vmatprep.mubr.bf16.mxu0 0
        %5056 = vmatmul.mubr.bf16.gmra.mxu0 %v4913
        %v5057 = vpop.f32.mrf.mxu0
        %v5058 = vadd.f32 0.0, %v5057
        %v5059 = vpop.f32.mrf.mxu0
        %v5060 = vadd.f32 0.0, %v5059
        %v5061 = vpop.f32.mrf.mxu0
        %v5062 = vadd.f32 0.0, %v5061
        %v5063 = vpop.f32.mrf.mxu0
        %v5064 = vadd.f32 0.0, %v5063
        %5065 = vmatprep.mubr.bf16.mxu0 0
        %5066 = vmatmul.mubr.bf16.gmra.mxu0 %v4914
        %v5067 = vpop.f32.mrf.mxu0
        %v5068 = vadd.f32 0.0, %v5067
        %v5069 = vpop.f32.mrf.mxu0
        %v5070 = vadd.f32 0.0, %v5069
        %v5071 = vpop.f32.mrf.mxu0
        %v5072 = vadd.f32 0.0, %v5071
        %v5073 = vpop.f32.mrf.mxu0
        %v5074 = vadd.f32 0.0, %v5073
        %5075 = vmatprep.mubr.bf16.mxu0 0
        %5076 = vmatmul.mubr.bf16.gmra.mxu0 %v4915
        %v5077 = vpop.f32.mrf.mxu0
        %v5078 = vadd.f32 0.0, %v5077
        %v5079 = vpop.f32.mrf.mxu0
        %v5080 = vadd.f32 0.0, %v5079
        %v5081 = vpop.f32.mrf.mxu0
        %v5082 = vadd.f32 0.0, %v5081
        %v5083 = vpop.f32.mrf.mxu0
        %v5084 = vadd.f32 0.0, %v5083
        %5085 = vdwg.mxu0
        %v5086 = vadd.f32 %v4888, %v5048
        %v5087 = vadd.f32 %v4889, %v5050
        %v5088 = vadd.f32 %v4890, %v5052
        %v5089 = vadd.f32 %v4891, %v5054
        %v5090 = vadd.f32 %v4892, %v5058
        %v5091 = vadd.f32 %v4893, %v5060
        %v5092 = vadd.f32 %v4894, %v5062
        %v5093 = vadd.f32 %v4895, %v5064
        %v5094 = vadd.f32 %v4896, %v5068
        %v5095 = vadd.f32 %v4897, %v5070
        %v5096 = vadd.f32 %v4898, %v5072
        %v5097 = vadd.f32 %v4899, %v5074
        %v5098 = vadd.f32 %v4900, %v5078
        %v5099 = vadd.f32 %v4901, %v5080
        %v5100 = vadd.f32 %v4902, %v5082
        %v5101 = vadd.f32 %v4903, %v5084
        %v5102 = vld [vmem:[%s568 + $0x2] sm:$0xff]
        %v5103 = vld [vmem:[%s568 + $0x12] sm:$0xff]
        %v5104 = vld [vmem:[%s568 + $0x22] sm:$0xff]
        %v5105 = vld [vmem:[%s568 + $0x32] sm:$0xff]
        %v5106 = vld [vmem:[%s568 + $0x42] sm:$0xff]
        %v5107 = vld [vmem:[%s568 + $0x52] sm:$0xff]
        %v5108 = vld [vmem:[%s568 + $0x62] sm:$0xff]
        %v5109 = vld [vmem:[%s568 + $0x72] sm:$0xff]
        %v5110 = vpack.c.bf16 %v5103, %v5102
        %v5111 = vpack.c.bf16 %v5105, %v5104
        %v5112 = vpack.c.bf16 %v5107, %v5106
        %v5113 = vpack.c.bf16 %v5109, %v5108
        %s5114 = scalar_lea.vmem %s4, 2944
        %v5115 = vld [vmem:[%s5114] sm:$0xff]
        %v5116 = vld [vmem:[%s5114 + $0x8] sm:$0xff]
        %v5117 = vld [vmem:[%s5114 + $0x10] sm:$0xff]
        %v5118 = vld [vmem:[%s5114 + $0x18] sm:$0xff]
        %v5119 = vld [vmem:[%s5114 + $0x20] sm:$0xff]
        %v5120 = vld [vmem:[%s5114 + $0x28] sm:$0xff]
        %v5121 = vld [vmem:[%s5114 + $0x30] sm:$0xff]
        %v5122 = vld [vmem:[%s5114 + $0x38] sm:$0xff]
        %v5123 = vld [vmem:[%s5114 + $0x40] sm:$0xff]
        %v5124 = vld [vmem:[%s5114 + $0x48] sm:$0xff]
        %v5125 = vld [vmem:[%s5114 + $0x50] sm:$0xff]
        %v5126 = vld [vmem:[%s5114 + $0x58] sm:$0xff]
        %v5127 = vld [vmem:[%s5114 + $0x60] sm:$0xff]
        %v5128 = vld [vmem:[%s5114 + $0x68] sm:$0xff]
        %v5129 = vld [vmem:[%s5114 + $0x70] sm:$0xff]
        %v5130 = vld [vmem:[%s5114 + $0x78] sm:$0xff]
        %v5147 = vunpack.c.l.b16 %v5115
        %v5148 = vunpack.c.h.b16 %v5115
        %v5149 = vunpack.c.l.b16 %v5116
        %v5150 = vunpack.c.h.b16 %v5116
        %v5151 = vunpack.c.l.b16 %v5117
        %v5152 = vunpack.c.h.b16 %v5117
        %v5153 = vunpack.c.l.b16 %v5118
        %v5154 = vunpack.c.h.b16 %v5118
        %v5155 = vunpack.c.l.b16 %v5119
        %v5156 = vunpack.c.h.b16 %v5119
        %v5157 = vunpack.c.l.b16 %v5120
        %v5158 = vunpack.c.h.b16 %v5120
        %v5159 = vunpack.c.l.b16 %v5121
        %v5160 = vunpack.c.h.b16 %v5121
        %v5161 = vunpack.c.l.b16 %v5122
        %v5162 = vunpack.c.h.b16 %v5122
        %v5163 = vunpack.c.l.b16 %v5123
        %v5164 = vunpack.c.h.b16 %v5123
        %v5165 = vunpack.c.l.b16 %v5124
        %v5166 = vunpack.c.h.b16 %v5124
        %v5167 = vunpack.c.l.b16 %v5125
        %v5168 = vunpack.c.h.b16 %v5125
        %v5169 = vunpack.c.l.b16 %v5126
        %v5170 = vunpack.c.h.b16 %v5126
        %v5171 = vunpack.c.l.b16 %v5127
        %v5172 = vunpack.c.h.b16 %v5127
        %v5173 = vunpack.c.l.b16 %v5128
        %v5174 = vunpack.c.h.b16 %v5128
        %v5175 = vunpack.c.l.b16 %v5129
        %v5176 = vunpack.c.h.b16 %v5129
        %v5177 = vunpack.c.l.b16 %v5130
        %v5178 = vunpack.c.h.b16 %v5130
        %v5179 = vpack.c.b16 %v5149, %v5147
        %v5180 = vpack.c.b16 %v5150, %v5148
        %v5181 = vpack.c.b16 %v5153, %v5151
        %v5182 = vpack.c.b16 %v5154, %v5152
        %v5183 = vpack.c.b16 %v5157, %v5155
        %v5184 = vpack.c.b16 %v5158, %v5156
        %v5185 = vpack.c.b16 %v5161, %v5159
        %v5186 = vpack.c.b16 %v5162, %v5160
        %v5187 = vpack.c.b16 %v5165, %v5163
        %v5188 = vpack.c.b16 %v5166, %v5164
        %v5189 = vpack.c.b16 %v5169, %v5167
        %v5190 = vpack.c.b16 %v5170, %v5168
        %v5191 = vpack.c.b16 %v5173, %v5171
        %v5192 = vpack.c.b16 %v5174, %v5172
        %v5193 = vpack.c.b16 %v5177, %v5175
        %v5194 = vpack.c.b16 %v5178, %v5176
        %5211 = vmatprep.subr.bf16.mxu0 %v5194
        %5212 = vmatpush1.bf16.msra.mxu0 %v5193
        %5213 = vmatprep.subr.bf16.mxu0 %v5192
        %5214 = vmatpush1.bf16.msra.mxu0 %v5191
        %5215 = vmatprep.subr.bf16.mxu0 %v5190
        %5216 = vmatpush1.bf16.msra.mxu0 %v5189
        %5217 = vmatprep.subr.bf16.mxu0 %v5188
        %5218 = vmatpush1.bf16.msra.mxu0 %v5187
        %5219 = vmatprep.subr.bf16.mxu0 %v5186
        %5220 = vmatpush1.bf16.msra.mxu0 %v5185
        %5221 = vmatprep.subr.bf16.mxu0 %v5184
        %5222 = vmatpush1.bf16.msra.mxu0 %v5183
        %5223 = vmatprep.subr.bf16.mxu0 %v5182
        %5224 = vmatpush1.bf16.msra.mxu0 %v5181
        %5225 = vmatprep.subr.bf16.mxu0 %v5180
        %5226 = vmatpush1.bf16.msra.mxu0 %v5179
        %5227 = vmatprep.subr.bf16.mxu0 0
        %5228 = vmatpush2.bf16.msra.mxu0 0
        %5229 = vmatprep.subr.bf16.mxu0 0
        %5230 = vmatpush2.bf16.msra.mxu0 0
        %5231 = vmatprep.subr.bf16.mxu0 0
        %5232 = vmatpush2.bf16.msra.mxu0 0
        %5233 = vmatprep.subr.bf16.mxu0 0
        %5234 = vmatpush2.bf16.msra.mxu0 0
        %5235 = vmatprep.subr.bf16.mxu0 0
        %5236 = vmatpush2.bf16.msra.mxu0 0
        %5237 = vmatprep.subr.bf16.mxu0 0
        %5238 = vmatpush2.bf16.msra.mxu0 0
        %5239 = vmatprep.subr.bf16.mxu0 0
        %5240 = vmatpush2.bf16.msra.mxu0 0
        %5241 = vmatprep.subr.bf16.mxu0 0
        %5242 = vmatpush2.bf16.msra.mxu0 0
        %5243 = vmatprep.mubr.bf16.mxu0 0
        %5244 = vmatmul.mubr.bf16.gmra.mxu0 %v5110
        %v5245 = vpop.f32.mrf.mxu0
        %v5246 = vadd.f32 0.0, %v5245
        %v5247 = vpop.f32.mrf.mxu0
        %v5248 = vadd.f32 0.0, %v5247
        %v5249 = vpop.f32.mrf.mxu0
        %v5250 = vadd.f32 0.0, %v5249
        %v5251 = vpop.f32.mrf.mxu0
        %v5252 = vadd.f32 0.0, %v5251
        %5253 = vmatprep.mubr.bf16.mxu0 0
        %5254 = vmatmul.mubr.bf16.gmra.mxu0 %v5111
        %v5255 = vpop.f32.mrf.mxu0
        %v5256 = vadd.f32 0.0, %v5255
        %v5257 = vpop.f32.mrf.mxu0
        %v5258 = vadd.f32 0.0, %v5257
        %v5259 = vpop.f32.mrf.mxu0
        %v5260 = vadd.f32 0.0, %v5259
        %v5261 = vpop.f32.mrf.mxu0
        %v5262 = vadd.f32 0.0, %v5261
        %5263 = vmatprep.mubr.bf16.mxu0 0
        %5264 = vmatmul.mubr.bf16.gmra.mxu0 %v5112
        %v5265 = vpop.f32.mrf.mxu0
        %v5266 = vadd.f32 0.0, %v5265
        %v5267 = vpop.f32.mrf.mxu0
        %v5268 = vadd.f32 0.0, %v5267
        %v5269 = vpop.f32.mrf.mxu0
        %v5270 = vadd.f32 0.0, %v5269
        %v5271 = vpop.f32.mrf.mxu0
        %v5272 = vadd.f32 0.0, %v5271
        %5273 = vmatprep.mubr.bf16.mxu0 0
        %5274 = vmatmul.mubr.bf16.gmra.mxu0 %v5113
        %v5275 = vpop.f32.mrf.mxu0
        %v5276 = vadd.f32 0.0, %v5275
        %v5277 = vpop.f32.mrf.mxu0
        %v5278 = vadd.f32 0.0, %v5277
        %v5279 = vpop.f32.mrf.mxu0
        %v5280 = vadd.f32 0.0, %v5279
        %v5281 = vpop.f32.mrf.mxu0
        %v5282 = vadd.f32 0.0, %v5281
        %5283 = vdwg.mxu0
        %v5284 = vadd.f32 %v5086, %v5246
        %v5285 = vadd.f32 %v5087, %v5248
        %v5286 = vadd.f32 %v5088, %v5250
        %v5287 = vadd.f32 %v5089, %v5252
        %v5288 = vadd.f32 %v5090, %v5256
        %v5289 = vadd.f32 %v5091, %v5258
        %v5290 = vadd.f32 %v5092, %v5260
        %v5291 = vadd.f32 %v5093, %v5262
        %v5292 = vadd.f32 %v5094, %v5266
        %v5293 = vadd.f32 %v5095, %v5268
        %v5294 = vadd.f32 %v5096, %v5270
        %v5295 = vadd.f32 %v5097, %v5272
        %v5296 = vadd.f32 %v5098, %v5276
        %v5297 = vadd.f32 %v5099, %v5278
        %v5298 = vadd.f32 %v5100, %v5280
        %v5299 = vadd.f32 %v5101, %v5282
        %s5300 = scalar_lea.vmem [#allocation2], 352
        %v5301 = vld [vmem:[%s5300] sm:$0xff]
        %v5302 = vld [vmem:[%s5300 + $0x10] sm:$0xff]
        %v5303 = vld [vmem:[%s5300 + $0x20] sm:$0xff]
        %v5304 = vld [vmem:[%s5300 + $0x30] sm:$0xff]
        %v5305 = vld [vmem:[%s5300 + $0x40] sm:$0xff]
        %v5306 = vld [vmem:[%s5300 + $0x50] sm:$0xff]
        %v5307 = vld [vmem:[%s5300 + $0x60] sm:$0xff]
        %v5308 = vld [vmem:[%s5300 + $0x70] sm:$0xff]
        %v5309 = vpack.c.bf16 %v5302, %v5301
        %v5310 = vpack.c.bf16 %v5304, %v5303
        %v5311 = vpack.c.bf16 %v5306, %v5305
        %v5312 = vpack.c.bf16 %v5308, %v5307
        %s5313 = scalar_lea.vmem %s4, 3072
        %v5314 = vld [vmem:[%s5313] sm:$0xff]
        %v5315 = vld [vmem:[%s5313 + $0x8] sm:$0xff]
        %v5316 = vld [vmem:[%s5313 + $0x10] sm:$0xff]
        %v5317 = vld [vmem:[%s5313 + $0x18] sm:$0xff]
        %v5318 = vld [vmem:[%s5313 + $0x20] sm:$0xff]
        %v5319 = vld [vmem:[%s5313 + $0x28] sm:$0xff]
        %v5320 = vld [vmem:[%s5313 + $0x30] sm:$0xff]
        %v5321 = vld [vmem:[%s5313 + $0x38] sm:$0xff]
        %v5322 = vld [vmem:[%s5313 + $0x40] sm:$0xff]
        %v5323 = vld [vmem:[%s5313 + $0x48] sm:$0xff]
        %v5324 = vld [vmem:[%s5313 + $0x50] sm:$0xff]
        %v5325 = vld [vmem:[%s5313 + $0x58] sm:$0xff]
        %v5326 = vld [vmem:[%s5313 + $0x60] sm:$0xff]
        %v5327 = vld [vmem:[%s5313 + $0x68] sm:$0xff]
        %v5328 = vld [vmem:[%s5313 + $0x70] sm:$0xff]
        %v5329 = vld [vmem:[%s5313 + $0x78] sm:$0xff]
        %v5346 = vunpack.c.l.b16 %v5314
        %v5347 = vunpack.c.h.b16 %v5314
        %v5348 = vunpack.c.l.b16 %v5315
        %v5349 = vunpack.c.h.b16 %v5315
        %v5350 = vunpack.c.l.b16 %v5316
        %v5351 = vunpack.c.h.b16 %v5316
        %v5352 = vunpack.c.l.b16 %v5317
        %v5353 = vunpack.c.h.b16 %v5317
        %v5354 = vunpack.c.l.b16 %v5318
        %v5355 = vunpack.c.h.b16 %v5318
        %v5356 = vunpack.c.l.b16 %v5319
        %v5357 = vunpack.c.h.b16 %v5319
        %v5358 = vunpack.c.l.b16 %v5320
        %v5359 = vunpack.c.h.b16 %v5320
        %v5360 = vunpack.c.l.b16 %v5321
        %v5361 = vunpack.c.h.b16 %v5321
        %v5362 = vunpack.c.l.b16 %v5322
        %v5363 = vunpack.c.h.b16 %v5322
        %v5364 = vunpack.c.l.b16 %v5323
        %v5365 = vunpack.c.h.b16 %v5323
        %v5366 = vunpack.c.l.b16 %v5324
        %v5367 = vunpack.c.h.b16 %v5324
        %v5368 = vunpack.c.l.b16 %v5325
        %v5369 = vunpack.c.h.b16 %v5325
        %v5370 = vunpack.c.l.b16 %v5326
        %v5371 = vunpack.c.h.b16 %v5326
        %v5372 = vunpack.c.l.b16 %v5327
        %v5373 = vunpack.c.h.b16 %v5327
        %v5374 = vunpack.c.l.b16 %v5328
        %v5375 = vunpack.c.h.b16 %v5328
        %v5376 = vunpack.c.l.b16 %v5329
        %v5377 = vunpack.c.h.b16 %v5329
        %v5378 = vpack.c.b16 %v5348, %v5346
        %v5379 = vpack.c.b16 %v5349, %v5347
        %v5380 = vpack.c.b16 %v5352, %v5350
        %v5381 = vpack.c.b16 %v5353, %v5351
        %v5382 = vpack.c.b16 %v5356, %v5354
        %v5383 = vpack.c.b16 %v5357, %v5355
        %v5384 = vpack.c.b16 %v5360, %v5358
        %v5385 = vpack.c.b16 %v5361, %v5359
        %v5386 = vpack.c.b16 %v5364, %v5362
        %v5387 = vpack.c.b16 %v5365, %v5363
        %v5388 = vpack.c.b16 %v5368, %v5366
        %v5389 = vpack.c.b16 %v5369, %v5367
        %v5390 = vpack.c.b16 %v5372, %v5370
        %v5391 = vpack.c.b16 %v5373, %v5371
        %v5392 = vpack.c.b16 %v5376, %v5374
        %v5393 = vpack.c.b16 %v5377, %v5375
        %5410 = vmatprep.subr.bf16.mxu0 %v5393
        %5411 = vmatpush1.bf16.msra.mxu0 %v5392
        %5412 = vmatprep.subr.bf16.mxu0 %v5391
        %5413 = vmatpush1.bf16.msra.mxu0 %v5390
        %5414 = vmatprep.subr.bf16.mxu0 %v5389
        %5415 = vmatpush1.bf16.msra.mxu0 %v5388
        %5416 = vmatprep.subr.bf16.mxu0 %v5387
        %5417 = vmatpush1.bf16.msra.mxu0 %v5386
        %5418 = vmatprep.subr.bf16.mxu0 %v5385
        %5419 = vmatpush1.bf16.msra.mxu0 %v5384
        %5420 = vmatprep.subr.bf16.mxu0 %v5383
        %5421 = vmatpush1.bf16.msra.mxu0 %v5382
        %5422 = vmatprep.subr.bf16.mxu0 %v5381
        %5423 = vmatpush1.bf16.msra.mxu0 %v5380
        %5424 = vmatprep.subr.bf16.mxu0 %v5379
        %5425 = vmatpush1.bf16.msra.mxu0 %v5378
        %5426 = vmatprep.subr.bf16.mxu0 0
        %5427 = vmatpush2.bf16.msra.mxu0 0
        %5428 = vmatprep.subr.bf16.mxu0 0
        %5429 = vmatpush2.bf16.msra.mxu0 0
        %5430 = vmatprep.subr.bf16.mxu0 0
        %5431 = vmatpush2.bf16.msra.mxu0 0
        %5432 = vmatprep.subr.bf16.mxu0 0
        %5433 = vmatpush2.bf16.msra.mxu0 0
        %5434 = vmatprep.subr.bf16.mxu0 0
        %5435 = vmatpush2.bf16.msra.mxu0 0
        %5436 = vmatprep.subr.bf16.mxu0 0
        %5437 = vmatpush2.bf16.msra.mxu0 0
        %5438 = vmatprep.subr.bf16.mxu0 0
        %5439 = vmatpush2.bf16.msra.mxu0 0
        %5440 = vmatprep.subr.bf16.mxu0 0
        %5441 = vmatpush2.bf16.msra.mxu0 0
        %5442 = vmatprep.mubr.bf16.mxu0 0
        %5443 = vmatmul.mubr.bf16.gmra.mxu0 %v5309
        %v5444 = vpop.f32.mrf.mxu0
        %v5445 = vadd.f32 0.0, %v5444
        %v5446 = vpop.f32.mrf.mxu0
        %v5447 = vadd.f32 0.0, %v5446
        %v5448 = vpop.f32.mrf.mxu0
        %v5449 = vadd.f32 0.0, %v5448
        %v5450 = vpop.f32.mrf.mxu0
        %v5451 = vadd.f32 0.0, %v5450
        %5452 = vmatprep.mubr.bf16.mxu0 0
        %5453 = vmatmul.mubr.bf16.gmra.mxu0 %v5310
        %v5454 = vpop.f32.mrf.mxu0
        %v5455 = vadd.f32 0.0, %v5454
        %v5456 = vpop.f32.mrf.mxu0
        %v5457 = vadd.f32 0.0, %v5456
        %v5458 = vpop.f32.mrf.mxu0
        %v5459 = vadd.f32 0.0, %v5458
        %v5460 = vpop.f32.mrf.mxu0
        %v5461 = vadd.f32 0.0, %v5460
        %5462 = vmatprep.mubr.bf16.mxu0 0
        %5463 = vmatmul.mubr.bf16.gmra.mxu0 %v5311
        %v5464 = vpop.f32.mrf.mxu0
        %v5465 = vadd.f32 0.0, %v5464
        %v5466 = vpop.f32.mrf.mxu0
        %v5467 = vadd.f32 0.0, %v5466
        %v5468 = vpop.f32.mrf.mxu0
        %v5469 = vadd.f32 0.0, %v5468
        %v5470 = vpop.f32.mrf.mxu0
        %v5471 = vadd.f32 0.0, %v5470
        %5472 = vmatprep.mubr.bf16.mxu0 0
        %5473 = vmatmul.mubr.bf16.gmra.mxu0 %v5312
        %v5474 = vpop.f32.mrf.mxu0
        %v5475 = vadd.f32 0.0, %v5474
        %v5476 = vpop.f32.mrf.mxu0
        %v5477 = vadd.f32 0.0, %v5476
        %v5478 = vpop.f32.mrf.mxu0
        %v5479 = vadd.f32 0.0, %v5478
        %v5480 = vpop.f32.mrf.mxu0
        %v5481 = vadd.f32 0.0, %v5480
        %5482 = vdwg.mxu0
        %v5483 = vadd.f32 %v5284, %v5445
        %v5484 = vadd.f32 %v5285, %v5447
        %v5485 = vadd.f32 %v5286, %v5449
        %v5486 = vadd.f32 %v5287, %v5451
        %v5487 = vadd.f32 %v5288, %v5455
        %v5488 = vadd.f32 %v5289, %v5457
        %v5489 = vadd.f32 %v5290, %v5459
        %v5490 = vadd.f32 %v5291, %v5461
        %v5491 = vadd.f32 %v5292, %v5465
        %v5492 = vadd.f32 %v5293, %v5467
        %v5493 = vadd.f32 %v5294, %v5469
        %v5494 = vadd.f32 %v5295, %v5471
        %v5495 = vadd.f32 %v5296, %v5475
        %v5496 = vadd.f32 %v5297, %v5477
        %v5497 = vadd.f32 %v5298, %v5479
        %v5498 = vadd.f32 %v5299, %v5481
        %v5499 = vld [vmem:[%s5300 + $0x1] sm:$0xff]
        %v5500 = vld [vmem:[%s5300 + $0x11] sm:$0xff]
        %v5501 = vld [vmem:[%s5300 + $0x21] sm:$0xff]
        %v5502 = vld [vmem:[%s5300 + $0x31] sm:$0xff]
        %v5503 = vld [vmem:[%s5300 + $0x41] sm:$0xff]
        %v5504 = vld [vmem:[%s5300 + $0x51] sm:$0xff]
        %v5505 = vld [vmem:[%s5300 + $0x61] sm:$0xff]
        %v5506 = vld [vmem:[%s5300 + $0x71] sm:$0xff]
        %v5507 = vpack.c.bf16 %v5500, %v5499
        %v5508 = vpack.c.bf16 %v5502, %v5501
        %v5509 = vpack.c.bf16 %v5504, %v5503
        %v5510 = vpack.c.bf16 %v5506, %v5505
        %s5511 = scalar_lea.vmem %s4, 3200
        %v5512 = vld [vmem:[%s5511] sm:$0xff]
        %v5513 = vld [vmem:[%s5511 + $0x8] sm:$0xff]
        %v5514 = vld [vmem:[%s5511 + $0x10] sm:$0xff]
        %v5515 = vld [vmem:[%s5511 + $0x18] sm:$0xff]
        %v5516 = vld [vmem:[%s5511 + $0x20] sm:$0xff]
        %v5517 = vld [vmem:[%s5511 + $0x28] sm:$0xff]
        %v5518 = vld [vmem:[%s5511 + $0x30] sm:$0xff]
        %v5519 = vld [vmem:[%s5511 + $0x38] sm:$0xff]
        %v5520 = vld [vmem:[%s5511 + $0x40] sm:$0xff]
        %v5521 = vld [vmem:[%s5511 + $0x48] sm:$0xff]
        %v5522 = vld [vmem:[%s5511 + $0x50] sm:$0xff]
        %v5523 = vld [vmem:[%s5511 + $0x58] sm:$0xff]
        %v5524 = vld [vmem:[%s5511 + $0x60] sm:$0xff]
        %v5525 = vld [vmem:[%s5511 + $0x68] sm:$0xff]
        %v5526 = vld [vmem:[%s5511 + $0x70] sm:$0xff]
        %v5527 = vld [vmem:[%s5511 + $0x78] sm:$0xff]
        %v5544 = vunpack.c.l.b16 %v5512
        %v5545 = vunpack.c.h.b16 %v5512
        %v5546 = vunpack.c.l.b16 %v5513
        %v5547 = vunpack.c.h.b16 %v5513
        %v5548 = vunpack.c.l.b16 %v5514
        %v5549 = vunpack.c.h.b16 %v5514
        %v5550 = vunpack.c.l.b16 %v5515
        %v5551 = vunpack.c.h.b16 %v5515
        %v5552 = vunpack.c.l.b16 %v5516
        %v5553 = vunpack.c.h.b16 %v5516
        %v5554 = vunpack.c.l.b16 %v5517
        %v5555 = vunpack.c.h.b16 %v5517
        %v5556 = vunpack.c.l.b16 %v5518
        %v5557 = vunpack.c.h.b16 %v5518
        %v5558 = vunpack.c.l.b16 %v5519
        %v5559 = vunpack.c.h.b16 %v5519
        %v5560 = vunpack.c.l.b16 %v5520
        %v5561 = vunpack.c.h.b16 %v5520
        %v5562 = vunpack.c.l.b16 %v5521
        %v5563 = vunpack.c.h.b16 %v5521
        %v5564 = vunpack.c.l.b16 %v5522
        %v5565 = vunpack.c.h.b16 %v5522
        %v5566 = vunpack.c.l.b16 %v5523
        %v5567 = vunpack.c.h.b16 %v5523
        %v5568 = vunpack.c.l.b16 %v5524
        %v5569 = vunpack.c.h.b16 %v5524
        %v5570 = vunpack.c.l.b16 %v5525
        %v5571 = vunpack.c.h.b16 %v5525
        %v5572 = vunpack.c.l.b16 %v5526
        %v5573 = vunpack.c.h.b16 %v5526
        %v5574 = vunpack.c.l.b16 %v5527
        %v5575 = vunpack.c.h.b16 %v5527
        %v5576 = vpack.c.b16 %v5546, %v5544
        %v5577 = vpack.c.b16 %v5547, %v5545
        %v5578 = vpack.c.b16 %v5550, %v5548
        %v5579 = vpack.c.b16 %v5551, %v5549
        %v5580 = vpack.c.b16 %v5554, %v5552
        %v5581 = vpack.c.b16 %v5555, %v5553
        %v5582 = vpack.c.b16 %v5558, %v5556
        %v5583 = vpack.c.b16 %v5559, %v5557
        %v5584 = vpack.c.b16 %v5562, %v5560
        %v5585 = vpack.c.b16 %v5563, %v5561
        %v5586 = vpack.c.b16 %v5566, %v5564
        %v5587 = vpack.c.b16 %v5567, %v5565
        %v5588 = vpack.c.b16 %v5570, %v5568
        %v5589 = vpack.c.b16 %v5571, %v5569
        %v5590 = vpack.c.b16 %v5574, %v5572
        %v5591 = vpack.c.b16 %v5575, %v5573
        %5608 = vmatprep.subr.bf16.mxu0 %v5591
        %5609 = vmatpush1.bf16.msra.mxu0 %v5590
        %5610 = vmatprep.subr.bf16.mxu0 %v5589
        %5611 = vmatpush1.bf16.msra.mxu0 %v5588
        %5612 = vmatprep.subr.bf16.mxu0 %v5587
        %5613 = vmatpush1.bf16.msra.mxu0 %v5586
        %5614 = vmatprep.subr.bf16.mxu0 %v5585
        %5615 = vmatpush1.bf16.msra.mxu0 %v5584
        %5616 = vmatprep.subr.bf16.mxu0 %v5583
        %5617 = vmatpush1.bf16.msra.mxu0 %v5582
        %5618 = vmatprep.subr.bf16.mxu0 %v5581
        %5619 = vmatpush1.bf16.msra.mxu0 %v5580
        %5620 = vmatprep.subr.bf16.mxu0 %v5579
        %5621 = vmatpush1.bf16.msra.mxu0 %v5578
        %5622 = vmatprep.subr.bf16.mxu0 %v5577
        %5623 = vmatpush1.bf16.msra.mxu0 %v5576
        %5624 = vmatprep.subr.bf16.mxu0 0
        %5625 = vmatpush2.bf16.msra.mxu0 0
        %5626 = vmatprep.subr.bf16.mxu0 0
        %5627 = vmatpush2.bf16.msra.mxu0 0
        %5628 = vmatprep.subr.bf16.mxu0 0
        %5629 = vmatpush2.bf16.msra.mxu0 0
        %5630 = vmatprep.subr.bf16.mxu0 0
        %5631 = vmatpush2.bf16.msra.mxu0 0
        %5632 = vmatprep.subr.bf16.mxu0 0
        %5633 = vmatpush2.bf16.msra.mxu0 0
        %5634 = vmatprep.subr.bf16.mxu0 0
        %5635 = vmatpush2.bf16.msra.mxu0 0
        %5636 = vmatprep.subr.bf16.mxu0 0
        %5637 = vmatpush2.bf16.msra.mxu0 0
        %5638 = vmatprep.subr.bf16.mxu0 0
        %5639 = vmatpush2.bf16.msra.mxu0 0
        %5640 = vmatprep.mubr.bf16.mxu0 0
        %5641 = vmatmul.mubr.bf16.gmra.mxu0 %v5507
        %v5642 = vpop.f32.mrf.mxu0
        %v5643 = vadd.f32 0.0, %v5642
        %v5644 = vpop.f32.mrf.mxu0
        %v5645 = vadd.f32 0.0, %v5644
        %v5646 = vpop.f32.mrf.mxu0
        %v5647 = vadd.f32 0.0, %v5646
        %v5648 = vpop.f32.mrf.mxu0
        %v5649 = vadd.f32 0.0, %v5648
        %5650 = vmatprep.mubr.bf16.mxu0 0
        %5651 = vmatmul.mubr.bf16.gmra.mxu0 %v5508
        %v5652 = vpop.f32.mrf.mxu0
        %v5653 = vadd.f32 0.0, %v5652
        %v5654 = vpop.f32.mrf.mxu0
        %v5655 = vadd.f32 0.0, %v5654
        %v5656 = vpop.f32.mrf.mxu0
        %v5657 = vadd.f32 0.0, %v5656
        %v5658 = vpop.f32.mrf.mxu0
        %v5659 = vadd.f32 0.0, %v5658
        %5660 = vmatprep.mubr.bf16.mxu0 0
        %5661 = vmatmul.mubr.bf16.gmra.mxu0 %v5509
        %v5662 = vpop.f32.mrf.mxu0
        %v5663 = vadd.f32 0.0, %v5662
        %v5664 = vpop.f32.mrf.mxu0
        %v5665 = vadd.f32 0.0, %v5664
        %v5666 = vpop.f32.mrf.mxu0
        %v5667 = vadd.f32 0.0, %v5666
        %v5668 = vpop.f32.mrf.mxu0
        %v5669 = vadd.f32 0.0, %v5668
        %5670 = vmatprep.mubr.bf16.mxu0 0
        %5671 = vmatmul.mubr.bf16.gmra.mxu0 %v5510
        %v5672 = vpop.f32.mrf.mxu0
        %v5673 = vadd.f32 0.0, %v5672
        %v5674 = vpop.f32.mrf.mxu0
        %v5675 = vadd.f32 0.0, %v5674
        %v5676 = vpop.f32.mrf.mxu0
        %v5677 = vadd.f32 0.0, %v5676
        %v5678 = vpop.f32.mrf.mxu0
        %v5679 = vadd.f32 0.0, %v5678
        %5680 = vdwg.mxu0
        %v5681 = vadd.f32 %v5483, %v5643
        %v5682 = vadd.f32 %v5484, %v5645
        %v5683 = vadd.f32 %v5485, %v5647
        %v5684 = vadd.f32 %v5486, %v5649
        %v5685 = vadd.f32 %v5487, %v5653
        %v5686 = vadd.f32 %v5488, %v5655
        %v5687 = vadd.f32 %v5489, %v5657
        %v5688 = vadd.f32 %v5490, %v5659
        %v5689 = vadd.f32 %v5491, %v5663
        %v5690 = vadd.f32 %v5492, %v5665
        %v5691 = vadd.f32 %v5493, %v5667
        %v5692 = vadd.f32 %v5494, %v5669
        %v5693 = vadd.f32 %v5495, %v5673
        %v5694 = vadd.f32 %v5496, %v5675
        %v5695 = vadd.f32 %v5497, %v5677
        %v5696 = vadd.f32 %v5498, %v5679
        %v5697 = vld [vmem:[%s5300 + $0x2] sm:$0xff]
        %v5698 = vld [vmem:[%s5300 + $0x12] sm:$0xff]
        %v5699 = vld [vmem:[%s5300 + $0x22] sm:$0xff]
        %v5700 = vld [vmem:[%s5300 + $0x32] sm:$0xff]
        %v5701 = vld [vmem:[%s5300 + $0x42] sm:$0xff]
        %v5702 = vld [vmem:[%s5300 + $0x52] sm:$0xff]
        %v5703 = vld [vmem:[%s5300 + $0x62] sm:$0xff]
        %v5704 = vld [vmem:[%s5300 + $0x72] sm:$0xff]
        %v5705 = vpack.c.bf16 %v5698, %v5697
        %v5706 = vpack.c.bf16 %v5700, %v5699
        %v5707 = vpack.c.bf16 %v5702, %v5701
        %v5708 = vpack.c.bf16 %v5704, %v5703
        %s5709 = scalar_lea.vmem %s4, 3328
        %v5710 = vld [vmem:[%s5709] sm:$0xff]
        %v5711 = vld [vmem:[%s5709 + $0x8] sm:$0xff]
        %v5712 = vld [vmem:[%s5709 + $0x10] sm:$0xff]
        %v5713 = vld [vmem:[%s5709 + $0x18] sm:$0xff]
        %v5714 = vld [vmem:[%s5709 + $0x20] sm:$0xff]
        %v5715 = vld [vmem:[%s5709 + $0x28] sm:$0xff]
        %v5716 = vld [vmem:[%s5709 + $0x30] sm:$0xff]
        %v5717 = vld [vmem:[%s5709 + $0x38] sm:$0xff]
        %v5718 = vld [vmem:[%s5709 + $0x40] sm:$0xff]
        %v5719 = vld [vmem:[%s5709 + $0x48] sm:$0xff]
        %v5720 = vld [vmem:[%s5709 + $0x50] sm:$0xff]
        %v5721 = vld [vmem:[%s5709 + $0x58] sm:$0xff]
        %v5722 = vld [vmem:[%s5709 + $0x60] sm:$0xff]
        %v5723 = vld [vmem:[%s5709 + $0x68] sm:$0xff]
        %v5724 = vld [vmem:[%s5709 + $0x70] sm:$0xff]
        %v5725 = vld [vmem:[%s5709 + $0x78] sm:$0xff]
        %v5742 = vunpack.c.l.b16 %v5710
        %v5743 = vunpack.c.h.b16 %v5710
        %v5744 = vunpack.c.l.b16 %v5711
        %v5745 = vunpack.c.h.b16 %v5711
        %v5746 = vunpack.c.l.b16 %v5712
        %v5747 = vunpack.c.h.b16 %v5712
        %v5748 = vunpack.c.l.b16 %v5713
        %v5749 = vunpack.c.h.b16 %v5713
        %v5750 = vunpack.c.l.b16 %v5714
        %v5751 = vunpack.c.h.b16 %v5714
        %v5752 = vunpack.c.l.b16 %v5715
        %v5753 = vunpack.c.h.b16 %v5715
        %v5754 = vunpack.c.l.b16 %v5716
        %v5755 = vunpack.c.h.b16 %v5716
        %v5756 = vunpack.c.l.b16 %v5717
        %v5757 = vunpack.c.h.b16 %v5717
        %v5758 = vunpack.c.l.b16 %v5718
        %v5759 = vunpack.c.h.b16 %v5718
        %v5760 = vunpack.c.l.b16 %v5719
        %v5761 = vunpack.c.h.b16 %v5719
        %v5762 = vunpack.c.l.b16 %v5720
        %v5763 = vunpack.c.h.b16 %v5720
        %v5764 = vunpack.c.l.b16 %v5721
        %v5765 = vunpack.c.h.b16 %v5721
        %v5766 = vunpack.c.l.b16 %v5722
        %v5767 = vunpack.c.h.b16 %v5722
        %v5768 = vunpack.c.l.b16 %v5723
        %v5769 = vunpack.c.h.b16 %v5723
        %v5770 = vunpack.c.l.b16 %v5724
        %v5771 = vunpack.c.h.b16 %v5724
        %v5772 = vunpack.c.l.b16 %v5725
        %v5773 = vunpack.c.h.b16 %v5725
        %v5774 = vpack.c.b16 %v5744, %v5742
        %v5775 = vpack.c.b16 %v5745, %v5743
        %v5776 = vpack.c.b16 %v5748, %v5746
        %v5777 = vpack.c.b16 %v5749, %v5747
        %v5778 = vpack.c.b16 %v5752, %v5750
        %v5779 = vpack.c.b16 %v5753, %v5751
        %v5780 = vpack.c.b16 %v5756, %v5754
        %v5781 = vpack.c.b16 %v5757, %v5755
        %v5782 = vpack.c.b16 %v5760, %v5758
        %v5783 = vpack.c.b16 %v5761, %v5759
        %v5784 = vpack.c.b16 %v5764, %v5762
        %v5785 = vpack.c.b16 %v5765, %v5763
        %v5786 = vpack.c.b16 %v5768, %v5766
        %v5787 = vpack.c.b16 %v5769, %v5767
        %v5788 = vpack.c.b16 %v5772, %v5770
        %v5789 = vpack.c.b16 %v5773, %v5771
        %5806 = vmatprep.subr.bf16.mxu0 %v5789
        %5807 = vmatpush1.bf16.msra.mxu0 %v5788
        %5808 = vmatprep.subr.bf16.mxu0 %v5787
        %5809 = vmatpush1.bf16.msra.mxu0 %v5786
        %5810 = vmatprep.subr.bf16.mxu0 %v5785
        %5811 = vmatpush1.bf16.msra.mxu0 %v5784
        %5812 = vmatprep.subr.bf16.mxu0 %v5783
        %5813 = vmatpush1.bf16.msra.mxu0 %v5782
        %5814 = vmatprep.subr.bf16.mxu0 %v5781
        %5815 = vmatpush1.bf16.msra.mxu0 %v5780
        %5816 = vmatprep.subr.bf16.mxu0 %v5779
        %5817 = vmatpush1.bf16.msra.mxu0 %v5778
        %5818 = vmatprep.subr.bf16.mxu0 %v5777
        %5819 = vmatpush1.bf16.msra.mxu0 %v5776
        %5820 = vmatprep.subr.bf16.mxu0 %v5775
        %5821 = vmatpush1.bf16.msra.mxu0 %v5774
        %5822 = vmatprep.subr.bf16.mxu0 0
        %5823 = vmatpush2.bf16.msra.mxu0 0
        %5824 = vmatprep.subr.bf16.mxu0 0
        %5825 = vmatpush2.bf16.msra.mxu0 0
        %5826 = vmatprep.subr.bf16.mxu0 0
        %5827 = vmatpush2.bf16.msra.mxu0 0
        %5828 = vmatprep.subr.bf16.mxu0 0
        %5829 = vmatpush2.bf16.msra.mxu0 0
        %5830 = vmatprep.subr.bf16.mxu0 0
        %5831 = vmatpush2.bf16.msra.mxu0 0
        %5832 = vmatprep.subr.bf16.mxu0 0
        %5833 = vmatpush2.bf16.msra.mxu0 0
        %5834 = vmatprep.subr.bf16.mxu0 0
        %5835 = vmatpush2.bf16.msra.mxu0 0
        %5836 = vmatprep.subr.bf16.mxu0 0
        %5837 = vmatpush2.bf16.msra.mxu0 0
        %5838 = vmatprep.mubr.bf16.mxu0 0
        %5839 = vmatmul.mubr.bf16.gmra.mxu0 %v5705
        %v5840 = vpop.f32.mrf.mxu0
        %v5841 = vadd.f32 0.0, %v5840
        %v5842 = vpop.f32.mrf.mxu0
        %v5843 = vadd.f32 0.0, %v5842
        %v5844 = vpop.f32.mrf.mxu0
        %v5845 = vadd.f32 0.0, %v5844
        %v5846 = vpop.f32.mrf.mxu0
        %v5847 = vadd.f32 0.0, %v5846
        %5848 = vmatprep.mubr.bf16.mxu0 0
        %5849 = vmatmul.mubr.bf16.gmra.mxu0 %v5706
        %v5850 = vpop.f32.mrf.mxu0
        %v5851 = vadd.f32 0.0, %v5850
        %v5852 = vpop.f32.mrf.mxu0
        %v5853 = vadd.f32 0.0, %v5852
        %v5854 = vpop.f32.mrf.mxu0
        %v5855 = vadd.f32 0.0, %v5854
        %v5856 = vpop.f32.mrf.mxu0
        %v5857 = vadd.f32 0.0, %v5856
        %5858 = vmatprep.mubr.bf16.mxu0 0
        %5859 = vmatmul.mubr.bf16.gmra.mxu0 %v5707
        %v5860 = vpop.f32.mrf.mxu0
        %v5861 = vadd.f32 0.0, %v5860
        %v5862 = vpop.f32.mrf.mxu0
        %v5863 = vadd.f32 0.0, %v5862
        %v5864 = vpop.f32.mrf.mxu0
        %v5865 = vadd.f32 0.0, %v5864
        %v5866 = vpop.f32.mrf.mxu0
        %v5867 = vadd.f32 0.0, %v5866
        %5868 = vmatprep.mubr.bf16.mxu0 0
        %5869 = vmatmul.mubr.bf16.gmra.mxu0 %v5708
        %v5870 = vpop.f32.mrf.mxu0
        %v5871 = vadd.f32 0.0, %v5870
        %v5872 = vpop.f32.mrf.mxu0
        %v5873 = vadd.f32 0.0, %v5872
        %v5874 = vpop.f32.mrf.mxu0
        %v5875 = vadd.f32 0.0, %v5874
        %v5876 = vpop.f32.mrf.mxu0
        %v5877 = vadd.f32 0.0, %v5876
        %5878 = vdwg.mxu0
        %v5879 = vadd.f32 %v5681, %v5841
        %v5880 = vadd.f32 %v5682, %v5843
        %v5881 = vadd.f32 %v5683, %v5845
        %v5882 = vadd.f32 %v5684, %v5847
        %v5883 = vadd.f32 %v5685, %v5851
        %v5884 = vadd.f32 %v5686, %v5853
        %v5885 = vadd.f32 %v5687, %v5855
        %v5886 = vadd.f32 %v5688, %v5857
        %v5887 = vadd.f32 %v5689, %v5861
        %v5888 = vadd.f32 %v5690, %v5863
        %v5889 = vadd.f32 %v5691, %v5865
        %v5890 = vadd.f32 %v5692, %v5867
        %v5891 = vadd.f32 %v5693, %v5871
        %v5892 = vadd.f32 %v5694, %v5873
        %v5893 = vadd.f32 %v5695, %v5875
        %v5894 = vadd.f32 %v5696, %v5877
        %v5895 = vld [vmem:[%s5] sm:$0x3]
        %v5897 = vlaneseq
        %v5898 = vshrl.u32 %v5897, 7
        %v5899 = vsub.s32 0, %v5898
        %v5900 = vrot.slane %v5895, %v5899
        %v5901 = vlaneseq
        %v5902 = vshrl.u32 %v5901, 7
        %v5903 = vsub.s32 1, %v5902
        %v5904 = vrot.slane %v5895, %v5903
        %v5907 = vadd.f32 %v5879, %v5900
        %v5908 = vadd.f32 %v5880, %v5904
        %v5909 = vadd.f32 %v5881, %v5900
        %v5910 = vadd.f32 %v5882, %v5904
        %v5911 = vadd.f32 %v5883, %v5900
        %v5912 = vadd.f32 %v5884, %v5904
        %v5913 = vadd.f32 %v5885, %v5900
        %v5914 = vadd.f32 %v5886, %v5904
        %v5915 = vadd.f32 %v5887, %v5900
        %v5916 = vadd.f32 %v5888, %v5904
        %v5917 = vadd.f32 %v5889, %v5900
        %v5918 = vadd.f32 %v5890, %v5904
        %v5919 = vadd.f32 %v5891, %v5900
        %v5920 = vadd.f32 %v5892, %v5904
        %v5921 = vadd.f32 %v5893, %v5900
        %v5922 = vadd.f32 %v5894, %v5904
        %v5923 = vmax.f32 %v5907, 0.0
        %v5924 = vmax.f32 %v5908, 0.0
        %v5925 = vmax.f32 %v5909, 0.0
        %v5926 = vmax.f32 %v5910, 0.0
        %v5927 = vmax.f32 %v5911, 0.0
        %v5928 = vmax.f32 %v5912, 0.0
        %v5929 = vmax.f32 %v5913, 0.0
        %v5930 = vmax.f32 %v5914, 0.0
        %v5931 = vmax.f32 %v5915, 0.0
        %v5932 = vmax.f32 %v5916, 0.0
        %v5933 = vmax.f32 %v5917, 0.0
        %v5934 = vmax.f32 %v5918, 0.0
        %v5935 = vmax.f32 %v5919, 0.0
        %v5936 = vmax.f32 %v5920, 0.0
        %v5937 = vmax.f32 %v5921, 0.0
        %v5938 = vmax.f32 %v5922, 0.0
        %v5939 = vld [vmem:[%s421] sm:$0xff]
        %v5940 = vld [vmem:[%s421 + $0x8] sm:$0xff]
        %v5941 = vld [vmem:[%s421 + $0x10] sm:$0xff]
        %v5942 = vld [vmem:[%s421 + $0x18] sm:$0xff]
        %v5943 = vld [vmem:[%s421 + $0x20] sm:$0xff]
        %v5944 = vld [vmem:[%s421 + $0x28] sm:$0xff]
        %v5945 = vld [vmem:[%s421 + $0x30] sm:$0xff]
        %v5946 = vld [vmem:[%s421 + $0x38] sm:$0xff]
        %vm5947 = vcmask 523264
        %5948 = vst.msk [vmem:[%s373] sm:$0xff] %vm5947, %v5939
        %5949 = vst.msk [vmem:[%s373 + $0x10] sm:$0xff] %vm5947, %v5940
        %5950 = vst.msk [vmem:[%s373 + $0x20] sm:$0xff] %vm5947, %v5941
        %5951 = vst.msk [vmem:[%s373 + $0x30] sm:$0xff] %vm5947, %v5942
        %5952 = vst.msk [vmem:[%s373 + $0x40] sm:$0xff] %vm5947, %v5943
        %5953 = vst.msk [vmem:[%s373 + $0x50] sm:$0xff] %vm5947, %v5944
        %5954 = vst.msk [vmem:[%s373 + $0x60] sm:$0xff] %vm5947, %v5945
        %5955 = vst.msk [vmem:[%s373 + $0x70] sm:$0xff] %vm5947, %v5946
        %5972 = vrot.lane.b32.xlu0 %v5923, 64
        %v5973 = vpop.permute.xlu0 %5972
        %5974 = vrot.lane.b32.xlu0 %v5924, 64
        %v5975 = vpop.permute.xlu0 %5974
        %5976 = vrot.lane.b32.xlu0 %v5925, 64
        %v5977 = vpop.permute.xlu0 %5976
        %5978 = vrot.lane.b32.xlu0 %v5926, 64
        %v5979 = vpop.permute.xlu0 %5978
        %5980 = vrot.lane.b32.xlu0 %v5927, 64
        %v5981 = vpop.permute.xlu0 %5980
        %5982 = vrot.lane.b32.xlu0 %v5928, 64
        %v5983 = vpop.permute.xlu0 %5982
        %5984 = vrot.lane.b32.xlu0 %v5929, 64
        %v5985 = vpop.permute.xlu0 %5984
        %5986 = vrot.lane.b32.xlu0 %v5930, 64
        %v5987 = vpop.permute.xlu0 %5986
        %5988 = vrot.lane.b32.xlu0 %v5931, 64
        %v5989 = vpop.permute.xlu0 %5988
        %5990 = vrot.lane.b32.xlu0 %v5932, 64
        %v5991 = vpop.permute.xlu0 %5990
        %5992 = vrot.lane.b32.xlu0 %v5933, 64
        %v5993 = vpop.permute.xlu0 %5992
        %5994 = vrot.lane.b32.xlu0 %v5934, 64
        %v5995 = vpop.permute.xlu0 %5994
        %5996 = vrot.lane.b32.xlu0 %v5935, 64
        %v5997 = vpop.permute.xlu0 %5996
        %5998 = vrot.lane.b32.xlu0 %v5936, 64
        %v5999 = vpop.permute.xlu0 %5998
        %6000 = vrot.lane.b32.xlu0 %v5937, 64
        %v6001 = vpop.permute.xlu0 %6000
        %6002 = vrot.lane.b32.xlu0 %v5938, 64
        %v6003 = vpop.permute.xlu0 %6002
        %v6004 = vsel %vm5947, %v5973, %v5975
        %v6005 = vsel %vm5947, %v5977, %v5979
        %v6006 = vsel %vm5947, %v5981, %v5983
        %v6007 = vsel %vm5947, %v5985, %v5987
        %v6008 = vsel %vm5947, %v5989, %v5991
        %v6009 = vsel %vm5947, %v5993, %v5995
        %v6010 = vsel %vm5947, %v5997, %v5999
        %v6011 = vsel %vm5947, %v6001, %v6003
        %vm6028 = vcmask 1048064
        %6029 = vst.msk [vmem:[%s373] sm:$0xff] %vm6028, %v5973
        %vm6030 = vcmask 785408
        %6031 = vst.msk [vmem:[%s373 + $0x8] sm:$0xff] %vm6030, %v6004
        %6032 = vst.msk [vmem:[%s373 + $0x10] sm:$0xff] %vm6028, %v5977
        %6033 = vst.msk [vmem:[%s373 + $0x18] sm:$0xff] %vm6030, %v6005
        %6034 = vst.msk [vmem:[%s373 + $0x20] sm:$0xff] %vm6028, %v5981
        %6035 = vst.msk [vmem:[%s373 + $0x28] sm:$0xff] %vm6030, %v6006
        %6036 = vst.msk [vmem:[%s373 + $0x30] sm:$0xff] %vm6028, %v5985
        %6037 = vst.msk [vmem:[%s373 + $0x38] sm:$0xff] %vm6030, %v6007
        %6038 = vst.msk [vmem:[%s373 + $0x40] sm:$0xff] %vm6028, %v5989
        %6039 = vst.msk [vmem:[%s373 + $0x48] sm:$0xff] %vm6030, %v6008
        %6040 = vst.msk [vmem:[%s373 + $0x50] sm:$0xff] %vm6028, %v5993
        %6041 = vst.msk [vmem:[%s373 + $0x58] sm:$0xff] %vm6030, %v6009
        %6042 = vst.msk [vmem:[%s373 + $0x60] sm:$0xff] %vm6028, %v5997
        %6043 = vst.msk [vmem:[%s373 + $0x68] sm:$0xff] %vm6030, %v6010
        %6044 = vst.msk [vmem:[%s373 + $0x70] sm:$0xff] %vm6028, %v6001
        %6045 = vst.msk [vmem:[%s373 + $0x78] sm:$0xff] %vm6030, %v6011
        %v6046 = vld [vmem:[%s421] sm:$0xff]
        %v6047 = vld [vmem:[%s421 + $0x8] sm:$0xff]
        %v6048 = vld [vmem:[%s421 + $0x10] sm:$0xff]
        %v6049 = vld [vmem:[%s421 + $0x18] sm:$0xff]
        %v6050 = vld [vmem:[%s421 + $0x20] sm:$0xff]
        %v6051 = vld [vmem:[%s421 + $0x28] sm:$0xff]
        %v6052 = vld [vmem:[%s421 + $0x30] sm:$0xff]
        %v6053 = vld [vmem:[%s421 + $0x38] sm:$0xff]
        %6062 = vrot.lane.b32.xlu0 %v6046, 32
        %v6063 = vpop.permute.xlu0 %6062
        %6064 = vrot.lane.b32.xlu0 %v6047, 32
        %v6065 = vpop.permute.xlu0 %6064
        %6066 = vrot.lane.b32.xlu0 %v6048, 32
        %v6067 = vpop.permute.xlu0 %6066
        %6068 = vrot.lane.b32.xlu0 %v6049, 32
        %v6069 = vpop.permute.xlu0 %6068
        %6070 = vrot.lane.b32.xlu0 %v6050, 32
        %v6071 = vpop.permute.xlu0 %6070
        %6072 = vrot.lane.b32.xlu0 %v6051, 32
        %v6073 = vpop.permute.xlu0 %6072
        %6074 = vrot.lane.b32.xlu0 %v6052, 32
        %v6075 = vpop.permute.xlu0 %6074
        %6076 = vrot.lane.b32.xlu0 %v6053, 32
        %v6077 = vpop.permute.xlu0 %6076
        %vm6086 = vcmask 1048320
        %6087 = vst.msk [vmem:[%s373 + $0x8] sm:$0xff] %vm6086, %v6063
        %6088 = vst.msk [vmem:[%s373 + $0x18] sm:$0xff] %vm6086, %v6065
        %6089 = vst.msk [vmem:[%s373 + $0x28] sm:$0xff] %vm6086, %v6067
        %6090 = vst.msk [vmem:[%s373 + $0x38] sm:$0xff] %vm6086, %v6069
        %6091 = vst.msk [vmem:[%s373 + $0x48] sm:$0xff] %vm6086, %v6071
        %6092 = vst.msk [vmem:[%s373 + $0x58] sm:$0xff] %vm6086, %v6073
        %6093 = vst.msk [vmem:[%s373 + $0x68] sm:$0xff] %vm6086, %v6075
        %6094 = vst.msk [vmem:[%s373 + $0x78] sm:$0xff] %vm6086, %v6077
        %s6095 = sand.u32 %s208, 1
        %s6096 = scalar_lea.sflag [#allocation4], %s6095
        %s6097 = sand.u32 %s208, 1
        %s6098 = smul.addr %s6097, 128
        %s6099 = scalar_lea.vmem [#allocation3], %s6098
        // Predicated region
        $region45: #{mixed_3b_forward.3} parent=43 // pred_check
          %p6100 = pneg %p218
        $region46: #{mixed_3b_forward.3} parent=43 // pred_check_branch
          %6102 = sbr.rel (%p6100) target = $region48
        $region47: #{mixed_3b_forward.3} parent=43 // pred_region
          %s6104 = ssub.s32 2048, 2048
          %6105 = vsyncadd %s6096, %s6104
          %s6106 = smul.addr %s25, 16
          %s6107 = smul.addr %s24, 64
          %s6108 = sadd.s32 %s6106, %s6107
          %s6109 = smul.addr %s6108, 128
          %s6110 = scalar_lea.hbm %s6, %s6109
          %s6111 = sshll.u32 %s6099, 4
          %s6112 = int_to_ptr.vmem [resolvable:$true] %s6111
          %6117 = dma.vmem_to_hbm [thread:$0]  %s6112, 2048, %s6110, %s6096, 256, 256, 16
        $region48: #{mixed_3b_forward.3} parent=43 // pred_fallthru
          _
      $region44: #{mixed_3b_forward.3} parent=5 // pred_fallthru
        _
      %p6118 = scmp.le.s32.totalorder 2, %s15
      // Predicated region
      $region49: #{mixed_3b_forward.3} parent=5 // pred_check
        %p6119 = pneg %p6118
      $region50: #{mixed_3b_forward.3} parent=5 // pred_check_branch
        %6121 = sbr.rel (%p6119) target = $region52
      $region51: #{mixed_3b_forward.3} parent=5 // pred_region
        %s6122 = ssub.s32 %s15, 2
        // Predicated region
        $region53: #{mixed_3b_forward.3} parent=51 // pred_check
          %p6123 = pneg %p224
        $region54: #{mixed_3b_forward.3} parent=51 // pred_check_branch
          %6125 = sbr.rel (%p6123) target = $region56
        $region55: #{mixed_3b_forward.3} parent=51 // pred_region
          %s6126 = sand.u32 %s209, 1
          %s6127 = scalar_lea.sflag [#allocation4], %s6126
          %s6128 = sand.u32 %s209, 1
          %s6129 = smul.addr %s6128, 128
          %s6130 = scalar_lea.vmem [#allocation3], %s6129
          %6131 = dma.done %s6127, 2048
        $region56: #{mixed_3b_forward.3} parent=51 // pred_fallthru
          _
      $region52: #{mixed_3b_forward.3} parent=5 // pred_fallthru
        _
    $region6: #{mixed_3b_forward.3} parent=1 // loop_footer
      %s19 = sadd.s32 1, %s15
    $region7: #{mixed_3b_forward.3} parent=1 // loop_footer_branch
      %14 = sbr.rel target = $region3
    $region8: #{mixed_3b_forward.3} parent=1 // loop_exit
      _
    %6132 = vsyncpa [#allocation4], 1
    %s6133 = scalar_lea.sflag [#allocation4], 1
    %6134 = vsyncpa %s6133, 1

</llo_original>
